<compile_context>
chip_gen: v5e
topology: v5e:2x2
jax: 0.10.0
libtpu: 0.0.40
codegen_flags: <defaults>
</compile_context>

<pallas_src>
import numpy as np
import jax
import jax.numpy as jnp
from jax import lax
from jax.experimental import pallas as pl
from jax.experimental.pallas import tpu as pltpu

EPS = 1e-5


# ----------------------------------------------------------------------------
# XLA-side parameter folding: conv weights -> slab-layout block-Toeplitz matrix
# ----------------------------------------------------------------------------
def _prep_conv(w_oihw, bias, bn, hi, wi, dil):
    """Fold one Conv2d(valid, dilation=(1, dil)) + bias + BN(eval) for slab layout.

    Input slab:  (hi, wi*ci)  with column index = w*ci + c
    Output slab: (ho, wo*co)  with column index = wo*co + c
    Kernel computes:  out = sum_i  in[i:i+ho, :] @ T[i*wi*ci:(i+1)*wi*ci, :]
    """
    co, ci, kh, kw = w_oihw.shape
    ho = hi - kh + 1
    wo = wi - dil * (kw - 1)
    # D[j, w_in, w_out] = 1 where w_in == w_out + j*dil
    D = jnp.stack([jnp.eye(wi, wo, k=-(j * dil), dtype=w_oihw.dtype)
                   for j in range(kw)], axis=0)                      # (kw, wi, wo)
    # T[(i, w_in, ci), (w_out, co)] = sum_j D[j, w_in, w_out] * W[co, ci, i, j]
    T = jnp.einsum('jpq,ocij->ipcqo', D, w_oihw).reshape(kh * wi * ci, wo * co)

    gamma, beta, mean, var = bn
    scale = gamma / jnp.sqrt(var + EPS)
    shift = beta - mean * scale
    aff = jnp.stack([jnp.tile(bias, wo),      # row 0: conv bias  (tiled over wo)
                     jnp.tile(scale, wo),     # row 1: BN scale
                     jnp.tile(shift, wo)],    # row 2: BN shift
                    axis=0)                   # (3, wo*co)
    cfg = dict(kh=kh, ho=ho, wo=wo, wc_in=wi * ci, co=co)
    return T, aff, cfg


# ----------------------------------------------------------------------------
# Fully fused forward pass (one Pallas kernel)
# ----------------------------------------------------------------------------
def net_individual_forward(x_nchw, P):
    N, C, H, W = x_nchw.shape
    # NCHW -> NHWC -> per-sample slab (H, W*C)
    x_slab = jnp.transpose(x_nchw, (0, 2, 3, 1)).reshape(N, H, W * C)

    T1a, A1a, c1a = _prep_conv(P['w_conv1'],  P['b_conv1'],  P['bn1'],  H, W, 1)
    T2a, A2a, c2a = _prep_conv(P['w_conv2'],  P['b_conv2'],  P['bn2'],  c1a['ho'], c1a['wo'], 1)
    T1b, A1b, c1b = _prep_conv(P['w_conv1b'], P['b_conv1b'], P['bn1b'], H, W, 1)
    T2b, A2b, c2b = _prep_conv(P['w_conv2b'], P['b_conv2b'], P['bn2b'], c1b['ho'], c1b['wo'], 1)
    T1c, A1c, c1c = _prep_conv(P['w_conv1c'], P['b_conv1c'], P['bn1c'], H, W, 1)
    T2c, A2c, c2c = _prep_conv(P['w_conv2c'], P['b_conv2c'], P['bn2c'], c1c['ho'], c1c['wo'], 2)

    co = c2a['co']            # 8 channels per branch
    wt = P['lin_w'][0]        # (24,)
    # Fold GAP (mean over Ho*Wo) + Linear slice into one per-branch lane vector.
    Hva = (jnp.tile(wt[0 * co:1 * co], c2a['wo']) / (c2a['ho'] * c2a['wo'])).reshape(1, -1)
    Hvb = (jnp.tile(wt[1 * co:2 * co], c2b['wo']) / (c2b['ho'] * c2b['wo'])).reshape(1, -1)
    Hvc = (jnp.tile(wt[2 * co:3 * co], c2c['wo']) / (c2c['ho'] * c2c['wo'])).reshape(1, -1)
    Hb = P['lin_b'].reshape(1, 1)

    def kernel(x_ref,
               t1a, a1a, t2a, a2a,
               t1b, a1b, t2b, a2b,
               t1c, a1c, t2c, a2c,
               hva, hvb, hvc, hb,
               o_ref, s1a, s1b, s1c):
        # One conv layer: KH matmuls of row-shifted slabs against Toeplitz blocks,
        # then bias + ReLU + eval-mode BatchNorm (all on the f32 accumulator).
        def conv(read, t_ref, aff_ref, cfg):
            kh, ho, wc = cfg['kh'], cfg['ho'], cfg['wc_in']
            acc = jnp.dot(read(0, ho), t_ref[0:wc, :],
                          preferred_element_type=jnp.float32)
            for i in range(1, kh):
                acc = acc + jnp.dot(read(i, ho), t_ref[i * wc:(i + 1) * wc, :],
                                    preferred_element_type=jnp.float32)
            acc = acc + aff_ref[0:1, :]          # conv bias
            acc = jnp.maximum(acc, 0.0)          # ReLU
            return acc * aff_ref[1:2, :] + aff_ref[2:3, :]   # BatchNorm (eval)

        read_x = lambda i, ho: x_ref[0, i:i + ho, :]

        # First conv of each branch -> VMEM scratch (slab layout), second conv
        # reads row-shifted slices of that scratch.
        s1a[...] = conv(read_x, t1a, a1a, c1a)
        s1b[...] = conv(read_x, t1b, a1b, c1b)
        s1c[...] = conv(read_x, t1c, a1c, c1c)
        h2a = conv(lambda i, ho: s1a[i:i + ho, :], t2a, a2a, c2a)
        h2b = conv(lambda i, ho: s1b[i:i + ho, :], t2b, a2b, c2b)
        h2c = conv(lambda i, ho: s1c[i:i + ho, :], t2c, a2c, c2c)

        # GAP + Linear folded into the head vectors: full reductions per branch.
        def gsum(v):
            return jnp.sum(jnp.sum(v, axis=1, keepdims=True), axis=0, keepdims=True)

        logit = (gsum(h2a * hva[...]) + gsum(h2b * hvb[...])
                 + gsum(h2c * hvc[...]) + hb[...])                 # (1, 1)
        o_ref[0] = 1.0 / (1.0 + jnp.exp(-logit))                   # sigmoid

    consts = (T1a, A1a, T2a, A2a, T1b, A1b, T2b, A2b, T1c, A1c, T2c, A2c,
              Hva, Hvb, Hvc, Hb)
    in_specs = ([pl.BlockSpec((1, H, W * C), lambda n: (n, 0, 0))] +
                [pl.BlockSpec(a.shape, lambda n: (0, 0)) for a in consts])

    out = pl.pallas_call(
        kernel,
        out_shape=jax.ShapeDtypeStruct((N, 1, 1), jnp.float32),
        grid=(N,),
        in_specs=in_specs,
        out_specs=pl.BlockSpec((1, 1, 1), lambda n: (n, 0, 0)),
        scratch_shapes=[
            pltpu.VMEM((c1a['ho'], c1a['wo'] * co), jnp.float32),
            pltpu.VMEM((c1b['ho'], c1b['wo'] * co), jnp.float32),
            pltpu.VMEM((c1c['ho'], c1c['wo'] * co), jnp.float32),
        ],
        compiler_params=pltpu.CompilerParams(
            dimension_semantics=("parallel",),       # batch split across TCs on v7x
            vmem_limit_bytes=32 * 1024 * 1024),
    )(x_slab, *consts)

    return out.reshape(N, 1)


# ----------------------------------------------------------------------------
# Deterministic synthetic parameters (shapes from NetConv/NetIndividual __init__)
# ----------------------------------------------------------------------------
def init_params(key, C=19):
    keys = iter(jax.random.split(key, 48))

    def nrm(shape, scale):
        return scale * jax.random.normal(next(keys), shape, jnp.float32)

    def bn_params():
        gamma = 1.0 + 0.1 * jax.random.normal(next(keys), (8,), jnp.float32)
        beta = 0.1 * jax.random.normal(next(keys), (8,), jnp.float32)
        mean = 0.1 * jax.random.normal(next(keys), (8,), jnp.float32)
        var = jax.random.uniform(next(keys), (8,), jnp.float32, 0.5, 1.5)
        return (gamma, beta, mean, var)

    P = {}
    P['w_conv1'],  P['b_conv1']  = nrm((8, C, 5, 10), 0.05), nrm((8,), 0.05)
    P['w_conv2'],  P['b_conv2']  = nrm((8, 8, 5, 5),  0.05), nrm((8,), 0.05)
    P['w_conv1b'], P['b_conv1b'] = nrm((8, C, 5, 5),  0.05), nrm((8,), 0.05)
    P['w_conv2b'], P['b_conv2b'] = nrm((8, 8, 5, 10), 0.05), nrm((8,), 0.05)
    P['w_conv1c'], P['b_conv1c'] = nrm((8, C, 5, 1),  0.05), nrm((8,), 0.05)
    P['w_conv2c'], P['b_conv2c'] = nrm((8, 8, 5, 10), 0.05), nrm((8,), 0.05)
    P['bn1'], P['bn2'] = bn_params(), bn_params()
    P['bn1b'], P['bn2b'] = bn_params(), bn_params()
    P['bn1c'], P['bn2c'] = bn_params(), bn_params()
    P['lin_w'] = nrm((1, 24), 0.3)
    P['lin_b'] = nrm((1,), 0.1)
    return P


# ----------------------------------------------------------------------------
# Pure-JAX reference (mirrors the PyTorch forward with eval-mode BatchNorm)
# ----------------------------------------------------------------------------
def reference_forward(x_nchw, P):
    def conv(x, w, b, dil):
        y = lax.conv_general_dilated(
            x, w, window_strides=(1, 1), padding='VALID',
            rhs_dilation=(1, dil),
            dimension_numbers=('NCHW', 'OIHW', 'NCHW'))
        return y + b[None, :, None, None]

    def bn(x, p):
        gamma, beta, mean, var = p
        scale = gamma / jnp.sqrt(var + EPS)
        shift = beta - mean * scale
        return x * scale[None, :, None, None] + shift[None, :, None, None]

    relu = jax.nn.relu
    x1 = bn(relu(conv(x_nchw, P['w_conv1'], P['b_conv1'], 1)), P['bn1'])
    x1 = bn(relu(conv(x1, P['w_conv2'], P['b_conv2'], 1)), P['bn2'])
    x2 = bn(relu(conv(x_nchw, P['w_conv1b'], P['b_conv1b'], 1)), P['bn1b'])
    x2 = bn(relu(conv(x2, P['w_conv2b'], P['b_conv2b'], 1)), P['bn2b'])
    x3 = bn(relu(conv(x_nchw, P['w_conv1c'], P['b_conv1c'], 1)), P['bn1c'])
    x3 = bn(relu(conv(x3, P['w_conv2c'], P['b_conv2c'], 2)), P['bn2c'])
    f1, f2, f3 = (t.mean(axis=(2, 3)) for t in (x1, x2, x3))
    feats = jnp.concatenate([f1, f2, f3], axis=1)            # (N, 24)
    logit = feats @ jnp.transpose(P['lin_w']) + P['lin_b'][None, :]
    return jax.nn.sigmoid(logit)


# ----------------------------------------------------------------------------
if __name__ == "__main__":
    key = jax.random.PRNGKey(0)
    k_x, k_p = jax.random.split(key)
    P = init_params(k_p, C=19)

    # NCHW input like PyTorch; W must be >= 19 for the dilated (5, 10) conv2c.
    x = jax.random.normal(k_x, (2, 19, 16, 24), jnp.float32)

    out = jax.jit(net_individual_forward)(x, P)
    out = jax.block_until_ready(out)

    ref = jax.block_until_ready(reference_forward(x, P))
    assert out.shape == (2, 1), out.shape
    np.testing.assert_allclose(np.asarray(out), np.asarray(ref), atol=2e-2, rtol=0)

    # TODO(synk): BatchNorm is eval-mode only (running stats); train()-mode batch
    # statistics are not modeled.
    print("KERNEL_OK")
</pallas_src>

<mosaic_0001>
module attributes {stable_mosaic.version = 11 : i64} {
  func.func @kernel(%arg0: i32, %arg1: memref<1x16x456xf32, #tpu.memory_space<vmem>>, %arg2: memref<2280x120xf32, #tpu.memory_space<vmem>>, %arg3: memref<3x120xf32, #tpu.memory_space<vmem>>, %arg4: memref<600x88xf32, #tpu.memory_space<vmem>>, %arg5: memref<3x88xf32, #tpu.memory_space<vmem>>, %arg6: memref<2280x160xf32, #tpu.memory_space<vmem>>, %arg7: memref<3x160xf32, #tpu.memory_space<vmem>>, %arg8: memref<800x88xf32, #tpu.memory_space<vmem>>, %arg9: memref<3x88xf32, #tpu.memory_space<vmem>>, %arg10: memref<2280x192xf32, #tpu.memory_space<vmem>>, %arg11: memref<3x192xf32, #tpu.memory_space<vmem>>, %arg12: memref<960x48xf32, #tpu.memory_space<vmem>>, %arg13: memref<3x48xf32, #tpu.memory_space<vmem>>, %arg14: memref<1x88xf32, #tpu.memory_space<vmem>>, %arg15: memref<1x88xf32, #tpu.memory_space<vmem>>, %arg16: memref<1x48xf32, #tpu.memory_space<vmem>>, %arg17: memref<1x1xf32, #tpu.memory_space<vmem>>, %arg18: memref<1x1x1xf32, #tpu.memory_space<vmem>>, %arg19: memref<12x120xf32, #tpu.memory_space<vmem>>, %arg20: memref<12x160xf32, #tpu.memory_space<vmem>>, %arg21: memref<12x192xf32, #tpu.memory_space<vmem>>) attributes {dimension_semantics = [#tpu.dimension_semantics<parallel>], iteration_bounds = array<i64: 2>, scalar_prefetch = 0 : i64, scratch_operands = 3 : i64, tpu.core_type = #tpu.core_type<tc>, window_params = [{transform_indices = @transform_0, window_bounds = array<i64: 1, 16, 456>}, {pipeline_mode = #tpu.pipeline_mode<synchronous>, transform_indices = @transform_1, window_bounds = array<i64: 2280, 120>}, {pipeline_mode = #tpu.pipeline_mode<synchronous>, transform_indices = @transform_2, window_bounds = array<i64: 3, 120>}, {pipeline_mode = #tpu.pipeline_mode<synchronous>, transform_indices = @transform_3, window_bounds = array<i64: 600, 88>}, {pipeline_mode = #tpu.pipeline_mode<synchronous>, transform_indices = @transform_4, window_bounds = array<i64: 3, 88>}, {pipeline_mode = #tpu.pipeline_mode<synchronous>, transform_indices = @transform_5, window_bounds = array<i64: 2280, 160>}, {pipeline_mode = #tpu.pipeline_mode<synchronous>, transform_indices = @transform_6, window_bounds = array<i64: 3, 160>}, {pipeline_mode = #tpu.pipeline_mode<synchronous>, transform_indices = @transform_7, window_bounds = array<i64: 800, 88>}, {pipeline_mode = #tpu.pipeline_mode<synchronous>, transform_indices = @transform_8, window_bounds = array<i64: 3, 88>}, {pipeline_mode = #tpu.pipeline_mode<synchronous>, transform_indices = @transform_9, window_bounds = array<i64: 2280, 192>}, {pipeline_mode = #tpu.pipeline_mode<synchronous>, transform_indices = @transform_10, window_bounds = array<i64: 3, 192>}, {pipeline_mode = #tpu.pipeline_mode<synchronous>, transform_indices = @transform_11, window_bounds = array<i64: 960, 48>}, {pipeline_mode = #tpu.pipeline_mode<synchronous>, transform_indices = @transform_12, window_bounds = array<i64: 3, 48>}, {pipeline_mode = #tpu.pipeline_mode<synchronous>, transform_indices = @transform_13, window_bounds = array<i64: 1, 88>}, {pipeline_mode = #tpu.pipeline_mode<synchronous>, transform_indices = @transform_14, window_bounds = array<i64: 1, 88>}, {pipeline_mode = #tpu.pipeline_mode<synchronous>, transform_indices = @transform_15, window_bounds = array<i64: 1, 48>}, {pipeline_mode = #tpu.pipeline_mode<synchronous>, transform_indices = @transform_16, window_bounds = array<i64: 1, 1>}, {transform_indices = @transform_17, window_bounds = array<i64: 1, 1, 1>}]} {
    %c0 = arith.constant 0 : index
    %c0_0 = arith.constant 0 : index
    %c0_1 = arith.constant 0 : index
    %0 = vector.load %arg1[%c0, %c0_0, %c0_1] : memref<1x16x456xf32, #tpu.memory_space<vmem>>, vector<1x12x456xf32>
    %1 = vector.shape_cast %0 : vector<1x12x456xf32> to vector<12x456xf32>
    %c0_2 = arith.constant 0 : index
    %c0_3 = arith.constant 0 : index
    %2 = vector.load %arg2[%c0_2, %c0_3] : memref<2280x120xf32, #tpu.memory_space<vmem>>, vector<456x120xf32>
    %cst = arith.constant dense<0.000000e+00> : vector<12x120xf32>
    %3 = tpu.matmul %1, %2, %cst {dimension_numbers = #tpu.dot_dimension_numbers<[1], [0], [0], [1], [0, 0, 1, 1], [], []>} : vector<12x456xf32>, vector<456x120xf32>, vector<12x120xf32> -> vector<12x120xf32>
    %c0_4 = arith.constant 0 : index
    %c1 = arith.constant 1 : index
    %c0_5 = arith.constant 0 : index
    %4 = vector.load %arg1[%c0_4, %c1, %c0_5] : memref<1x16x456xf32, #tpu.memory_space<vmem>>, vector<1x12x456xf32>
    %5 = vector.shape_cast %4 : vector<1x12x456xf32> to vector<12x456xf32>
    %c456 = arith.constant 456 : index
    %c0_6 = arith.constant 0 : index
    %6 = vector.load %arg2[%c456, %c0_6] : memref<2280x120xf32, #tpu.memory_space<vmem>>, vector<456x120xf32>
    %cst_7 = arith.constant dense<0.000000e+00> : vector<12x120xf32>
    %7 = tpu.matmul %5, %6, %cst_7 {dimension_numbers = #tpu.dot_dimension_numbers<[1], [0], [0], [1], [0, 0, 1, 1], [], []>} : vector<12x456xf32>, vector<456x120xf32>, vector<12x120xf32> -> vector<12x120xf32>
    %8 = arith.addf %3, %7 : vector<12x120xf32>
    %c0_8 = arith.constant 0 : index
    %c2 = arith.constant 2 : index
    %c0_9 = arith.constant 0 : index
    %9 = vector.load %arg1[%c0_8, %c2, %c0_9] : memref<1x16x456xf32, #tpu.memory_space<vmem>>, vector<1x12x456xf32>
    %10 = vector.shape_cast %9 : vector<1x12x456xf32> to vector<12x456xf32>
    %c912 = arith.constant 912 : index
    %c0_10 = arith.constant 0 : index
    %11 = vector.load %arg2[%c912, %c0_10] : memref<2280x120xf32, #tpu.memory_space<vmem>>, vector<456x120xf32>
    %cst_11 = arith.constant dense<0.000000e+00> : vector<12x120xf32>
    %12 = tpu.matmul %10, %11, %cst_11 {dimension_numbers = #tpu.dot_dimension_numbers<[1], [0], [0], [1], [0, 0, 1, 1], [], []>} : vector<12x456xf32>, vector<456x120xf32>, vector<12x120xf32> -> vector<12x120xf32>
    %13 = arith.addf %8, %12 : vector<12x120xf32>
    %c0_12 = arith.constant 0 : index
    %c3 = arith.constant 3 : index
    %c0_13 = arith.constant 0 : index
    %14 = vector.load %arg1[%c0_12, %c3, %c0_13] : memref<1x16x456xf32, #tpu.memory_space<vmem>>, vector<1x12x456xf32>
    %15 = vector.shape_cast %14 : vector<1x12x456xf32> to vector<12x456xf32>
    %c1368 = arith.constant 1368 : index
    %c0_14 = arith.constant 0 : index
    %16 = vector.load %arg2[%c1368, %c0_14] : memref<2280x120xf32, #tpu.memory_space<vmem>>, vector<456x120xf32>
    %cst_15 = arith.constant dense<0.000000e+00> : vector<12x120xf32>
    %17 = tpu.matmul %15, %16, %cst_15 {dimension_numbers = #tpu.dot_dimension_numbers<[1], [0], [0], [1], [0, 0, 1, 1], [], []>} : vector<12x456xf32>, vector<456x120xf32>, vector<12x120xf32> -> vector<12x120xf32>
    %18 = arith.addf %13, %17 : vector<12x120xf32>
    %c0_16 = arith.constant 0 : index
    %c4 = arith.constant 4 : index
    %c0_17 = arith.constant 0 : index
    %19 = vector.load %arg1[%c0_16, %c4, %c0_17] : memref<1x16x456xf32, #tpu.memory_space<vmem>>, vector<1x12x456xf32>
    %20 = vector.shape_cast %19 : vector<1x12x456xf32> to vector<12x456xf32>
    %c1824 = arith.constant 1824 : index
    %c0_18 = arith.constant 0 : index
    %21 = vector.load %arg2[%c1824, %c0_18] : memref<2280x120xf32, #tpu.memory_space<vmem>>, vector<456x120xf32>
    %cst_19 = arith.constant dense<0.000000e+00> : vector<12x120xf32>
    %22 = tpu.matmul %20, %21, %cst_19 {dimension_numbers = #tpu.dot_dimension_numbers<[1], [0], [0], [1], [0, 0, 1, 1], [], []>} : vector<12x456xf32>, vector<456x120xf32>, vector<12x120xf32> -> vector<12x120xf32>
    %23 = arith.addf %18, %22 : vector<12x120xf32>
    %c0_20 = arith.constant 0 : index
    %c0_21 = arith.constant 0 : index
    %24 = vector.load %arg3[%c0_20, %c0_21] : memref<3x120xf32, #tpu.memory_space<vmem>>, vector<1x120xf32>
    %25 = vector.broadcast %24 : vector<1x120xf32> to vector<12x120xf32>
    %26 = arith.addf %23, %25 : vector<12x120xf32>
    %cst_22 = arith.constant 0.000000e+00 : f32
    %27 = vector.broadcast %cst_22 : f32 to vector<12x120xf32>
    %28 = arith.maximumf %26, %27 : vector<12x120xf32>
    %c1_23 = arith.constant 1 : index
    %c0_24 = arith.constant 0 : index
    %29 = vector.load %arg3[%c1_23, %c0_24] : memref<3x120xf32, #tpu.memory_space<vmem>>, vector<1x120xf32>
    %30 = vector.broadcast %29 : vector<1x120xf32> to vector<12x120xf32>
    %31 = arith.mulf %28, %30 : vector<12x120xf32>
    %c2_25 = arith.constant 2 : index
    %c0_26 = arith.constant 0 : index
    %32 = vector.load %arg3[%c2_25, %c0_26] : memref<3x120xf32, #tpu.memory_space<vmem>>, vector<1x120xf32>
    %33 = vector.broadcast %32 : vector<1x120xf32> to vector<12x120xf32>
    %34 = arith.addf %31, %33 : vector<12x120xf32>
    %c0_27 = arith.constant 0 : index
    %c0_28 = arith.constant 0 : index
    %35 = vector.load %arg19[%c0_27, %c0_28] : memref<12x120xf32, #tpu.memory_space<vmem>>, vector<12x120xf32>
    tpu.vector_store %arg19[%c0_27, %c0_28], %34 {strides = array<i32>} : memref<12x120xf32, #tpu.memory_space<vmem>>, vector<12x120xf32>,
    %c0_29 = arith.constant 0 : index
    %c0_30 = arith.constant 0 : index
    %c0_31 = arith.constant 0 : index
    %36 = vector.load %arg1[%c0_29, %c0_30, %c0_31] : memref<1x16x456xf32, #tpu.memory_space<vmem>>, vector<1x12x456xf32>
    %37 = vector.shape_cast %36 : vector<1x12x456xf32> to vector<12x456xf32>
    %c0_32 = arith.constant 0 : index
    %c0_33 = arith.constant 0 : index
    %38 = vector.load %arg6[%c0_32, %c0_33] : memref<2280x160xf32, #tpu.memory_space<vmem>>, vector<456x160xf32>
    %cst_34 = arith.constant dense<0.000000e+00> : vector<12x160xf32>
    %39 = tpu.matmul %37, %38, %cst_34 {dimension_numbers = #tpu.dot_dimension_numbers<[1], [0], [0], [1], [0, 0, 1, 1], [], []>} : vector<12x456xf32>, vector<456x160xf32>, vector<12x160xf32> -> vector<12x160xf32>
    %c0_35 = arith.constant 0 : index
    %c1_36 = arith.constant 1 : index
    %c0_37 = arith.constant 0 : index
    %40 = vector.load %arg1[%c0_35, %c1_36, %c0_37] : memref<1x16x456xf32, #tpu.memory_space<vmem>>, vector<1x12x456xf32>
    %41 = vector.shape_cast %40 : vector<1x12x456xf32> to vector<12x456xf32>
    %c456_38 = arith.constant 456 : index
    %c0_39 = arith.constant 0 : index
    %42 = vector.load %arg6[%c456_38, %c0_39] : memref<2280x160xf32, #tpu.memory_space<vmem>>, vector<456x160xf32>
    %cst_40 = arith.constant dense<0.000000e+00> : vector<12x160xf32>
    %43 = tpu.matmul %41, %42, %cst_40 {dimension_numbers = #tpu.dot_dimension_numbers<[1], [0], [0], [1], [0, 0, 1, 1], [], []>} : vector<12x456xf32>, vector<456x160xf32>, vector<12x160xf32> -> vector<12x160xf32>
    %44 = arith.addf %39, %43 : vector<12x160xf32>
    %c0_41 = arith.constant 0 : index
    %c2_42 = arith.constant 2 : index
    %c0_43 = arith.constant 0 : index
    %45 = vector.load %arg1[%c0_41, %c2_42, %c0_43] : memref<1x16x456xf32, #tpu.memory_space<vmem>>, vector<1x12x456xf32>
    %46 = vector.shape_cast %45 : vector<1x12x456xf32> to vector<12x456xf32>
    %c912_44 = arith.constant 912 : index
    %c0_45 = arith.constant 0 : index
    %47 = vector.load %arg6[%c912_44, %c0_45] : memref<2280x160xf32, #tpu.memory_space<vmem>>, vector<456x160xf32>
    %cst_46 = arith.constant dense<0.000000e+00> : vector<12x160xf32>
    %48 = tpu.matmul %46, %47, %cst_46 {dimension_numbers = #tpu.dot_dimension_numbers<[1], [0], [0], [1], [0, 0, 1, 1], [], []>} : vector<12x456xf32>, vector<456x160xf32>, vector<12x160xf32> -> vector<12x160xf32>
    %49 = arith.addf %44, %48 : vector<12x160xf32>
    %c0_47 = arith.constant 0 : index
    %c3_48 = arith.constant 3 : index
    %c0_49 = arith.constant 0 : index
    %50 = vector.load %arg1[%c0_47, %c3_48, %c0_49] : memref<1x16x456xf32, #tpu.memory_space<vmem>>, vector<1x12x456xf32>
    %51 = vector.shape_cast %50 : vector<1x12x456xf32> to vector<12x456xf32>
    %c1368_50 = arith.constant 1368 : index
    %c0_51 = arith.constant 0 : index
    %52 = vector.load %arg6[%c1368_50, %c0_51] : memref<2280x160xf32, #tpu.memory_space<vmem>>, vector<456x160xf32>
    %cst_52 = arith.constant dense<0.000000e+00> : vector<12x160xf32>
    %53 = tpu.matmul %51, %52, %cst_52 {dimension_numbers = #tpu.dot_dimension_numbers<[1], [0], [0], [1], [0, 0, 1, 1], [], []>} : vector<12x456xf32>, vector<456x160xf32>, vector<12x160xf32> -> vector<12x160xf32>
    %54 = arith.addf %49, %53 : vector<12x160xf32>
    %c0_53 = arith.constant 0 : index
    %c4_54 = arith.constant 4 : index
    %c0_55 = arith.constant 0 : index
    %55 = vector.load %arg1[%c0_53, %c4_54, %c0_55] : memref<1x16x456xf32, #tpu.memory_space<vmem>>, vector<1x12x456xf32>
    %56 = vector.shape_cast %55 : vector<1x12x456xf32> to vector<12x456xf32>
    %c1824_56 = arith.constant 1824 : index
    %c0_57 = arith.constant 0 : index
    %57 = vector.load %arg6[%c1824_56, %c0_57] : memref<2280x160xf32, #tpu.memory_space<vmem>>, vector<456x160xf32>
    %cst_58 = arith.constant dense<0.000000e+00> : vector<12x160xf32>
    %58 = tpu.matmul %56, %57, %cst_58 {dimension_numbers = #tpu.dot_dimension_numbers<[1], [0], [0], [1], [0, 0, 1, 1], [], []>} : vector<12x456xf32>, vector<456x160xf32>, vector<12x160xf32> -> vector<12x160xf32>
    %59 = arith.addf %54, %58 : vector<12x160xf32>
    %c0_59 = arith.constant 0 : index
    %c0_60 = arith.constant 0 : index
    %60 = vector.load %arg7[%c0_59, %c0_60] : memref<3x160xf32, #tpu.memory_space<vmem>>, vector<1x160xf32>
    %61 = vector.broadcast %60 : vector<1x160xf32> to vector<12x160xf32>
    %62 = arith.addf %59, %61 : vector<12x160xf32>
    %cst_61 = arith.constant 0.000000e+00 : f32
    %63 = vector.broadcast %cst_61 : f32 to vector<12x160xf32>
    %64 = arith.maximumf %62, %63 : vector<12x160xf32>
    %c1_62 = arith.constant 1 : index
    %c0_63 = arith.constant 0 : index
    %65 = vector.load %arg7[%c1_62, %c0_63] : memref<3x160xf32, #tpu.memory_space<vmem>>, vector<1x160xf32>
    %66 = vector.broadcast %65 : vector<1x160xf32> to vector<12x160xf32>
    %67 = arith.mulf %64, %66 : vector<12x160xf32>
    %c2_64 = arith.constant 2 : index
    %c0_65 = arith.constant 0 : index
    %68 = vector.load %arg7[%c2_64, %c0_65] : memref<3x160xf32, #tpu.memory_space<vmem>>, vector<1x160xf32>
    %69 = vector.broadcast %68 : vector<1x160xf32> to vector<12x160xf32>
    %70 = arith.addf %67, %69 : vector<12x160xf32>
    %c0_66 = arith.constant 0 : index
    %c0_67 = arith.constant 0 : index
    %71 = vector.load %arg20[%c0_66, %c0_67] : memref<12x160xf32, #tpu.memory_space<vmem>>, vector<12x160xf32>
    tpu.vector_store %arg20[%c0_66, %c0_67], %70 {strides = array<i32>} : memref<12x160xf32, #tpu.memory_space<vmem>>, vector<12x160xf32>,
    %c0_68 = arith.constant 0 : index
    %c0_69 = arith.constant 0 : index
    %c0_70 = arith.constant 0 : index
    %72 = vector.load %arg1[%c0_68, %c0_69, %c0_70] : memref<1x16x456xf32, #tpu.memory_space<vmem>>, vector<1x12x456xf32>
    %73 = vector.shape_cast %72 : vector<1x12x456xf32> to vector<12x456xf32>
    %c0_71 = arith.constant 0 : index
    %c0_72 = arith.constant 0 : index
    %74 = vector.load %arg10[%c0_71, %c0_72] : memref<2280x192xf32, #tpu.memory_space<vmem>>, vector<456x192xf32>
    %cst_73 = arith.constant dense<0.000000e+00> : vector<12x192xf32>
    %75 = tpu.matmul %73, %74, %cst_73 {dimension_numbers = #tpu.dot_dimension_numbers<[1], [0], [0], [1], [0, 0, 1, 1], [], []>} : vector<12x456xf32>, vector<456x192xf32>, vector<12x192xf32> -> vector<12x192xf32>
    %c0_74 = arith.constant 0 : index
    %c1_75 = arith.constant 1 : index
    %c0_76 = arith.constant 0 : index
    %76 = vector.load %arg1[%c0_74, %c1_75, %c0_76] : memref<1x16x456xf32, #tpu.memory_space<vmem>>, vector<1x12x456xf32>
    %77 = vector.shape_cast %76 : vector<1x12x456xf32> to vector<12x456xf32>
    %c456_77 = arith.constant 456 : index
    %c0_78 = arith.constant 0 : index
    %78 = vector.load %arg10[%c456_77, %c0_78] : memref<2280x192xf32, #tpu.memory_space<vmem>>, vector<456x192xf32>
    %cst_79 = arith.constant dense<0.000000e+00> : vector<12x192xf32>
    %79 = tpu.matmul %77, %78, %cst_79 {dimension_numbers = #tpu.dot_dimension_numbers<[1], [0], [0], [1], [0, 0, 1, 1], [], []>} : vector<12x456xf32>, vector<456x192xf32>, vector<12x192xf32> -> vector<12x192xf32>
    %80 = arith.addf %75, %79 : vector<12x192xf32>
    %c0_80 = arith.constant 0 : index
    %c2_81 = arith.constant 2 : index
    %c0_82 = arith.constant 0 : index
    %81 = vector.load %arg1[%c0_80, %c2_81, %c0_82] : memref<1x16x456xf32, #tpu.memory_space<vmem>>, vector<1x12x456xf32>
    %82 = vector.shape_cast %81 : vector<1x12x456xf32> to vector<12x456xf32>
    %c912_83 = arith.constant 912 : index
    %c0_84 = arith.constant 0 : index
    %83 = vector.load %arg10[%c912_83, %c0_84] : memref<2280x192xf32, #tpu.memory_space<vmem>>, vector<456x192xf32>
    %cst_85 = arith.constant dense<0.000000e+00> : vector<12x192xf32>
    %84 = tpu.matmul %82, %83, %cst_85 {dimension_numbers = #tpu.dot_dimension_numbers<[1], [0], [0], [1], [0, 0, 1, 1], [], []>} : vector<12x456xf32>, vector<456x192xf32>, vector<12x192xf32> -> vector<12x192xf32>
    %85 = arith.addf %80, %84 : vector<12x192xf32>
    %c0_86 = arith.constant 0 : index
    %c3_87 = arith.constant 3 : index
    %c0_88 = arith.constant 0 : index
    %86 = vector.load %arg1[%c0_86, %c3_87, %c0_88] : memref<1x16x456xf32, #tpu.memory_space<vmem>>, vector<1x12x456xf32>
    %87 = vector.shape_cast %86 : vector<1x12x456xf32> to vector<12x456xf32>
    %c1368_89 = arith.constant 1368 : index
    %c0_90 = arith.constant 0 : index
    %88 = vector.load %arg10[%c1368_89, %c0_90] : memref<2280x192xf32, #tpu.memory_space<vmem>>, vector<456x192xf32>
    %cst_91 = arith.constant dense<0.000000e+00> : vector<12x192xf32>
    %89 = tpu.matmul %87, %88, %cst_91 {dimension_numbers = #tpu.dot_dimension_numbers<[1], [0], [0], [1], [0, 0, 1, 1], [], []>} : vector<12x456xf32>, vector<456x192xf32>, vector<12x192xf32> -> vector<12x192xf32>
    %90 = arith.addf %85, %89 : vector<12x192xf32>
    %c0_92 = arith.constant 0 : index
    %c4_93 = arith.constant 4 : index
    %c0_94 = arith.constant 0 : index
    %91 = vector.load %arg1[%c0_92, %c4_93, %c0_94] : memref<1x16x456xf32, #tpu.memory_space<vmem>>, vector<1x12x456xf32>
    %92 = vector.shape_cast %91 : vector<1x12x456xf32> to vector<12x456xf32>
    %c1824_95 = arith.constant 1824 : index
    %c0_96 = arith.constant 0 : index
    %93 = vector.load %arg10[%c1824_95, %c0_96] : memref<2280x192xf32, #tpu.memory_space<vmem>>, vector<456x192xf32>
    %cst_97 = arith.constant dense<0.000000e+00> : vector<12x192xf32>
    %94 = tpu.matmul %92, %93, %cst_97 {dimension_numbers = #tpu.dot_dimension_numbers<[1], [0], [0], [1], [0, 0, 1, 1], [], []>} : vector<12x456xf32>, vector<456x192xf32>, vector<12x192xf32> -> vector<12x192xf32>
    %95 = arith.addf %90, %94 : vector<12x192xf32>
    %c0_98 = arith.constant 0 : index
    %c0_99 = arith.constant 0 : index
    %96 = vector.load %arg11[%c0_98, %c0_99] : memref<3x192xf32, #tpu.memory_space<vmem>>, vector<1x192xf32>
    %97 = vector.broadcast %96 : vector<1x192xf32> to vector<12x192xf32>
    %98 = arith.addf %95, %97 : vector<12x192xf32>
    %cst_100 = arith.constant 0.000000e+00 : f32
    %99 = vector.broadcast %cst_100 : f32 to vector<12x192xf32>
    %100 = arith.maximumf %98, %99 : vector<12x192xf32>
    %c1_101 = arith.constant 1 : index
    %c0_102 = arith.constant 0 : index
    %101 = vector.load %arg11[%c1_101, %c0_102] : memref<3x192xf32, #tpu.memory_space<vmem>>, vector<1x192xf32>
    %102 = vector.broadcast %101 : vector<1x192xf32> to vector<12x192xf32>
    %103 = arith.mulf %100, %102 : vector<12x192xf32>
    %c2_103 = arith.constant 2 : index
    %c0_104 = arith.constant 0 : index
    %104 = vector.load %arg11[%c2_103, %c0_104] : memref<3x192xf32, #tpu.memory_space<vmem>>, vector<1x192xf32>
    %105 = vector.broadcast %104 : vector<1x192xf32> to vector<12x192xf32>
    %106 = arith.addf %103, %105 : vector<12x192xf32>
    %c0_105 = arith.constant 0 : index
    %c0_106 = arith.constant 0 : index
    %107 = vector.load %arg21[%c0_105, %c0_106] : memref<12x192xf32, #tpu.memory_space<vmem>>, vector<12x192xf32>
    tpu.vector_store %arg21[%c0_105, %c0_106], %106 {strides = array<i32>} : memref<12x192xf32, #tpu.memory_space<vmem>>, vector<12x192xf32>,
    %c0_107 = arith.constant 0 : index
    %c0_108 = arith.constant 0 : index
    %108 = vector.load %arg19[%c0_107, %c0_108] : memref<12x120xf32, #tpu.memory_space<vmem>>, vector<8x120xf32>
    %c0_109 = arith.constant 0 : index
    %c0_110 = arith.constant 0 : index
    %109 = vector.load %arg4[%c0_109, %c0_110] : memref<600x88xf32, #tpu.memory_space<vmem>>, vector<120x88xf32>
    %cst_111 = arith.constant dense<0.000000e+00> : vector<8x88xf32>
    %110 = tpu.matmul %108, %109, %cst_111 {dimension_numbers = #tpu.dot_dimension_numbers<[1], [0], [0], [1], [0, 0, 1, 1], [], []>} : vector<8x120xf32>, vector<120x88xf32>, vector<8x88xf32> -> vector<8x88xf32>
    %c1_112 = arith.constant 1 : index
    %c0_113 = arith.constant 0 : index
    %111 = vector.load %arg19[%c1_112, %c0_113] : memref<12x120xf32, #tpu.memory_space<vmem>>, vector<8x120xf32>
    %c120 = arith.constant 120 : index
    %c0_114 = arith.constant 0 : index
    %112 = vector.load %arg4[%c120, %c0_114] : memref<600x88xf32, #tpu.memory_space<vmem>>, vector<120x88xf32>
    %cst_115 = arith.constant dense<0.000000e+00> : vector<8x88xf32>
    %113 = tpu.matmul %111, %112, %cst_115 {dimension_numbers = #tpu.dot_dimension_numbers<[1], [0], [0], [1], [0, 0, 1, 1], [], []>} : vector<8x120xf32>, vector<120x88xf32>, vector<8x88xf32> -> vector<8x88xf32>
    %114 = arith.addf %110, %113 : vector<8x88xf32>
    %c2_116 = arith.constant 2 : index
    %c0_117 = arith.constant 0 : index
    %115 = vector.load %arg19[%c2_116, %c0_117] : memref<12x120xf32, #tpu.memory_space<vmem>>, vector<8x120xf32>
    %c240 = arith.constant 240 : index
    %c0_118 = arith.constant 0 : index
    %116 = vector.load %arg4[%c240, %c0_118] : memref<600x88xf32, #tpu.memory_space<vmem>>, vector<120x88xf32>
    %cst_119 = arith.constant dense<0.000000e+00> : vector<8x88xf32>
    %117 = tpu.matmul %115, %116, %cst_119 {dimension_numbers = #tpu.dot_dimension_numbers<[1], [0], [0], [1], [0, 0, 1, 1], [], []>} : vector<8x120xf32>, vector<120x88xf32>, vector<8x88xf32> -> vector<8x88xf32>
    %118 = arith.addf %114, %117 : vector<8x88xf32>
    %c3_120 = arith.constant 3 : index
    %c0_121 = arith.constant 0 : index
    %119 = vector.load %arg19[%c3_120, %c0_121] : memref<12x120xf32, #tpu.memory_space<vmem>>, vector<8x120xf32>
    %c360 = arith.constant 360 : index
    %c0_122 = arith.constant 0 : index
    %120 = vector.load %arg4[%c360, %c0_122] : memref<600x88xf32, #tpu.memory_space<vmem>>, vector<120x88xf32>
    %cst_123 = arith.constant dense<0.000000e+00> : vector<8x88xf32>
    %121 = tpu.matmul %119, %120, %cst_123 {dimension_numbers = #tpu.dot_dimension_numbers<[1], [0], [0], [1], [0, 0, 1, 1], [], []>} : vector<8x120xf32>, vector<120x88xf32>, vector<8x88xf32> -> vector<8x88xf32>
    %122 = arith.addf %118, %121 : vector<8x88xf32>
    %c4_124 = arith.constant 4 : index
    %c0_125 = arith.constant 0 : index
    %123 = vector.load %arg19[%c4_124, %c0_125] : memref<12x120xf32, #tpu.memory_space<vmem>>, vector<8x120xf32>
    %c480 = arith.constant 480 : index
    %c0_126 = arith.constant 0 : index
    %124 = vector.load %arg4[%c480, %c0_126] : memref<600x88xf32, #tpu.memory_space<vmem>>, vector<120x88xf32>
    %cst_127 = arith.constant dense<0.000000e+00> : vector<8x88xf32>
    %125 = tpu.matmul %123, %124, %cst_127 {dimension_numbers = #tpu.dot_dimension_numbers<[1], [0], [0], [1], [0, 0, 1, 1], [], []>} : vector<8x120xf32>, vector<120x88xf32>, vector<8x88xf32> -> vector<8x88xf32>
    %126 = arith.addf %122, %125 : vector<8x88xf32>
    %c0_128 = arith.constant 0 : index
    %c0_129 = arith.constant 0 : index
    %127 = vector.load %arg5[%c0_128, %c0_129] : memref<3x88xf32, #tpu.memory_space<vmem>>, vector<1x88xf32>
    %128 = vector.broadcast %127 : vector<1x88xf32> to vector<8x88xf32>
    %129 = arith.addf %126, %128 : vector<8x88xf32>
    %cst_130 = arith.constant 0.000000e+00 : f32
    %130 = vector.broadcast %cst_130 : f32 to vector<8x88xf32>
    %131 = arith.maximumf %129, %130 : vector<8x88xf32>
    %c1_131 = arith.constant 1 : index
    %c0_132 = arith.constant 0 : index
    %132 = vector.load %arg5[%c1_131, %c0_132] : memref<3x88xf32, #tpu.memory_space<vmem>>, vector<1x88xf32>
    %133 = vector.broadcast %132 : vector<1x88xf32> to vector<8x88xf32>
    %134 = arith.mulf %131, %133 : vector<8x88xf32>
    %c2_133 = arith.constant 2 : index
    %c0_134 = arith.constant 0 : index
    %135 = vector.load %arg5[%c2_133, %c0_134] : memref<3x88xf32, #tpu.memory_space<vmem>>, vector<1x88xf32>
    %136 = vector.broadcast %135 : vector<1x88xf32> to vector<8x88xf32>
    %137 = arith.addf %134, %136 : vector<8x88xf32>
    %c0_135 = arith.constant 0 : index
    %c0_136 = arith.constant 0 : index
    %138 = vector.load %arg20[%c0_135, %c0_136] : memref<12x160xf32, #tpu.memory_space<vmem>>, vector<8x160xf32>
    %c0_137 = arith.constant 0 : index
    %c0_138 = arith.constant 0 : index
    %139 = vector.load %arg8[%c0_137, %c0_138] : memref<800x88xf32, #tpu.memory_space<vmem>>, vector<160x88xf32>
    %cst_139 = arith.constant dense<0.000000e+00> : vector<8x88xf32>
    %140 = tpu.matmul %138, %139, %cst_139 {dimension_numbers = #tpu.dot_dimension_numbers<[1], [0], [0], [1], [0, 0, 1, 1], [], []>} : vector<8x160xf32>, vector<160x88xf32>, vector<8x88xf32> -> vector<8x88xf32>
    %c1_140 = arith.constant 1 : index
    %c0_141 = arith.constant 0 : index
    %141 = vector.load %arg20[%c1_140, %c0_141] : memref<12x160xf32, #tpu.memory_space<vmem>>, vector<8x160xf32>
    %c160 = arith.constant 160 : index
    %c0_142 = arith.constant 0 : index
    %142 = vector.load %arg8[%c160, %c0_142] : memref<800x88xf32, #tpu.memory_space<vmem>>, vector<160x88xf32>
    %cst_143 = arith.constant dense<0.000000e+00> : vector<8x88xf32>
    %143 = tpu.matmul %141, %142, %cst_143 {dimension_numbers = #tpu.dot_dimension_numbers<[1], [0], [0], [1], [0, 0, 1, 1], [], []>} : vector<8x160xf32>, vector<160x88xf32>, vector<8x88xf32> -> vector<8x88xf32>
    %144 = arith.addf %140, %143 : vector<8x88xf32>
    %c2_144 = arith.constant 2 : index
    %c0_145 = arith.constant 0 : index
    %145 = vector.load %arg20[%c2_144, %c0_145] : memref<12x160xf32, #tpu.memory_space<vmem>>, vector<8x160xf32>
    %c320 = arith.constant 320 : index
    %c0_146 = arith.constant 0 : index
    %146 = vector.load %arg8[%c320, %c0_146] : memref<800x88xf32, #tpu.memory_space<vmem>>, vector<160x88xf32>
    %cst_147 = arith.constant dense<0.000000e+00> : vector<8x88xf32>
    %147 = tpu.matmul %145, %146, %cst_147 {dimension_numbers = #tpu.dot_dimension_numbers<[1], [0], [0], [1], [0, 0, 1, 1], [], []>} : vector<8x160xf32>, vector<160x88xf32>, vector<8x88xf32> -> vector<8x88xf32>
    %148 = arith.addf %144, %147 : vector<8x88xf32>
    %c3_148 = arith.constant 3 : index
    %c0_149 = arith.constant 0 : index
    %149 = vector.load %arg20[%c3_148, %c0_149] : memref<12x160xf32, #tpu.memory_space<vmem>>, vector<8x160xf32>
    %c480_150 = arith.constant 480 : index
    %c0_151 = arith.constant 0 : index
    %150 = vector.load %arg8[%c480_150, %c0_151] : memref<800x88xf32, #tpu.memory_space<vmem>>, vector<160x88xf32>
    %cst_152 = arith.constant dense<0.000000e+00> : vector<8x88xf32>
    %151 = tpu.matmul %149, %150, %cst_152 {dimension_numbers = #tpu.dot_dimension_numbers<[1], [0], [0], [1], [0, 0, 1, 1], [], []>} : vector<8x160xf32>, vector<160x88xf32>, vector<8x88xf32> -> vector<8x88xf32>
    %152 = arith.addf %148, %151 : vector<8x88xf32>
    %c4_153 = arith.constant 4 : index
    %c0_154 = arith.constant 0 : index
    %153 = vector.load %arg20[%c4_153, %c0_154] : memref<12x160xf32, #tpu.memory_space<vmem>>, vector<8x160xf32>
    %c640 = arith.constant 640 : index
    %c0_155 = arith.constant 0 : index
    %154 = vector.load %arg8[%c640, %c0_155] : memref<800x88xf32, #tpu.memory_space<vmem>>, vector<160x88xf32>
    %cst_156 = arith.constant dense<0.000000e+00> : vector<8x88xf32>
    %155 = tpu.matmul %153, %154, %cst_156 {dimension_numbers = #tpu.dot_dimension_numbers<[1], [0], [0], [1], [0, 0, 1, 1], [], []>} : vector<8x160xf32>, vector<160x88xf32>, vector<8x88xf32> -> vector<8x88xf32>
    %156 = arith.addf %152, %155 : vector<8x88xf32>
    %c0_157 = arith.constant 0 : index
    %c0_158 = arith.constant 0 : index
    %157 = vector.load %arg9[%c0_157, %c0_158] : memref<3x88xf32, #tpu.memory_space<vmem>>, vector<1x88xf32>
    %158 = vector.broadcast %157 : vector<1x88xf32> to vector<8x88xf32>
    %159 = arith.addf %156, %158 : vector<8x88xf32>
    %cst_159 = arith.constant 0.000000e+00 : f32
    %160 = vector.broadcast %cst_159 : f32 to vector<8x88xf32>
    %161 = arith.maximumf %159, %160 : vector<8x88xf32>
    %c1_160 = arith.constant 1 : index
    %c0_161 = arith.constant 0 : index
    %162 = vector.load %arg9[%c1_160, %c0_161] : memref<3x88xf32, #tpu.memory_space<vmem>>, vector<1x88xf32>
    %163 = vector.broadcast %162 : vector<1x88xf32> to vector<8x88xf32>
    %164 = arith.mulf %161, %163 : vector<8x88xf32>
    %c2_162 = arith.constant 2 : index
    %c0_163 = arith.constant 0 : index
    %165 = vector.load %arg9[%c2_162, %c0_163] : memref<3x88xf32, #tpu.memory_space<vmem>>, vector<1x88xf32>
    %166 = vector.broadcast %165 : vector<1x88xf32> to vector<8x88xf32>
    %167 = arith.addf %164, %166 : vector<8x88xf32>
    %c0_164 = arith.constant 0 : index
    %c0_165 = arith.constant 0 : index
    %168 = vector.load %arg21[%c0_164, %c0_165] : memref<12x192xf32, #tpu.memory_space<vmem>>, vector<8x192xf32>
    %c0_166 = arith.constant 0 : index
    %c0_167 = arith.constant 0 : index
    %169 = vector.load %arg12[%c0_166, %c0_167] : memref<960x48xf32, #tpu.memory_space<vmem>>, vector<192x48xf32>
    %cst_168 = arith.constant dense<0.000000e+00> : vector<8x48xf32>
    %170 = tpu.matmul %168, %169, %cst_168 {dimension_numbers = #tpu.dot_dimension_numbers<[1], [0], [0], [1], [0, 0, 1, 1], [], []>} : vector<8x192xf32>, vector<192x48xf32>, vector<8x48xf32> -> vector<8x48xf32>
    %c1_169 = arith.constant 1 : index
    %c0_170 = arith.constant 0 : index
    %171 = vector.load %arg21[%c1_169, %c0_170] : memref<12x192xf32, #tpu.memory_space<vmem>>, vector<8x192xf32>
    %c192 = arith.constant 192 : index
    %c0_171 = arith.constant 0 : index
    %172 = vector.load %arg12[%c192, %c0_171] : memref<960x48xf32, #tpu.memory_space<vmem>>, vector<192x48xf32>
    %cst_172 = arith.constant dense<0.000000e+00> : vector<8x48xf32>
    %173 = tpu.matmul %171, %172, %cst_172 {dimension_numbers = #tpu.dot_dimension_numbers<[1], [0], [0], [1], [0, 0, 1, 1], [], []>} : vector<8x192xf32>, vector<192x48xf32>, vector<8x48xf32> -> vector<8x48xf32>
    %174 = arith.addf %170, %173 : vector<8x48xf32>
    %c2_173 = arith.constant 2 : index
    %c0_174 = arith.constant 0 : index
    %175 = vector.load %arg21[%c2_173, %c0_174] : memref<12x192xf32, #tpu.memory_space<vmem>>, vector<8x192xf32>
    %c384 = arith.constant 384 : index
    %c0_175 = arith.constant 0 : index
    %176 = vector.load %arg12[%c384, %c0_175] : memref<960x48xf32, #tpu.memory_space<vmem>>, vector<192x48xf32>
    %cst_176 = arith.constant dense<0.000000e+00> : vector<8x48xf32>
    %177 = tpu.matmul %175, %176, %cst_176 {dimension_numbers = #tpu.dot_dimension_numbers<[1], [0], [0], [1], [0, 0, 1, 1], [], []>} : vector<8x192xf32>, vector<192x48xf32>, vector<8x48xf32> -> vector<8x48xf32>
    %178 = arith.addf %174, %177 : vector<8x48xf32>
    %c3_177 = arith.constant 3 : index
    %c0_178 = arith.constant 0 : index
    %179 = vector.load %arg21[%c3_177, %c0_178] : memref<12x192xf32, #tpu.memory_space<vmem>>, vector<8x192xf32>
    %c576 = arith.constant 576 : index
    %c0_179 = arith.constant 0 : index
    %180 = vector.load %arg12[%c576, %c0_179] : memref<960x48xf32, #tpu.memory_space<vmem>>, vector<192x48xf32>
    %cst_180 = arith.constant dense<0.000000e+00> : vector<8x48xf32>
    %181 = tpu.matmul %179, %180, %cst_180 {dimension_numbers = #tpu.dot_dimension_numbers<[1], [0], [0], [1], [0, 0, 1, 1], [], []>} : vector<8x192xf32>, vector<192x48xf32>, vector<8x48xf32> -> vector<8x48xf32>
    %182 = arith.addf %178, %181 : vector<8x48xf32>
    %c4_181 = arith.constant 4 : index
    %c0_182 = arith.constant 0 : index
    %183 = vector.load %arg21[%c4_181, %c0_182] : memref<12x192xf32, #tpu.memory_space<vmem>>, vector<8x192xf32>
    %c768 = arith.constant 768 : index
    %c0_183 = arith.constant 0 : index
    %184 = vector.load %arg12[%c768, %c0_183] : memref<960x48xf32, #tpu.memory_space<vmem>>, vector<192x48xf32>
    %cst_184 = arith.constant dense<0.000000e+00> : vector<8x48xf32>
    %185 = tpu.matmul %183, %184, %cst_184 {dimension_numbers = #tpu.dot_dimension_numbers<[1], [0], [0], [1], [0, 0, 1, 1], [], []>} : vector<8x192xf32>, vector<192x48xf32>, vector<8x48xf32> -> vector<8x48xf32>
    %186 = arith.addf %182, %185 : vector<8x48xf32>
    %c0_185 = arith.constant 0 : index
    %c0_186 = arith.constant 0 : index
    %187 = vector.load %arg13[%c0_185, %c0_186] : memref<3x48xf32, #tpu.memory_space<vmem>>, vector<1x48xf32>
    %188 = vector.broadcast %187 : vector<1x48xf32> to vector<8x48xf32>
    %189 = arith.addf %186, %188 : vector<8x48xf32>
    %cst_187 = arith.constant 0.000000e+00 : f32
    %190 = vector.broadcast %cst_187 : f32 to vector<8x48xf32>
    %191 = arith.maximumf %189, %190 : vector<8x48xf32>
    %c1_188 = arith.constant 1 : index
    %c0_189 = arith.constant 0 : index
    %192 = vector.load %arg13[%c1_188, %c0_189] : memref<3x48xf32, #tpu.memory_space<vmem>>, vector<1x48xf32>
    %193 = vector.broadcast %192 : vector<1x48xf32> to vector<8x48xf32>
    %194 = arith.mulf %191, %193 : vector<8x48xf32>
    %c2_190 = arith.constant 2 : index
    %c0_191 = arith.constant 0 : index
    %195 = vector.load %arg13[%c2_190, %c0_191] : memref<3x48xf32, #tpu.memory_space<vmem>>, vector<1x48xf32>
    %196 = vector.broadcast %195 : vector<1x48xf32> to vector<8x48xf32>
    %197 = arith.addf %194, %196 : vector<8x48xf32>
    %c0_192 = arith.constant 0 : index
    %c0_193 = arith.constant 0 : index
    %198 = vector.load %arg14[%c0_192, %c0_193] : memref<1x88xf32, #tpu.memory_space<vmem>>, vector<1x88xf32>
    %199 = vector.broadcast %198 : vector<1x88xf32> to vector<8x88xf32>
    %200 = arith.mulf %137, %199 : vector<8x88xf32>
    %cst_194 = arith.constant dense<0.000000e+00> : vector<8xf32>
    %201 = vector.multi_reduction <add>, %200, %cst_194 [1] : vector<8x88xf32> to vector<8xf32>
    %202 = vector.shape_cast %201 : vector<8xf32> to vector<8x1xf32>
    %cst_195 = arith.constant dense<0.000000e+00> : vector<1xf32>
    %203 = vector.multi_reduction <add>, %202, %cst_195 [0] : vector<8x1xf32> to vector<1xf32>
    %204 = vector.shape_cast %203 : vector<1xf32> to vector<1x1xf32>
    %c0_196 = arith.constant 0 : index
    %c0_197 = arith.constant 0 : index
    %205 = vector.load %arg15[%c0_196, %c0_197] : memref<1x88xf32, #tpu.memory_space<vmem>>, vector<1x88xf32>
    %206 = vector.broadcast %205 : vector<1x88xf32> to vector<8x88xf32>
    %207 = arith.mulf %167, %206 : vector<8x88xf32>
    %cst_198 = arith.constant dense<0.000000e+00> : vector<8xf32>
    %208 = vector.multi_reduction <add>, %207, %cst_198 [1] : vector<8x88xf32> to vector<8xf32>
    %209 = vector.shape_cast %208 : vector<8xf32> to vector<8x1xf32>
    %cst_199 = arith.constant dense<0.000000e+00> : vector<1xf32>
    %210 = vector.multi_reduction <add>, %209, %cst_199 [0] : vector<8x1xf32> to vector<1xf32>
    %211 = vector.shape_cast %210 : vector<1xf32> to vector<1x1xf32>
    %212 = arith.addf %204, %211 : vector<1x1xf32>
    %c0_200 = arith.constant 0 : index
    %c0_201 = arith.constant 0 : index
    %213 = vector.load %arg16[%c0_200, %c0_201] : memref<1x48xf32, #tpu.memory_space<vmem>>, vector<1x48xf32>
    %214 = vector.broadcast %213 : vector<1x48xf32> to vector<8x48xf32>
    %215 = arith.mulf %197, %214 : vector<8x48xf32>
    %cst_202 = arith.constant dense<0.000000e+00> : vector<8xf32>
    %216 = vector.multi_reduction <add>, %215, %cst_202 [1] : vector<8x48xf32> to vector<8xf32>
    %217 = vector.shape_cast %216 : vector<8xf32> to vector<8x1xf32>
    %cst_203 = arith.constant dense<0.000000e+00> : vector<1xf32>
    %218 = vector.multi_reduction <add>, %217, %cst_203 [0] : vector<8x1xf32> to vector<1xf32>
    %219 = vector.shape_cast %218 : vector<1xf32> to vector<1x1xf32>
    %220 = arith.addf %212, %219 : vector<1x1xf32>
    %c0_204 = arith.constant 0 : index
    %c0_205 = arith.constant 0 : index
    %221 = vector.load %arg17[%c0_204, %c0_205] : memref<1x1xf32, #tpu.memory_space<vmem>>, vector<1x1xf32>
    %222 = arith.addf %220, %221 : vector<1x1xf32>
    %cst_206 = arith.constant 0.000000e+00 : f32
    %223 = vector.broadcast %cst_206 : f32 to vector<1x1xf32>
    %224 = arith.subf %223, %222 : vector<1x1xf32>
    %225 = math.exp %224 : vector<1x1xf32>
    %cst_207 = arith.constant 1.000000e+00 : f32
    %226 = vector.broadcast %cst_207 : f32 to vector<1x1xf32>
    %227 = arith.addf %226, %225 : vector<1x1xf32>
    %cst_208 = arith.constant 1.000000e+00 : f32
    %228 = vector.broadcast %cst_208 : f32 to vector<1x1xf32>
    %229 = arith.divf %228, %227 : vector<1x1xf32>
    %c0_209 = arith.constant 0 : index
    %c0_210 = arith.constant 0 : index
    %c0_211 = arith.constant 0 : index
    %230 = vector.load %arg18[%c0_209, %c0_210, %c0_211] : memref<1x1x1xf32, #tpu.memory_space<vmem>>, vector<1x1x1xf32>
    %231 = vector.shape_cast %230 : vector<1x1x1xf32> to vector<1x1xf32>
    %232 = vector.shape_cast %229 : vector<1x1xf32> to vector<1x1x1xf32>
    tpu.vector_store %arg18[%c0_209, %c0_210, %c0_211], %232 {strides = array<i32>} : memref<1x1x1xf32, #tpu.memory_space<vmem>>, vector<1x1x1xf32>,
    return
  }
  func.func @transform_0(%arg0: i32) -> (i32, i32, i32) {
    %c0_i32 = arith.constant 0 : i32
    %c0_i32_0 = arith.constant 0 : i32
    %c0_i32_1 = arith.constant 0 : i32
    return %arg0, %c0_i32, %c0_i32_0 : i32, i32, i32
  }
  func.func @transform_1(%arg0: i32) -> (i32, i32) {
    %c0_i32 = arith.constant 0 : i32
    %c0_i32_0 = arith.constant 0 : i32
    %c0_i32_1 = arith.constant 0 : i32
    return %c0_i32, %c0_i32_0 : i32, i32
  }
  func.func @transform_2(%arg0: i32) -> (i32, i32) {
    %c0_i32 = arith.constant 0 : i32
    %c0_i32_0 = arith.constant 0 : i32
    %c0_i32_1 = arith.constant 0 : i32
    return %c0_i32, %c0_i32_0 : i32, i32
  }
  func.func @transform_3(%arg0: i32) -> (i32, i32) {
    %c0_i32 = arith.constant 0 : i32
    %c0_i32_0 = arith.constant 0 : i32
    %c0_i32_1 = arith.constant 0 : i32
    return %c0_i32, %c0_i32_0 : i32, i32
  }
  func.func @transform_4(%arg0: i32) -> (i32, i32) {
    %c0_i32 = arith.constant 0 : i32
    %c0_i32_0 = arith.constant 0 : i32
    %c0_i32_1 = arith.constant 0 : i32
    return %c0_i32, %c0_i32_0 : i32, i32
  }
  func.func @transform_5(%arg0: i32) -> (i32, i32) {
    %c0_i32 = arith.constant 0 : i32
    %c0_i32_0 = arith.constant 0 : i32
    %c0_i32_1 = arith.constant 0 : i32
    return %c0_i32, %c0_i32_0 : i32, i32
  }
  func.func @transform_6(%arg0: i32) -> (i32, i32) {
    %c0_i32 = arith.constant 0 : i32
    %c0_i32_0 = arith.constant 0 : i32
    %c0_i32_1 = arith.constant 0 : i32
    return %c0_i32, %c0_i32_0 : i32, i32
  }
  func.func @transform_7(%arg0: i32) -> (i32, i32) {
    %c0_i32 = arith.constant 0 : i32
    %c0_i32_0 = arith.constant 0 : i32
    %c0_i32_1 = arith.constant 0 : i32
    return %c0_i32, %c0_i32_0 : i32, i32
  }
  func.func @transform_8(%arg0: i32) -> (i32, i32) {
    %c0_i32 = arith.constant 0 : i32
    %c0_i32_0 = arith.constant 0 : i32
    %c0_i32_1 = arith.constant 0 : i32
    return %c0_i32, %c0_i32_0 : i32, i32
  }
  func.func @transform_9(%arg0: i32) -> (i32, i32) {
    %c0_i32 = arith.constant 0 : i32
    %c0_i32_0 = arith.constant 0 : i32
    %c0_i32_1 = arith.constant 0 : i32
    return %c0_i32, %c0_i32_0 : i32, i32
  }
  func.func @transform_10(%arg0: i32) -> (i32, i32) {
    %c0_i32 = arith.constant 0 : i32
    %c0_i32_0 = arith.constant 0 : i32
    %c0_i32_1 = arith.constant 0 : i32
    return %c0_i32, %c0_i32_0 : i32, i32
  }
  func.func @transform_11(%arg0: i32) -> (i32, i32) {
    %c0_i32 = arith.constant 0 : i32
    %c0_i32_0 = arith.constant 0 : i32
    %c0_i32_1 = arith.constant 0 : i32
    return %c0_i32, %c0_i32_0 : i32, i32
  }
  func.func @transform_12(%arg0: i32) -> (i32, i32) {
    %c0_i32 = arith.constant 0 : i32
    %c0_i32_0 = arith.constant 0 : i32
    %c0_i32_1 = arith.constant 0 : i32
    return %c0_i32, %c0_i32_0 : i32, i32
  }
  func.func @transform_13(%arg0: i32) -> (i32, i32) {
    %c0_i32 = arith.constant 0 : i32
    %c0_i32_0 = arith.constant 0 : i32
    %c0_i32_1 = arith.constant 0 : i32
    return %c0_i32, %c0_i32_0 : i32, i32
  }
  func.func @transform_14(%arg0: i32) -> (i32, i32) {
    %c0_i32 = arith.constant 0 : i32
    %c0_i32_0 = arith.constant 0 : i32
    %c0_i32_1 = arith.constant 0 : i32
    return %c0_i32, %c0_i32_0 : i32, i32
  }
  func.func @transform_15(%arg0: i32) -> (i32, i32) {
    %c0_i32 = arith.constant 0 : i32
    %c0_i32_0 = arith.constant 0 : i32
    %c0_i32_1 = arith.constant 0 : i32
    return %c0_i32, %c0_i32_0 : i32, i32
  }
  func.func @transform_16(%arg0: i32) -> (i32, i32) {
    %c0_i32 = arith.constant 0 : i32
    %c0_i32_0 = arith.constant 0 : i32
    %c0_i32_1 = arith.constant 0 : i32
    return %c0_i32, %c0_i32_0 : i32, i32
  }
  func.func @transform_17(%arg0: i32) -> (i32, i32, i32) {
    %c0_i32 = arith.constant 0 : i32
    %c0_i32_0 = arith.constant 0 : i32
    %c0_i32_1 = arith.constant 0 : i32
    return %arg0, %c0_i32, %c0_i32_0 : i32, i32, i32
  }
}

</mosaic_0001>

<llo_original>
// kernel: tile.142
$region0: #{tile.142}
  #allocation0 [shape = 's32[1]{0}', space=sflag, size = 0x4, scoped, tag = 'scoped memory for tile.142']
  %s0 = inlined_call_operand.vmem [shape: f32[8], index: 0, kind: input, shape index: {}]
  %s1 = inlined_call_operand.vmem [shape: f32[20,8], index: 1, kind: output, shape index: {}]
  // Predicated region
  $region2: #{tile.142} parent=0 // pred_check
    _
  $region3: #{tile.142} parent=0 // pred_check_branch
    %3 = sbr.rel (0) target = $region5
  $region4: #{tile.142} parent=0 // pred_region
    _
  $region5: #{tile.142} parent=0 // pred_fallthru
    _
  %v4 = vld [vmem:[%s0] ss:$0 sm:$0xff]
  %5 = vst [vmem:[%s1] sm:$0xff] %v4
  %s6 = scalar_lea.vmem %s1, 8
  %7 = vst [vmem:[%s6] sm:$0xff] %v4
  %s8 = scalar_lea.vmem %s1, 16
  %9 = vst [vmem:[%s8] sm:$0xff] %v4

// kernel: tile.148
$region0: #{tile.148}
  %s0 = inlined_call_operand.vmem [shape: f32[20,8], index: 0, kind: input, shape index: {}]
  %s1 = inlined_call_operand.vmem [shape: f32[1,160], index: 1, kind: output, shape index: {}]
  $region1: #{tile.148} parent=0
    #allocation0 [shape = 'u8[8192]{0}', space=vmem, size = 0x2000, scoped, tag = 'scoped mem for output reshape']
    %s2 = smov 3
    %v3 = vld [vmem:[%s0] ss:$16 sm:%s2]
    %vm4 = vcmask 64512
    %5 = vst.msk [vmem:[#allocation0] ss:$8 sm:$0x3] %vm4, %v3
    %s6 = scalar_lea.vmem %s0, 15
    %v7 = vld [vmem:[%s6] sm:$0x1]
    %8 = vrot.lane.b32.xlu0 %v7, 120
    %v9 = vpop.permute.xlu0 %8
    %vm10 = vcmask 1048512
    %11 = vst.msk [vmem:[#allocation0] sm:$0x1] %vm10, %v9
    %s12 = scalar_lea.vmem %s0, 14
    %v13 = vld [vmem:[%s12] sm:$0x1]
    %14 = vrot.lane.b32.xlu0 %v13, 112
    %v15 = vpop.permute.xlu0 %14
    %vm16 = vcmask 982912
    %17 = vst.msk [vmem:[#allocation0] sm:$0x1] %vm16, %v15
    %s18 = scalar_lea.vmem %s0, 13
    %v19 = vld [vmem:[%s18] sm:$0x1]
    %20 = vrot.lane.b32.xlu0 %v19, 104
    %v21 = vpop.permute.xlu0 %20
    %vm22 = vcmask 917312
    %23 = vst.msk [vmem:[#allocation0] sm:$0x1] %vm22, %v21
    %s24 = scalar_lea.vmem %s0, 12
    %v25 = vld [vmem:[%s24] sm:$0x1]
    %26 = vrot.lane.b32.xlu0 %v25, 96
    %v27 = vpop.permute.xlu0 %26
    %vm28 = vcmask 851712
    %29 = vst.msk [vmem:[#allocation0] sm:$0x1] %vm28, %v27
    %s30 = scalar_lea.vmem %s0, 11
    %v31 = vld [vmem:[%s30] sm:$0x1]
    %32 = vrot.lane.b32.xlu0 %v31, 88
    %v33 = vpop.permute.xlu0 %32
    %vm34 = vcmask 786112
    %35 = vst.msk [vmem:[#allocation0] sm:$0x1] %vm34, %v33
    %s36 = scalar_lea.vmem %s0, 10
    %v37 = vld [vmem:[%s36] sm:$0x1]
    %38 = vrot.lane.b32.xlu0 %v37, 80
    %v39 = vpop.permute.xlu0 %38
    %vm40 = vcmask 720512
    %41 = vst.msk [vmem:[#allocation0] sm:$0x1] %vm40, %v39
    %s42 = scalar_lea.vmem %s0, 9
    %v43 = vld [vmem:[%s42] sm:$0x1]
    %44 = vrot.lane.b32.xlu0 %v43, 72
    %v45 = vpop.permute.xlu0 %44
    %vm46 = vcmask 654912
    %47 = vst.msk [vmem:[#allocation0] sm:$0x1] %vm46, %v45
    %s48 = scalar_lea.vmem %s0, 8
    %v49 = vld [vmem:[%s48] sm:$0x1]
    %50 = vrot.lane.b32.xlu0 %v49, 64
    %v51 = vpop.permute.xlu0 %50
    %vm52 = vcmask 589312
    %53 = vst.msk [vmem:[#allocation0] sm:$0x1] %vm52, %v51
    %s54 = scalar_lea.vmem %s0, 7
    %v55 = vld [vmem:[%s54] sm:$0x1]
    %56 = vrot.lane.b32.xlu0 %v55, 56
    %v57 = vpop.permute.xlu0 %56
    %vm58 = vcmask 523712
    %59 = vst.msk [vmem:[#allocation0] sm:$0x1] %vm58, %v57
    %s60 = scalar_lea.vmem %s0, 6
    %v61 = vld [vmem:[%s60] sm:$0x1]
    %62 = vrot.lane.b32.xlu0 %v61, 48
    %v63 = vpop.permute.xlu0 %62
    %vm64 = vcmask 458112
    %65 = vst.msk [vmem:[#allocation0] sm:$0x1] %vm64, %v63
    %s66 = scalar_lea.vmem %s0, 5
    %v67 = vld [vmem:[%s66] sm:$0x1]
    %68 = vrot.lane.b32.xlu0 %v67, 40
    %v69 = vpop.permute.xlu0 %68
    %vm70 = vcmask 392512
    %71 = vst.msk [vmem:[#allocation0] sm:$0x1] %vm70, %v69
    %s72 = scalar_lea.vmem %s0, 4
    %v73 = vld [vmem:[%s72] sm:$0x1]
    %74 = vrot.lane.b32.xlu0 %v73, 32
    %v75 = vpop.permute.xlu0 %74
    %vm76 = vcmask 326912
    %77 = vst.msk [vmem:[#allocation0] sm:$0x1] %vm76, %v75
    %s78 = scalar_lea.vmem %s0, 3
    %s79 = smov 3
    %v80 = vld [vmem:[%s78] ss:$16 sm:%s79]
    %81 = vrot.lane.b32.xlu0 %v80, 24
    %v82 = vpop.permute.xlu0 %81
    %vm83 = vcmask 261312
    %84 = vst.msk [vmem:[#allocation0] ss:$8 sm:$0x3] %vm83, %v82
    %s85 = scalar_lea.vmem %s0, 2
    %s86 = smov 3
    %v87 = vld [vmem:[%s85] ss:$16 sm:%s86]
    %88 = vrot.lane.b32.xlu0 %v87, 16
    %v89 = vpop.permute.xlu0 %88
    %vm90 = vcmask 195712
    %91 = vst.msk [vmem:[#allocation0] ss:$8 sm:$0x3] %vm90, %v89
    %s92 = scalar_lea.vmem %s0, 1
    %s93 = smov 3
    %v94 = vld [vmem:[%s92] ss:$16 sm:%s93]
    %95 = vrot.lane.b32.xlu0 %v94, 8
    %v96 = vpop.permute.xlu0 %95
    %vm97 = vcmask 130112
    %98 = vst.msk [vmem:[#allocation0] ss:$8 sm:$0x3] %vm97, %v96
    %s100 = ssub.s32 2, 1
    %v101 = vld [vmem:[#allocation0] sm:%s100]
    %s103 = ssub.s32 2, 1
    %104 = vst [vmem:[%s1] sm:%s103] %v101
    %s105 = scalar_lea.vmem [#allocation0], 8
    %v106 = vld [vmem:[%s105] sm:%s100]
    %s108 = ssub.s32 2, 1
    %s109 = scalar_lea.vmem %s1, 1
    %110 = vst [vmem:[%s109] sm:%s108] %v106

// kernel: tile.172
$region0: #{tile.172}
  #allocation0 [shape = 's32[1]{0}', space=sflag, size = 0x4, scoped, tag = 'scoped memory for tile.172']
  %s0 = inlined_call_operand.vmem [shape: f32[8], index: 0, kind: input, shape index: {}]
  %s1 = inlined_call_operand.vmem [shape: f32[24,8], index: 1, kind: output, shape index: {}]
  // Predicated region
  $region2: #{tile.172} parent=0 // pred_check
    _
  $region3: #{tile.172} parent=0 // pred_check_branch
    %3 = sbr.rel (0) target = $region5
  $region4: #{tile.172} parent=0 // pred_region
    _
  $region5: #{tile.172} parent=0 // pred_fallthru
    _
  %v4 = vld [vmem:[%s0] ss:$0 sm:$0xff]
  %5 = vst [vmem:[%s1] sm:$0xff] %v4
  %s6 = scalar_lea.vmem %s1, 8
  %7 = vst [vmem:[%s6] sm:$0xff] %v4
  %s8 = scalar_lea.vmem %s1, 16
  %9 = vst [vmem:[%s8] sm:$0xff] %v4

// kernel: tile.178
$region0: #{tile.178}
  %s0 = inlined_call_operand.vmem [shape: f32[24,8], index: 0, kind: input, shape index: {}]
  %s1 = inlined_call_operand.vmem [shape: f32[1,192], index: 1, kind: output, shape index: {}]
  $region1: #{tile.178} parent=0
    #allocation0 [shape = 'u8[8192]{0}', space=vmem, size = 0x2000, scoped, tag = 'scoped mem for output reshape']
    %s2 = smov 3
    %v3 = vld [vmem:[%s0] ss:$16 sm:%s2]
    %vm4 = vcmask 64512
    %5 = vst.msk [vmem:[#allocation0] ss:$8 sm:$0x3] %vm4, %v3
    %s6 = scalar_lea.vmem %s0, 15
    %v7 = vld [vmem:[%s6] sm:$0x1]
    %8 = vrot.lane.b32.xlu0 %v7, 120
    %v9 = vpop.permute.xlu0 %8
    %vm10 = vcmask 1048512
    %11 = vst.msk [vmem:[#allocation0] sm:$0x1] %vm10, %v9
    %s12 = scalar_lea.vmem %s0, 14
    %v13 = vld [vmem:[%s12] sm:$0x1]
    %14 = vrot.lane.b32.xlu0 %v13, 112
    %v15 = vpop.permute.xlu0 %14
    %vm16 = vcmask 982912
    %17 = vst.msk [vmem:[#allocation0] sm:$0x1] %vm16, %v15
    %s18 = scalar_lea.vmem %s0, 13
    %v19 = vld [vmem:[%s18] sm:$0x1]
    %20 = vrot.lane.b32.xlu0 %v19, 104
    %v21 = vpop.permute.xlu0 %20
    %vm22 = vcmask 917312
    %23 = vst.msk [vmem:[#allocation0] sm:$0x1] %vm22, %v21
    %s24 = scalar_lea.vmem %s0, 12
    %v25 = vld [vmem:[%s24] sm:$0x1]
    %26 = vrot.lane.b32.xlu0 %v25, 96
    %v27 = vpop.permute.xlu0 %26
    %vm28 = vcmask 851712
    %29 = vst.msk [vmem:[#allocation0] sm:$0x1] %vm28, %v27
    %s30 = scalar_lea.vmem %s0, 11
    %v31 = vld [vmem:[%s30] sm:$0x1]
    %32 = vrot.lane.b32.xlu0 %v31, 88
    %v33 = vpop.permute.xlu0 %32
    %vm34 = vcmask 786112
    %35 = vst.msk [vmem:[#allocation0] sm:$0x1] %vm34, %v33
    %s36 = scalar_lea.vmem %s0, 10
    %v37 = vld [vmem:[%s36] sm:$0x1]
    %38 = vrot.lane.b32.xlu0 %v37, 80
    %v39 = vpop.permute.xlu0 %38
    %vm40 = vcmask 720512
    %41 = vst.msk [vmem:[#allocation0] sm:$0x1] %vm40, %v39
    %s42 = scalar_lea.vmem %s0, 9
    %v43 = vld [vmem:[%s42] sm:$0x1]
    %44 = vrot.lane.b32.xlu0 %v43, 72
    %v45 = vpop.permute.xlu0 %44
    %vm46 = vcmask 654912
    %47 = vst.msk [vmem:[#allocation0] sm:$0x1] %vm46, %v45
    %s48 = scalar_lea.vmem %s0, 8
    %v49 = vld [vmem:[%s48] sm:$0x1]
    %50 = vrot.lane.b32.xlu0 %v49, 64
    %v51 = vpop.permute.xlu0 %50
    %vm52 = vcmask 589312
    %53 = vst.msk [vmem:[#allocation0] sm:$0x1] %vm52, %v51
    %s54 = scalar_lea.vmem %s0, 7
    %s55 = smov 3
    %v56 = vld [vmem:[%s54] ss:$16 sm:%s55]
    %57 = vrot.lane.b32.xlu0 %v56, 56
    %v58 = vpop.permute.xlu0 %57
    %vm59 = vcmask 523712
    %60 = vst.msk [vmem:[#allocation0] ss:$8 sm:$0x3] %vm59, %v58
    %s61 = scalar_lea.vmem %s0, 6
    %s62 = smov 3
    %v63 = vld [vmem:[%s61] ss:$16 sm:%s62]
    %64 = vrot.lane.b32.xlu0 %v63, 48
    %v65 = vpop.permute.xlu0 %64
    %vm66 = vcmask 458112
    %67 = vst.msk [vmem:[#allocation0] ss:$8 sm:$0x3] %vm66, %v65
    %s68 = scalar_lea.vmem %s0, 5
    %s69 = smov 3
    %v70 = vld [vmem:[%s68] ss:$16 sm:%s69]
    %71 = vrot.lane.b32.xlu0 %v70, 40
    %v72 = vpop.permute.xlu0 %71
    %vm73 = vcmask 392512
    %74 = vst.msk [vmem:[#allocation0] ss:$8 sm:$0x3] %vm73, %v72
    %s75 = scalar_lea.vmem %s0, 4
    %s76 = smov 3
    %v77 = vld [vmem:[%s75] ss:$16 sm:%s76]
    %78 = vrot.lane.b32.xlu0 %v77, 32
    %v79 = vpop.permute.xlu0 %78
    %vm80 = vcmask 326912
    %81 = vst.msk [vmem:[#allocation0] ss:$8 sm:$0x3] %vm80, %v79
    %s82 = scalar_lea.vmem %s0, 3
    %s83 = smov 3
    %v84 = vld [vmem:[%s82] ss:$16 sm:%s83]
    %85 = vrot.lane.b32.xlu0 %v84, 24
    %v86 = vpop.permute.xlu0 %85
    %vm87 = vcmask 261312
    %88 = vst.msk [vmem:[#allocation0] ss:$8 sm:$0x3] %vm87, %v86
    %s89 = scalar_lea.vmem %s0, 2
    %s90 = smov 3
    %v91 = vld [vmem:[%s89] ss:$16 sm:%s90]
    %92 = vrot.lane.b32.xlu0 %v91, 16
    %v93 = vpop.permute.xlu0 %92
    %vm94 = vcmask 195712
    %95 = vst.msk [vmem:[#allocation0] ss:$8 sm:$0x3] %vm94, %v93
    %s96 = scalar_lea.vmem %s0, 1
    %s97 = smov 3
    %v98 = vld [vmem:[%s96] ss:$16 sm:%s97]
    %99 = vrot.lane.b32.xlu0 %v98, 8
    %v100 = vpop.permute.xlu0 %99
    %vm101 = vcmask 130112
    %102 = vst.msk [vmem:[#allocation0] ss:$8 sm:$0x3] %vm101, %v100
    %s104 = ssub.s32 2, 1
    %v105 = vld [vmem:[#allocation0] sm:%s104]
    %s107 = ssub.s32 2, 1
    %108 = vst [vmem:[%s1] sm:%s107] %v105
    %s109 = scalar_lea.vmem [#allocation0], 8
    %v110 = vld [vmem:[%s109] sm:%s104]
    %s112 = ssub.s32 2, 1
    %s113 = scalar_lea.vmem %s1, 1
    %114 = vst [vmem:[%s113] sm:%s112] %v110

// kernel: tile.112
$region0: #{tile.112}
  #allocation0 [shape = 's32[1]{0}', space=sflag, size = 0x4, scoped, tag = 'scoped memory for tile.112']
  %s0 = inlined_call_operand.vmem [shape: f32[8], index: 0, kind: input, shape index: {}]
  %s1 = inlined_call_operand.vmem [shape: f32[15,8], index: 1, kind: output, shape index: {}]
  // Predicated region
  $region2: #{tile.112} parent=0 // pred_check
    _
  $region3: #{tile.112} parent=0 // pred_check_branch
    %3 = sbr.rel (0) target = $region5
  $region4: #{tile.112} parent=0 // pred_region
    _
  $region5: #{tile.112} parent=0 // pred_fallthru
    _
  %v4 = vld [vmem:[%s0] ss:$0 sm:$0xff]
  %5 = vst [vmem:[%s1] sm:$0xff] %v4
  %s6 = scalar_lea.vmem %s1, 8
  %7 = vst [vmem:[%s6] sm:$0xff] %v4

// kernel: tile.118
$region0: #{tile.118}
  %s0 = inlined_call_operand.vmem [shape: f32[15,8], index: 0, kind: input, shape index: {}]
  %s1 = inlined_call_operand.vmem [shape: f32[1,120], index: 1, kind: output, shape index: {}]
  $region1: #{tile.118} parent=0
    #allocation0 [shape = 'u8[4096]{0}', space=vmem, size = 0x1000, scoped, tag = 'scoped mem for output reshape']
    %v2 = vld [vmem:[%s0] sm:$0x1]
    %vm3 = vcmask 64512
    %4 = vst.msk [vmem:[#allocation0] sm:$0x1] %vm3, %v2
    %s5 = scalar_lea.vmem %s0, 14
    %v6 = vld [vmem:[%s5] sm:$0x1]
    %7 = vrot.lane.b32.xlu0 %v6, 112
    %v8 = vpop.permute.xlu0 %7
    %vm9 = vcmask 982912
    %10 = vst.msk [vmem:[#allocation0] sm:$0x1] %vm9, %v8
    %s11 = scalar_lea.vmem %s0, 13
    %v12 = vld [vmem:[%s11] sm:$0x1]
    %13 = vrot.lane.b32.xlu0 %v12, 104
    %v14 = vpop.permute.xlu0 %13
    %vm15 = vcmask 917312
    %16 = vst.msk [vmem:[#allocation0] sm:$0x1] %vm15, %v14
    %s17 = scalar_lea.vmem %s0, 12
    %v18 = vld [vmem:[%s17] sm:$0x1]
    %19 = vrot.lane.b32.xlu0 %v18, 96
    %v20 = vpop.permute.xlu0 %19
    %vm21 = vcmask 851712
    %22 = vst.msk [vmem:[#allocation0] sm:$0x1] %vm21, %v20
    %s23 = scalar_lea.vmem %s0, 11
    %v24 = vld [vmem:[%s23] sm:$0x1]
    %25 = vrot.lane.b32.xlu0 %v24, 88
    %v26 = vpop.permute.xlu0 %25
    %vm27 = vcmask 786112
    %28 = vst.msk [vmem:[#allocation0] sm:$0x1] %vm27, %v26
    %s29 = scalar_lea.vmem %s0, 10
    %v30 = vld [vmem:[%s29] sm:$0x1]
    %31 = vrot.lane.b32.xlu0 %v30, 80
    %v32 = vpop.permute.xlu0 %31
    %vm33 = vcmask 720512
    %34 = vst.msk [vmem:[#allocation0] sm:$0x1] %vm33, %v32
    %s35 = scalar_lea.vmem %s0, 9
    %v36 = vld [vmem:[%s35] sm:$0x1]
    %37 = vrot.lane.b32.xlu0 %v36, 72
    %v38 = vpop.permute.xlu0 %37
    %vm39 = vcmask 654912
    %40 = vst.msk [vmem:[#allocation0] sm:$0x1] %vm39, %v38
    %s41 = scalar_lea.vmem %s0, 8
    %v42 = vld [vmem:[%s41] sm:$0x1]
    %43 = vrot.lane.b32.xlu0 %v42, 64
    %v44 = vpop.permute.xlu0 %43
    %vm45 = vcmask 589312
    %46 = vst.msk [vmem:[#allocation0] sm:$0x1] %vm45, %v44
    %s47 = scalar_lea.vmem %s0, 7
    %v48 = vld [vmem:[%s47] sm:$0x1]
    %49 = vrot.lane.b32.xlu0 %v48, 56
    %v50 = vpop.permute.xlu0 %49
    %vm51 = vcmask 523712
    %52 = vst.msk [vmem:[#allocation0] sm:$0x1] %vm51, %v50
    %s53 = scalar_lea.vmem %s0, 6
    %v54 = vld [vmem:[%s53] sm:$0x1]
    %55 = vrot.lane.b32.xlu0 %v54, 48
    %v56 = vpop.permute.xlu0 %55
    %vm57 = vcmask 458112
    %58 = vst.msk [vmem:[#allocation0] sm:$0x1] %vm57, %v56
    %s59 = scalar_lea.vmem %s0, 5
    %v60 = vld [vmem:[%s59] sm:$0x1]
    %61 = vrot.lane.b32.xlu0 %v60, 40
    %v62 = vpop.permute.xlu0 %61
    %vm63 = vcmask 392512
    %64 = vst.msk [vmem:[#allocation0] sm:$0x1] %vm63, %v62
    %s65 = scalar_lea.vmem %s0, 4
    %v66 = vld [vmem:[%s65] sm:$0x1]
    %67 = vrot.lane.b32.xlu0 %v66, 32
    %v68 = vpop.permute.xlu0 %67
    %vm69 = vcmask 326912
    %70 = vst.msk [vmem:[#allocation0] sm:$0x1] %vm69, %v68
    %s71 = scalar_lea.vmem %s0, 3
    %v72 = vld [vmem:[%s71] sm:$0x1]
    %73 = vrot.lane.b32.xlu0 %v72, 24
    %v74 = vpop.permute.xlu0 %73
    %vm75 = vcmask 261312
    %76 = vst.msk [vmem:[#allocation0] sm:$0x1] %vm75, %v74
    %s77 = scalar_lea.vmem %s0, 2
    %v78 = vld [vmem:[%s77] sm:$0x1]
    %79 = vrot.lane.b32.xlu0 %v78, 16
    %v80 = vpop.permute.xlu0 %79
    %vm81 = vcmask 195712
    %82 = vst.msk [vmem:[#allocation0] sm:$0x1] %vm81, %v80
    %s83 = scalar_lea.vmem %s0, 1
    %v84 = vld [vmem:[%s83] sm:$0x1]
    %85 = vrot.lane.b32.xlu0 %v84, 8
    %v86 = vpop.permute.xlu0 %85
    %vm87 = vcmask 130112
    %88 = vst.msk [vmem:[#allocation0] sm:$0x1] %vm87, %v86
    %s90 = ssub.s32 2, 1
    %v91 = vld [vmem:[#allocation0] sm:%s90]
    %s93 = ssub.s32 2, 1
    %94 = vst [vmem:[%s1] sm:%s93] %v91

// kernel: tile.127
$region0: #{tile.127}
  #allocation0 [shape = 's32[1]{0}', space=sflag, size = 0x4, scoped, tag = 'scoped memory for tile.127']
  %s0 = inlined_call_operand.vmem [shape: f32[8], index: 0, kind: input, shape index: {}]
  %s1 = inlined_call_operand.vmem [shape: f32[11,8], index: 1, kind: output, shape index: {}]
  // Predicated region
  $region2: #{tile.127} parent=0 // pred_check
    _
  $region3: #{tile.127} parent=0 // pred_check_branch
    %3 = sbr.rel (0) target = $region5
  $region4: #{tile.127} parent=0 // pred_region
    _
  $region5: #{tile.127} parent=0 // pred_fallthru
    _
  %v4 = vld [vmem:[%s0] ss:$0 sm:$0xff]
  %5 = vst [vmem:[%s1] sm:$0xff] %v4
  %s6 = scalar_lea.vmem %s1, 8
  %7 = vst [vmem:[%s6] sm:$0xff] %v4

// kernel: tile.133
$region0: #{tile.133}
  %s0 = inlined_call_operand.vmem [shape: f32[11,8], index: 0, kind: input, shape index: {}]
  %s1 = inlined_call_operand.vmem [shape: f32[1,88], index: 1, kind: output, shape index: {}]
  $region1: #{tile.133} parent=0
    #allocation0 [shape = 'u8[4096]{0}', space=vmem, size = 0x1000, scoped, tag = 'scoped mem for output reshape']
    %v2 = vld [vmem:[%s0] sm:$0x1]
    %vm3 = vcmask 64512
    %4 = vst.msk [vmem:[#allocation0] sm:$0x1] %vm3, %v2
    %s5 = scalar_lea.vmem %s0, 10
    %v6 = vld [vmem:[%s5] sm:$0x1]
    %7 = vrot.lane.b32.xlu0 %v6, 80
    %v8 = vpop.permute.xlu0 %7
    %vm9 = vcmask 720512
    %10 = vst.msk [vmem:[#allocation0] sm:$0x1] %vm9, %v8
    %s11 = scalar_lea.vmem %s0, 9
    %v12 = vld [vmem:[%s11] sm:$0x1]
    %13 = vrot.lane.b32.xlu0 %v12, 72
    %v14 = vpop.permute.xlu0 %13
    %vm15 = vcmask 654912
    %16 = vst.msk [vmem:[#allocation0] sm:$0x1] %vm15, %v14
    %s17 = scalar_lea.vmem %s0, 8
    %v18 = vld [vmem:[%s17] sm:$0x1]
    %19 = vrot.lane.b32.xlu0 %v18, 64
    %v20 = vpop.permute.xlu0 %19
    %vm21 = vcmask 589312
    %22 = vst.msk [vmem:[#allocation0] sm:$0x1] %vm21, %v20
    %s23 = scalar_lea.vmem %s0, 7
    %v24 = vld [vmem:[%s23] sm:$0x1]
    %25 = vrot.lane.b32.xlu0 %v24, 56
    %v26 = vpop.permute.xlu0 %25
    %vm27 = vcmask 523712
    %28 = vst.msk [vmem:[#allocation0] sm:$0x1] %vm27, %v26
    %s29 = scalar_lea.vmem %s0, 6
    %v30 = vld [vmem:[%s29] sm:$0x1]
    %31 = vrot.lane.b32.xlu0 %v30, 48
    %v32 = vpop.permute.xlu0 %31
    %vm33 = vcmask 458112
    %34 = vst.msk [vmem:[#allocation0] sm:$0x1] %vm33, %v32
    %s35 = scalar_lea.vmem %s0, 5
    %v36 = vld [vmem:[%s35] sm:$0x1]
    %37 = vrot.lane.b32.xlu0 %v36, 40
    %v38 = vpop.permute.xlu0 %37
    %vm39 = vcmask 392512
    %40 = vst.msk [vmem:[#allocation0] sm:$0x1] %vm39, %v38
    %s41 = scalar_lea.vmem %s0, 4
    %v42 = vld [vmem:[%s41] sm:$0x1]
    %43 = vrot.lane.b32.xlu0 %v42, 32
    %v44 = vpop.permute.xlu0 %43
    %vm45 = vcmask 326912
    %46 = vst.msk [vmem:[#allocation0] sm:$0x1] %vm45, %v44
    %s47 = scalar_lea.vmem %s0, 3
    %v48 = vld [vmem:[%s47] sm:$0x1]
    %49 = vrot.lane.b32.xlu0 %v48, 24
    %v50 = vpop.permute.xlu0 %49
    %vm51 = vcmask 261312
    %52 = vst.msk [vmem:[#allocation0] sm:$0x1] %vm51, %v50
    %s53 = scalar_lea.vmem %s0, 2
    %v54 = vld [vmem:[%s53] sm:$0x1]
    %55 = vrot.lane.b32.xlu0 %v54, 16
    %v56 = vpop.permute.xlu0 %55
    %vm57 = vcmask 195712
    %58 = vst.msk [vmem:[#allocation0] sm:$0x1] %vm57, %v56
    %s59 = scalar_lea.vmem %s0, 1
    %v60 = vld [vmem:[%s59] sm:$0x1]
    %61 = vrot.lane.b32.xlu0 %v60, 8
    %v62 = vpop.permute.xlu0 %61
    %vm63 = vcmask 130112
    %64 = vst.msk [vmem:[#allocation0] sm:$0x1] %vm63, %v62
    %s66 = ssub.s32 2, 1
    %v67 = vld [vmem:[#allocation0] sm:%s66]
    %s69 = ssub.s32 2, 1
    %70 = vst [vmem:[%s1] sm:%s69] %v67

// kernel: tile.187
$region0: #{tile.187}
  #allocation0 [shape = 's32[1]{0}', space=sflag, size = 0x4, scoped, tag = 'scoped memory for tile.187']
  %s0 = inlined_call_operand.vmem [shape: f32[8], index: 0, kind: input, shape index: {}]
  %s1 = inlined_call_operand.vmem [shape: f32[6,8], index: 1, kind: output, shape index: {}]
  // Predicated region
  $region2: #{tile.187} parent=0 // pred_check
    _
  $region3: #{tile.187} parent=0 // pred_check_branch
    %3 = sbr.rel (0) target = $region5
  $region4: #{tile.187} parent=0 // pred_region
    _
  $region5: #{tile.187} parent=0 // pred_fallthru
    _
  %v4 = vld [vmem:[%s0] ss:$0 sm:$0xff]
  %5 = vst [vmem:[%s1] sm:$0xff] %v4

// kernel: tile.193
$region0: #{tile.193}
  %s0 = inlined_call_operand.vmem [shape: f32[6,8], index: 0, kind: input, shape index: {}]
  %s1 = inlined_call_operand.vmem [shape: f32[1,48], index: 1, kind: output, shape index: {}]
  $region1: #{tile.193} parent=0
    #allocation0 [shape = 'u8[4096]{0}', space=vmem, size = 0x1000, scoped, tag = 'scoped mem for output reshape']
    %v2 = vld [vmem:[%s0] sm:$0x1]
    %vm3 = vcmask 64512
    %4 = vst.msk [vmem:[#allocation0] sm:$0x1] %vm3, %v2
    %s5 = scalar_lea.vmem %s0, 5
    %v6 = vld [vmem:[%s5] sm:$0x1]
    %7 = vrot.lane.b32.xlu0 %v6, 40
    %v8 = vpop.permute.xlu0 %7
    %vm9 = vcmask 392512
    %10 = vst.msk [vmem:[#allocation0] sm:$0x1] %vm9, %v8
    %s11 = scalar_lea.vmem %s0, 4
    %v12 = vld [vmem:[%s11] sm:$0x1]
    %13 = vrot.lane.b32.xlu0 %v12, 32
    %v14 = vpop.permute.xlu0 %13
    %vm15 = vcmask 326912
    %16 = vst.msk [vmem:[#allocation0] sm:$0x1] %vm15, %v14
    %s17 = scalar_lea.vmem %s0, 3
    %v18 = vld [vmem:[%s17] sm:$0x1]
    %19 = vrot.lane.b32.xlu0 %v18, 24
    %v20 = vpop.permute.xlu0 %19
    %vm21 = vcmask 261312
    %22 = vst.msk [vmem:[#allocation0] sm:$0x1] %vm21, %v20
    %s23 = scalar_lea.vmem %s0, 2
    %v24 = vld [vmem:[%s23] sm:$0x1]
    %25 = vrot.lane.b32.xlu0 %v24, 16
    %v26 = vpop.permute.xlu0 %25
    %vm27 = vcmask 195712
    %28 = vst.msk [vmem:[#allocation0] sm:$0x1] %vm27, %v26
    %s29 = scalar_lea.vmem %s0, 1
    %v30 = vld [vmem:[%s29] sm:$0x1]
    %31 = vrot.lane.b32.xlu0 %v30, 8
    %v32 = vpop.permute.xlu0 %31
    %vm33 = vcmask 130112
    %34 = vst.msk [vmem:[#allocation0] sm:$0x1] %vm33, %v32
    %s36 = ssub.s32 2, 1
    %v37 = vld [vmem:[#allocation0] sm:%s36]
    %s39 = ssub.s32 2, 1
    %40 = vst [vmem:[%s1] sm:%s39] %v37

// kernel: net_individual_forward.1
$region0: #{net_individual_forward.1}
  #allocation0 [shape = 'u32[]', space=smem, size = 0x4, offset = 0x4, fixed_abs, tag = 'smem constant byte address 0x4 - core index']
  #allocation1 [shape = 'u32[72,128]{1,0:T(1,128)}', space=vmem, size = 0x9000, scoped, tag = 'internal scratch']
  #allocation2 [shape = 'f32[12,120]{1,0:T(8,128)}', space=vmem, size = 0x2000, scoped, tag = 'scratch operand']
  #allocation3 [shape = 'f32[12,160]{1,0:T(8,128)}', space=vmem, size = 0x4000, scoped, tag = 'scratch operand']
  #allocation4 [shape = 'f32[12,192]{1,0:T(8,128)}', space=vmem, size = 0x4000, scoped, tag = 'scratch operand']
  #allocation5 [shape = 'f32[1,1]{1,0:T(1,128)S(1)}', space=vmem, size = 0x200, scoped, tag = 'scoped memory for net_individual_forward.1']
  %s0 = inlined_call_operand.vmem [shape: f32[2,16,456], index: 0, kind: input, shape index: {}]
  %s1 = inlined_call_operand.vmem [shape: f32[2280,120], index: 1, kind: input, shape index: {}]
  %s2 = inlined_call_operand.vmem [shape: f32[3,120], index: 2, kind: input, shape index: {}]
  %s3 = inlined_call_operand.vmem [shape: f32[600,88], index: 3, kind: input, shape index: {}]
  %s4 = inlined_call_operand.vmem [shape: f32[3,88], index: 4, kind: input, shape index: {}]
  %s5 = inlined_call_operand.vmem [shape: f32[2280,160], index: 5, kind: input, shape index: {}]
  %s6 = inlined_call_operand.vmem [shape: f32[3,160], index: 6, kind: input, shape index: {}]
  %s7 = inlined_call_operand.vmem [shape: f32[800,88], index: 7, kind: input, shape index: {}]
  %s8 = inlined_call_operand.vmem [shape: f32[3,88], index: 8, kind: input, shape index: {}]
  %s9 = inlined_call_operand.vmem [shape: f32[2280,192], index: 9, kind: input, shape index: {}]
  %s10 = inlined_call_operand.vmem [shape: f32[3,192], index: 10, kind: input, shape index: {}]
  %s11 = inlined_call_operand.vmem [shape: f32[960,48], index: 11, kind: input, shape index: {}]
  %s12 = inlined_call_operand.vmem [shape: f32[3,48], index: 12, kind: input, shape index: {}]
  %s13 = inlined_call_operand.vmem [shape: f32[1,88], index: 13, kind: input, shape index: {}]
  %s14 = inlined_call_operand.vmem [shape: f32[1,88], index: 14, kind: input, shape index: {}]
  %s15 = inlined_call_operand.vmem [shape: f32[1,48], index: 15, kind: input, shape index: {}]
  %s16 = inlined_call_operand.<no memory space> [shape: f32[1,1], index: 16, kind: input, shape index: {}]
  %s17 = inlined_call_operand.vmem [shape: f32[2,1,1], index: 17, kind: output, shape index: {}]
  %s18 = sld [smem:[#allocation0]]
  $region101: #{net_individual_forward.1} parent=0
    _
  %s20 = ssub.s32 1, %s18
  %s21 = scalar_select 0, %s20, %s18
  %v22 = vstv %s16
  %23 = vst [vmem:[#allocation5] sm:$0x1] %v22
  loop: start=0, step=1, limit=4
  $region2: #{net_individual_forward.1} parent=0 // loop_pre_header
    _
  $region3: #{net_individual_forward.1} parent=0 // loop_header
    %s25 = sphi 0, %s29
    %p26 = scmp.ge.s32.totalorder %s25, 4
    %s35 = sphi 0, %s37
    %s38 = sphi 0, %s35
    %s39 = sphi 0, %s38
    %s55 = sphi 0, %s39
    %s59 = sphi 0, %s59
    %s61 = sphi 0, %s59
    %s62 = sphi 0, %s61
    %s76 = sphi 0, %s62
    %s80 = sphi 0, %s80
    %s82 = sphi 0, %s80
    %s83 = sphi 0, %s82
    %s97 = sphi 0, %s83
    %s101 = sphi 0, %s101
    %s103 = sphi 0, %s101
    %s104 = sphi 0, %s103
    %s118 = sphi 0, %s104
    %s122 = sphi 0, %s122
    %s124 = sphi 0, %s122
    %s125 = sphi 0, %s124
    %s139 = sphi 0, %s125
    %s143 = sphi 0, %s143
    %s145 = sphi 0, %s143
    %s146 = sphi 0, %s145
    %s160 = sphi 0, %s146
    %s164 = sphi 0, %s164
    %s166 = sphi 0, %s164
    %s167 = sphi 0, %s166
    %s181 = sphi 0, %s167
    %s185 = sphi 0, %s185
    %s187 = sphi 0, %s185
    %s188 = sphi 0, %s187
    %s202 = sphi 0, %s188
    %s206 = sphi 0, %s206
    %s208 = sphi 0, %s206
    %s209 = sphi 0, %s208
    %s223 = sphi 0, %s209
    %s227 = sphi 0, %s227
    %s229 = sphi 0, %s227
    %s230 = sphi 0, %s229
    %s244 = sphi 0, %s230
    %s248 = sphi 0, %s248
    %s250 = sphi 0, %s248
    %s251 = sphi 0, %s250
    %s265 = sphi 0, %s251
    %s269 = sphi 0, %s269
    %s271 = sphi 0, %s269
    %s272 = sphi 0, %s271
    %s286 = sphi 0, %s272
    %s290 = sphi 0, %s290
    %s292 = sphi 0, %s290
    %s293 = sphi 0, %s292
    %s307 = sphi 0, %s293
    %s311 = sphi 0, %s311
    %s313 = sphi 0, %s311
    %s314 = sphi 0, %s313
    %s328 = sphi 0, %s314
    %s332 = sphi 0, %s332
    %s334 = sphi 0, %s332
    %s335 = sphi 0, %s334
    %s349 = sphi 0, %s335
    %s353 = sphi 0, %s353
    %s355 = sphi 0, %s353
    %s356 = sphi 0, %s355
    %s370 = sphi 0, %s356
    %s374 = sphi 0, %s374
    %s376 = sphi 0, %s374
    %s377 = sphi 0, %s376
    %s391 = sphi 0, %s377
    %s397 = sphi 0, %s399
    %s400 = sphi 0, %s397
    %s401 = sphi 0, %s400
    %s417 = sphi 0, %s401
  $region4: #{net_individual_forward.1} parent=0 // loop_header_branch
    %28 = sbr.rel (%p26) target = $region8
  $region5: #{net_individual_forward.1} parent=0 // loop_body
    %s30 = ssub.s32 %s25, 1
    %s31 = ssub.s32 %s25, 2
    %s32 = sadd.s32 %s25, 1
    %s33 = ssub.s32 %s25, %s32
    %p34 = scmp.eq.s32.totalorder %s33, 0
    %s36 = sadd.s32 %s35, 1
    %s37 = scalar_select %p34, %s35, %s36
    %p40 = pneg %p34
    %p41 = scmp.eq.s32.totalorder %s25, 1
    %p42 = por %p40, %p41
    %p43 = scmp.ne.s32.totalorder %s35, %s38
    %p44 = scmp.eq.s32.totalorder %s25, 0
    %p45 = por %p43, %p44
    %p46 = scmp.ne.s32.totalorder %s35, %s38
    %p47 = scmp.eq.s32.totalorder %s30, 1
    %p48 = por %p46, %p47
    %p49 = scmp.ne.s32.totalorder %s38, %s39
    %p50 = scmp.eq.s32.totalorder %s30, 0
    %p51 = por %p49, %p50
    %p52 = scmp.ne.s32.totalorder %s38, %s39
    %p53 = scmp.eq.s32.totalorder %s31, 1
    %p54 = por %p52, %p53
    %p56 = scmp.ne.s32.totalorder %s39, %s55
    %p57 = scmp.eq.s32.totalorder %s31, 0
    %p58 = por %p56, %p57
    %s60 = sadd.s32 %s59, 1
    %p63 = scmp.eq.s32.totalorder %s25, 1
    %p64 = scmp.ne.s32.totalorder %s59, %s61
    %p65 = scmp.eq.s32.totalorder %s25, 0
    %p66 = por %p64, %p65
    %p67 = scmp.ne.s32.totalorder %s59, %s61
    %p68 = scmp.eq.s32.totalorder %s30, 1
    %p69 = por %p67, %p68
    %p70 = scmp.ne.s32.totalorder %s61, %s62
    %p71 = scmp.eq.s32.totalorder %s30, 0
    %p72 = por %p70, %p71
    %p73 = scmp.ne.s32.totalorder %s61, %s62
    %p74 = scmp.eq.s32.totalorder %s31, 1
    %p75 = por %p73, %p74
    %p77 = scmp.ne.s32.totalorder %s62, %s76
    %p78 = scmp.eq.s32.totalorder %s31, 0
    %p79 = por %p77, %p78
    %s81 = sadd.s32 %s80, 1
    %p84 = scmp.eq.s32.totalorder %s25, 1
    %p85 = scmp.ne.s32.totalorder %s80, %s82
    %p86 = scmp.eq.s32.totalorder %s25, 0
    %p87 = por %p85, %p86
    %p88 = scmp.ne.s32.totalorder %s80, %s82
    %p89 = scmp.eq.s32.totalorder %s30, 1
    %p90 = por %p88, %p89
    %p91 = scmp.ne.s32.totalorder %s82, %s83
    %p92 = scmp.eq.s32.totalorder %s30, 0
    %p93 = por %p91, %p92
    %p94 = scmp.ne.s32.totalorder %s82, %s83
    %p95 = scmp.eq.s32.totalorder %s31, 1
    %p96 = por %p94, %p95
    %p98 = scmp.ne.s32.totalorder %s83, %s97
    %p99 = scmp.eq.s32.totalorder %s31, 0
    %p100 = por %p98, %p99
    %s102 = sadd.s32 %s101, 1
    %p105 = scmp.eq.s32.totalorder %s25, 1
    %p106 = scmp.ne.s32.totalorder %s101, %s103
    %p107 = scmp.eq.s32.totalorder %s25, 0
    %p108 = por %p106, %p107
    %p109 = scmp.ne.s32.totalorder %s101, %s103
    %p110 = scmp.eq.s32.totalorder %s30, 1
    %p111 = por %p109, %p110
    %p112 = scmp.ne.s32.totalorder %s103, %s104
    %p113 = scmp.eq.s32.totalorder %s30, 0
    %p114 = por %p112, %p113
    %p115 = scmp.ne.s32.totalorder %s103, %s104
    %p116 = scmp.eq.s32.totalorder %s31, 1
    %p117 = por %p115, %p116
    %p119 = scmp.ne.s32.totalorder %s104, %s118
    %p120 = scmp.eq.s32.totalorder %s31, 0
    %p121 = por %p119, %p120
    %s123 = sadd.s32 %s122, 1
    %p126 = scmp.eq.s32.totalorder %s25, 1
    %p127 = scmp.ne.s32.totalorder %s122, %s124
    %p128 = scmp.eq.s32.totalorder %s25, 0
    %p129 = por %p127, %p128
    %p130 = scmp.ne.s32.totalorder %s122, %s124
    %p131 = scmp.eq.s32.totalorder %s30, 1
    %p132 = por %p130, %p131
    %p133 = scmp.ne.s32.totalorder %s124, %s125
    %p134 = scmp.eq.s32.totalorder %s30, 0
    %p135 = por %p133, %p134
    %p136 = scmp.ne.s32.totalorder %s124, %s125
    %p137 = scmp.eq.s32.totalorder %s31, 1
    %p138 = por %p136, %p137
    %p140 = scmp.ne.s32.totalorder %s125, %s139
    %p141 = scmp.eq.s32.totalorder %s31, 0
    %p142 = por %p140, %p141
    %s144 = sadd.s32 %s143, 1
    %p147 = scmp.eq.s32.totalorder %s25, 1
    %p148 = scmp.ne.s32.totalorder %s143, %s145
    %p149 = scmp.eq.s32.totalorder %s25, 0
    %p150 = por %p148, %p149
    %p151 = scmp.ne.s32.totalorder %s143, %s145
    %p152 = scmp.eq.s32.totalorder %s30, 1
    %p153 = por %p151, %p152
    %p154 = scmp.ne.s32.totalorder %s145, %s146
    %p155 = scmp.eq.s32.totalorder %s30, 0
    %p156 = por %p154, %p155
    %p157 = scmp.ne.s32.totalorder %s145, %s146
    %p158 = scmp.eq.s32.totalorder %s31, 1
    %p159 = por %p157, %p158
    %p161 = scmp.ne.s32.totalorder %s146, %s160
    %p162 = scmp.eq.s32.totalorder %s31, 0
    %p163 = por %p161, %p162
    %s165 = sadd.s32 %s164, 1
    %p168 = scmp.eq.s32.totalorder %s25, 1
    %p169 = scmp.ne.s32.totalorder %s164, %s166
    %p170 = scmp.eq.s32.totalorder %s25, 0
    %p171 = por %p169, %p170
    %p172 = scmp.ne.s32.totalorder %s164, %s166
    %p173 = scmp.eq.s32.totalorder %s30, 1
    %p174 = por %p172, %p173
    %p175 = scmp.ne.s32.totalorder %s166, %s167
    %p176 = scmp.eq.s32.totalorder %s30, 0
    %p177 = por %p175, %p176
    %p178 = scmp.ne.s32.totalorder %s166, %s167
    %p179 = scmp.eq.s32.totalorder %s31, 1
    %p180 = por %p178, %p179
    %p182 = scmp.ne.s32.totalorder %s167, %s181
    %p183 = scmp.eq.s32.totalorder %s31, 0
    %p184 = por %p182, %p183
    %s186 = sadd.s32 %s185, 1
    %p189 = scmp.eq.s32.totalorder %s25, 1
    %p190 = scmp.ne.s32.totalorder %s185, %s187
    %p191 = scmp.eq.s32.totalorder %s25, 0
    %p192 = por %p190, %p191
    %p193 = scmp.ne.s32.totalorder %s185, %s187
    %p194 = scmp.eq.s32.totalorder %s30, 1
    %p195 = por %p193, %p194
    %p196 = scmp.ne.s32.totalorder %s187, %s188
    %p197 = scmp.eq.s32.totalorder %s30, 0
    %p198 = por %p196, %p197
    %p199 = scmp.ne.s32.totalorder %s187, %s188
    %p200 = scmp.eq.s32.totalorder %s31, 1
    %p201 = por %p199, %p200
    %p203 = scmp.ne.s32.totalorder %s188, %s202
    %p204 = scmp.eq.s32.totalorder %s31, 0
    %p205 = por %p203, %p204
    %s207 = sadd.s32 %s206, 1
    %p210 = scmp.eq.s32.totalorder %s25, 1
    %p211 = scmp.ne.s32.totalorder %s206, %s208
    %p212 = scmp.eq.s32.totalorder %s25, 0
    %p213 = por %p211, %p212
    %p214 = scmp.ne.s32.totalorder %s206, %s208
    %p215 = scmp.eq.s32.totalorder %s30, 1
    %p216 = por %p214, %p215
    %p217 = scmp.ne.s32.totalorder %s208, %s209
    %p218 = scmp.eq.s32.totalorder %s30, 0
    %p219 = por %p217, %p218
    %p220 = scmp.ne.s32.totalorder %s208, %s209
    %p221 = scmp.eq.s32.totalorder %s31, 1
    %p222 = por %p220, %p221
    %p224 = scmp.ne.s32.totalorder %s209, %s223
    %p225 = scmp.eq.s32.totalorder %s31, 0
    %p226 = por %p224, %p225
    %s228 = sadd.s32 %s227, 1
    %p231 = scmp.eq.s32.totalorder %s25, 1
    %p232 = scmp.ne.s32.totalorder %s227, %s229
    %p233 = scmp.eq.s32.totalorder %s25, 0
    %p234 = por %p232, %p233
    %p235 = scmp.ne.s32.totalorder %s227, %s229
    %p236 = scmp.eq.s32.totalorder %s30, 1
    %p237 = por %p235, %p236
    %p238 = scmp.ne.s32.totalorder %s229, %s230
    %p239 = scmp.eq.s32.totalorder %s30, 0
    %p240 = por %p238, %p239
    %p241 = scmp.ne.s32.totalorder %s229, %s230
    %p242 = scmp.eq.s32.totalorder %s31, 1
    %p243 = por %p241, %p242
    %p245 = scmp.ne.s32.totalorder %s230, %s244
    %p246 = scmp.eq.s32.totalorder %s31, 0
    %p247 = por %p245, %p246
    %s249 = sadd.s32 %s248, 1
    %p252 = scmp.eq.s32.totalorder %s25, 1
    %p253 = scmp.ne.s32.totalorder %s248, %s250
    %p254 = scmp.eq.s32.totalorder %s25, 0
    %p255 = por %p253, %p254
    %p256 = scmp.ne.s32.totalorder %s248, %s250
    %p257 = scmp.eq.s32.totalorder %s30, 1
    %p258 = por %p256, %p257
    %p259 = scmp.ne.s32.totalorder %s250, %s251
    %p260 = scmp.eq.s32.totalorder %s30, 0
    %p261 = por %p259, %p260
    %p262 = scmp.ne.s32.totalorder %s250, %s251
    %p263 = scmp.eq.s32.totalorder %s31, 1
    %p264 = por %p262, %p263
    %p266 = scmp.ne.s32.totalorder %s251, %s265
    %p267 = scmp.eq.s32.totalorder %s31, 0
    %p268 = por %p266, %p267
    %s270 = sadd.s32 %s269, 1
    %p273 = scmp.eq.s32.totalorder %s25, 1
    %p274 = scmp.ne.s32.totalorder %s269, %s271
    %p275 = scmp.eq.s32.totalorder %s25, 0
    %p276 = por %p274, %p275
    %p277 = scmp.ne.s32.totalorder %s269, %s271
    %p278 = scmp.eq.s32.totalorder %s30, 1
    %p279 = por %p277, %p278
    %p280 = scmp.ne.s32.totalorder %s271, %s272
    %p281 = scmp.eq.s32.totalorder %s30, 0
    %p282 = por %p280, %p281
    %p283 = scmp.ne.s32.totalorder %s271, %s272
    %p284 = scmp.eq.s32.totalorder %s31, 1
    %p285 = por %p283, %p284
    %p287 = scmp.ne.s32.totalorder %s272, %s286
    %p288 = scmp.eq.s32.totalorder %s31, 0
    %p289 = por %p287, %p288
    %s291 = sadd.s32 %s290, 1
    %p294 = scmp.eq.s32.totalorder %s25, 1
    %p295 = scmp.ne.s32.totalorder %s290, %s292
    %p296 = scmp.eq.s32.totalorder %s25, 0
    %p297 = por %p295, %p296
    %p298 = scmp.ne.s32.totalorder %s290, %s292
    %p299 = scmp.eq.s32.totalorder %s30, 1
    %p300 = por %p298, %p299
    %p301 = scmp.ne.s32.totalorder %s292, %s293
    %p302 = scmp.eq.s32.totalorder %s30, 0
    %p303 = por %p301, %p302
    %p304 = scmp.ne.s32.totalorder %s292, %s293
    %p305 = scmp.eq.s32.totalorder %s31, 1
    %p306 = por %p304, %p305
    %p308 = scmp.ne.s32.totalorder %s293, %s307
    %p309 = scmp.eq.s32.totalorder %s31, 0
    %p310 = por %p308, %p309
    %s312 = sadd.s32 %s311, 1
    %p315 = scmp.eq.s32.totalorder %s25, 1
    %p316 = scmp.ne.s32.totalorder %s311, %s313
    %p317 = scmp.eq.s32.totalorder %s25, 0
    %p318 = por %p316, %p317
    %p319 = scmp.ne.s32.totalorder %s311, %s313
    %p320 = scmp.eq.s32.totalorder %s30, 1
    %p321 = por %p319, %p320
    %p322 = scmp.ne.s32.totalorder %s313, %s314
    %p323 = scmp.eq.s32.totalorder %s30, 0
    %p324 = por %p322, %p323
    %p325 = scmp.ne.s32.totalorder %s313, %s314
    %p326 = scmp.eq.s32.totalorder %s31, 1
    %p327 = por %p325, %p326
    %p329 = scmp.ne.s32.totalorder %s314, %s328
    %p330 = scmp.eq.s32.totalorder %s31, 0
    %p331 = por %p329, %p330
    %s333 = sadd.s32 %s332, 1
    %p336 = scmp.eq.s32.totalorder %s25, 1
    %p337 = scmp.ne.s32.totalorder %s332, %s334
    %p338 = scmp.eq.s32.totalorder %s25, 0
    %p339 = por %p337, %p338
    %p340 = scmp.ne.s32.totalorder %s332, %s334
    %p341 = scmp.eq.s32.totalorder %s30, 1
    %p342 = por %p340, %p341
    %p343 = scmp.ne.s32.totalorder %s334, %s335
    %p344 = scmp.eq.s32.totalorder %s30, 0
    %p345 = por %p343, %p344
    %p346 = scmp.ne.s32.totalorder %s334, %s335
    %p347 = scmp.eq.s32.totalorder %s31, 1
    %p348 = por %p346, %p347
    %p350 = scmp.ne.s32.totalorder %s335, %s349
    %p351 = scmp.eq.s32.totalorder %s31, 0
    %p352 = por %p350, %p351
    %s354 = sadd.s32 %s353, 1
    %p357 = scmp.eq.s32.totalorder %s25, 1
    %p358 = scmp.ne.s32.totalorder %s353, %s355
    %p359 = scmp.eq.s32.totalorder %s25, 0
    %p360 = por %p358, %p359
    %p361 = scmp.ne.s32.totalorder %s353, %s355
    %p362 = scmp.eq.s32.totalorder %s30, 1
    %p363 = por %p361, %p362
    %p364 = scmp.ne.s32.totalorder %s355, %s356
    %p365 = scmp.eq.s32.totalorder %s30, 0
    %p366 = por %p364, %p365
    %p367 = scmp.ne.s32.totalorder %s355, %s356
    %p368 = scmp.eq.s32.totalorder %s31, 1
    %p369 = por %p367, %p368
    %p371 = scmp.ne.s32.totalorder %s356, %s370
    %p372 = scmp.eq.s32.totalorder %s31, 0
    %p373 = por %p371, %p372
    %s375 = sadd.s32 %s374, 1
    %p378 = scmp.eq.s32.totalorder %s25, 1
    %p379 = scmp.ne.s32.totalorder %s374, %s376
    %p380 = scmp.eq.s32.totalorder %s25, 0
    %p381 = por %p379, %p380
    %p382 = scmp.ne.s32.totalorder %s374, %s376
    %p383 = scmp.eq.s32.totalorder %s30, 1
    %p384 = por %p382, %p383
    %p385 = scmp.ne.s32.totalorder %s376, %s377
    %p386 = scmp.eq.s32.totalorder %s30, 0
    %p387 = por %p385, %p386
    %p388 = scmp.ne.s32.totalorder %s376, %s377
    %p389 = scmp.eq.s32.totalorder %s31, 1
    %p390 = por %p388, %p389
    %p392 = scmp.ne.s32.totalorder %s377, %s391
    %p393 = scmp.eq.s32.totalorder %s31, 0
    %p394 = por %p392, %p393
    %s395 = ssub.s32 %s25, %s32
    %p396 = scmp.eq.s32.totalorder %s395, 0
    %s398 = sadd.s32 %s397, 1
    %s399 = scalar_select %p396, %s397, %s398
    %p402 = pneg %p396
    %p403 = scmp.eq.s32.totalorder %s25, 1
    %p404 = por %p402, %p403
    %p405 = scmp.ne.s32.totalorder %s397, %s400
    %p406 = scmp.eq.s32.totalorder %s25, 0
    %p407 = por %p405, %p406
    %p408 = scmp.ne.s32.totalorder %s397, %s400
    %p409 = scmp.eq.s32.totalorder %s30, 1
    %p410 = por %p408, %p409
    %p411 = scmp.ne.s32.totalorder %s400, %s401
    %p412 = scmp.eq.s32.totalorder %s30, 0
    %p413 = por %p411, %p412
    %p414 = scmp.ne.s32.totalorder %s400, %s401
    %p415 = scmp.eq.s32.totalorder %s31, 1
    %p416 = por %p414, %p415
    %p418 = scmp.ne.s32.totalorder %s401, %s417
    %p419 = scmp.eq.s32.totalorder %s31, 0
    %p420 = por %p418, %p419
    %p421 = scmp.le.s32.totalorder 1, %s25
    %p422 = scmp.lt.s32.totalorder %s25, 3
    %p423 = pnand %p421, %p422
    %p424 = pneg %p423
    // Predicated region
    $region9: #{net_individual_forward.1} parent=5 // pred_check
      _
    $region10: #{net_individual_forward.1} parent=5 // pred_check_branch
      %426 = sbr.rel (%p423) target = $region12
    $region11: #{net_individual_forward.1} parent=5 // pred_region
      %s427 = ssub.s32 %s25, 1
      // Predicated region
      $region13: #{net_individual_forward.1} parent=11 // pred_check
        %p428 = pneg %p72
      $region14: #{net_individual_forward.1} parent=11 // pred_check_branch
        %430 = sbr.rel (%p428) target = $region16
      $region15: #{net_individual_forward.1} parent=11 // pred_region
        _
      $region16: #{net_individual_forward.1} parent=11 // pred_fallthru
        _
      // Predicated region
      $region17: #{net_individual_forward.1} parent=11 // pred_check
        %p431 = pneg %p93
      $region18: #{net_individual_forward.1} parent=11 // pred_check_branch
        %433 = sbr.rel (%p431) target = $region20
      $region19: #{net_individual_forward.1} parent=11 // pred_region
        _
      $region20: #{net_individual_forward.1} parent=11 // pred_fallthru
        _
      // Predicated region
      $region21: #{net_individual_forward.1} parent=11 // pred_check
        %p434 = pneg %p114
      $region22: #{net_individual_forward.1} parent=11 // pred_check_branch
        %436 = sbr.rel (%p434) target = $region24
      $region23: #{net_individual_forward.1} parent=11 // pred_region
        _
      $region24: #{net_individual_forward.1} parent=11 // pred_fallthru
        _
      // Predicated region
      $region25: #{net_individual_forward.1} parent=11 // pred_check
        %p437 = pneg %p135
      $region26: #{net_individual_forward.1} parent=11 // pred_check_branch
        %439 = sbr.rel (%p437) target = $region28
      $region27: #{net_individual_forward.1} parent=11 // pred_region
        _
      $region28: #{net_individual_forward.1} parent=11 // pred_fallthru
        _
      // Predicated region
      $region29: #{net_individual_forward.1} parent=11 // pred_check
        %p440 = pneg %p156
      $region30: #{net_individual_forward.1} parent=11 // pred_check_branch
        %442 = sbr.rel (%p440) target = $region32
      $region31: #{net_individual_forward.1} parent=11 // pred_region
        _
      $region32: #{net_individual_forward.1} parent=11 // pred_fallthru
        _
      // Predicated region
      $region33: #{net_individual_forward.1} parent=11 // pred_check
        %p443 = pneg %p177
      $region34: #{net_individual_forward.1} parent=11 // pred_check_branch
        %445 = sbr.rel (%p443) target = $region36
      $region35: #{net_individual_forward.1} parent=11 // pred_region
        _
      $region36: #{net_individual_forward.1} parent=11 // pred_fallthru
        _
      // Predicated region
      $region37: #{net_individual_forward.1} parent=11 // pred_check
        %p446 = pneg %p198
      $region38: #{net_individual_forward.1} parent=11 // pred_check_branch
        %448 = sbr.rel (%p446) target = $region40
      $region39: #{net_individual_forward.1} parent=11 // pred_region
        _
      $region40: #{net_individual_forward.1} parent=11 // pred_fallthru
        _
      // Predicated region
      $region41: #{net_individual_forward.1} parent=11 // pred_check
        %p449 = pneg %p219
      $region42: #{net_individual_forward.1} parent=11 // pred_check_branch
        %451 = sbr.rel (%p449) target = $region44
      $region43: #{net_individual_forward.1} parent=11 // pred_region
        _
      $region44: #{net_individual_forward.1} parent=11 // pred_fallthru
        _
      // Predicated region
      $region45: #{net_individual_forward.1} parent=11 // pred_check
        %p452 = pneg %p240
      $region46: #{net_individual_forward.1} parent=11 // pred_check_branch
        %454 = sbr.rel (%p452) target = $region48
      $region47: #{net_individual_forward.1} parent=11 // pred_region
        _
      $region48: #{net_individual_forward.1} parent=11 // pred_fallthru
        _
      // Predicated region
      $region49: #{net_individual_forward.1} parent=11 // pred_check
        %p455 = pneg %p261
      $region50: #{net_individual_forward.1} parent=11 // pred_check_branch
        %457 = sbr.rel (%p455) target = $region52
      $region51: #{net_individual_forward.1} parent=11 // pred_region
        _
      $region52: #{net_individual_forward.1} parent=11 // pred_fallthru
        _
      // Predicated region
      $region53: #{net_individual_forward.1} parent=11 // pred_check
        %p458 = pneg %p282
      $region54: #{net_individual_forward.1} parent=11 // pred_check_branch
        %460 = sbr.rel (%p458) target = $region56
      $region55: #{net_individual_forward.1} parent=11 // pred_region
        _
      $region56: #{net_individual_forward.1} parent=11 // pred_fallthru
        _
      // Predicated region
      $region57: #{net_individual_forward.1} parent=11 // pred_check
        %p461 = pneg %p303
      $region58: #{net_individual_forward.1} parent=11 // pred_check_branch
        %463 = sbr.rel (%p461) target = $region60
      $region59: #{net_individual_forward.1} parent=11 // pred_region
        _
      $region60: #{net_individual_forward.1} parent=11 // pred_fallthru
        _
      // Predicated region
      $region61: #{net_individual_forward.1} parent=11 // pred_check
        %p464 = pneg %p324
      $region62: #{net_individual_forward.1} parent=11 // pred_check_branch
        %466 = sbr.rel (%p464) target = $region64
      $region63: #{net_individual_forward.1} parent=11 // pred_region
        _
      $region64: #{net_individual_forward.1} parent=11 // pred_fallthru
        _
      // Predicated region
      $region65: #{net_individual_forward.1} parent=11 // pred_check
        %p467 = pneg %p345
      $region66: #{net_individual_forward.1} parent=11 // pred_check_branch
        %469 = sbr.rel (%p467) target = $region68
      $region67: #{net_individual_forward.1} parent=11 // pred_region
        _
      $region68: #{net_individual_forward.1} parent=11 // pred_fallthru
        _
      // Predicated region
      $region69: #{net_individual_forward.1} parent=11 // pred_check
        %p470 = pneg %p366
      $region70: #{net_individual_forward.1} parent=11 // pred_check_branch
        %472 = sbr.rel (%p470) target = $region72
      $region71: #{net_individual_forward.1} parent=11 // pred_region
        _
      $region72: #{net_individual_forward.1} parent=11 // pred_fallthru
        _
      // Predicated region
      $region73: #{net_individual_forward.1} parent=11 // pred_check
        %p473 = pneg %p387
      $region74: #{net_individual_forward.1} parent=11 // pred_check_branch
        %475 = sbr.rel (%p473) target = $region76
      $region75: #{net_individual_forward.1} parent=11 // pred_region
        _
      $region76: #{net_individual_forward.1} parent=11 // pred_fallthru
        _
    $region12: #{net_individual_forward.1} parent=5 // pred_fallthru
      _
    %p476 = scmp.lt.s32.totalorder %s25, 2
    // Predicated region
    $region77: #{net_individual_forward.1} parent=5 // pred_check
      %p477 = pneg %p476
    $region78: #{net_individual_forward.1} parent=5 // pred_check_branch
      %479 = sbr.rel (%p477) target = $region80
    $region79: #{net_individual_forward.1} parent=5 // pred_region
      // Predicated region
      $region81: #{net_individual_forward.1} parent=79 // pred_check
        %p480 = pneg %p45
      $region82: #{net_individual_forward.1} parent=79 // pred_check_branch
        %482 = sbr.rel (%p480) target = $region84
      $region83: #{net_individual_forward.1} parent=79 // pred_region
        %p483 = scmp.lt.s32.totalorder %s25, 1
        %s484 = scalar_select %p483, %s25, 1
        %s485 = smul.addr %s484, 8
        %s486 = smul.addr %s485, 8
        %s487 = scalar_lea.vmem %s0, %s486
      $region84: #{net_individual_forward.1} parent=79 // pred_fallthru
        _
    $region80: #{net_individual_forward.1} parent=5 // pred_fallthru
      _
    %p488 = scmp.le.s32.totalorder 1, %s25
    %p489 = scmp.lt.s32.totalorder %s25, 3
    %p490 = pnand %p488, %p489
    %p491 = pneg %p490
    // Predicated region
    $region85: #{net_individual_forward.1} parent=5 // pred_check
      _
    $region86: #{net_individual_forward.1} parent=5 // pred_check_branch
      %493 = sbr.rel (%p490) target = $region88
    $region87: #{net_individual_forward.1} parent=5 // pred_region
      %s494 = ssub.s32 %s25, 1
      %p495 = scmp.lt.s32.totalorder %s30, 1
      %s496 = scalar_select %p495, %s30, 1
      %s497 = smul.addr %s496, 8
      %s498 = smul.addr %s497, 8
      %s499 = scalar_lea.vmem %s0, %s498
      %p500 = pneg %p51
      %p501 = pneg %p48
      %p502 = pneg %p72
      %p503 = pneg %p69
      %p504 = pneg %p93
      %p505 = pneg %p90
      %p506 = pneg %p114
      %p507 = pneg %p111
      %p508 = pneg %p135
      %p509 = pneg %p132
      %p510 = pneg %p156
      %p511 = pneg %p153
      %p512 = pneg %p177
      %p513 = pneg %p174
      %p514 = pneg %p198
      %p515 = pneg %p195
      %p516 = pneg %p219
      %p517 = pneg %p216
      %p518 = pneg %p240
      %p519 = pneg %p237
      %p520 = pneg %p261
      %p521 = pneg %p258
      %p522 = pneg %p282
      %p523 = pneg %p279
      %p524 = pneg %p303
      %p525 = pneg %p300
      %p526 = pneg %p324
      %p527 = pneg %p321
      %p528 = pneg %p345
      %p529 = pneg %p342
      %p530 = pneg %p366
      %p531 = pneg %p363
      %p532 = pneg %p387
      %p533 = pneg %p384
      %p534 = pneg %p413
      %p535 = pneg %p410
      %p536 = scmp.lt.s32.totalorder %s30, 1
      %s537 = scalar_select %p536, %s30, 1
      %s538 = scalar_lea.vmem %s17, %s537
      %p539 = scmp.lt.s32.totalorder %s30, 1
      %s540 = scalar_select %p539, %s30, 1
      %s541 = smul.addr %s540, 8
      %s542 = smul.addr %s541, 8
      %s543 = scalar_lea.vmem %s0, %s542
      %p544 = scmp.lt.s32.totalorder %s30, 1
      %s545 = scalar_select %p544, %s30, 1
      %s546 = scalar_lea.vmem %s17, %s545
      %v547 = vld [vmem:[%s543] sm:$0xff]
      %v548 = vld [vmem:[%s543 + $0x8] sm:$0xff]
      %v549 = vld [vmem:[%s543 + $0x10] sm:$0xff]
      %v550 = vld [vmem:[%s543 + $0x18] sm:$0xff]
      %v551 = vld [vmem:[%s543 + $0x20] sm:$0xf]
      %v552 = vld [vmem:[%s543 + $0x28] sm:$0xf]
      %v553 = vld [vmem:[%s543 + $0x30] sm:$0xf]
      %v554 = vld [vmem:[%s543 + $0x38] sm:$0xf]
      %v555 = vld [vmem:[%s1] sm:$0xff]
      %v556 = vld [vmem:[%s1 + $0x8] sm:$0xff]
      %v557 = vld [vmem:[%s1 + $0x10] sm:$0xff]
      %v558 = vld [vmem:[%s1 + $0x18] sm:$0xff]
      %v559 = vld [vmem:[%s1 + $0x20] sm:$0xff]
      %v560 = vld [vmem:[%s1 + $0x28] sm:$0xff]
      %v561 = vld [vmem:[%s1 + $0x30] sm:$0xff]
      %v562 = vld [vmem:[%s1 + $0x38] sm:$0xff]
      %v563 = vld [vmem:[%s1 + $0x40] sm:$0xff]
      %v564 = vld [vmem:[%s1 + $0x48] sm:$0xff]
      %v565 = vld [vmem:[%s1 + $0x50] sm:$0xff]
      %v566 = vld [vmem:[%s1 + $0x58] sm:$0xff]
      %v567 = vld [vmem:[%s1 + $0x60] sm:$0xff]
      %v568 = vld [vmem:[%s1 + $0x68] sm:$0xff]
      %v569 = vld [vmem:[%s1 + $0x70] sm:$0xff]
      %v570 = vld [vmem:[%s1 + $0x78] sm:$0xff]
      %v571 = vld [vmem:[%s1 + $0x80] sm:$0xff]
      %v572 = vld [vmem:[%s1 + $0x88] sm:$0xff]
      %v573 = vld [vmem:[%s1 + $0x90] sm:$0xff]
      %v574 = vld [vmem:[%s1 + $0x98] sm:$0xff]
      %v575 = vld [vmem:[%s1 + $0xa0] sm:$0xff]
      %v576 = vld [vmem:[%s1 + $0xa8] sm:$0xff]
      %v577 = vld [vmem:[%s1 + $0xb0] sm:$0xff]
      %v578 = vld [vmem:[%s1 + $0xb8] sm:$0xff]
      %v579 = vld [vmem:[%s1 + $0xc0] sm:$0xff]
      %v580 = vld [vmem:[%s1 + $0xc8] sm:$0xff]
      %v581 = vld [vmem:[%s1 + $0xd0] sm:$0xff]
      %v582 = vld [vmem:[%s1 + $0xd8] sm:$0xff]
      %v583 = vld [vmem:[%s1 + $0xe0] sm:$0xff]
      %v584 = vld [vmem:[%s1 + $0xe8] sm:$0xff]
      %v585 = vld [vmem:[%s1 + $0xf0] sm:$0xff]
      %v586 = vld [vmem:[%s1 + $0xf8] sm:$0xff]
      %v587 = vld [vmem:[%s1 + $0x100] sm:$0xff]
      %v588 = vld [vmem:[%s1 + $0x108] sm:$0xff]
      %v589 = vld [vmem:[%s1 + $0x110] sm:$0xff]
      %v590 = vld [vmem:[%s1 + $0x118] sm:$0xff]
      %v591 = vld [vmem:[%s1 + $0x120] sm:$0xff]
      %v592 = vld [vmem:[%s1 + $0x128] sm:$0xff]
      %v593 = vld [vmem:[%s1 + $0x130] sm:$0xff]
      %v594 = vld [vmem:[%s1 + $0x138] sm:$0xff]
      %v595 = vld [vmem:[%s1 + $0x140] sm:$0xff]
      %v596 = vld [vmem:[%s1 + $0x148] sm:$0xff]
      %v597 = vld [vmem:[%s1 + $0x150] sm:$0xff]
      %v598 = vld [vmem:[%s1 + $0x158] sm:$0xff]
      %v599 = vld [vmem:[%s1 + $0x160] sm:$0xff]
      %v600 = vld [vmem:[%s1 + $0x168] sm:$0xff]
      %v601 = vld [vmem:[%s1 + $0x170] sm:$0xff]
      %v602 = vld [vmem:[%s1 + $0x178] sm:$0xff]
      %v603 = vld [vmem:[%s1 + $0x180] sm:$0xff]
      %v604 = vld [vmem:[%s1 + $0x188] sm:$0xff]
      %v605 = vld [vmem:[%s1 + $0x190] sm:$0xff]
      %v606 = vld [vmem:[%s1 + $0x198] sm:$0xff]
      %v607 = vld [vmem:[%s1 + $0x1a0] sm:$0xff]
      %v608 = vld [vmem:[%s1 + $0x1a8] sm:$0xff]
      %v609 = vld [vmem:[%s1 + $0x1b0] sm:$0xff]
      %v610 = vld [vmem:[%s1 + $0x1b8] sm:$0xff]
      %v611 = vld [vmem:[%s1 + $0x1c0] sm:$0xff]
      %v612 = vld [vmem:[%s543] sm:$0xfe]
      %v613 = vld [vmem:[%s543 + $0x8] sm:$0xfe]
      %v614 = vld [vmem:[%s543 + $0x10] sm:$0xfe]
      %v615 = vld [vmem:[%s543 + $0x18] sm:$0xfe]
      %v616 = vld [vmem:[%s543 + $0x20] sm:$0x1f]
      %v617 = vld [vmem:[%s543 + $0x28] sm:$0x1f]
      %v618 = vld [vmem:[%s543 + $0x30] sm:$0x1f]
      %v619 = vld [vmem:[%s543 + $0x38] sm:$0x1f]
      %v620 = vld [vmem:[%s1 + $0x1c8] sm:$0xff]
      %v621 = vld [vmem:[%s1 + $0x1d0] sm:$0xff]
      %v622 = vld [vmem:[%s1 + $0x1d8] sm:$0xff]
      %v623 = vld [vmem:[%s1 + $0x1e0] sm:$0xff]
      %v624 = vld [vmem:[%s1 + $0x1e8] sm:$0xff]
      %v625 = vld [vmem:[%s1 + $0x1f0] sm:$0xff]
      %v626 = vld [vmem:[%s1 + $0x1f8] sm:$0xff]
      %v627 = vld [vmem:[%s1 + $0x200] sm:$0xff]
      %v628 = vld [vmem:[%s1 + $0x208] sm:$0xff]
      %v629 = vld [vmem:[%s1 + $0x210] sm:$0xff]
      %v630 = vld [vmem:[%s1 + $0x218] sm:$0xff]
      %v631 = vld [vmem:[%s1 + $0x220] sm:$0xff]
      %v632 = vld [vmem:[%s1 + $0x228] sm:$0xff]
      %v633 = vld [vmem:[%s1 + $0x230] sm:$0xff]
      %v634 = vld [vmem:[%s1 + $0x238] sm:$0xff]
      %v635 = vld [vmem:[%s1 + $0x240] sm:$0xff]
      %v636 = vld [vmem:[%s1 + $0x248] sm:$0xff]
      %v637 = vld [vmem:[%s1 + $0x250] sm:$0xff]
      %v638 = vld [vmem:[%s1 + $0x258] sm:$0xff]
      %v639 = vld [vmem:[%s1 + $0x260] sm:$0xff]
      %v640 = vld [vmem:[%s1 + $0x268] sm:$0xff]
      %v641 = vld [vmem:[%s1 + $0x270] sm:$0xff]
      %v642 = vld [vmem:[%s1 + $0x278] sm:$0xff]
      %v643 = vld [vmem:[%s1 + $0x280] sm:$0xff]
      %v644 = vld [vmem:[%s1 + $0x288] sm:$0xff]
      %v645 = vld [vmem:[%s1 + $0x290] sm:$0xff]
      %v646 = vld [vmem:[%s1 + $0x298] sm:$0xff]
      %v647 = vld [vmem:[%s1 + $0x2a0] sm:$0xff]
      %v648 = vld [vmem:[%s1 + $0x2a8] sm:$0xff]
      %v649 = vld [vmem:[%s1 + $0x2b0] sm:$0xff]
      %v650 = vld [vmem:[%s1 + $0x2b8] sm:$0xff]
      %v651 = vld [vmem:[%s1 + $0x2c0] sm:$0xff]
      %v652 = vld [vmem:[%s1 + $0x2c8] sm:$0xff]
      %v653 = vld [vmem:[%s1 + $0x2d0] sm:$0xff]
      %v654 = vld [vmem:[%s1 + $0x2d8] sm:$0xff]
      %v655 = vld [vmem:[%s1 + $0x2e0] sm:$0xff]
      %v656 = vld [vmem:[%s1 + $0x2e8] sm:$0xff]
      %v657 = vld [vmem:[%s1 + $0x2f0] sm:$0xff]
      %v658 = vld [vmem:[%s1 + $0x2f8] sm:$0xff]
      %v659 = vld [vmem:[%s1 + $0x300] sm:$0xff]
      %v660 = vld [vmem:[%s1 + $0x308] sm:$0xff]
      %v661 = vld [vmem:[%s1 + $0x310] sm:$0xff]
      %v662 = vld [vmem:[%s1 + $0x318] sm:$0xff]
      %v663 = vld [vmem:[%s1 + $0x320] sm:$0xff]
      %v664 = vld [vmem:[%s1 + $0x328] sm:$0xff]
      %v665 = vld [vmem:[%s1 + $0x330] sm:$0xff]
      %v666 = vld [vmem:[%s1 + $0x338] sm:$0xff]
      %v667 = vld [vmem:[%s1 + $0x340] sm:$0xff]
      %v668 = vld [vmem:[%s1 + $0x348] sm:$0xff]
      %v669 = vld [vmem:[%s1 + $0x350] sm:$0xff]
      %v670 = vld [vmem:[%s1 + $0x358] sm:$0xff]
      %v671 = vld [vmem:[%s1 + $0x360] sm:$0xff]
      %v672 = vld [vmem:[%s1 + $0x368] sm:$0xff]
      %v673 = vld [vmem:[%s1 + $0x370] sm:$0xff]
      %v674 = vld [vmem:[%s1 + $0x378] sm:$0xff]
      %v675 = vld [vmem:[%s1 + $0x380] sm:$0xff]
      %v676 = vld [vmem:[%s1 + $0x388] sm:$0xff]
      %vm685 = vcmask 1046528
      %v686 = vrot.slane %v612, 1
      %v687 = vrot.slane %v616, 1
      %v688 = vsel %vm685, %v686, %v687
      %v689 = vrot.slane %v613, 1
      %v690 = vrot.slane %v617, 1
      %v691 = vsel %vm685, %v689, %v690
      %v692 = vrot.slane %v614, 1
      %v693 = vrot.slane %v618, 1
      %v694 = vsel %vm685, %v692, %v693
      %v695 = vrot.slane %v615, 1
      %v696 = vrot.slane %v619, 1
      %v697 = vsel %vm685, %v695, %v696
      %vm704 = vcmask 588800
      %v705 = vsel %vm704, %v697, 0
      %v707 = vsel %vm704, %v696, 0
      %709 = vmatpush.msra.mxu0 %v635
      %710 = vmatpush.msra.mxu0 %v634
      %711 = vmatpush.msra.mxu0 %v633
      %712 = vmatpush.msra.mxu0 %v632
      %713 = vmatpush.msra.mxu0 %v631
      %714 = vmatpush.msra.mxu0 %v630
      %715 = vmatpush.msra.mxu0 %v629
      %716 = vmatpush.msra.mxu0 %v628
      %717 = vmatpush.msra.mxu0 %v627
      %718 = vmatpush.msra.mxu0 %v626
      %719 = vmatpush.msra.mxu0 %v625
      %720 = vmatpush.msra.mxu0 %v624
      %721 = vmatpush.msra.mxu0 %v623
      %722 = vmatpush.msra.mxu0 %v622
      %723 = vmatpush.msra.mxu0 %v621
      %724 = vmatpush.msra.mxu0 %v620
      %725 = vmatmul.f32.gmra.mxu0 %v688
      %v726 = vpop.f32.mrf.mxu0
      %v727 = vadd.f32 0.0, %v726
      %728 = vmatmul.f32.gmra.mxu0 %v687
      %v729 = vpop.f32.mrf.mxu0
      %v730 = vadd.f32 0.0, %v729
      %731 = vdwg.mxu0
      %732 = vmatpush.msra.mxu0 %v651
      %733 = vmatpush.msra.mxu0 %v650
      %734 = vmatpush.msra.mxu0 %v649
      %735 = vmatpush.msra.mxu0 %v648
      %736 = vmatpush.msra.mxu0 %v647
      %737 = vmatpush.msra.mxu0 %v646
      %738 = vmatpush.msra.mxu0 %v645
      %739 = vmatpush.msra.mxu0 %v644
      %740 = vmatpush.msra.mxu0 %v643
      %741 = vmatpush.msra.mxu0 %v642
      %742 = vmatpush.msra.mxu0 %v641
      %743 = vmatpush.msra.mxu0 %v640
      %744 = vmatpush.msra.mxu0 %v639
      %745 = vmatpush.msra.mxu0 %v638
      %746 = vmatpush.msra.mxu0 %v637
      %747 = vmatpush.msra.mxu0 %v636
      %748 = vmatmul.f32.gmra.mxu0 %v691
      %v749 = vpop.f32.mrf.mxu0
      %v750 = vadd.f32 %v727, %v749
      %751 = vmatmul.f32.gmra.mxu0 %v690
      %v752 = vpop.f32.mrf.mxu0
      %v753 = vadd.f32 %v730, %v752
      %754 = vdwg.mxu0
      %755 = vmatpush.msra.mxu0 %v667
      %756 = vmatpush.msra.mxu0 %v666
      %757 = vmatpush.msra.mxu0 %v665
      %758 = vmatpush.msra.mxu0 %v664
      %759 = vmatpush.msra.mxu0 %v663
      %760 = vmatpush.msra.mxu0 %v662
      %761 = vmatpush.msra.mxu0 %v661
      %762 = vmatpush.msra.mxu0 %v660
      %763 = vmatpush.msra.mxu0 %v659
      %764 = vmatpush.msra.mxu0 %v658
      %765 = vmatpush.msra.mxu0 %v657
      %766 = vmatpush.msra.mxu0 %v656
      %767 = vmatpush.msra.mxu0 %v655
      %768 = vmatpush.msra.mxu0 %v654
      %769 = vmatpush.msra.mxu0 %v653
      %770 = vmatpush.msra.mxu0 %v652
      %771 = vmatmul.f32.gmra.mxu0 %v694
      %v772 = vpop.f32.mrf.mxu0
      %v773 = vadd.f32 %v750, %v772
      %774 = vmatmul.f32.gmra.mxu0 %v693
      %v775 = vpop.f32.mrf.mxu0
      %v776 = vadd.f32 %v753, %v775
      %777 = vdwg.mxu0
      %778 = vmatpush.msra.mxu0 0.0
      %779 = vmatpush.msra.mxu0 0.0
      %780 = vmatpush.msra.mxu0 0.0
      %781 = vmatpush.msra.mxu0 0.0
      %782 = vmatpush.msra.mxu0 0.0
      %783 = vmatpush.msra.mxu0 0.0
      %784 = vmatpush.msra.mxu0 0.0
      %785 = vmatpush.msra.mxu0 %v676
      %786 = vmatpush.msra.mxu0 %v675
      %787 = vmatpush.msra.mxu0 %v674
      %788 = vmatpush.msra.mxu0 %v673
      %789 = vmatpush.msra.mxu0 %v672
      %790 = vmatpush.msra.mxu0 %v671
      %791 = vmatpush.msra.mxu0 %v670
      %792 = vmatpush.msra.mxu0 %v669
      %793 = vmatpush.msra.mxu0 %v668
      %794 = vmatmul.f32.gmra.mxu0 %v705
      %v795 = vpop.f32.mrf.mxu0
      %v796 = vadd.f32 %v773, %v795
      %797 = vmatmul.f32.gmra.mxu0 %v707
      %v798 = vpop.f32.mrf.mxu0
      %v799 = vadd.f32 %v776, %v798
      %800 = vdwg.mxu0
      %v802 = vsel %vm704, %v550, 0
      %v805 = vsel %vm704, %v554, 0
      %807 = vmatpush.msra.mxu0 %v570
      %808 = vmatpush.msra.mxu0 %v569
      %809 = vmatpush.msra.mxu0 %v568
      %810 = vmatpush.msra.mxu0 %v567
      %811 = vmatpush.msra.mxu0 %v566
      %812 = vmatpush.msra.mxu0 %v565
      %813 = vmatpush.msra.mxu0 %v564
      %814 = vmatpush.msra.mxu0 %v563
      %815 = vmatpush.msra.mxu0 %v562
      %816 = vmatpush.msra.mxu0 %v561
      %817 = vmatpush.msra.mxu0 %v560
      %818 = vmatpush.msra.mxu0 %v559
      %819 = vmatpush.msra.mxu0 %v558
      %820 = vmatpush.msra.mxu0 %v557
      %821 = vmatpush.msra.mxu0 %v556
      %822 = vmatpush.msra.mxu0 %v555
      %823 = vmatmul.f32.gmra.mxu0 %v547
      %v824 = vpop.f32.mrf.mxu0
      %v825 = vadd.f32 %v796, %v824
      %826 = vmatmul.f32.gmra.mxu0 %v551
      %v827 = vpop.f32.mrf.mxu0
      %v828 = vadd.f32 %v799, %v827
      %829 = vdwg.mxu0
      %830 = vmatpush.msra.mxu0 %v586
      %831 = vmatpush.msra.mxu0 %v585
      %832 = vmatpush.msra.mxu0 %v584
      %833 = vmatpush.msra.mxu0 %v583
      %834 = vmatpush.msra.mxu0 %v582
      %835 = vmatpush.msra.mxu0 %v581
      %836 = vmatpush.msra.mxu0 %v580
      %837 = vmatpush.msra.mxu0 %v579
      %838 = vmatpush.msra.mxu0 %v578
      %839 = vmatpush.msra.mxu0 %v577
      %840 = vmatpush.msra.mxu0 %v576
      %841 = vmatpush.msra.mxu0 %v575
      %842 = vmatpush.msra.mxu0 %v574
      %843 = vmatpush.msra.mxu0 %v573
      %844 = vmatpush.msra.mxu0 %v572
      %845 = vmatpush.msra.mxu0 %v571
      %846 = vmatmul.f32.gmra.mxu0 %v548
      %v847 = vpop.f32.mrf.mxu0
      %v848 = vadd.f32 %v825, %v847
      %849 = vmatmul.f32.gmra.mxu0 %v552
      %v850 = vpop.f32.mrf.mxu0
      %v851 = vadd.f32 %v828, %v850
      %852 = vdwg.mxu0
      %853 = vmatpush.msra.mxu0 %v602
      %854 = vmatpush.msra.mxu0 %v601
      %855 = vmatpush.msra.mxu0 %v600
      %856 = vmatpush.msra.mxu0 %v599
      %857 = vmatpush.msra.mxu0 %v598
      %858 = vmatpush.msra.mxu0 %v597
      %859 = vmatpush.msra.mxu0 %v596
      %860 = vmatpush.msra.mxu0 %v595
      %861 = vmatpush.msra.mxu0 %v594
      %862 = vmatpush.msra.mxu0 %v593
      %863 = vmatpush.msra.mxu0 %v592
      %864 = vmatpush.msra.mxu0 %v591
      %865 = vmatpush.msra.mxu0 %v590
      %866 = vmatpush.msra.mxu0 %v589
      %867 = vmatpush.msra.mxu0 %v588
      %868 = vmatpush.msra.mxu0 %v587
      %869 = vmatmul.f32.gmra.mxu0 %v549
      %v870 = vpop.f32.mrf.mxu0
      %v871 = vadd.f32 %v848, %v870
      %872 = vmatmul.f32.gmra.mxu0 %v553
      %v873 = vpop.f32.mrf.mxu0
      %v874 = vadd.f32 %v851, %v873
      %875 = vdwg.mxu0
      %876 = vmatpush.msra.mxu0 0.0
      %877 = vmatpush.msra.mxu0 0.0
      %878 = vmatpush.msra.mxu0 0.0
      %879 = vmatpush.msra.mxu0 0.0
      %880 = vmatpush.msra.mxu0 0.0
      %881 = vmatpush.msra.mxu0 0.0
      %882 = vmatpush.msra.mxu0 0.0
      %883 = vmatpush.msra.mxu0 %v611
      %884 = vmatpush.msra.mxu0 %v610
      %885 = vmatpush.msra.mxu0 %v609
      %886 = vmatpush.msra.mxu0 %v608
      %887 = vmatpush.msra.mxu0 %v607
      %888 = vmatpush.msra.mxu0 %v606
      %889 = vmatpush.msra.mxu0 %v605
      %890 = vmatpush.msra.mxu0 %v604
      %891 = vmatpush.msra.mxu0 %v603
      %892 = vmatmul.f32.gmra.mxu0 %v802
      %v893 = vpop.f32.mrf.mxu0
      %v894 = vadd.f32 %v871, %v893
      %895 = vmatmul.f32.gmra.mxu0 %v805
      %v896 = vpop.f32.mrf.mxu0
      %v897 = vadd.f32 %v874, %v896
      %898 = vdwg.mxu0
      %v899 = vld [vmem:[%s543] sm:$0xfc]
      %v900 = vld [vmem:[%s543 + $0x8] sm:$0xfc]
      %v901 = vld [vmem:[%s543 + $0x10] sm:$0xfc]
      %v902 = vld [vmem:[%s543 + $0x18] sm:$0xfc]
      %v903 = vld [vmem:[%s543 + $0x20] sm:$0x3f]
      %v904 = vld [vmem:[%s543 + $0x28] sm:$0x3f]
      %v905 = vld [vmem:[%s543 + $0x30] sm:$0x3f]
      %v906 = vld [vmem:[%s543 + $0x38] sm:$0x3f]
      %v907 = vld [vmem:[%s1 + $0x390] sm:$0xff]
      %v908 = vld [vmem:[%s1 + $0x398] sm:$0xff]
      %v909 = vld [vmem:[%s1 + $0x3a0] sm:$0xff]
      %v910 = vld [vmem:[%s1 + $0x3a8] sm:$0xff]
      %v911 = vld [vmem:[%s1 + $0x3b0] sm:$0xff]
      %v912 = vld [vmem:[%s1 + $0x3b8] sm:$0xff]
      %v913 = vld [vmem:[%s1 + $0x3c0] sm:$0xff]
      %v914 = vld [vmem:[%s1 + $0x3c8] sm:$0xff]
      %v915 = vld [vmem:[%s1 + $0x3d0] sm:$0xff]
      %v916 = vld [vmem:[%s1 + $0x3d8] sm:$0xff]
      %v917 = vld [vmem:[%s1 + $0x3e0] sm:$0xff]
      %v918 = vld [vmem:[%s1 + $0x3e8] sm:$0xff]
      %v919 = vld [vmem:[%s1 + $0x3f0] sm:$0xff]
      %v920 = vld [vmem:[%s1 + $0x3f8] sm:$0xff]
      %v921 = vld [vmem:[%s1 + $0x400] sm:$0xff]
      %v922 = vld [vmem:[%s1 + $0x408] sm:$0xff]
      %v923 = vld [vmem:[%s1 + $0x410] sm:$0xff]
      %v924 = vld [vmem:[%s1 + $0x418] sm:$0xff]
      %v925 = vld [vmem:[%s1 + $0x420] sm:$0xff]
      %v926 = vld [vmem:[%s1 + $0x428] sm:$0xff]
      %v927 = vld [vmem:[%s1 + $0x430] sm:$0xff]
      %v928 = vld [vmem:[%s1 + $0x438] sm:$0xff]
      %v929 = vld [vmem:[%s1 + $0x440] sm:$0xff]
      %v930 = vld [vmem:[%s1 + $0x448] sm:$0xff]
      %v931 = vld [vmem:[%s1 + $0x450] sm:$0xff]
      %v932 = vld [vmem:[%s1 + $0x458] sm:$0xff]
      %v933 = vld [vmem:[%s1 + $0x460] sm:$0xff]
      %v934 = vld [vmem:[%s1 + $0x468] sm:$0xff]
      %v935 = vld [vmem:[%s1 + $0x470] sm:$0xff]
      %v936 = vld [vmem:[%s1 + $0x478] sm:$0xff]
      %v937 = vld [vmem:[%s1 + $0x480] sm:$0xff]
      %v938 = vld [vmem:[%s1 + $0x488] sm:$0xff]
      %v939 = vld [vmem:[%s1 + $0x490] sm:$0xff]
      %v940 = vld [vmem:[%s1 + $0x498] sm:$0xff]
      %v941 = vld [vmem:[%s1 + $0x4a0] sm:$0xff]
      %v942 = vld [vmem:[%s1 + $0x4a8] sm:$0xff]
      %v943 = vld [vmem:[%s1 + $0x4b0] sm:$0xff]
      %v944 = vld [vmem:[%s1 + $0x4b8] sm:$0xff]
      %v945 = vld [vmem:[%s1 + $0x4c0] sm:$0xff]
      %v946 = vld [vmem:[%s1 + $0x4c8] sm:$0xff]
      %v947 = vld [vmem:[%s1 + $0x4d0] sm:$0xff]
      %v948 = vld [vmem:[%s1 + $0x4d8] sm:$0xff]
      %v949 = vld [vmem:[%s1 + $0x4e0] sm:$0xff]
      %v950 = vld [vmem:[%s1 + $0x4e8] sm:$0xff]
      %v951 = vld [vmem:[%s1 + $0x4f0] sm:$0xff]
      %v952 = vld [vmem:[%s1 + $0x4f8] sm:$0xff]
      %v953 = vld [vmem:[%s1 + $0x500] sm:$0xff]
      %v954 = vld [vmem:[%s1 + $0x508] sm:$0xff]
      %v955 = vld [vmem:[%s1 + $0x510] sm:$0xff]
      %v956 = vld [vmem:[%s1 + $0x518] sm:$0xff]
      %v957 = vld [vmem:[%s1 + $0x520] sm:$0xff]
      %v958 = vld [vmem:[%s1 + $0x528] sm:$0xff]
      %v959 = vld [vmem:[%s1 + $0x530] sm:$0xff]
      %v960 = vld [vmem:[%s1 + $0x538] sm:$0xff]
      %v961 = vld [vmem:[%s1 + $0x540] sm:$0xff]
      %v962 = vld [vmem:[%s1 + $0x548] sm:$0xff]
      %v963 = vld [vmem:[%s1 + $0x550] sm:$0xff]
      %vm972 = vcmask 1045504
      %v973 = vrot.slane %v899, 2
      %v974 = vrot.slane %v903, 2
      %v975 = vsel %vm972, %v973, %v974
      %v976 = vrot.slane %v900, 2
      %v977 = vrot.slane %v904, 2
      %v978 = vsel %vm972, %v976, %v977
      %v979 = vrot.slane %v901, 2
      %v980 = vrot.slane %v905, 2
      %v981 = vsel %vm972, %v979, %v980
      %v982 = vrot.slane %v902, 2
      %v983 = vrot.slane %v906, 2
      %v984 = vsel %vm972, %v982, %v983
      %v991 = vsel %vm704, %v984, 0
      %v993 = vsel %vm704, %v983, 0
      %995 = vmatpush.msra.mxu0 %v922
      %996 = vmatpush.msra.mxu0 %v921
      %997 = vmatpush.msra.mxu0 %v920
      %998 = vmatpush.msra.mxu0 %v919
      %999 = vmatpush.msra.mxu0 %v918
      %1000 = vmatpush.msra.mxu0 %v917
      %1001 = vmatpush.msra.mxu0 %v916
      %1002 = vmatpush.msra.mxu0 %v915
      %1003 = vmatpush.msra.mxu0 %v914
      %1004 = vmatpush.msra.mxu0 %v913
      %1005 = vmatpush.msra.mxu0 %v912
      %1006 = vmatpush.msra.mxu0 %v911
      %1007 = vmatpush.msra.mxu0 %v910
      %1008 = vmatpush.msra.mxu0 %v909
      %1009 = vmatpush.msra.mxu0 %v908
      %1010 = vmatpush.msra.mxu0 %v907
      %1011 = vmatmul.f32.gmra.mxu0 %v975
      %v1012 = vpop.f32.mrf.mxu0
      %v1013 = vadd.f32 0.0, %v1012
      %1014 = vmatmul.f32.gmra.mxu0 %v974
      %v1015 = vpop.f32.mrf.mxu0
      %v1016 = vadd.f32 0.0, %v1015
      %1017 = vdwg.mxu0
      %1018 = vmatpush.msra.mxu0 %v938
      %1019 = vmatpush.msra.mxu0 %v937
      %1020 = vmatpush.msra.mxu0 %v936
      %1021 = vmatpush.msra.mxu0 %v935
      %1022 = vmatpush.msra.mxu0 %v934
      %1023 = vmatpush.msra.mxu0 %v933
      %1024 = vmatpush.msra.mxu0 %v932
      %1025 = vmatpush.msra.mxu0 %v931
      %1026 = vmatpush.msra.mxu0 %v930
      %1027 = vmatpush.msra.mxu0 %v929
      %1028 = vmatpush.msra.mxu0 %v928
      %1029 = vmatpush.msra.mxu0 %v927
      %1030 = vmatpush.msra.mxu0 %v926
      %1031 = vmatpush.msra.mxu0 %v925
      %1032 = vmatpush.msra.mxu0 %v924
      %1033 = vmatpush.msra.mxu0 %v923
      %1034 = vmatmul.f32.gmra.mxu0 %v978
      %v1035 = vpop.f32.mrf.mxu0
      %v1036 = vadd.f32 %v1013, %v1035
      %1037 = vmatmul.f32.gmra.mxu0 %v977
      %v1038 = vpop.f32.mrf.mxu0
      %v1039 = vadd.f32 %v1016, %v1038
      %1040 = vdwg.mxu0
      %1041 = vmatpush.msra.mxu0 %v954
      %1042 = vmatpush.msra.mxu0 %v953
      %1043 = vmatpush.msra.mxu0 %v952
      %1044 = vmatpush.msra.mxu0 %v951
      %1045 = vmatpush.msra.mxu0 %v950
      %1046 = vmatpush.msra.mxu0 %v949
      %1047 = vmatpush.msra.mxu0 %v948
      %1048 = vmatpush.msra.mxu0 %v947
      %1049 = vmatpush.msra.mxu0 %v946
      %1050 = vmatpush.msra.mxu0 %v945
      %1051 = vmatpush.msra.mxu0 %v944
      %1052 = vmatpush.msra.mxu0 %v943
      %1053 = vmatpush.msra.mxu0 %v942
      %1054 = vmatpush.msra.mxu0 %v941
      %1055 = vmatpush.msra.mxu0 %v940
      %1056 = vmatpush.msra.mxu0 %v939
      %1057 = vmatmul.f32.gmra.mxu0 %v981
      %v1058 = vpop.f32.mrf.mxu0
      %v1059 = vadd.f32 %v1036, %v1058
      %1060 = vmatmul.f32.gmra.mxu0 %v980
      %v1061 = vpop.f32.mrf.mxu0
      %v1062 = vadd.f32 %v1039, %v1061
      %1063 = vdwg.mxu0
      %1064 = vmatpush.msra.mxu0 0.0
      %1065 = vmatpush.msra.mxu0 0.0
      %1066 = vmatpush.msra.mxu0 0.0
      %1067 = vmatpush.msra.mxu0 0.0
      %1068 = vmatpush.msra.mxu0 0.0
      %1069 = vmatpush.msra.mxu0 0.0
      %1070 = vmatpush.msra.mxu0 0.0
      %1071 = vmatpush.msra.mxu0 %v963
      %1072 = vmatpush.msra.mxu0 %v962
      %1073 = vmatpush.msra.mxu0 %v961
      %1074 = vmatpush.msra.mxu0 %v960
      %1075 = vmatpush.msra.mxu0 %v959
      %1076 = vmatpush.msra.mxu0 %v958
      %1077 = vmatpush.msra.mxu0 %v957
      %1078 = vmatpush.msra.mxu0 %v956
      %1079 = vmatpush.msra.mxu0 %v955
      %1080 = vmatmul.f32.gmra.mxu0 %v991
      %v1081 = vpop.f32.mrf.mxu0
      %v1082 = vadd.f32 %v1059, %v1081
      %1083 = vmatmul.f32.gmra.mxu0 %v993
      %v1084 = vpop.f32.mrf.mxu0
      %v1085 = vadd.f32 %v1062, %v1084
      %1086 = vdwg.mxu0
      %v1087 = vadd.f32 %v894, %v1082
      %v1088 = vadd.f32 %v897, %v1085
      %v1089 = vld [vmem:[%s543] sm:$0xf8]
      %v1090 = vld [vmem:[%s543 + $0x8] sm:$0xf8]
      %v1091 = vld [vmem:[%s543 + $0x10] sm:$0xf8]
      %v1092 = vld [vmem:[%s543 + $0x18] sm:$0xf8]
      %v1093 = vld [vmem:[%s543 + $0x20] sm:$0x7f]
      %v1094 = vld [vmem:[%s543 + $0x28] sm:$0x7f]
      %v1095 = vld [vmem:[%s543 + $0x30] sm:$0x7f]
      %v1096 = vld [vmem:[%s543 + $0x38] sm:$0x7f]
      %v1097 = vld [vmem:[%s1 + $0x558] sm:$0xff]
      %v1098 = vld [vmem:[%s1 + $0x560] sm:$0xff]
      %v1099 = vld [vmem:[%s1 + $0x568] sm:$0xff]
      %v1100 = vld [vmem:[%s1 + $0x570] sm:$0xff]
      %v1101 = vld [vmem:[%s1 + $0x578] sm:$0xff]
      %v1102 = vld [vmem:[%s1 + $0x580] sm:$0xff]
      %v1103 = vld [vmem:[%s1 + $0x588] sm:$0xff]
      %v1104 = vld [vmem:[%s1 + $0x590] sm:$0xff]
      %v1105 = vld [vmem:[%s1 + $0x598] sm:$0xff]
      %v1106 = vld [vmem:[%s1 + $0x5a0] sm:$0xff]
      %v1107 = vld [vmem:[%s1 + $0x5a8] sm:$0xff]
      %v1108 = vld [vmem:[%s1 + $0x5b0] sm:$0xff]
      %v1109 = vld [vmem:[%s1 + $0x5b8] sm:$0xff]
      %v1110 = vld [vmem:[%s1 + $0x5c0] sm:$0xff]
      %v1111 = vld [vmem:[%s1 + $0x5c8] sm:$0xff]
      %v1112 = vld [vmem:[%s1 + $0x5d0] sm:$0xff]
      %v1113 = vld [vmem:[%s1 + $0x5d8] sm:$0xff]
      %v1114 = vld [vmem:[%s1 + $0x5e0] sm:$0xff]
      %v1115 = vld [vmem:[%s1 + $0x5e8] sm:$0xff]
      %v1116 = vld [vmem:[%s1 + $0x5f0] sm:$0xff]
      %v1117 = vld [vmem:[%s1 + $0x5f8] sm:$0xff]
      %v1118 = vld [vmem:[%s1 + $0x600] sm:$0xff]
      %v1119 = vld [vmem:[%s1 + $0x608] sm:$0xff]
      %v1120 = vld [vmem:[%s1 + $0x610] sm:$0xff]
      %v1121 = vld [vmem:[%s1 + $0x618] sm:$0xff]
      %v1122 = vld [vmem:[%s1 + $0x620] sm:$0xff]
      %v1123 = vld [vmem:[%s1 + $0x628] sm:$0xff]
      %v1124 = vld [vmem:[%s1 + $0x630] sm:$0xff]
      %v1125 = vld [vmem:[%s1 + $0x638] sm:$0xff]
      %v1126 = vld [vmem:[%s1 + $0x640] sm:$0xff]
      %v1127 = vld [vmem:[%s1 + $0x648] sm:$0xff]
      %v1128 = vld [vmem:[%s1 + $0x650] sm:$0xff]
      %v1129 = vld [vmem:[%s1 + $0x658] sm:$0xff]
      %v1130 = vld [vmem:[%s1 + $0x660] sm:$0xff]
      %v1131 = vld [vmem:[%s1 + $0x668] sm:$0xff]
      %v1132 = vld [vmem:[%s1 + $0x670] sm:$0xff]
      %v1133 = vld [vmem:[%s1 + $0x678] sm:$0xff]
      %v1134 = vld [vmem:[%s1 + $0x680] sm:$0xff]
      %v1135 = vld [vmem:[%s1 + $0x688] sm:$0xff]
      %v1136 = vld [vmem:[%s1 + $0x690] sm:$0xff]
      %v1137 = vld [vmem:[%s1 + $0x698] sm:$0xff]
      %v1138 = vld [vmem:[%s1 + $0x6a0] sm:$0xff]
      %v1139 = vld [vmem:[%s1 + $0x6a8] sm:$0xff]
      %v1140 = vld [vmem:[%s1 + $0x6b0] sm:$0xff]
      %v1141 = vld [vmem:[%s1 + $0x6b8] sm:$0xff]
      %v1142 = vld [vmem:[%s1 + $0x6c0] sm:$0xff]
      %v1143 = vld [vmem:[%s1 + $0x6c8] sm:$0xff]
      %v1144 = vld [vmem:[%s1 + $0x6d0] sm:$0xff]
      %v1145 = vld [vmem:[%s1 + $0x6d8] sm:$0xff]
      %v1146 = vld [vmem:[%s1 + $0x6e0] sm:$0xff]
      %v1147 = vld [vmem:[%s1 + $0x6e8] sm:$0xff]
      %v1148 = vld [vmem:[%s1 + $0x6f0] sm:$0xff]
      %v1149 = vld [vmem:[%s1 + $0x6f8] sm:$0xff]
      %v1150 = vld [vmem:[%s1 + $0x700] sm:$0xff]
      %v1151 = vld [vmem:[%s1 + $0x708] sm:$0xff]
      %v1152 = vld [vmem:[%s1 + $0x710] sm:$0xff]
      %v1153 = vld [vmem:[%s1 + $0x718] sm:$0xff]
      %vm1162 = vcmask 1044480
      %v1163 = vrot.slane %v1089, 3
      %v1164 = vrot.slane %v1093, 3
      %v1165 = vsel %vm1162, %v1163, %v1164
      %v1166 = vrot.slane %v1090, 3
      %v1167 = vrot.slane %v1094, 3
      %v1168 = vsel %vm1162, %v1166, %v1167
      %v1169 = vrot.slane %v1091, 3
      %v1170 = vrot.slane %v1095, 3
      %v1171 = vsel %vm1162, %v1169, %v1170
      %v1172 = vrot.slane %v1092, 3
      %v1173 = vrot.slane %v1096, 3
      %v1174 = vsel %vm1162, %v1172, %v1173
      %v1181 = vsel %vm704, %v1174, 0
      %v1183 = vsel %vm704, %v1173, 0
      %1185 = vmatpush.msra.mxu0 %v1112
      %1186 = vmatpush.msra.mxu0 %v1111
      %1187 = vmatpush.msra.mxu0 %v1110
      %1188 = vmatpush.msra.mxu0 %v1109
      %1189 = vmatpush.msra.mxu0 %v1108
      %1190 = vmatpush.msra.mxu0 %v1107
      %1191 = vmatpush.msra.mxu0 %v1106
      %1192 = vmatpush.msra.mxu0 %v1105
      %1193 = vmatpush.msra.mxu0 %v1104
      %1194 = vmatpush.msra.mxu0 %v1103
      %1195 = vmatpush.msra.mxu0 %v1102
      %1196 = vmatpush.msra.mxu0 %v1101
      %1197 = vmatpush.msra.mxu0 %v1100
      %1198 = vmatpush.msra.mxu0 %v1099
      %1199 = vmatpush.msra.mxu0 %v1098
      %1200 = vmatpush.msra.mxu0 %v1097
      %1201 = vmatmul.f32.gmra.mxu0 %v1165
      %v1202 = vpop.f32.mrf.mxu0
      %v1203 = vadd.f32 0.0, %v1202
      %1204 = vmatmul.f32.gmra.mxu0 %v1164
      %v1205 = vpop.f32.mrf.mxu0
      %v1206 = vadd.f32 0.0, %v1205
      %1207 = vdwg.mxu0
      %1208 = vmatpush.msra.mxu0 %v1128
      %1209 = vmatpush.msra.mxu0 %v1127
      %1210 = vmatpush.msra.mxu0 %v1126
      %1211 = vmatpush.msra.mxu0 %v1125
      %1212 = vmatpush.msra.mxu0 %v1124
      %1213 = vmatpush.msra.mxu0 %v1123
      %1214 = vmatpush.msra.mxu0 %v1122
      %1215 = vmatpush.msra.mxu0 %v1121
      %1216 = vmatpush.msra.mxu0 %v1120
      %1217 = vmatpush.msra.mxu0 %v1119
      %1218 = vmatpush.msra.mxu0 %v1118
      %1219 = vmatpush.msra.mxu0 %v1117
      %1220 = vmatpush.msra.mxu0 %v1116
      %1221 = vmatpush.msra.mxu0 %v1115
      %1222 = vmatpush.msra.mxu0 %v1114
      %1223 = vmatpush.msra.mxu0 %v1113
      %1224 = vmatmul.f32.gmra.mxu0 %v1168
      %v1225 = vpop.f32.mrf.mxu0
      %v1226 = vadd.f32 %v1203, %v1225
      %1227 = vmatmul.f32.gmra.mxu0 %v1167
      %v1228 = vpop.f32.mrf.mxu0
      %v1229 = vadd.f32 %v1206, %v1228
      %1230 = vdwg.mxu0
      %1231 = vmatpush.msra.mxu0 %v1144
      %1232 = vmatpush.msra.mxu0 %v1143
      %1233 = vmatpush.msra.mxu0 %v1142
      %1234 = vmatpush.msra.mxu0 %v1141
      %1235 = vmatpush.msra.mxu0 %v1140
      %1236 = vmatpush.msra.mxu0 %v1139
      %1237 = vmatpush.msra.mxu0 %v1138
      %1238 = vmatpush.msra.mxu0 %v1137
      %1239 = vmatpush.msra.mxu0 %v1136
      %1240 = vmatpush.msra.mxu0 %v1135
      %1241 = vmatpush.msra.mxu0 %v1134
      %1242 = vmatpush.msra.mxu0 %v1133
      %1243 = vmatpush.msra.mxu0 %v1132
      %1244 = vmatpush.msra.mxu0 %v1131
      %1245 = vmatpush.msra.mxu0 %v1130
      %1246 = vmatpush.msra.mxu0 %v1129
      %1247 = vmatmul.f32.gmra.mxu0 %v1171
      %v1248 = vpop.f32.mrf.mxu0
      %v1249 = vadd.f32 %v1226, %v1248
      %1250 = vmatmul.f32.gmra.mxu0 %v1170
      %v1251 = vpop.f32.mrf.mxu0
      %v1252 = vadd.f32 %v1229, %v1251
      %1253 = vdwg.mxu0
      %1254 = vmatpush.msra.mxu0 0.0
      %1255 = vmatpush.msra.mxu0 0.0
      %1256 = vmatpush.msra.mxu0 0.0
      %1257 = vmatpush.msra.mxu0 0.0
      %1258 = vmatpush.msra.mxu0 0.0
      %1259 = vmatpush.msra.mxu0 0.0
      %1260 = vmatpush.msra.mxu0 0.0
      %1261 = vmatpush.msra.mxu0 %v1153
      %1262 = vmatpush.msra.mxu0 %v1152
      %1263 = vmatpush.msra.mxu0 %v1151
      %1264 = vmatpush.msra.mxu0 %v1150
      %1265 = vmatpush.msra.mxu0 %v1149
      %1266 = vmatpush.msra.mxu0 %v1148
      %1267 = vmatpush.msra.mxu0 %v1147
      %1268 = vmatpush.msra.mxu0 %v1146
      %1269 = vmatpush.msra.mxu0 %v1145
      %1270 = vmatmul.f32.gmra.mxu0 %v1181
      %v1271 = vpop.f32.mrf.mxu0
      %v1272 = vadd.f32 %v1249, %v1271
      %1273 = vmatmul.f32.gmra.mxu0 %v1183
      %v1274 = vpop.f32.mrf.mxu0
      %v1275 = vadd.f32 %v1252, %v1274
      %1276 = vdwg.mxu0
      %v1277 = vadd.f32 %v1087, %v1272
      %v1278 = vadd.f32 %v1088, %v1275
      %v1279 = vld [vmem:[%s543] sm:$0xf0]
      %v1280 = vld [vmem:[%s543 + $0x8] sm:$0xf0]
      %v1281 = vld [vmem:[%s543 + $0x10] sm:$0xf0]
      %v1282 = vld [vmem:[%s543 + $0x18] sm:$0xf0]
      %v1283 = vld [vmem:[%s543 + $0x20] sm:$0xff]
      %v1284 = vld [vmem:[%s543 + $0x28] sm:$0xff]
      %v1285 = vld [vmem:[%s543 + $0x30] sm:$0xff]
      %v1286 = vld [vmem:[%s543 + $0x38] sm:$0xff]
      %v1287 = vld [vmem:[%s1 + $0x720] sm:$0xff]
      %v1288 = vld [vmem:[%s1 + $0x728] sm:$0xff]
      %v1289 = vld [vmem:[%s1 + $0x730] sm:$0xff]
      %v1290 = vld [vmem:[%s1 + $0x738] sm:$0xff]
      %v1291 = vld [vmem:[%s1 + $0x740] sm:$0xff]
      %v1292 = vld [vmem:[%s1 + $0x748] sm:$0xff]
      %v1293 = vld [vmem:[%s1 + $0x750] sm:$0xff]
      %v1294 = vld [vmem:[%s1 + $0x758] sm:$0xff]
      %v1295 = vld [vmem:[%s1 + $0x760] sm:$0xff]
      %v1296 = vld [vmem:[%s1 + $0x768] sm:$0xff]
      %v1297 = vld [vmem:[%s1 + $0x770] sm:$0xff]
      %v1298 = vld [vmem:[%s1 + $0x778] sm:$0xff]
      %v1299 = vld [vmem:[%s1 + $0x780] sm:$0xff]
      %v1300 = vld [vmem:[%s1 + $0x788] sm:$0xff]
      %v1301 = vld [vmem:[%s1 + $0x790] sm:$0xff]
      %v1302 = vld [vmem:[%s1 + $0x798] sm:$0xff]
      %v1303 = vld [vmem:[%s1 + $0x7a0] sm:$0xff]
      %v1304 = vld [vmem:[%s1 + $0x7a8] sm:$0xff]
      %v1305 = vld [vmem:[%s1 + $0x7b0] sm:$0xff]
      %v1306 = vld [vmem:[%s1 + $0x7b8] sm:$0xff]
      %v1307 = vld [vmem:[%s1 + $0x7c0] sm:$0xff]
      %v1308 = vld [vmem:[%s1 + $0x7c8] sm:$0xff]
      %v1309 = vld [vmem:[%s1 + $0x7d0] sm:$0xff]
      %v1310 = vld [vmem:[%s1 + $0x7d8] sm:$0xff]
      %v1311 = vld [vmem:[%s1 + $0x7e0] sm:$0xff]
      %v1312 = vld [vmem:[%s1 + $0x7e8] sm:$0xff]
      %v1313 = vld [vmem:[%s1 + $0x7f0] sm:$0xff]
      %v1314 = vld [vmem:[%s1 + $0x7f8] sm:$0xff]
      %v1315 = vld [vmem:[%s1 + $0x800] sm:$0xff]
      %v1316 = vld [vmem:[%s1 + $0x808] sm:$0xff]
      %v1317 = vld [vmem:[%s1 + $0x810] sm:$0xff]
      %v1318 = vld [vmem:[%s1 + $0x818] sm:$0xff]
      %v1319 = vld [vmem:[%s1 + $0x820] sm:$0xff]
      %v1320 = vld [vmem:[%s1 + $0x828] sm:$0xff]
      %v1321 = vld [vmem:[%s1 + $0x830] sm:$0xff]
      %v1322 = vld [vmem:[%s1 + $0x838] sm:$0xff]
      %v1323 = vld [vmem:[%s1 + $0x840] sm:$0xff]
      %v1324 = vld [vmem:[%s1 + $0x848] sm:$0xff]
      %v1325 = vld [vmem:[%s1 + $0x850] sm:$0xff]
      %v1326 = vld [vmem:[%s1 + $0x858] sm:$0xff]
      %v1327 = vld [vmem:[%s1 + $0x860] sm:$0xff]
      %v1328 = vld [vmem:[%s1 + $0x868] sm:$0xff]
      %v1329 = vld [vmem:[%s1 + $0x870] sm:$0xff]
      %v1330 = vld [vmem:[%s1 + $0x878] sm:$0xff]
      %v1331 = vld [vmem:[%s1 + $0x880] sm:$0xff]
      %v1332 = vld [vmem:[%s1 + $0x888] sm:$0xff]
      %v1333 = vld [vmem:[%s1 + $0x890] sm:$0xff]
      %v1334 = vld [vmem:[%s1 + $0x898] sm:$0xff]
      %v1335 = vld [vmem:[%s1 + $0x8a0] sm:$0xff]
      %v1336 = vld [vmem:[%s1 + $0x8a8] sm:$0xff]
      %v1337 = vld [vmem:[%s1 + $0x8b0] sm:$0xff]
      %v1338 = vld [vmem:[%s1 + $0x8b8] sm:$0xff]
      %v1339 = vld [vmem:[%s1 + $0x8c0] sm:$0xff]
      %v1340 = vld [vmem:[%s1 + $0x8c8] sm:$0xff]
      %v1341 = vld [vmem:[%s1 + $0x8d0] sm:$0xff]
      %v1342 = vld [vmem:[%s1 + $0x8d8] sm:$0xff]
      %v1343 = vld [vmem:[%s1 + $0x8e0] sm:$0xff]
      %vm1352 = vcmask 1043456
      %v1353 = vrot.slane %v1279, 4
      %v1354 = vrot.slane %v1283, 4
      %v1355 = vsel %vm1352, %v1353, %v1354
      %v1356 = vrot.slane %v1280, 4
      %v1357 = vrot.slane %v1284, 4
      %v1358 = vsel %vm1352, %v1356, %v1357
      %v1359 = vrot.slane %v1281, 4
      %v1360 = vrot.slane %v1285, 4
      %v1361 = vsel %vm1352, %v1359, %v1360
      %v1362 = vrot.slane %v1282, 4
      %v1363 = vrot.slane %v1286, 4
      %v1364 = vsel %vm1352, %v1362, %v1363
      %v1371 = vsel %vm704, %v1364, 0
      %v1373 = vsel %vm704, %v1363, 0
      %1375 = vmatpush.msra.mxu0 %v1302
      %1376 = vmatpush.msra.mxu0 %v1301
      %1377 = vmatpush.msra.mxu0 %v1300
      %1378 = vmatpush.msra.mxu0 %v1299
      %1379 = vmatpush.msra.mxu0 %v1298
      %1380 = vmatpush.msra.mxu0 %v1297
      %1381 = vmatpush.msra.mxu0 %v1296
      %1382 = vmatpush.msra.mxu0 %v1295
      %1383 = vmatpush.msra.mxu0 %v1294
      %1384 = vmatpush.msra.mxu0 %v1293
      %1385 = vmatpush.msra.mxu0 %v1292
      %1386 = vmatpush.msra.mxu0 %v1291
      %1387 = vmatpush.msra.mxu0 %v1290
      %1388 = vmatpush.msra.mxu0 %v1289
      %1389 = vmatpush.msra.mxu0 %v1288
      %1390 = vmatpush.msra.mxu0 %v1287
      %1391 = vmatmul.f32.gmra.mxu0 %v1355
      %v1392 = vpop.f32.mrf.mxu0
      %v1393 = vadd.f32 0.0, %v1392
      %1394 = vmatmul.f32.gmra.mxu0 %v1354
      %v1395 = vpop.f32.mrf.mxu0
      %v1396 = vadd.f32 0.0, %v1395
      %1397 = vdwg.mxu0
      %1398 = vmatpush.msra.mxu0 %v1318
      %1399 = vmatpush.msra.mxu0 %v1317
      %1400 = vmatpush.msra.mxu0 %v1316
      %1401 = vmatpush.msra.mxu0 %v1315
      %1402 = vmatpush.msra.mxu0 %v1314
      %1403 = vmatpush.msra.mxu0 %v1313
      %1404 = vmatpush.msra.mxu0 %v1312
      %1405 = vmatpush.msra.mxu0 %v1311
      %1406 = vmatpush.msra.mxu0 %v1310
      %1407 = vmatpush.msra.mxu0 %v1309
      %1408 = vmatpush.msra.mxu0 %v1308
      %1409 = vmatpush.msra.mxu0 %v1307
      %1410 = vmatpush.msra.mxu0 %v1306
      %1411 = vmatpush.msra.mxu0 %v1305
      %1412 = vmatpush.msra.mxu0 %v1304
      %1413 = vmatpush.msra.mxu0 %v1303
      %1414 = vmatmul.f32.gmra.mxu0 %v1358
      %v1415 = vpop.f32.mrf.mxu0
      %v1416 = vadd.f32 %v1393, %v1415
      %1417 = vmatmul.f32.gmra.mxu0 %v1357
      %v1418 = vpop.f32.mrf.mxu0
      %v1419 = vadd.f32 %v1396, %v1418
      %1420 = vdwg.mxu0
      %1421 = vmatpush.msra.mxu0 %v1334
      %1422 = vmatpush.msra.mxu0 %v1333
      %1423 = vmatpush.msra.mxu0 %v1332
      %1424 = vmatpush.msra.mxu0 %v1331
      %1425 = vmatpush.msra.mxu0 %v1330
      %1426 = vmatpush.msra.mxu0 %v1329
      %1427 = vmatpush.msra.mxu0 %v1328
      %1428 = vmatpush.msra.mxu0 %v1327
      %1429 = vmatpush.msra.mxu0 %v1326
      %1430 = vmatpush.msra.mxu0 %v1325
      %1431 = vmatpush.msra.mxu0 %v1324
      %1432 = vmatpush.msra.mxu0 %v1323
      %1433 = vmatpush.msra.mxu0 %v1322
      %1434 = vmatpush.msra.mxu0 %v1321
      %1435 = vmatpush.msra.mxu0 %v1320
      %1436 = vmatpush.msra.mxu0 %v1319
      %1437 = vmatmul.f32.gmra.mxu0 %v1361
      %v1438 = vpop.f32.mrf.mxu0
      %v1439 = vadd.f32 %v1416, %v1438
      %1440 = vmatmul.f32.gmra.mxu0 %v1360
      %v1441 = vpop.f32.mrf.mxu0
      %v1442 = vadd.f32 %v1419, %v1441
      %1443 = vdwg.mxu0
      %1444 = vmatpush.msra.mxu0 0.0
      %1445 = vmatpush.msra.mxu0 0.0
      %1446 = vmatpush.msra.mxu0 0.0
      %1447 = vmatpush.msra.mxu0 0.0
      %1448 = vmatpush.msra.mxu0 0.0
      %1449 = vmatpush.msra.mxu0 0.0
      %1450 = vmatpush.msra.mxu0 0.0
      %1451 = vmatpush.msra.mxu0 %v1343
      %1452 = vmatpush.msra.mxu0 %v1342
      %1453 = vmatpush.msra.mxu0 %v1341
      %1454 = vmatpush.msra.mxu0 %v1340
      %1455 = vmatpush.msra.mxu0 %v1339
      %1456 = vmatpush.msra.mxu0 %v1338
      %1457 = vmatpush.msra.mxu0 %v1337
      %1458 = vmatpush.msra.mxu0 %v1336
      %1459 = vmatpush.msra.mxu0 %v1335
      %1460 = vmatmul.f32.gmra.mxu0 %v1371
      %v1461 = vpop.f32.mrf.mxu0
      %v1462 = vadd.f32 %v1439, %v1461
      %1463 = vmatmul.f32.gmra.mxu0 %v1373
      %v1464 = vpop.f32.mrf.mxu0
      %v1465 = vadd.f32 %v1442, %v1464
      %1466 = vdwg.mxu0
      %v1467 = vadd.f32 %v1277, %v1462
      %v1468 = vadd.f32 %v1278, %v1465
      %v1469 = vld [vmem:[%s2] sm:$0x1]
      %v1470 = vperm.slane %v1469, 0
      %v1471 = vadd.f32 %v1467, %v1470
      %v1472 = vadd.f32 %v1468, %v1470
      %v1473 = vmax.f32 %v1471, 0.0
      %v1474 = vmax.f32 %v1472, 0.0
      %v1475 = vld [vmem:[%s2 + $0x1] sm:$0x1]
      %v1476 = vperm.slane %v1475, 0
      %v1477 = vmul.f32 %v1473, %v1476
      %v1478 = vmul.f32 %v1474, %v1476
      %v1479 = vld [vmem:[%s2 + $0x2] sm:$0x1]
      %v1480 = vperm.slane %v1479, 0
      %v1481 = vadd.f32 %v1477, %v1480
      %v1482 = vadd.f32 %v1478, %v1480
      %vm1483 = vcmask 982016
      %1484 = vst.msk [vmem:[#allocation2] sm:$0xff] %vm1483, %v1481
      %vm1485 = vcmask 977920
      %1486 = vst.msk [vmem:[#allocation2 + $0x8] sm:$0xf] %vm1485, %v1482
      %v1487 = vld [vmem:[%s543] sm:$0xff]
      %v1488 = vld [vmem:[%s543 + $0x8] sm:$0xff]
      %v1489 = vld [vmem:[%s543 + $0x10] sm:$0xff]
      %v1490 = vld [vmem:[%s543 + $0x18] sm:$0xff]
      %v1491 = vld [vmem:[%s543 + $0x20] sm:$0xf]
      %v1492 = vld [vmem:[%s543 + $0x28] sm:$0xf]
      %v1493 = vld [vmem:[%s543 + $0x30] sm:$0xf]
      %v1494 = vld [vmem:[%s543 + $0x38] sm:$0xf]
      %v1495 = vld [vmem:[%s5] sm:$0xff]
      %v1496 = vld [vmem:[%s5 + $0x8] sm:$0xff]
      %v1497 = vld [vmem:[%s5 + $0x10] sm:$0xff]
      %v1498 = vld [vmem:[%s5 + $0x18] sm:$0xff]
      %v1499 = vld [vmem:[%s5 + $0x20] sm:$0xff]
      %v1500 = vld [vmem:[%s5 + $0x28] sm:$0xff]
      %v1501 = vld [vmem:[%s5 + $0x30] sm:$0xff]
      %v1502 = vld [vmem:[%s5 + $0x38] sm:$0xff]
      %v1503 = vld [vmem:[%s5 + $0x40] sm:$0xff]
      %v1504 = vld [vmem:[%s5 + $0x48] sm:$0xff]
      %v1505 = vld [vmem:[%s5 + $0x50] sm:$0xff]
      %v1506 = vld [vmem:[%s5 + $0x58] sm:$0xff]
      %v1507 = vld [vmem:[%s5 + $0x60] sm:$0xff]
      %v1508 = vld [vmem:[%s5 + $0x68] sm:$0xff]
      %v1509 = vld [vmem:[%s5 + $0x70] sm:$0xff]
      %v1510 = vld [vmem:[%s5 + $0x78] sm:$0xff]
      %v1511 = vld [vmem:[%s5 + $0x80] sm:$0xff]
      %v1512 = vld [vmem:[%s5 + $0x88] sm:$0xff]
      %v1513 = vld [vmem:[%s5 + $0x90] sm:$0xff]
      %v1514 = vld [vmem:[%s5 + $0x98] sm:$0xff]
      %v1515 = vld [vmem:[%s5 + $0xa0] sm:$0xff]
      %v1516 = vld [vmem:[%s5 + $0xa8] sm:$0xff]
      %v1517 = vld [vmem:[%s5 + $0xb0] sm:$0xff]
      %v1518 = vld [vmem:[%s5 + $0xb8] sm:$0xff]
      %v1519 = vld [vmem:[%s5 + $0xc0] sm:$0xff]
      %v1520 = vld [vmem:[%s5 + $0xc8] sm:$0xff]
      %v1521 = vld [vmem:[%s5 + $0xd0] sm:$0xff]
      %v1522 = vld [vmem:[%s5 + $0xd8] sm:$0xff]
      %v1523 = vld [vmem:[%s5 + $0xe0] sm:$0xff]
      %v1524 = vld [vmem:[%s5 + $0xe8] sm:$0xff]
      %v1525 = vld [vmem:[%s5 + $0xf0] sm:$0xff]
      %v1526 = vld [vmem:[%s5 + $0xf8] sm:$0xff]
      %v1527 = vld [vmem:[%s5 + $0x100] sm:$0xff]
      %v1528 = vld [vmem:[%s5 + $0x108] sm:$0xff]
      %v1529 = vld [vmem:[%s5 + $0x110] sm:$0xff]
      %v1530 = vld [vmem:[%s5 + $0x118] sm:$0xff]
      %v1531 = vld [vmem:[%s5 + $0x120] sm:$0xff]
      %v1532 = vld [vmem:[%s5 + $0x128] sm:$0xff]
      %v1533 = vld [vmem:[%s5 + $0x130] sm:$0xff]
      %v1534 = vld [vmem:[%s5 + $0x138] sm:$0xff]
      %v1535 = vld [vmem:[%s5 + $0x140] sm:$0xff]
      %v1536 = vld [vmem:[%s5 + $0x148] sm:$0xff]
      %v1537 = vld [vmem:[%s5 + $0x150] sm:$0xff]
      %v1538 = vld [vmem:[%s5 + $0x158] sm:$0xff]
      %v1539 = vld [vmem:[%s5 + $0x160] sm:$0xff]
      %v1540 = vld [vmem:[%s5 + $0x168] sm:$0xff]
      %v1541 = vld [vmem:[%s5 + $0x170] sm:$0xff]
      %v1542 = vld [vmem:[%s5 + $0x178] sm:$0xff]
      %v1543 = vld [vmem:[%s5 + $0x180] sm:$0xff]
      %v1544 = vld [vmem:[%s5 + $0x188] sm:$0xff]
      %v1545 = vld [vmem:[%s5 + $0x190] sm:$0xff]
      %v1546 = vld [vmem:[%s5 + $0x198] sm:$0xff]
      %v1547 = vld [vmem:[%s5 + $0x1a0] sm:$0xff]
      %v1548 = vld [vmem:[%s5 + $0x1a8] sm:$0xff]
      %v1549 = vld [vmem:[%s5 + $0x1b0] sm:$0xff]
      %v1550 = vld [vmem:[%s5 + $0x1b8] sm:$0xff]
      %v1551 = vld [vmem:[%s5 + $0x1c0] sm:$0xff]
      %v1552 = vld [vmem:[%s5 + $0x1c8] sm:$0xff]
      %v1553 = vld [vmem:[%s5 + $0x1d0] sm:$0xff]
      %v1554 = vld [vmem:[%s5 + $0x1d8] sm:$0xff]
      %v1555 = vld [vmem:[%s5 + $0x1e0] sm:$0xff]
      %v1556 = vld [vmem:[%s5 + $0x1e8] sm:$0xff]
      %v1557 = vld [vmem:[%s5 + $0x1f0] sm:$0xff]
      %v1558 = vld [vmem:[%s5 + $0x1f8] sm:$0xff]
      %v1559 = vld [vmem:[%s5 + $0x200] sm:$0xff]
      %v1560 = vld [vmem:[%s5 + $0x208] sm:$0xff]
      %v1561 = vld [vmem:[%s5 + $0x210] sm:$0xff]
      %v1562 = vld [vmem:[%s5 + $0x218] sm:$0xff]
      %v1563 = vld [vmem:[%s5 + $0x220] sm:$0xff]
      %v1564 = vld [vmem:[%s5 + $0x228] sm:$0xff]
      %v1565 = vld [vmem:[%s5 + $0x230] sm:$0xff]
      %v1566 = vld [vmem:[%s5 + $0x238] sm:$0xff]
      %v1567 = vld [vmem:[%s5 + $0x240] sm:$0xff]
      %v1568 = vld [vmem:[%s5 + $0x248] sm:$0xff]
      %v1569 = vld [vmem:[%s5 + $0x250] sm:$0xff]
      %v1570 = vld [vmem:[%s5 + $0x258] sm:$0xff]
      %v1571 = vld [vmem:[%s5 + $0x260] sm:$0xff]
      %v1572 = vld [vmem:[%s5 + $0x268] sm:$0xff]
      %v1573 = vld [vmem:[%s5 + $0x270] sm:$0xff]
      %v1574 = vld [vmem:[%s5 + $0x278] sm:$0xff]
      %v1575 = vld [vmem:[%s5 + $0x280] sm:$0xff]
      %v1576 = vld [vmem:[%s5 + $0x288] sm:$0xff]
      %v1577 = vld [vmem:[%s5 + $0x290] sm:$0xff]
      %v1578 = vld [vmem:[%s5 + $0x298] sm:$0xff]
      %v1579 = vld [vmem:[%s5 + $0x2a0] sm:$0xff]
      %v1580 = vld [vmem:[%s5 + $0x2a8] sm:$0xff]
      %v1581 = vld [vmem:[%s5 + $0x2b0] sm:$0xff]
      %v1582 = vld [vmem:[%s5 + $0x2b8] sm:$0xff]
      %v1583 = vld [vmem:[%s5 + $0x2c0] sm:$0xff]
      %v1584 = vld [vmem:[%s5 + $0x2c8] sm:$0xff]
      %v1585 = vld [vmem:[%s5 + $0x2d0] sm:$0xff]
      %v1586 = vld [vmem:[%s5 + $0x2d8] sm:$0xff]
      %v1587 = vld [vmem:[%s5 + $0x2e0] sm:$0xff]
      %v1588 = vld [vmem:[%s5 + $0x2e8] sm:$0xff]
      %v1589 = vld [vmem:[%s5 + $0x2f0] sm:$0xff]
      %v1590 = vld [vmem:[%s5 + $0x2f8] sm:$0xff]
      %v1591 = vld [vmem:[%s5 + $0x300] sm:$0xff]
      %v1592 = vld [vmem:[%s5 + $0x308] sm:$0xff]
      %v1593 = vld [vmem:[%s5 + $0x310] sm:$0xff]
      %v1594 = vld [vmem:[%s5 + $0x318] sm:$0xff]
      %v1595 = vld [vmem:[%s5 + $0x320] sm:$0xff]
      %v1596 = vld [vmem:[%s5 + $0x328] sm:$0xff]
      %v1597 = vld [vmem:[%s5 + $0x330] sm:$0xff]
      %v1598 = vld [vmem:[%s5 + $0x338] sm:$0xff]
      %v1599 = vld [vmem:[%s5 + $0x340] sm:$0xff]
      %v1600 = vld [vmem:[%s5 + $0x348] sm:$0xff]
      %v1601 = vld [vmem:[%s5 + $0x350] sm:$0xff]
      %v1602 = vld [vmem:[%s5 + $0x358] sm:$0xff]
      %v1603 = vld [vmem:[%s5 + $0x360] sm:$0xff]
      %v1604 = vld [vmem:[%s5 + $0x368] sm:$0xff]
      %v1605 = vld [vmem:[%s5 + $0x370] sm:$0xff]
      %v1606 = vld [vmem:[%s5 + $0x378] sm:$0xff]
      %v1607 = vld [vmem:[%s5 + $0x380] sm:$0xff]
      %v1608 = vld [vmem:[%s5 + $0x388] sm:$0xff]
      %v1609 = vld [vmem:[%s543] sm:$0xfe]
      %v1610 = vld [vmem:[%s543 + $0x8] sm:$0xfe]
      %v1611 = vld [vmem:[%s543 + $0x10] sm:$0xfe]
      %v1612 = vld [vmem:[%s543 + $0x18] sm:$0xfe]
      %v1613 = vld [vmem:[%s543 + $0x20] sm:$0x1f]
      %v1614 = vld [vmem:[%s543 + $0x28] sm:$0x1f]
      %v1615 = vld [vmem:[%s543 + $0x30] sm:$0x1f]
      %v1616 = vld [vmem:[%s543 + $0x38] sm:$0x1f]
      %v1617 = vld [vmem:[%s5 + $0x390] sm:$0xff]
      %v1618 = vld [vmem:[%s5 + $0x398] sm:$0xff]
      %v1619 = vld [vmem:[%s5 + $0x3a0] sm:$0xff]
      %v1620 = vld [vmem:[%s5 + $0x3a8] sm:$0xff]
      %v1621 = vld [vmem:[%s5 + $0x3b0] sm:$0xff]
      %v1622 = vld [vmem:[%s5 + $0x3b8] sm:$0xff]
      %v1623 = vld [vmem:[%s5 + $0x3c0] sm:$0xff]
      %v1624 = vld [vmem:[%s5 + $0x3c8] sm:$0xff]
      %v1625 = vld [vmem:[%s5 + $0x3d0] sm:$0xff]
      %v1626 = vld [vmem:[%s5 + $0x3d8] sm:$0xff]
      %v1627 = vld [vmem:[%s5 + $0x3e0] sm:$0xff]
      %v1628 = vld [vmem:[%s5 + $0x3e8] sm:$0xff]
      %v1629 = vld [vmem:[%s5 + $0x3f0] sm:$0xff]
      %v1630 = vld [vmem:[%s5 + $0x3f8] sm:$0xff]
      %v1631 = vld [vmem:[%s5 + $0x400] sm:$0xff]
      %v1632 = vld [vmem:[%s5 + $0x408] sm:$0xff]
      %v1633 = vld [vmem:[%s5 + $0x410] sm:$0xff]
      %v1634 = vld [vmem:[%s5 + $0x418] sm:$0xff]
      %v1635 = vld [vmem:[%s5 + $0x420] sm:$0xff]
      %v1636 = vld [vmem:[%s5 + $0x428] sm:$0xff]
      %v1637 = vld [vmem:[%s5 + $0x430] sm:$0xff]
      %v1638 = vld [vmem:[%s5 + $0x438] sm:$0xff]
      %v1639 = vld [vmem:[%s5 + $0x440] sm:$0xff]
      %v1640 = vld [vmem:[%s5 + $0x448] sm:$0xff]
      %v1641 = vld [vmem:[%s5 + $0x450] sm:$0xff]
      %v1642 = vld [vmem:[%s5 + $0x458] sm:$0xff]
      %v1643 = vld [vmem:[%s5 + $0x460] sm:$0xff]
      %v1644 = vld [vmem:[%s5 + $0x468] sm:$0xff]
      %v1645 = vld [vmem:[%s5 + $0x470] sm:$0xff]
      %v1646 = vld [vmem:[%s5 + $0x478] sm:$0xff]
      %v1647 = vld [vmem:[%s5 + $0x480] sm:$0xff]
      %v1648 = vld [vmem:[%s5 + $0x488] sm:$0xff]
      %v1649 = vld [vmem:[%s5 + $0x490] sm:$0xff]
      %v1650 = vld [vmem:[%s5 + $0x498] sm:$0xff]
      %v1651 = vld [vmem:[%s5 + $0x4a0] sm:$0xff]
      %v1652 = vld [vmem:[%s5 + $0x4a8] sm:$0xff]
      %v1653 = vld [vmem:[%s5 + $0x4b0] sm:$0xff]
      %v1654 = vld [vmem:[%s5 + $0x4b8] sm:$0xff]
      %v1655 = vld [vmem:[%s5 + $0x4c0] sm:$0xff]
      %v1656 = vld [vmem:[%s5 + $0x4c8] sm:$0xff]
      %v1657 = vld [vmem:[%s5 + $0x4d0] sm:$0xff]
      %v1658 = vld [vmem:[%s5 + $0x4d8] sm:$0xff]
      %v1659 = vld [vmem:[%s5 + $0x4e0] sm:$0xff]
      %v1660 = vld [vmem:[%s5 + $0x4e8] sm:$0xff]
      %v1661 = vld [vmem:[%s5 + $0x4f0] sm:$0xff]
      %v1662 = vld [vmem:[%s5 + $0x4f8] sm:$0xff]
      %v1663 = vld [vmem:[%s5 + $0x500] sm:$0xff]
      %v1664 = vld [vmem:[%s5 + $0x508] sm:$0xff]
      %v1665 = vld [vmem:[%s5 + $0x510] sm:$0xff]
      %v1666 = vld [vmem:[%s5 + $0x518] sm:$0xff]
      %v1667 = vld [vmem:[%s5 + $0x520] sm:$0xff]
      %v1668 = vld [vmem:[%s5 + $0x528] sm:$0xff]
      %v1669 = vld [vmem:[%s5 + $0x530] sm:$0xff]
      %v1670 = vld [vmem:[%s5 + $0x538] sm:$0xff]
      %v1671 = vld [vmem:[%s5 + $0x540] sm:$0xff]
      %v1672 = vld [vmem:[%s5 + $0x548] sm:$0xff]
      %v1673 = vld [vmem:[%s5 + $0x550] sm:$0xff]
      %v1674 = vld [vmem:[%s5 + $0x558] sm:$0xff]
      %v1675 = vld [vmem:[%s5 + $0x560] sm:$0xff]
      %v1676 = vld [vmem:[%s5 + $0x568] sm:$0xff]
      %v1677 = vld [vmem:[%s5 + $0x570] sm:$0xff]
      %v1678 = vld [vmem:[%s5 + $0x578] sm:$0xff]
      %v1679 = vld [vmem:[%s5 + $0x580] sm:$0xff]
      %v1680 = vld [vmem:[%s5 + $0x588] sm:$0xff]
      %v1681 = vld [vmem:[%s5 + $0x590] sm:$0xff]
      %v1682 = vld [vmem:[%s5 + $0x598] sm:$0xff]
      %v1683 = vld [vmem:[%s5 + $0x5a0] sm:$0xff]
      %v1684 = vld [vmem:[%s5 + $0x5a8] sm:$0xff]
      %v1685 = vld [vmem:[%s5 + $0x5b0] sm:$0xff]
      %v1686 = vld [vmem:[%s5 + $0x5b8] sm:$0xff]
      %v1687 = vld [vmem:[%s5 + $0x5c0] sm:$0xff]
      %v1688 = vld [vmem:[%s5 + $0x5c8] sm:$0xff]
      %v1689 = vld [vmem:[%s5 + $0x5d0] sm:$0xff]
      %v1690 = vld [vmem:[%s5 + $0x5d8] sm:$0xff]
      %v1691 = vld [vmem:[%s5 + $0x5e0] sm:$0xff]
      %v1692 = vld [vmem:[%s5 + $0x5e8] sm:$0xff]
      %v1693 = vld [vmem:[%s5 + $0x5f0] sm:$0xff]
      %v1694 = vld [vmem:[%s5 + $0x5f8] sm:$0xff]
      %v1695 = vld [vmem:[%s5 + $0x600] sm:$0xff]
      %v1696 = vld [vmem:[%s5 + $0x608] sm:$0xff]
      %v1697 = vld [vmem:[%s5 + $0x610] sm:$0xff]
      %v1698 = vld [vmem:[%s5 + $0x618] sm:$0xff]
      %v1699 = vld [vmem:[%s5 + $0x620] sm:$0xff]
      %v1700 = vld [vmem:[%s5 + $0x628] sm:$0xff]
      %v1701 = vld [vmem:[%s5 + $0x630] sm:$0xff]
      %v1702 = vld [vmem:[%s5 + $0x638] sm:$0xff]
      %v1703 = vld [vmem:[%s5 + $0x640] sm:$0xff]
      %v1704 = vld [vmem:[%s5 + $0x648] sm:$0xff]
      %v1705 = vld [vmem:[%s5 + $0x650] sm:$0xff]
      %v1706 = vld [vmem:[%s5 + $0x658] sm:$0xff]
      %v1707 = vld [vmem:[%s5 + $0x660] sm:$0xff]
      %v1708 = vld [vmem:[%s5 + $0x668] sm:$0xff]
      %v1709 = vld [vmem:[%s5 + $0x670] sm:$0xff]
      %v1710 = vld [vmem:[%s5 + $0x678] sm:$0xff]
      %v1711 = vld [vmem:[%s5 + $0x680] sm:$0xff]
      %v1712 = vld [vmem:[%s5 + $0x688] sm:$0xff]
      %v1713 = vld [vmem:[%s5 + $0x690] sm:$0xff]
      %v1714 = vld [vmem:[%s5 + $0x698] sm:$0xff]
      %v1715 = vld [vmem:[%s5 + $0x6a0] sm:$0xff]
      %v1716 = vld [vmem:[%s5 + $0x6a8] sm:$0xff]
      %v1717 = vld [vmem:[%s5 + $0x6b0] sm:$0xff]
      %v1718 = vld [vmem:[%s5 + $0x6b8] sm:$0xff]
      %v1719 = vld [vmem:[%s5 + $0x6c0] sm:$0xff]
      %v1720 = vld [vmem:[%s5 + $0x6c8] sm:$0xff]
      %v1721 = vld [vmem:[%s5 + $0x6d0] sm:$0xff]
      %v1722 = vld [vmem:[%s5 + $0x6d8] sm:$0xff]
      %v1723 = vld [vmem:[%s5 + $0x6e0] sm:$0xff]
      %v1724 = vld [vmem:[%s5 + $0x6e8] sm:$0xff]
      %v1725 = vld [vmem:[%s5 + $0x6f0] sm:$0xff]
      %v1726 = vld [vmem:[%s5 + $0x6f8] sm:$0xff]
      %v1727 = vld [vmem:[%s5 + $0x700] sm:$0xff]
      %v1728 = vld [vmem:[%s5 + $0x708] sm:$0xff]
      %v1729 = vld [vmem:[%s5 + $0x710] sm:$0xff]
      %v1730 = vld [vmem:[%s5 + $0x718] sm:$0xff]
      %v1739 = vrot.slane %v1609, 1
      %v1740 = vrot.slane %v1613, 1
      %v1741 = vsel %vm685, %v1739, %v1740
      %v1742 = vrot.slane %v1610, 1
      %v1743 = vrot.slane %v1614, 1
      %v1744 = vsel %vm685, %v1742, %v1743
      %v1745 = vrot.slane %v1611, 1
      %v1746 = vrot.slane %v1615, 1
      %v1747 = vsel %vm685, %v1745, %v1746
      %v1748 = vrot.slane %v1612, 1
      %v1749 = vrot.slane %v1616, 1
      %v1750 = vsel %vm685, %v1748, %v1749
      %v1757 = vsel %vm704, %v1750, 0
      %v1759 = vsel %vm704, %v1749, 0
      %1761 = vmatpush.msra.mxu0 %v1647
      %1762 = vmatpush.msra.mxu0 %v1645
      %1763 = vmatpush.msra.mxu0 %v1643
      %1764 = vmatpush.msra.mxu0 %v1641
      %1765 = vmatpush.msra.mxu0 %v1639
      %1766 = vmatpush.msra.mxu0 %v1637
      %1767 = vmatpush.msra.mxu0 %v1635
      %1768 = vmatpush.msra.mxu0 %v1633
      %1769 = vmatpush.msra.mxu0 %v1631
      %1770 = vmatpush.msra.mxu0 %v1629
      %1771 = vmatpush.msra.mxu0 %v1627
      %1772 = vmatpush.msra.mxu0 %v1625
      %1773 = vmatpush.msra.mxu0 %v1623
      %1774 = vmatpush.msra.mxu0 %v1621
      %1775 = vmatpush.msra.mxu0 %v1619
      %1776 = vmatpush.msra.mxu0 %v1617
      %1777 = vmatmul.f32.gmra.mxu0 %v1741
      %v1778 = vpop.f32.mrf.mxu0
      %v1779 = vadd.f32 0.0, %v1778
      %1780 = vmatmul.f32.gmra.mxu0 %v1740
      %v1781 = vpop.f32.mrf.mxu0
      %v1782 = vadd.f32 0.0, %v1781
      %1783 = vdwg.mxu0
      %1784 = vmatpush.msra.mxu0 %v1679
      %1785 = vmatpush.msra.mxu0 %v1677
      %1786 = vmatpush.msra.mxu0 %v1675
      %1787 = vmatpush.msra.mxu0 %v1673
      %1788 = vmatpush.msra.mxu0 %v1671
      %1789 = vmatpush.msra.mxu0 %v1669
      %1790 = vmatpush.msra.mxu0 %v1667
      %1791 = vmatpush.msra.mxu0 %v1665
      %1792 = vmatpush.msra.mxu0 %v1663
      %1793 = vmatpush.msra.mxu0 %v1661
      %1794 = vmatpush.msra.mxu0 %v1659
      %1795 = vmatpush.msra.mxu0 %v1657
      %1796 = vmatpush.msra.mxu0 %v1655
      %1797 = vmatpush.msra.mxu0 %v1653
      %1798 = vmatpush.msra.mxu0 %v1651
      %1799 = vmatpush.msra.mxu0 %v1649
      %1800 = vmatmul.f32.gmra.mxu0 %v1744
      %v1801 = vpop.f32.mrf.mxu0
      %v1802 = vadd.f32 %v1779, %v1801
      %1803 = vmatmul.f32.gmra.mxu0 %v1743
      %v1804 = vpop.f32.mrf.mxu0
      %v1805 = vadd.f32 %v1782, %v1804
      %1806 = vdwg.mxu0
      %1807 = vmatpush.msra.mxu0 %v1711
      %1808 = vmatpush.msra.mxu0 %v1709
      %1809 = vmatpush.msra.mxu0 %v1707
      %1810 = vmatpush.msra.mxu0 %v1705
      %1811 = vmatpush.msra.mxu0 %v1703
      %1812 = vmatpush.msra.mxu0 %v1701
      %1813 = vmatpush.msra.mxu0 %v1699
      %1814 = vmatpush.msra.mxu0 %v1697
      %1815 = vmatpush.msra.mxu0 %v1695
      %1816 = vmatpush.msra.mxu0 %v1693
      %1817 = vmatpush.msra.mxu0 %v1691
      %1818 = vmatpush.msra.mxu0 %v1689
      %1819 = vmatpush.msra.mxu0 %v1687
      %1820 = vmatpush.msra.mxu0 %v1685
      %1821 = vmatpush.msra.mxu0 %v1683
      %1822 = vmatpush.msra.mxu0 %v1681
      %1823 = vmatmul.f32.gmra.mxu0 %v1747
      %v1824 = vpop.f32.mrf.mxu0
      %v1825 = vadd.f32 %v1802, %v1824
      %1826 = vmatmul.f32.gmra.mxu0 %v1746
      %v1827 = vpop.f32.mrf.mxu0
      %v1828 = vadd.f32 %v1805, %v1827
      %1829 = vdwg.mxu0
      %1830 = vmatpush.msra.mxu0 0.0
      %1831 = vmatpush.msra.mxu0 0.0
      %1832 = vmatpush.msra.mxu0 0.0
      %1833 = vmatpush.msra.mxu0 0.0
      %1834 = vmatpush.msra.mxu0 0.0
      %1835 = vmatpush.msra.mxu0 0.0
      %1836 = vmatpush.msra.mxu0 0.0
      %1837 = vmatpush.msra.mxu0 %v1729
      %1838 = vmatpush.msra.mxu0 %v1727
      %1839 = vmatpush.msra.mxu0 %v1725
      %1840 = vmatpush.msra.mxu0 %v1723
      %1841 = vmatpush.msra.mxu0 %v1721
      %1842 = vmatpush.msra.mxu0 %v1719
      %1843 = vmatpush.msra.mxu0 %v1717
      %1844 = vmatpush.msra.mxu0 %v1715
      %1845 = vmatpush.msra.mxu0 %v1713
      %1846 = vmatmul.f32.gmra.mxu0 %v1757
      %v1847 = vpop.f32.mrf.mxu0
      %v1848 = vadd.f32 %v1825, %v1847
      %1849 = vmatmul.f32.gmra.mxu0 %v1759
      %v1850 = vpop.f32.mrf.mxu0
      %v1851 = vadd.f32 %v1828, %v1850
      %1852 = vdwg.mxu0
      %1853 = vmatpush.msra.mxu0 %v1648
      %1854 = vmatpush.msra.mxu0 %v1646
      %1855 = vmatpush.msra.mxu0 %v1644
      %1856 = vmatpush.msra.mxu0 %v1642
      %1857 = vmatpush.msra.mxu0 %v1640
      %1858 = vmatpush.msra.mxu0 %v1638
      %1859 = vmatpush.msra.mxu0 %v1636
      %1860 = vmatpush.msra.mxu0 %v1634
      %1861 = vmatpush.msra.mxu0 %v1632
      %1862 = vmatpush.msra.mxu0 %v1630
      %1863 = vmatpush.msra.mxu0 %v1628
      %1864 = vmatpush.msra.mxu0 %v1626
      %1865 = vmatpush.msra.mxu0 %v1624
      %1866 = vmatpush.msra.mxu0 %v1622
      %1867 = vmatpush.msra.mxu0 %v1620
      %1868 = vmatpush.msra.mxu0 %v1618
      %1869 = vmatmul.f32.gmra.mxu0 %v1741
      %v1870 = vpop.f32.mrf.mxu0
      %v1871 = vadd.f32 0.0, %v1870
      %1872 = vmatmul.f32.gmra.mxu0 %v1740
      %v1873 = vpop.f32.mrf.mxu0
      %v1874 = vadd.f32 0.0, %v1873
      %1875 = vdwg.mxu0
      %1876 = vmatpush.msra.mxu0 %v1680
      %1877 = vmatpush.msra.mxu0 %v1678
      %1878 = vmatpush.msra.mxu0 %v1676
      %1879 = vmatpush.msra.mxu0 %v1674
      %1880 = vmatpush.msra.mxu0 %v1672
      %1881 = vmatpush.msra.mxu0 %v1670
      %1882 = vmatpush.msra.mxu0 %v1668
      %1883 = vmatpush.msra.mxu0 %v1666
      %1884 = vmatpush.msra.mxu0 %v1664
      %1885 = vmatpush.msra.mxu0 %v1662
      %1886 = vmatpush.msra.mxu0 %v1660
      %1887 = vmatpush.msra.mxu0 %v1658
      %1888 = vmatpush.msra.mxu0 %v1656
      %1889 = vmatpush.msra.mxu0 %v1654
      %1890 = vmatpush.msra.mxu0 %v1652
      %1891 = vmatpush.msra.mxu0 %v1650
      %1892 = vmatmul.f32.gmra.mxu0 %v1744
      %v1893 = vpop.f32.mrf.mxu0
      %v1894 = vadd.f32 %v1871, %v1893
      %1895 = vmatmul.f32.gmra.mxu0 %v1743
      %v1896 = vpop.f32.mrf.mxu0
      %v1897 = vadd.f32 %v1874, %v1896
      %1898 = vdwg.mxu0
      %1899 = vmatpush.msra.mxu0 %v1712
      %1900 = vmatpush.msra.mxu0 %v1710
      %1901 = vmatpush.msra.mxu0 %v1708
      %1902 = vmatpush.msra.mxu0 %v1706
      %1903 = vmatpush.msra.mxu0 %v1704
      %1904 = vmatpush.msra.mxu0 %v1702
      %1905 = vmatpush.msra.mxu0 %v1700
      %1906 = vmatpush.msra.mxu0 %v1698
      %1907 = vmatpush.msra.mxu0 %v1696
      %1908 = vmatpush.msra.mxu0 %v1694
      %1909 = vmatpush.msra.mxu0 %v1692
      %1910 = vmatpush.msra.mxu0 %v1690
      %1911 = vmatpush.msra.mxu0 %v1688
      %1912 = vmatpush.msra.mxu0 %v1686
      %1913 = vmatpush.msra.mxu0 %v1684
      %1914 = vmatpush.msra.mxu0 %v1682
      %1915 = vmatmul.f32.gmra.mxu0 %v1747
      %v1916 = vpop.f32.mrf.mxu0
      %v1917 = vadd.f32 %v1894, %v1916
      %1918 = vmatmul.f32.gmra.mxu0 %v1746
      %v1919 = vpop.f32.mrf.mxu0
      %v1920 = vadd.f32 %v1897, %v1919
      %1921 = vdwg.mxu0
      %1922 = vmatpush.msra.mxu0 0.0
      %1923 = vmatpush.msra.mxu0 0.0
      %1924 = vmatpush.msra.mxu0 0.0
      %1925 = vmatpush.msra.mxu0 0.0
      %1926 = vmatpush.msra.mxu0 0.0
      %1927 = vmatpush.msra.mxu0 0.0
      %1928 = vmatpush.msra.mxu0 0.0
      %1929 = vmatpush.msra.mxu0 %v1730
      %1930 = vmatpush.msra.mxu0 %v1728
      %1931 = vmatpush.msra.mxu0 %v1726
      %1932 = vmatpush.msra.mxu0 %v1724
      %1933 = vmatpush.msra.mxu0 %v1722
      %1934 = vmatpush.msra.mxu0 %v1720
      %1935 = vmatpush.msra.mxu0 %v1718
      %1936 = vmatpush.msra.mxu0 %v1716
      %1937 = vmatpush.msra.mxu0 %v1714
      %1938 = vmatmul.f32.gmra.mxu0 %v1757
      %v1939 = vpop.f32.mrf.mxu0
      %v1940 = vadd.f32 %v1917, %v1939
      %1941 = vmatmul.f32.gmra.mxu0 %v1759
      %v1942 = vpop.f32.mrf.mxu0
      %v1943 = vadd.f32 %v1920, %v1942
      %1944 = vdwg.mxu0
      %v1946 = vsel %vm704, %v1490, 0
      %v1949 = vsel %vm704, %v1494, 0
      %1951 = vmatpush.msra.mxu0 %v1525
      %1952 = vmatpush.msra.mxu0 %v1523
      %1953 = vmatpush.msra.mxu0 %v1521
      %1954 = vmatpush.msra.mxu0 %v1519
      %1955 = vmatpush.msra.mxu0 %v1517
      %1956 = vmatpush.msra.mxu0 %v1515
      %1957 = vmatpush.msra.mxu0 %v1513
      %1958 = vmatpush.msra.mxu0 %v1511
      %1959 = vmatpush.msra.mxu0 %v1509
      %1960 = vmatpush.msra.mxu0 %v1507
      %1961 = vmatpush.msra.mxu0 %v1505
      %1962 = vmatpush.msra.mxu0 %v1503
      %1963 = vmatpush.msra.mxu0 %v1501
      %1964 = vmatpush.msra.mxu0 %v1499
      %1965 = vmatpush.msra.mxu0 %v1497
      %1966 = vmatpush.msra.mxu0 %v1495
      %1967 = vmatmul.f32.gmra.mxu0 %v1487
      %v1968 = vpop.f32.mrf.mxu0
      %v1969 = vadd.f32 %v1848, %v1968
      %1970 = vmatmul.f32.gmra.mxu0 %v1491
      %v1971 = vpop.f32.mrf.mxu0
      %v1972 = vadd.f32 %v1851, %v1971
      %1973 = vdwg.mxu0
      %1974 = vmatpush.msra.mxu0 %v1557
      %1975 = vmatpush.msra.mxu0 %v1555
      %1976 = vmatpush.msra.mxu0 %v1553
      %1977 = vmatpush.msra.mxu0 %v1551
      %1978 = vmatpush.msra.mxu0 %v1549
      %1979 = vmatpush.msra.mxu0 %v1547
      %1980 = vmatpush.msra.mxu0 %v1545
      %1981 = vmatpush.msra.mxu0 %v1543
      %1982 = vmatpush.msra.mxu0 %v1541
      %1983 = vmatpush.msra.mxu0 %v1539
      %1984 = vmatpush.msra.mxu0 %v1537
      %1985 = vmatpush.msra.mxu0 %v1535
      %1986 = vmatpush.msra.mxu0 %v1533
      %1987 = vmatpush.msra.mxu0 %v1531
      %1988 = vmatpush.msra.mxu0 %v1529
      %1989 = vmatpush.msra.mxu0 %v1527
      %1990 = vmatmul.f32.gmra.mxu0 %v1488
      %v1991 = vpop.f32.mrf.mxu0
      %v1992 = vadd.f32 %v1969, %v1991
      %1993 = vmatmul.f32.gmra.mxu0 %v1492
      %v1994 = vpop.f32.mrf.mxu0
      %v1995 = vadd.f32 %v1972, %v1994
      %1996 = vdwg.mxu0
      %1997 = vmatpush.msra.mxu0 %v1589
      %1998 = vmatpush.msra.mxu0 %v1587
      %1999 = vmatpush.msra.mxu0 %v1585
      %2000 = vmatpush.msra.mxu0 %v1583
      %2001 = vmatpush.msra.mxu0 %v1581
      %2002 = vmatpush.msra.mxu0 %v1579
      %2003 = vmatpush.msra.mxu0 %v1577
      %2004 = vmatpush.msra.mxu0 %v1575
      %2005 = vmatpush.msra.mxu0 %v1573
      %2006 = vmatpush.msra.mxu0 %v1571
      %2007 = vmatpush.msra.mxu0 %v1569
      %2008 = vmatpush.msra.mxu0 %v1567
      %2009 = vmatpush.msra.mxu0 %v1565
      %2010 = vmatpush.msra.mxu0 %v1563
      %2011 = vmatpush.msra.mxu0 %v1561
      %2012 = vmatpush.msra.mxu0 %v1559
      %2013 = vmatmul.f32.gmra.mxu0 %v1489
      %v2014 = vpop.f32.mrf.mxu0
      %v2015 = vadd.f32 %v1992, %v2014
      %2016 = vmatmul.f32.gmra.mxu0 %v1493
      %v2017 = vpop.f32.mrf.mxu0
      %v2018 = vadd.f32 %v1995, %v2017
      %2019 = vdwg.mxu0
      %2020 = vmatpush.msra.mxu0 0.0
      %2021 = vmatpush.msra.mxu0 0.0
      %2022 = vmatpush.msra.mxu0 0.0
      %2023 = vmatpush.msra.mxu0 0.0
      %2024 = vmatpush.msra.mxu0 0.0
      %2025 = vmatpush.msra.mxu0 0.0
      %2026 = vmatpush.msra.mxu0 0.0
      %2027 = vmatpush.msra.mxu0 %v1607
      %2028 = vmatpush.msra.mxu0 %v1605
      %2029 = vmatpush.msra.mxu0 %v1603
      %2030 = vmatpush.msra.mxu0 %v1601
      %2031 = vmatpush.msra.mxu0 %v1599
      %2032 = vmatpush.msra.mxu0 %v1597
      %2033 = vmatpush.msra.mxu0 %v1595
      %2034 = vmatpush.msra.mxu0 %v1593
      %2035 = vmatpush.msra.mxu0 %v1591
      %2036 = vmatmul.f32.gmra.mxu0 %v1946
      %v2037 = vpop.f32.mrf.mxu0
      %v2038 = vadd.f32 %v2015, %v2037
      %2039 = vmatmul.f32.gmra.mxu0 %v1949
      %v2040 = vpop.f32.mrf.mxu0
      %v2041 = vadd.f32 %v2018, %v2040
      %2042 = vdwg.mxu0
      %2043 = vmatpush.msra.mxu0 %v1526
      %2044 = vmatpush.msra.mxu0 %v1524
      %2045 = vmatpush.msra.mxu0 %v1522
      %2046 = vmatpush.msra.mxu0 %v1520
      %2047 = vmatpush.msra.mxu0 %v1518
      %2048 = vmatpush.msra.mxu0 %v1516
      %2049 = vmatpush.msra.mxu0 %v1514
      %2050 = vmatpush.msra.mxu0 %v1512
      %2051 = vmatpush.msra.mxu0 %v1510
      %2052 = vmatpush.msra.mxu0 %v1508
      %2053 = vmatpush.msra.mxu0 %v1506
      %2054 = vmatpush.msra.mxu0 %v1504
      %2055 = vmatpush.msra.mxu0 %v1502
      %2056 = vmatpush.msra.mxu0 %v1500
      %2057 = vmatpush.msra.mxu0 %v1498
      %2058 = vmatpush.msra.mxu0 %v1496
      %2059 = vmatmul.f32.gmra.mxu0 %v1487
      %v2060 = vpop.f32.mrf.mxu0
      %v2061 = vadd.f32 %v1940, %v2060
      %2062 = vmatmul.f32.gmra.mxu0 %v1491
      %v2063 = vpop.f32.mrf.mxu0
      %v2064 = vadd.f32 %v1943, %v2063
      %2065 = vdwg.mxu0
      %2066 = vmatpush.msra.mxu0 %v1558
      %2067 = vmatpush.msra.mxu0 %v1556
      %2068 = vmatpush.msra.mxu0 %v1554
      %2069 = vmatpush.msra.mxu0 %v1552
      %2070 = vmatpush.msra.mxu0 %v1550
      %2071 = vmatpush.msra.mxu0 %v1548
      %2072 = vmatpush.msra.mxu0 %v1546
      %2073 = vmatpush.msra.mxu0 %v1544
      %2074 = vmatpush.msra.mxu0 %v1542
      %2075 = vmatpush.msra.mxu0 %v1540
      %2076 = vmatpush.msra.mxu0 %v1538
      %2077 = vmatpush.msra.mxu0 %v1536
      %2078 = vmatpush.msra.mxu0 %v1534
      %2079 = vmatpush.msra.mxu0 %v1532
      %2080 = vmatpush.msra.mxu0 %v1530
      %2081 = vmatpush.msra.mxu0 %v1528
      %2082 = vmatmul.f32.gmra.mxu0 %v1488
      %v2083 = vpop.f32.mrf.mxu0
      %v2084 = vadd.f32 %v2061, %v2083
      %2085 = vmatmul.f32.gmra.mxu0 %v1492
      %v2086 = vpop.f32.mrf.mxu0
      %v2087 = vadd.f32 %v2064, %v2086
      %2088 = vdwg.mxu0
      %2089 = vmatpush.msra.mxu0 %v1590
      %2090 = vmatpush.msra.mxu0 %v1588
      %2091 = vmatpush.msra.mxu0 %v1586
      %2092 = vmatpush.msra.mxu0 %v1584
      %2093 = vmatpush.msra.mxu0 %v1582
      %2094 = vmatpush.msra.mxu0 %v1580
      %2095 = vmatpush.msra.mxu0 %v1578
      %2096 = vmatpush.msra.mxu0 %v1576
      %2097 = vmatpush.msra.mxu0 %v1574
      %2098 = vmatpush.msra.mxu0 %v1572
      %2099 = vmatpush.msra.mxu0 %v1570
      %2100 = vmatpush.msra.mxu0 %v1568
      %2101 = vmatpush.msra.mxu0 %v1566
      %2102 = vmatpush.msra.mxu0 %v1564
      %2103 = vmatpush.msra.mxu0 %v1562
      %2104 = vmatpush.msra.mxu0 %v1560
      %2105 = vmatmul.f32.gmra.mxu0 %v1489
      %v2106 = vpop.f32.mrf.mxu0
      %v2107 = vadd.f32 %v2084, %v2106
      %2108 = vmatmul.f32.gmra.mxu0 %v1493
      %v2109 = vpop.f32.mrf.mxu0
      %v2110 = vadd.f32 %v2087, %v2109
      %2111 = vdwg.mxu0
      %2112 = vmatpush.msra.mxu0 0.0
      %2113 = vmatpush.msra.mxu0 0.0
      %2114 = vmatpush.msra.mxu0 0.0
      %2115 = vmatpush.msra.mxu0 0.0
      %2116 = vmatpush.msra.mxu0 0.0
      %2117 = vmatpush.msra.mxu0 0.0
      %2118 = vmatpush.msra.mxu0 0.0
      %2119 = vmatpush.msra.mxu0 %v1608
      %2120 = vmatpush.msra.mxu0 %v1606
      %2121 = vmatpush.msra.mxu0 %v1604
      %2122 = vmatpush.msra.mxu0 %v1602
      %2123 = vmatpush.msra.mxu0 %v1600
      %2124 = vmatpush.msra.mxu0 %v1598
      %2125 = vmatpush.msra.mxu0 %v1596
      %2126 = vmatpush.msra.mxu0 %v1594
      %2127 = vmatpush.msra.mxu0 %v1592
      %2128 = vmatmul.f32.gmra.mxu0 %v1946
      %v2129 = vpop.f32.mrf.mxu0
      %v2130 = vadd.f32 %v2107, %v2129
      %2131 = vmatmul.f32.gmra.mxu0 %v1949
      %v2132 = vpop.f32.mrf.mxu0
      %v2133 = vadd.f32 %v2110, %v2132
      %2134 = vdwg.mxu0
      %v2135 = vld [vmem:[%s543] sm:$0xfc]
      %v2136 = vld [vmem:[%s543 + $0x8] sm:$0xfc]
      %v2137 = vld [vmem:[%s543 + $0x10] sm:$0xfc]
      %v2138 = vld [vmem:[%s543 + $0x18] sm:$0xfc]
      %v2139 = vld [vmem:[%s543 + $0x20] sm:$0x3f]
      %v2140 = vld [vmem:[%s543 + $0x28] sm:$0x3f]
      %v2141 = vld [vmem:[%s543 + $0x30] sm:$0x3f]
      %v2142 = vld [vmem:[%s543 + $0x38] sm:$0x3f]
      %v2143 = vld [vmem:[%s5 + $0x720] sm:$0xff]
      %v2144 = vld [vmem:[%s5 + $0x728] sm:$0xff]
      %v2145 = vld [vmem:[%s5 + $0x730] sm:$0xff]
      %v2146 = vld [vmem:[%s5 + $0x738] sm:$0xff]
      %v2147 = vld [vmem:[%s5 + $0x740] sm:$0xff]
      %v2148 = vld [vmem:[%s5 + $0x748] sm:$0xff]
      %v2149 = vld [vmem:[%s5 + $0x750] sm:$0xff]
      %v2150 = vld [vmem:[%s5 + $0x758] sm:$0xff]
      %v2151 = vld [vmem:[%s5 + $0x760] sm:$0xff]
      %v2152 = vld [vmem:[%s5 + $0x768] sm:$0xff]
      %v2153 = vld [vmem:[%s5 + $0x770] sm:$0xff]
      %v2154 = vld [vmem:[%s5 + $0x778] sm:$0xff]
      %v2155 = vld [vmem:[%s5 + $0x780] sm:$0xff]
      %v2156 = vld [vmem:[%s5 + $0x788] sm:$0xff]
      %v2157 = vld [vmem:[%s5 + $0x790] sm:$0xff]
      %v2158 = vld [vmem:[%s5 + $0x798] sm:$0xff]
      %v2159 = vld [vmem:[%s5 + $0x7a0] sm:$0xff]
      %v2160 = vld [vmem:[%s5 + $0x7a8] sm:$0xff]
      %v2161 = vld [vmem:[%s5 + $0x7b0] sm:$0xff]
      %v2162 = vld [vmem:[%s5 + $0x7b8] sm:$0xff]
      %v2163 = vld [vmem:[%s5 + $0x7c0] sm:$0xff]
      %v2164 = vld [vmem:[%s5 + $0x7c8] sm:$0xff]
      %v2165 = vld [vmem:[%s5 + $0x7d0] sm:$0xff]
      %v2166 = vld [vmem:[%s5 + $0x7d8] sm:$0xff]
      %v2167 = vld [vmem:[%s5 + $0x7e0] sm:$0xff]
      %v2168 = vld [vmem:[%s5 + $0x7e8] sm:$0xff]
      %v2169 = vld [vmem:[%s5 + $0x7f0] sm:$0xff]
      %v2170 = vld [vmem:[%s5 + $0x7f8] sm:$0xff]
      %v2171 = vld [vmem:[%s5 + $0x800] sm:$0xff]
      %v2172 = vld [vmem:[%s5 + $0x808] sm:$0xff]
      %v2173 = vld [vmem:[%s5 + $0x810] sm:$0xff]
      %v2174 = vld [vmem:[%s5 + $0x818] sm:$0xff]
      %v2175 = vld [vmem:[%s5 + $0x820] sm:$0xff]
      %v2176 = vld [vmem:[%s5 + $0x828] sm:$0xff]
      %v2177 = vld [vmem:[%s5 + $0x830] sm:$0xff]
      %v2178 = vld [vmem:[%s5 + $0x838] sm:$0xff]
      %v2179 = vld [vmem:[%s5 + $0x840] sm:$0xff]
      %v2180 = vld [vmem:[%s5 + $0x848] sm:$0xff]
      %v2181 = vld [vmem:[%s5 + $0x850] sm:$0xff]
      %v2182 = vld [vmem:[%s5 + $0x858] sm:$0xff]
      %v2183 = vld [vmem:[%s5 + $0x860] sm:$0xff]
      %v2184 = vld [vmem:[%s5 + $0x868] sm:$0xff]
      %v2185 = vld [vmem:[%s5 + $0x870] sm:$0xff]
      %v2186 = vld [vmem:[%s5 + $0x878] sm:$0xff]
      %v2187 = vld [vmem:[%s5 + $0x880] sm:$0xff]
      %v2188 = vld [vmem:[%s5 + $0x888] sm:$0xff]
      %v2189 = vld [vmem:[%s5 + $0x890] sm:$0xff]
      %v2190 = vld [vmem:[%s5 + $0x898] sm:$0xff]
      %v2191 = vld [vmem:[%s5 + $0x8a0] sm:$0xff]
      %v2192 = vld [vmem:[%s5 + $0x8a8] sm:$0xff]
      %v2193 = vld [vmem:[%s5 + $0x8b0] sm:$0xff]
      %v2194 = vld [vmem:[%s5 + $0x8b8] sm:$0xff]
      %v2195 = vld [vmem:[%s5 + $0x8c0] sm:$0xff]
      %v2196 = vld [vmem:[%s5 + $0x8c8] sm:$0xff]
      %v2197 = vld [vmem:[%s5 + $0x8d0] sm:$0xff]
      %v2198 = vld [vmem:[%s5 + $0x8d8] sm:$0xff]
      %v2199 = vld [vmem:[%s5 + $0x8e0] sm:$0xff]
      %v2200 = vld [vmem:[%s5 + $0x8e8] sm:$0xff]
      %v2201 = vld [vmem:[%s5 + $0x8f0] sm:$0xff]
      %v2202 = vld [vmem:[%s5 + $0x8f8] sm:$0xff]
      %v2203 = vld [vmem:[%s5 + $0x900] sm:$0xff]
      %v2204 = vld [vmem:[%s5 + $0x908] sm:$0xff]
      %v2205 = vld [vmem:[%s5 + $0x910] sm:$0xff]
      %v2206 = vld [vmem:[%s5 + $0x918] sm:$0xff]
      %v2207 = vld [vmem:[%s5 + $0x920] sm:$0xff]
      %v2208 = vld [vmem:[%s5 + $0x928] sm:$0xff]
      %v2209 = vld [vmem:[%s5 + $0x930] sm:$0xff]
      %v2210 = vld [vmem:[%s5 + $0x938] sm:$0xff]
      %v2211 = vld [vmem:[%s5 + $0x940] sm:$0xff]
      %v2212 = vld [vmem:[%s5 + $0x948] sm:$0xff]
      %v2213 = vld [vmem:[%s5 + $0x950] sm:$0xff]
      %v2214 = vld [vmem:[%s5 + $0x958] sm:$0xff]
      %v2215 = vld [vmem:[%s5 + $0x960] sm:$0xff]
      %v2216 = vld [vmem:[%s5 + $0x968] sm:$0xff]
      %v2217 = vld [vmem:[%s5 + $0x970] sm:$0xff]
      %v2218 = vld [vmem:[%s5 + $0x978] sm:$0xff]
      %v2219 = vld [vmem:[%s5 + $0x980] sm:$0xff]
      %v2220 = vld [vmem:[%s5 + $0x988] sm:$0xff]
      %v2221 = vld [vmem:[%s5 + $0x990] sm:$0xff]
      %v2222 = vld [vmem:[%s5 + $0x998] sm:$0xff]
      %v2223 = vld [vmem:[%s5 + $0x9a0] sm:$0xff]
      %v2224 = vld [vmem:[%s5 + $0x9a8] sm:$0xff]
      %v2225 = vld [vmem:[%s5 + $0x9b0] sm:$0xff]
      %v2226 = vld [vmem:[%s5 + $0x9b8] sm:$0xff]
      %v2227 = vld [vmem:[%s5 + $0x9c0] sm:$0xff]
      %v2228 = vld [vmem:[%s5 + $0x9c8] sm:$0xff]
      %v2229 = vld [vmem:[%s5 + $0x9d0] sm:$0xff]
      %v2230 = vld [vmem:[%s5 + $0x9d8] sm:$0xff]
      %v2231 = vld [vmem:[%s5 + $0x9e0] sm:$0xff]
      %v2232 = vld [vmem:[%s5 + $0x9e8] sm:$0xff]
      %v2233 = vld [vmem:[%s5 + $0x9f0] sm:$0xff]
      %v2234 = vld [vmem:[%s5 + $0x9f8] sm:$0xff]
      %v2235 = vld [vmem:[%s5 + $0xa00] sm:$0xff]
      %v2236 = vld [vmem:[%s5 + $0xa08] sm:$0xff]
      %v2237 = vld [vmem:[%s5 + $0xa10] sm:$0xff]
      %v2238 = vld [vmem:[%s5 + $0xa18] sm:$0xff]
      %v2239 = vld [vmem:[%s5 + $0xa20] sm:$0xff]
      %v2240 = vld [vmem:[%s5 + $0xa28] sm:$0xff]
      %v2241 = vld [vmem:[%s5 + $0xa30] sm:$0xff]
      %v2242 = vld [vmem:[%s5 + $0xa38] sm:$0xff]
      %v2243 = vld [vmem:[%s5 + $0xa40] sm:$0xff]
      %v2244 = vld [vmem:[%s5 + $0xa48] sm:$0xff]
      %v2245 = vld [vmem:[%s5 + $0xa50] sm:$0xff]
      %v2246 = vld [vmem:[%s5 + $0xa58] sm:$0xff]
      %v2247 = vld [vmem:[%s5 + $0xa60] sm:$0xff]
      %v2248 = vld [vmem:[%s5 + $0xa68] sm:$0xff]
      %v2249 = vld [vmem:[%s5 + $0xa70] sm:$0xff]
      %v2250 = vld [vmem:[%s5 + $0xa78] sm:$0xff]
      %v2251 = vld [vmem:[%s5 + $0xa80] sm:$0xff]
      %v2252 = vld [vmem:[%s5 + $0xa88] sm:$0xff]
      %v2253 = vld [vmem:[%s5 + $0xa90] sm:$0xff]
      %v2254 = vld [vmem:[%s5 + $0xa98] sm:$0xff]
      %v2255 = vld [vmem:[%s5 + $0xaa0] sm:$0xff]
      %v2256 = vld [vmem:[%s5 + $0xaa8] sm:$0xff]
      %v2265 = vrot.slane %v2135, 2
      %v2266 = vrot.slane %v2139, 2
      %v2267 = vsel %vm972, %v2265, %v2266
      %v2268 = vrot.slane %v2136, 2
      %v2269 = vrot.slane %v2140, 2
      %v2270 = vsel %vm972, %v2268, %v2269
      %v2271 = vrot.slane %v2137, 2
      %v2272 = vrot.slane %v2141, 2
      %v2273 = vsel %vm972, %v2271, %v2272
      %v2274 = vrot.slane %v2138, 2
      %v2275 = vrot.slane %v2142, 2
      %v2276 = vsel %vm972, %v2274, %v2275
      %v2283 = vsel %vm704, %v2276, 0
      %v2285 = vsel %vm704, %v2275, 0
      %2287 = vmatpush.msra.mxu0 %v2173
      %2288 = vmatpush.msra.mxu0 %v2171
      %2289 = vmatpush.msra.mxu0 %v2169
      %2290 = vmatpush.msra.mxu0 %v2167
      %2291 = vmatpush.msra.mxu0 %v2165
      %2292 = vmatpush.msra.mxu0 %v2163
      %2293 = vmatpush.msra.mxu0 %v2161
      %2294 = vmatpush.msra.mxu0 %v2159
      %2295 = vmatpush.msra.mxu0 %v2157
      %2296 = vmatpush.msra.mxu0 %v2155
      %2297 = vmatpush.msra.mxu0 %v2153
      %2298 = vmatpush.msra.mxu0 %v2151
      %2299 = vmatpush.msra.mxu0 %v2149
      %2300 = vmatpush.msra.mxu0 %v2147
      %2301 = vmatpush.msra.mxu0 %v2145
      %2302 = vmatpush.msra.mxu0 %v2143
      %2303 = vmatmul.f32.gmra.mxu0 %v2267
      %v2304 = vpop.f32.mrf.mxu0
      %v2305 = vadd.f32 0.0, %v2304
      %2306 = vmatmul.f32.gmra.mxu0 %v2266
      %v2307 = vpop.f32.mrf.mxu0
      %v2308 = vadd.f32 0.0, %v2307
      %2309 = vdwg.mxu0
      %2310 = vmatpush.msra.mxu0 %v2205
      %2311 = vmatpush.msra.mxu0 %v2203
      %2312 = vmatpush.msra.mxu0 %v2201
      %2313 = vmatpush.msra.mxu0 %v2199
      %2314 = vmatpush.msra.mxu0 %v2197
      %2315 = vmatpush.msra.mxu0 %v2195
      %2316 = vmatpush.msra.mxu0 %v2193
      %2317 = vmatpush.msra.mxu0 %v2191
      %2318 = vmatpush.msra.mxu0 %v2189
      %2319 = vmatpush.msra.mxu0 %v2187
      %2320 = vmatpush.msra.mxu0 %v2185
      %2321 = vmatpush.msra.mxu0 %v2183
      %2322 = vmatpush.msra.mxu0 %v2181
      %2323 = vmatpush.msra.mxu0 %v2179
      %2324 = vmatpush.msra.mxu0 %v2177
      %2325 = vmatpush.msra.mxu0 %v2175
      %2326 = vmatmul.f32.gmra.mxu0 %v2270
      %v2327 = vpop.f32.mrf.mxu0
      %v2328 = vadd.f32 %v2305, %v2327
      %2329 = vmatmul.f32.gmra.mxu0 %v2269
      %v2330 = vpop.f32.mrf.mxu0
      %v2331 = vadd.f32 %v2308, %v2330
      %2332 = vdwg.mxu0
      %2333 = vmatpush.msra.mxu0 %v2237
      %2334 = vmatpush.msra.mxu0 %v2235
      %2335 = vmatpush.msra.mxu0 %v2233
      %2336 = vmatpush.msra.mxu0 %v2231
      %2337 = vmatpush.msra.mxu0 %v2229
      %2338 = vmatpush.msra.mxu0 %v2227
      %2339 = vmatpush.msra.mxu0 %v2225
      %2340 = vmatpush.msra.mxu0 %v2223
      %2341 = vmatpush.msra.mxu0 %v2221
      %2342 = vmatpush.msra.mxu0 %v2219
      %2343 = vmatpush.msra.mxu0 %v2217
      %2344 = vmatpush.msra.mxu0 %v2215
      %2345 = vmatpush.msra.mxu0 %v2213
      %2346 = vmatpush.msra.mxu0 %v2211
      %2347 = vmatpush.msra.mxu0 %v2209
      %2348 = vmatpush.msra.mxu0 %v2207
      %2349 = vmatmul.f32.gmra.mxu0 %v2273
      %v2350 = vpop.f32.mrf.mxu0
      %v2351 = vadd.f32 %v2328, %v2350
      %2352 = vmatmul.f32.gmra.mxu0 %v2272
      %v2353 = vpop.f32.mrf.mxu0
      %v2354 = vadd.f32 %v2331, %v2353
      %2355 = vdwg.mxu0
      %2356 = vmatpush.msra.mxu0 0.0
      %2357 = vmatpush.msra.mxu0 0.0
      %2358 = vmatpush.msra.mxu0 0.0
      %2359 = vmatpush.msra.mxu0 0.0
      %2360 = vmatpush.msra.mxu0 0.0
      %2361 = vmatpush.msra.mxu0 0.0
      %2362 = vmatpush.msra.mxu0 0.0
      %2363 = vmatpush.msra.mxu0 %v2255
      %2364 = vmatpush.msra.mxu0 %v2253
      %2365 = vmatpush.msra.mxu0 %v2251
      %2366 = vmatpush.msra.mxu0 %v2249
      %2367 = vmatpush.msra.mxu0 %v2247
      %2368 = vmatpush.msra.mxu0 %v2245
      %2369 = vmatpush.msra.mxu0 %v2243
      %2370 = vmatpush.msra.mxu0 %v2241
      %2371 = vmatpush.msra.mxu0 %v2239
      %2372 = vmatmul.f32.gmra.mxu0 %v2283
      %v2373 = vpop.f32.mrf.mxu0
      %v2374 = vadd.f32 %v2351, %v2373
      %2375 = vmatmul.f32.gmra.mxu0 %v2285
      %v2376 = vpop.f32.mrf.mxu0
      %v2377 = vadd.f32 %v2354, %v2376
      %2378 = vdwg.mxu0
      %2379 = vmatpush.msra.mxu0 %v2174
      %2380 = vmatpush.msra.mxu0 %v2172
      %2381 = vmatpush.msra.mxu0 %v2170
      %2382 = vmatpush.msra.mxu0 %v2168
      %2383 = vmatpush.msra.mxu0 %v2166
      %2384 = vmatpush.msra.mxu0 %v2164
      %2385 = vmatpush.msra.mxu0 %v2162
      %2386 = vmatpush.msra.mxu0 %v2160
      %2387 = vmatpush.msra.mxu0 %v2158
      %2388 = vmatpush.msra.mxu0 %v2156
      %2389 = vmatpush.msra.mxu0 %v2154
      %2390 = vmatpush.msra.mxu0 %v2152
      %2391 = vmatpush.msra.mxu0 %v2150
      %2392 = vmatpush.msra.mxu0 %v2148
      %2393 = vmatpush.msra.mxu0 %v2146
      %2394 = vmatpush.msra.mxu0 %v2144
      %2395 = vmatmul.f32.gmra.mxu0 %v2267
      %v2396 = vpop.f32.mrf.mxu0
      %v2397 = vadd.f32 0.0, %v2396
      %2398 = vmatmul.f32.gmra.mxu0 %v2266
      %v2399 = vpop.f32.mrf.mxu0
      %v2400 = vadd.f32 0.0, %v2399
      %2401 = vdwg.mxu0
      %2402 = vmatpush.msra.mxu0 %v2206
      %2403 = vmatpush.msra.mxu0 %v2204
      %2404 = vmatpush.msra.mxu0 %v2202
      %2405 = vmatpush.msra.mxu0 %v2200
      %2406 = vmatpush.msra.mxu0 %v2198
      %2407 = vmatpush.msra.mxu0 %v2196
      %2408 = vmatpush.msra.mxu0 %v2194
      %2409 = vmatpush.msra.mxu0 %v2192
      %2410 = vmatpush.msra.mxu0 %v2190
      %2411 = vmatpush.msra.mxu0 %v2188
      %2412 = vmatpush.msra.mxu0 %v2186
      %2413 = vmatpush.msra.mxu0 %v2184
      %2414 = vmatpush.msra.mxu0 %v2182
      %2415 = vmatpush.msra.mxu0 %v2180
      %2416 = vmatpush.msra.mxu0 %v2178
      %2417 = vmatpush.msra.mxu0 %v2176
      %2418 = vmatmul.f32.gmra.mxu0 %v2270
      %v2419 = vpop.f32.mrf.mxu0
      %v2420 = vadd.f32 %v2397, %v2419
      %2421 = vmatmul.f32.gmra.mxu0 %v2269
      %v2422 = vpop.f32.mrf.mxu0
      %v2423 = vadd.f32 %v2400, %v2422
      %2424 = vdwg.mxu0
      %2425 = vmatpush.msra.mxu0 %v2238
      %2426 = vmatpush.msra.mxu0 %v2236
      %2427 = vmatpush.msra.mxu0 %v2234
      %2428 = vmatpush.msra.mxu0 %v2232
      %2429 = vmatpush.msra.mxu0 %v2230
      %2430 = vmatpush.msra.mxu0 %v2228
      %2431 = vmatpush.msra.mxu0 %v2226
      %2432 = vmatpush.msra.mxu0 %v2224
      %2433 = vmatpush.msra.mxu0 %v2222
      %2434 = vmatpush.msra.mxu0 %v2220
      %2435 = vmatpush.msra.mxu0 %v2218
      %2436 = vmatpush.msra.mxu0 %v2216
      %2437 = vmatpush.msra.mxu0 %v2214
      %2438 = vmatpush.msra.mxu0 %v2212
      %2439 = vmatpush.msra.mxu0 %v2210
      %2440 = vmatpush.msra.mxu0 %v2208
      %2441 = vmatmul.f32.gmra.mxu0 %v2273
      %v2442 = vpop.f32.mrf.mxu0
      %v2443 = vadd.f32 %v2420, %v2442
      %2444 = vmatmul.f32.gmra.mxu0 %v2272
      %v2445 = vpop.f32.mrf.mxu0
      %v2446 = vadd.f32 %v2423, %v2445
      %2447 = vdwg.mxu0
      %2448 = vmatpush.msra.mxu0 0.0
      %2449 = vmatpush.msra.mxu0 0.0
      %2450 = vmatpush.msra.mxu0 0.0
      %2451 = vmatpush.msra.mxu0 0.0
      %2452 = vmatpush.msra.mxu0 0.0
      %2453 = vmatpush.msra.mxu0 0.0
      %2454 = vmatpush.msra.mxu0 0.0
      %2455 = vmatpush.msra.mxu0 %v2256
      %2456 = vmatpush.msra.mxu0 %v2254
      %2457 = vmatpush.msra.mxu0 %v2252
      %2458 = vmatpush.msra.mxu0 %v2250
      %2459 = vmatpush.msra.mxu0 %v2248
      %2460 = vmatpush.msra.mxu0 %v2246
      %2461 = vmatpush.msra.mxu0 %v2244
      %2462 = vmatpush.msra.mxu0 %v2242
      %2463 = vmatpush.msra.mxu0 %v2240
      %2464 = vmatmul.f32.gmra.mxu0 %v2283
      %v2465 = vpop.f32.mrf.mxu0
      %v2466 = vadd.f32 %v2443, %v2465
      %2467 = vmatmul.f32.gmra.mxu0 %v2285
      %v2468 = vpop.f32.mrf.mxu0
      %v2469 = vadd.f32 %v2446, %v2468
      %2470 = vdwg.mxu0
      %v2471 = vadd.f32 %v2038, %v2374
      %v2472 = vadd.f32 %v2130, %v2466
      %v2473 = vadd.f32 %v2041, %v2377
      %v2474 = vadd.f32 %v2133, %v2469
      %v2475 = vld [vmem:[%s543] sm:$0xf8]
      %v2476 = vld [vmem:[%s543 + $0x8] sm:$0xf8]
      %v2477 = vld [vmem:[%s543 + $0x10] sm:$0xf8]
      %v2478 = vld [vmem:[%s543 + $0x18] sm:$0xf8]
      %v2479 = vld [vmem:[%s543 + $0x20] sm:$0x7f]
      %v2480 = vld [vmem:[%s543 + $0x28] sm:$0x7f]
      %v2481 = vld [vmem:[%s543 + $0x30] sm:$0x7f]
      %v2482 = vld [vmem:[%s543 + $0x38] sm:$0x7f]
      %v2483 = vld [vmem:[%s5 + $0xab0] sm:$0xff]
      %v2484 = vld [vmem:[%s5 + $0xab8] sm:$0xff]
      %v2485 = vld [vmem:[%s5 + $0xac0] sm:$0xff]
      %v2486 = vld [vmem:[%s5 + $0xac8] sm:$0xff]
      %v2487 = vld [vmem:[%s5 + $0xad0] sm:$0xff]
      %v2488 = vld [vmem:[%s5 + $0xad8] sm:$0xff]
      %v2489 = vld [vmem:[%s5 + $0xae0] sm:$0xff]
      %v2490 = vld [vmem:[%s5 + $0xae8] sm:$0xff]
      %v2491 = vld [vmem:[%s5 + $0xaf0] sm:$0xff]
      %v2492 = vld [vmem:[%s5 + $0xaf8] sm:$0xff]
      %v2493 = vld [vmem:[%s5 + $0xb00] sm:$0xff]
      %v2494 = vld [vmem:[%s5 + $0xb08] sm:$0xff]
      %v2495 = vld [vmem:[%s5 + $0xb10] sm:$0xff]
      %v2496 = vld [vmem:[%s5 + $0xb18] sm:$0xff]
      %v2497 = vld [vmem:[%s5 + $0xb20] sm:$0xff]
      %v2498 = vld [vmem:[%s5 + $0xb28] sm:$0xff]
      %v2499 = vld [vmem:[%s5 + $0xb30] sm:$0xff]
      %v2500 = vld [vmem:[%s5 + $0xb38] sm:$0xff]
      %v2501 = vld [vmem:[%s5 + $0xb40] sm:$0xff]
      %v2502 = vld [vmem:[%s5 + $0xb48] sm:$0xff]
      %v2503 = vld [vmem:[%s5 + $0xb50] sm:$0xff]
      %v2504 = vld [vmem:[%s5 + $0xb58] sm:$0xff]
      %v2505 = vld [vmem:[%s5 + $0xb60] sm:$0xff]
      %v2506 = vld [vmem:[%s5 + $0xb68] sm:$0xff]
      %v2507 = vld [vmem:[%s5 + $0xb70] sm:$0xff]
      %v2508 = vld [vmem:[%s5 + $0xb78] sm:$0xff]
      %v2509 = vld [vmem:[%s5 + $0xb80] sm:$0xff]
      %v2510 = vld [vmem:[%s5 + $0xb88] sm:$0xff]
      %v2511 = vld [vmem:[%s5 + $0xb90] sm:$0xff]
      %v2512 = vld [vmem:[%s5 + $0xb98] sm:$0xff]
      %v2513 = vld [vmem:[%s5 + $0xba0] sm:$0xff]
      %v2514 = vld [vmem:[%s5 + $0xba8] sm:$0xff]
      %v2515 = vld [vmem:[%s5 + $0xbb0] sm:$0xff]
      %v2516 = vld [vmem:[%s5 + $0xbb8] sm:$0xff]
      %v2517 = vld [vmem:[%s5 + $0xbc0] sm:$0xff]
      %v2518 = vld [vmem:[%s5 + $0xbc8] sm:$0xff]
      %v2519 = vld [vmem:[%s5 + $0xbd0] sm:$0xff]
      %v2520 = vld [vmem:[%s5 + $0xbd8] sm:$0xff]
      %v2521 = vld [vmem:[%s5 + $0xbe0] sm:$0xff]
      %v2522 = vld [vmem:[%s5 + $0xbe8] sm:$0xff]
      %v2523 = vld [vmem:[%s5 + $0xbf0] sm:$0xff]
      %v2524 = vld [vmem:[%s5 + $0xbf8] sm:$0xff]
      %v2525 = vld [vmem:[%s5 + $0xc00] sm:$0xff]
      %v2526 = vld [vmem:[%s5 + $0xc08] sm:$0xff]
      %v2527 = vld [vmem:[%s5 + $0xc10] sm:$0xff]
      %v2528 = vld [vmem:[%s5 + $0xc18] sm:$0xff]
      %v2529 = vld [vmem:[%s5 + $0xc20] sm:$0xff]
      %v2530 = vld [vmem:[%s5 + $0xc28] sm:$0xff]
      %v2531 = vld [vmem:[%s5 + $0xc30] sm:$0xff]
      %v2532 = vld [vmem:[%s5 + $0xc38] sm:$0xff]
      %v2533 = vld [vmem:[%s5 + $0xc40] sm:$0xff]
      %v2534 = vld [vmem:[%s5 + $0xc48] sm:$0xff]
      %v2535 = vld [vmem:[%s5 + $0xc50] sm:$0xff]
      %v2536 = vld [vmem:[%s5 + $0xc58] sm:$0xff]
      %v2537 = vld [vmem:[%s5 + $0xc60] sm:$0xff]
      %v2538 = vld [vmem:[%s5 + $0xc68] sm:$0xff]
      %v2539 = vld [vmem:[%s5 + $0xc70] sm:$0xff]
      %v2540 = vld [vmem:[%s5 + $0xc78] sm:$0xff]
      %v2541 = vld [vmem:[%s5 + $0xc80] sm:$0xff]
      %v2542 = vld [vmem:[%s5 + $0xc88] sm:$0xff]
      %v2543 = vld [vmem:[%s5 + $0xc90] sm:$0xff]
      %v2544 = vld [vmem:[%s5 + $0xc98] sm:$0xff]
      %v2545 = vld [vmem:[%s5 + $0xca0] sm:$0xff]
      %v2546 = vld [vmem:[%s5 + $0xca8] sm:$0xff]
      %v2547 = vld [vmem:[%s5 + $0xcb0] sm:$0xff]
      %v2548 = vld [vmem:[%s5 + $0xcb8] sm:$0xff]
      %v2549 = vld [vmem:[%s5 + $0xcc0] sm:$0xff]
      %v2550 = vld [vmem:[%s5 + $0xcc8] sm:$0xff]
      %v2551 = vld [vmem:[%s5 + $0xcd0] sm:$0xff]
      %v2552 = vld [vmem:[%s5 + $0xcd8] sm:$0xff]
      %v2553 = vld [vmem:[%s5 + $0xce0] sm:$0xff]
      %v2554 = vld [vmem:[%s5 + $0xce8] sm:$0xff]
      %v2555 = vld [vmem:[%s5 + $0xcf0] sm:$0xff]
      %v2556 = vld [vmem:[%s5 + $0xcf8] sm:$0xff]
      %v2557 = vld [vmem:[%s5 + $0xd00] sm:$0xff]
      %v2558 = vld [vmem:[%s5 + $0xd08] sm:$0xff]
      %v2559 = vld [vmem:[%s5 + $0xd10] sm:$0xff]
      %v2560 = vld [vmem:[%s5 + $0xd18] sm:$0xff]
      %v2561 = vld [vmem:[%s5 + $0xd20] sm:$0xff]
      %v2562 = vld [vmem:[%s5 + $0xd28] sm:$0xff]
      %v2563 = vld [vmem:[%s5 + $0xd30] sm:$0xff]
      %v2564 = vld [vmem:[%s5 + $0xd38] sm:$0xff]
      %v2565 = vld [vmem:[%s5 + $0xd40] sm:$0xff]
      %v2566 = vld [vmem:[%s5 + $0xd48] sm:$0xff]
      %v2567 = vld [vmem:[%s5 + $0xd50] sm:$0xff]
      %v2568 = vld [vmem:[%s5 + $0xd58] sm:$0xff]
      %v2569 = vld [vmem:[%s5 + $0xd60] sm:$0xff]
      %v2570 = vld [vmem:[%s5 + $0xd68] sm:$0xff]
      %v2571 = vld [vmem:[%s5 + $0xd70] sm:$0xff]
      %v2572 = vld [vmem:[%s5 + $0xd78] sm:$0xff]
      %v2573 = vld [vmem:[%s5 + $0xd80] sm:$0xff]
      %v2574 = vld [vmem:[%s5 + $0xd88] sm:$0xff]
      %v2575 = vld [vmem:[%s5 + $0xd90] sm:$0xff]
      %v2576 = vld [vmem:[%s5 + $0xd98] sm:$0xff]
      %v2577 = vld [vmem:[%s5 + $0xda0] sm:$0xff]
      %v2578 = vld [vmem:[%s5 + $0xda8] sm:$0xff]
      %v2579 = vld [vmem:[%s5 + $0xdb0] sm:$0xff]
      %v2580 = vld [vmem:[%s5 + $0xdb8] sm:$0xff]
      %v2581 = vld [vmem:[%s5 + $0xdc0] sm:$0xff]
      %v2582 = vld [vmem:[%s5 + $0xdc8] sm:$0xff]
      %v2583 = vld [vmem:[%s5 + $0xdd0] sm:$0xff]
      %v2584 = vld [vmem:[%s5 + $0xdd8] sm:$0xff]
      %v2585 = vld [vmem:[%s5 + $0xde0] sm:$0xff]
      %v2586 = vld [vmem:[%s5 + $0xde8] sm:$0xff]
      %v2587 = vld [vmem:[%s5 + $0xdf0] sm:$0xff]
      %v2588 = vld [vmem:[%s5 + $0xdf8] sm:$0xff]
      %v2589 = vld [vmem:[%s5 + $0xe00] sm:$0xff]
      %v2590 = vld [vmem:[%s5 + $0xe08] sm:$0xff]
      %v2591 = vld [vmem:[%s5 + $0xe10] sm:$0xff]
      %v2592 = vld [vmem:[%s5 + $0xe18] sm:$0xff]
      %v2593 = vld [vmem:[%s5 + $0xe20] sm:$0xff]
      %v2594 = vld [vmem:[%s5 + $0xe28] sm:$0xff]
      %v2595 = vld [vmem:[%s5 + $0xe30] sm:$0xff]
      %v2596 = vld [vmem:[%s5 + $0xe38] sm:$0xff]
      %v2605 = vrot.slane %v2475, 3
      %v2606 = vrot.slane %v2479, 3
      %v2607 = vsel %vm1162, %v2605, %v2606
      %v2608 = vrot.slane %v2476, 3
      %v2609 = vrot.slane %v2480, 3
      %v2610 = vsel %vm1162, %v2608, %v2609
      %v2611 = vrot.slane %v2477, 3
      %v2612 = vrot.slane %v2481, 3
      %v2613 = vsel %vm1162, %v2611, %v2612
      %v2614 = vrot.slane %v2478, 3
      %v2615 = vrot.slane %v2482, 3
      %v2616 = vsel %vm1162, %v2614, %v2615
      %v2623 = vsel %vm704, %v2616, 0
      %v2625 = vsel %vm704, %v2615, 0
      %2627 = vmatpush.msra.mxu0 %v2513
      %2628 = vmatpush.msra.mxu0 %v2511
      %2629 = vmatpush.msra.mxu0 %v2509
      %2630 = vmatpush.msra.mxu0 %v2507
      %2631 = vmatpush.msra.mxu0 %v2505
      %2632 = vmatpush.msra.mxu0 %v2503
      %2633 = vmatpush.msra.mxu0 %v2501
      %2634 = vmatpush.msra.mxu0 %v2499
      %2635 = vmatpush.msra.mxu0 %v2497
      %2636 = vmatpush.msra.mxu0 %v2495
      %2637 = vmatpush.msra.mxu0 %v2493
      %2638 = vmatpush.msra.mxu0 %v2491
      %2639 = vmatpush.msra.mxu0 %v2489
      %2640 = vmatpush.msra.mxu0 %v2487
      %2641 = vmatpush.msra.mxu0 %v2485
      %2642 = vmatpush.msra.mxu0 %v2483
      %2643 = vmatmul.f32.gmra.mxu0 %v2607
      %v2644 = vpop.f32.mrf.mxu0
      %v2645 = vadd.f32 0.0, %v2644
      %2646 = vmatmul.f32.gmra.mxu0 %v2606
      %v2647 = vpop.f32.mrf.mxu0
      %v2648 = vadd.f32 0.0, %v2647
      %2649 = vdwg.mxu0
      %2650 = vmatpush.msra.mxu0 %v2545
      %2651 = vmatpush.msra.mxu0 %v2543
      %2652 = vmatpush.msra.mxu0 %v2541
      %2653 = vmatpush.msra.mxu0 %v2539
      %2654 = vmatpush.msra.mxu0 %v2537
      %2655 = vmatpush.msra.mxu0 %v2535
      %2656 = vmatpush.msra.mxu0 %v2533
      %2657 = vmatpush.msra.mxu0 %v2531
      %2658 = vmatpush.msra.mxu0 %v2529
      %2659 = vmatpush.msra.mxu0 %v2527
      %2660 = vmatpush.msra.mxu0 %v2525
      %2661 = vmatpush.msra.mxu0 %v2523
      %2662 = vmatpush.msra.mxu0 %v2521
      %2663 = vmatpush.msra.mxu0 %v2519
      %2664 = vmatpush.msra.mxu0 %v2517
      %2665 = vmatpush.msra.mxu0 %v2515
      %2666 = vmatmul.f32.gmra.mxu0 %v2610
      %v2667 = vpop.f32.mrf.mxu0
      %v2668 = vadd.f32 %v2645, %v2667
      %2669 = vmatmul.f32.gmra.mxu0 %v2609
      %v2670 = vpop.f32.mrf.mxu0
      %v2671 = vadd.f32 %v2648, %v2670
      %2672 = vdwg.mxu0
      %2673 = vmatpush.msra.mxu0 %v2577
      %2674 = vmatpush.msra.mxu0 %v2575
      %2675 = vmatpush.msra.mxu0 %v2573
      %2676 = vmatpush.msra.mxu0 %v2571
      %2677 = vmatpush.msra.mxu0 %v2569
      %2678 = vmatpush.msra.mxu0 %v2567
      %2679 = vmatpush.msra.mxu0 %v2565
      %2680 = vmatpush.msra.mxu0 %v2563
      %2681 = vmatpush.msra.mxu0 %v2561
      %2682 = vmatpush.msra.mxu0 %v2559
      %2683 = vmatpush.msra.mxu0 %v2557
      %2684 = vmatpush.msra.mxu0 %v2555
      %2685 = vmatpush.msra.mxu0 %v2553
      %2686 = vmatpush.msra.mxu0 %v2551
      %2687 = vmatpush.msra.mxu0 %v2549
      %2688 = vmatpush.msra.mxu0 %v2547
      %2689 = vmatmul.f32.gmra.mxu0 %v2613
      %v2690 = vpop.f32.mrf.mxu0
      %v2691 = vadd.f32 %v2668, %v2690
      %2692 = vmatmul.f32.gmra.mxu0 %v2612
      %v2693 = vpop.f32.mrf.mxu0
      %v2694 = vadd.f32 %v2671, %v2693
      %2695 = vdwg.mxu0
      %2696 = vmatpush.msra.mxu0 0.0
      %2697 = vmatpush.msra.mxu0 0.0
      %2698 = vmatpush.msra.mxu0 0.0
      %2699 = vmatpush.msra.mxu0 0.0
      %2700 = vmatpush.msra.mxu0 0.0
      %2701 = vmatpush.msra.mxu0 0.0
      %2702 = vmatpush.msra.mxu0 0.0
      %2703 = vmatpush.msra.mxu0 %v2595
      %2704 = vmatpush.msra.mxu0 %v2593
      %2705 = vmatpush.msra.mxu0 %v2591
      %2706 = vmatpush.msra.mxu0 %v2589
      %2707 = vmatpush.msra.mxu0 %v2587
      %2708 = vmatpush.msra.mxu0 %v2585
      %2709 = vmatpush.msra.mxu0 %v2583
      %2710 = vmatpush.msra.mxu0 %v2581
      %2711 = vmatpush.msra.mxu0 %v2579
      %2712 = vmatmul.f32.gmra.mxu0 %v2623
      %v2713 = vpop.f32.mrf.mxu0
      %v2714 = vadd.f32 %v2691, %v2713
      %2715 = vmatmul.f32.gmra.mxu0 %v2625
      %v2716 = vpop.f32.mrf.mxu0
      %v2717 = vadd.f32 %v2694, %v2716
      %2718 = vdwg.mxu0
      %2719 = vmatpush.msra.mxu0 %v2514
      %2720 = vmatpush.msra.mxu0 %v2512
      %2721 = vmatpush.msra.mxu0 %v2510
      %2722 = vmatpush.msra.mxu0 %v2508
      %2723 = vmatpush.msra.mxu0 %v2506
      %2724 = vmatpush.msra.mxu0 %v2504
      %2725 = vmatpush.msra.mxu0 %v2502
      %2726 = vmatpush.msra.mxu0 %v2500
      %2727 = vmatpush.msra.mxu0 %v2498
      %2728 = vmatpush.msra.mxu0 %v2496
      %2729 = vmatpush.msra.mxu0 %v2494
      %2730 = vmatpush.msra.mxu0 %v2492
      %2731 = vmatpush.msra.mxu0 %v2490
      %2732 = vmatpush.msra.mxu0 %v2488
      %2733 = vmatpush.msra.mxu0 %v2486
      %2734 = vmatpush.msra.mxu0 %v2484
      %2735 = vmatmul.f32.gmra.mxu0 %v2607
      %v2736 = vpop.f32.mrf.mxu0
      %v2737 = vadd.f32 0.0, %v2736
      %2738 = vmatmul.f32.gmra.mxu0 %v2606
      %v2739 = vpop.f32.mrf.mxu0
      %v2740 = vadd.f32 0.0, %v2739
      %2741 = vdwg.mxu0
      %2742 = vmatpush.msra.mxu0 %v2546
      %2743 = vmatpush.msra.mxu0 %v2544
      %2744 = vmatpush.msra.mxu0 %v2542
      %2745 = vmatpush.msra.mxu0 %v2540
      %2746 = vmatpush.msra.mxu0 %v2538
      %2747 = vmatpush.msra.mxu0 %v2536
      %2748 = vmatpush.msra.mxu0 %v2534
      %2749 = vmatpush.msra.mxu0 %v2532
      %2750 = vmatpush.msra.mxu0 %v2530
      %2751 = vmatpush.msra.mxu0 %v2528
      %2752 = vmatpush.msra.mxu0 %v2526
      %2753 = vmatpush.msra.mxu0 %v2524
      %2754 = vmatpush.msra.mxu0 %v2522
      %2755 = vmatpush.msra.mxu0 %v2520
      %2756 = vmatpush.msra.mxu0 %v2518
      %2757 = vmatpush.msra.mxu0 %v2516
      %2758 = vmatmul.f32.gmra.mxu0 %v2610
      %v2759 = vpop.f32.mrf.mxu0
      %v2760 = vadd.f32 %v2737, %v2759
      %2761 = vmatmul.f32.gmra.mxu0 %v2609
      %v2762 = vpop.f32.mrf.mxu0
      %v2763 = vadd.f32 %v2740, %v2762
      %2764 = vdwg.mxu0
      %2765 = vmatpush.msra.mxu0 %v2578
      %2766 = vmatpush.msra.mxu0 %v2576
      %2767 = vmatpush.msra.mxu0 %v2574
      %2768 = vmatpush.msra.mxu0 %v2572
      %2769 = vmatpush.msra.mxu0 %v2570
      %2770 = vmatpush.msra.mxu0 %v2568
      %2771 = vmatpush.msra.mxu0 %v2566
      %2772 = vmatpush.msra.mxu0 %v2564
      %2773 = vmatpush.msra.mxu0 %v2562
      %2774 = vmatpush.msra.mxu0 %v2560
      %2775 = vmatpush.msra.mxu0 %v2558
      %2776 = vmatpush.msra.mxu0 %v2556
      %2777 = vmatpush.msra.mxu0 %v2554
      %2778 = vmatpush.msra.mxu0 %v2552
      %2779 = vmatpush.msra.mxu0 %v2550
      %2780 = vmatpush.msra.mxu0 %v2548
      %2781 = vmatmul.f32.gmra.mxu0 %v2613
      %v2782 = vpop.f32.mrf.mxu0
      %v2783 = vadd.f32 %v2760, %v2782
      %2784 = vmatmul.f32.gmra.mxu0 %v2612
      %v2785 = vpop.f32.mrf.mxu0
      %v2786 = vadd.f32 %v2763, %v2785
      %2787 = vdwg.mxu0
      %2788 = vmatpush.msra.mxu0 0.0
      %2789 = vmatpush.msra.mxu0 0.0
      %2790 = vmatpush.msra.mxu0 0.0
      %2791 = vmatpush.msra.mxu0 0.0
      %2792 = vmatpush.msra.mxu0 0.0
      %2793 = vmatpush.msra.mxu0 0.0
      %2794 = vmatpush.msra.mxu0 0.0
      %2795 = vmatpush.msra.mxu0 %v2596
      %2796 = vmatpush.msra.mxu0 %v2594
      %2797 = vmatpush.msra.mxu0 %v2592
      %2798 = vmatpush.msra.mxu0 %v2590
      %2799 = vmatpush.msra.mxu0 %v2588
      %2800 = vmatpush.msra.mxu0 %v2586
      %2801 = vmatpush.msra.mxu0 %v2584
      %2802 = vmatpush.msra.mxu0 %v2582
      %2803 = vmatpush.msra.mxu0 %v2580
      %2804 = vmatmul.f32.gmra.mxu0 %v2623
      %v2805 = vpop.f32.mrf.mxu0
      %v2806 = vadd.f32 %v2783, %v2805
      %2807 = vmatmul.f32.gmra.mxu0 %v2625
      %v2808 = vpop.f32.mrf.mxu0
      %v2809 = vadd.f32 %v2786, %v2808
      %2810 = vdwg.mxu0
      %v2811 = vadd.f32 %v2471, %v2714
      %v2812 = vadd.f32 %v2472, %v2806
      %v2813 = vadd.f32 %v2473, %v2717
      %v2814 = vadd.f32 %v2474, %v2809
      %v2815 = vld [vmem:[%s543] sm:$0xf0]
      %v2816 = vld [vmem:[%s543 + $0x8] sm:$0xf0]
      %v2817 = vld [vmem:[%s543 + $0x10] sm:$0xf0]
      %v2818 = vld [vmem:[%s543 + $0x18] sm:$0xf0]
      %v2819 = vld [vmem:[%s543 + $0x20] sm:$0xff]
      %v2820 = vld [vmem:[%s543 + $0x28] sm:$0xff]
      %v2821 = vld [vmem:[%s543 + $0x30] sm:$0xff]
      %v2822 = vld [vmem:[%s543 + $0x38] sm:$0xff]
      %v2823 = vld [vmem:[%s5 + $0xe40] sm:$0xff]
      %v2824 = vld [vmem:[%s5 + $0xe48] sm:$0xff]
      %v2825 = vld [vmem:[%s5 + $0xe50] sm:$0xff]
      %v2826 = vld [vmem:[%s5 + $0xe58] sm:$0xff]
      %v2827 = vld [vmem:[%s5 + $0xe60] sm:$0xff]
      %v2828 = vld [vmem:[%s5 + $0xe68] sm:$0xff]
      %v2829 = vld [vmem:[%s5 + $0xe70] sm:$0xff]
      %v2830 = vld [vmem:[%s5 + $0xe78] sm:$0xff]
      %v2831 = vld [vmem:[%s5 + $0xe80] sm:$0xff]
      %v2832 = vld [vmem:[%s5 + $0xe88] sm:$0xff]
      %v2833 = vld [vmem:[%s5 + $0xe90] sm:$0xff]
      %v2834 = vld [vmem:[%s5 + $0xe98] sm:$0xff]
      %v2835 = vld [vmem:[%s5 + $0xea0] sm:$0xff]
      %v2836 = vld [vmem:[%s5 + $0xea8] sm:$0xff]
      %v2837 = vld [vmem:[%s5 + $0xeb0] sm:$0xff]
      %v2838 = vld [vmem:[%s5 + $0xeb8] sm:$0xff]
      %v2839 = vld [vmem:[%s5 + $0xec0] sm:$0xff]
      %v2840 = vld [vmem:[%s5 + $0xec8] sm:$0xff]
      %v2841 = vld [vmem:[%s5 + $0xed0] sm:$0xff]
      %v2842 = vld [vmem:[%s5 + $0xed8] sm:$0xff]
      %v2843 = vld [vmem:[%s5 + $0xee0] sm:$0xff]
      %v2844 = vld [vmem:[%s5 + $0xee8] sm:$0xff]
      %v2845 = vld [vmem:[%s5 + $0xef0] sm:$0xff]
      %v2846 = vld [vmem:[%s5 + $0xef8] sm:$0xff]
      %v2847 = vld [vmem:[%s5 + $0xf00] sm:$0xff]
      %v2848 = vld [vmem:[%s5 + $0xf08] sm:$0xff]
      %v2849 = vld [vmem:[%s5 + $0xf10] sm:$0xff]
      %v2850 = vld [vmem:[%s5 + $0xf18] sm:$0xff]
      %v2851 = vld [vmem:[%s5 + $0xf20] sm:$0xff]
      %v2852 = vld [vmem:[%s5 + $0xf28] sm:$0xff]
      %v2853 = vld [vmem:[%s5 + $0xf30] sm:$0xff]
      %v2854 = vld [vmem:[%s5 + $0xf38] sm:$0xff]
      %v2855 = vld [vmem:[%s5 + $0xf40] sm:$0xff]
      %v2856 = vld [vmem:[%s5 + $0xf48] sm:$0xff]
      %v2857 = vld [vmem:[%s5 + $0xf50] sm:$0xff]
      %v2858 = vld [vmem:[%s5 + $0xf58] sm:$0xff]
      %v2859 = vld [vmem:[%s5 + $0xf60] sm:$0xff]
      %v2860 = vld [vmem:[%s5 + $0xf68] sm:$0xff]
      %v2861 = vld [vmem:[%s5 + $0xf70] sm:$0xff]
      %v2862 = vld [vmem:[%s5 + $0xf78] sm:$0xff]
      %v2863 = vld [vmem:[%s5 + $0xf80] sm:$0xff]
      %v2864 = vld [vmem:[%s5 + $0xf88] sm:$0xff]
      %v2865 = vld [vmem:[%s5 + $0xf90] sm:$0xff]
      %v2866 = vld [vmem:[%s5 + $0xf98] sm:$0xff]
      %v2867 = vld [vmem:[%s5 + $0xfa0] sm:$0xff]
      %v2868 = vld [vmem:[%s5 + $0xfa8] sm:$0xff]
      %v2869 = vld [vmem:[%s5 + $0xfb0] sm:$0xff]
      %v2870 = vld [vmem:[%s5 + $0xfb8] sm:$0xff]
      %v2871 = vld [vmem:[%s5 + $0xfc0] sm:$0xff]
      %v2872 = vld [vmem:[%s5 + $0xfc8] sm:$0xff]
      %v2873 = vld [vmem:[%s5 + $0xfd0] sm:$0xff]
      %v2874 = vld [vmem:[%s5 + $0xfd8] sm:$0xff]
      %v2875 = vld [vmem:[%s5 + $0xfe0] sm:$0xff]
      %v2876 = vld [vmem:[%s5 + $0xfe8] sm:$0xff]
      %v2877 = vld [vmem:[%s5 + $0xff0] sm:$0xff]
      %v2878 = vld [vmem:[%s5 + $0xff8] sm:$0xff]
      %v2879 = vld [vmem:[%s5 + $0x1000] sm:$0xff]
      %v2880 = vld [vmem:[%s5 + $0x1008] sm:$0xff]
      %v2881 = vld [vmem:[%s5 + $0x1010] sm:$0xff]
      %v2882 = vld [vmem:[%s5 + $0x1018] sm:$0xff]
      %v2883 = vld [vmem:[%s5 + $0x1020] sm:$0xff]
      %v2884 = vld [vmem:[%s5 + $0x1028] sm:$0xff]
      %v2885 = vld [vmem:[%s5 + $0x1030] sm:$0xff]
      %v2886 = vld [vmem:[%s5 + $0x1038] sm:$0xff]
      %v2887 = vld [vmem:[%s5 + $0x1040] sm:$0xff]
      %v2888 = vld [vmem:[%s5 + $0x1048] sm:$0xff]
      %v2889 = vld [vmem:[%s5 + $0x1050] sm:$0xff]
      %v2890 = vld [vmem:[%s5 + $0x1058] sm:$0xff]
      %v2891 = vld [vmem:[%s5 + $0x1060] sm:$0xff]
      %v2892 = vld [vmem:[%s5 + $0x1068] sm:$0xff]
      %v2893 = vld [vmem:[%s5 + $0x1070] sm:$0xff]
      %v2894 = vld [vmem:[%s5 + $0x1078] sm:$0xff]
      %v2895 = vld [vmem:[%s5 + $0x1080] sm:$0xff]
      %v2896 = vld [vmem:[%s5 + $0x1088] sm:$0xff]
      %v2897 = vld [vmem:[%s5 + $0x1090] sm:$0xff]
      %v2898 = vld [vmem:[%s5 + $0x1098] sm:$0xff]
      %v2899 = vld [vmem:[%s5 + $0x10a0] sm:$0xff]
      %v2900 = vld [vmem:[%s5 + $0x10a8] sm:$0xff]
      %v2901 = vld [vmem:[%s5 + $0x10b0] sm:$0xff]
      %v2902 = vld [vmem:[%s5 + $0x10b8] sm:$0xff]
      %v2903 = vld [vmem:[%s5 + $0x10c0] sm:$0xff]
      %v2904 = vld [vmem:[%s5 + $0x10c8] sm:$0xff]
      %v2905 = vld [vmem:[%s5 + $0x10d0] sm:$0xff]
      %v2906 = vld [vmem:[%s5 + $0x10d8] sm:$0xff]
      %v2907 = vld [vmem:[%s5 + $0x10e0] sm:$0xff]
      %v2908 = vld [vmem:[%s5 + $0x10e8] sm:$0xff]
      %v2909 = vld [vmem:[%s5 + $0x10f0] sm:$0xff]
      %v2910 = vld [vmem:[%s5 + $0x10f8] sm:$0xff]
      %v2911 = vld [vmem:[%s5 + $0x1100] sm:$0xff]
      %v2912 = vld [vmem:[%s5 + $0x1108] sm:$0xff]
      %v2913 = vld [vmem:[%s5 + $0x1110] sm:$0xff]
      %v2914 = vld [vmem:[%s5 + $0x1118] sm:$0xff]
      %v2915 = vld [vmem:[%s5 + $0x1120] sm:$0xff]
      %v2916 = vld [vmem:[%s5 + $0x1128] sm:$0xff]
      %v2917 = vld [vmem:[%s5 + $0x1130] sm:$0xff]
      %v2918 = vld [vmem:[%s5 + $0x1138] sm:$0xff]
      %v2919 = vld [vmem:[%s5 + $0x1140] sm:$0xff]
      %v2920 = vld [vmem:[%s5 + $0x1148] sm:$0xff]
      %v2921 = vld [vmem:[%s5 + $0x1150] sm:$0xff]
      %v2922 = vld [vmem:[%s5 + $0x1158] sm:$0xff]
      %v2923 = vld [vmem:[%s5 + $0x1160] sm:$0xff]
      %v2924 = vld [vmem:[%s5 + $0x1168] sm:$0xff]
      %v2925 = vld [vmem:[%s5 + $0x1170] sm:$0xff]
      %v2926 = vld [vmem:[%s5 + $0x1178] sm:$0xff]
      %v2927 = vld [vmem:[%s5 + $0x1180] sm:$0xff]
      %v2928 = vld [vmem:[%s5 + $0x1188] sm:$0xff]
      %v2929 = vld [vmem:[%s5 + $0x1190] sm:$0xff]
      %v2930 = vld [vmem:[%s5 + $0x1198] sm:$0xff]
      %v2931 = vld [vmem:[%s5 + $0x11a0] sm:$0xff]
      %v2932 = vld [vmem:[%s5 + $0x11a8] sm:$0xff]
      %v2933 = vld [vmem:[%s5 + $0x11b0] sm:$0xff]
      %v2934 = vld [vmem:[%s5 + $0x11b8] sm:$0xff]
      %v2935 = vld [vmem:[%s5 + $0x11c0] sm:$0xff]
      %v2936 = vld [vmem:[%s5 + $0x11c8] sm:$0xff]
      %v2945 = vrot.slane %v2815, 4
      %v2946 = vrot.slane %v2819, 4
      %v2947 = vsel %vm1352, %v2945, %v2946
      %v2948 = vrot.slane %v2816, 4
      %v2949 = vrot.slane %v2820, 4
      %v2950 = vsel %vm1352, %v2948, %v2949
      %v2951 = vrot.slane %v2817, 4
      %v2952 = vrot.slane %v2821, 4
      %v2953 = vsel %vm1352, %v2951, %v2952
      %v2954 = vrot.slane %v2818, 4
      %v2955 = vrot.slane %v2822, 4
      %v2956 = vsel %vm1352, %v2954, %v2955
      %v2963 = vsel %vm704, %v2956, 0
      %v2965 = vsel %vm704, %v2955, 0
      %2967 = vmatpush.msra.mxu0 %v2853
      %2968 = vmatpush.msra.mxu0 %v2851
      %2969 = vmatpush.msra.mxu0 %v2849
      %2970 = vmatpush.msra.mxu0 %v2847
      %2971 = vmatpush.msra.mxu0 %v2845
      %2972 = vmatpush.msra.mxu0 %v2843
      %2973 = vmatpush.msra.mxu0 %v2841
      %2974 = vmatpush.msra.mxu0 %v2839
      %2975 = vmatpush.msra.mxu0 %v2837
      %2976 = vmatpush.msra.mxu0 %v2835
      %2977 = vmatpush.msra.mxu0 %v2833
      %2978 = vmatpush.msra.mxu0 %v2831
      %2979 = vmatpush.msra.mxu0 %v2829
      %2980 = vmatpush.msra.mxu0 %v2827
      %2981 = vmatpush.msra.mxu0 %v2825
      %2982 = vmatpush.msra.mxu0 %v2823
      %2983 = vmatmul.f32.gmra.mxu0 %v2947
      %v2984 = vpop.f32.mrf.mxu0
      %v2985 = vadd.f32 0.0, %v2984
      %2986 = vmatmul.f32.gmra.mxu0 %v2946
      %v2987 = vpop.f32.mrf.mxu0
      %v2988 = vadd.f32 0.0, %v2987
      %2989 = vdwg.mxu0
      %2990 = vmatpush.msra.mxu0 %v2885
      %2991 = vmatpush.msra.mxu0 %v2883
      %2992 = vmatpush.msra.mxu0 %v2881
      %2993 = vmatpush.msra.mxu0 %v2879
      %2994 = vmatpush.msra.mxu0 %v2877
      %2995 = vmatpush.msra.mxu0 %v2875
      %2996 = vmatpush.msra.mxu0 %v2873
      %2997 = vmatpush.msra.mxu0 %v2871
      %2998 = vmatpush.msra.mxu0 %v2869
      %2999 = vmatpush.msra.mxu0 %v2867
      %3000 = vmatpush.msra.mxu0 %v2865
      %3001 = vmatpush.msra.mxu0 %v2863
      %3002 = vmatpush.msra.mxu0 %v2861
      %3003 = vmatpush.msra.mxu0 %v2859
      %3004 = vmatpush.msra.mxu0 %v2857
      %3005 = vmatpush.msra.mxu0 %v2855
      %3006 = vmatmul.f32.gmra.mxu0 %v2950
      %v3007 = vpop.f32.mrf.mxu0
      %v3008 = vadd.f32 %v2985, %v3007
      %3009 = vmatmul.f32.gmra.mxu0 %v2949
      %v3010 = vpop.f32.mrf.mxu0
      %v3011 = vadd.f32 %v2988, %v3010
      %3012 = vdwg.mxu0
      %3013 = vmatpush.msra.mxu0 %v2917
      %3014 = vmatpush.msra.mxu0 %v2915
      %3015 = vmatpush.msra.mxu0 %v2913
      %3016 = vmatpush.msra.mxu0 %v2911
      %3017 = vmatpush.msra.mxu0 %v2909
      %3018 = vmatpush.msra.mxu0 %v2907
      %3019 = vmatpush.msra.mxu0 %v2905
      %3020 = vmatpush.msra.mxu0 %v2903
      %3021 = vmatpush.msra.mxu0 %v2901
      %3022 = vmatpush.msra.mxu0 %v2899
      %3023 = vmatpush.msra.mxu0 %v2897
      %3024 = vmatpush.msra.mxu0 %v2895
      %3025 = vmatpush.msra.mxu0 %v2893
      %3026 = vmatpush.msra.mxu0 %v2891
      %3027 = vmatpush.msra.mxu0 %v2889
      %3028 = vmatpush.msra.mxu0 %v2887
      %3029 = vmatmul.f32.gmra.mxu0 %v2953
      %v3030 = vpop.f32.mrf.mxu0
      %v3031 = vadd.f32 %v3008, %v3030
      %3032 = vmatmul.f32.gmra.mxu0 %v2952
      %v3033 = vpop.f32.mrf.mxu0
      %v3034 = vadd.f32 %v3011, %v3033
      %3035 = vdwg.mxu0
      %3036 = vmatpush.msra.mxu0 0.0
      %3037 = vmatpush.msra.mxu0 0.0
      %3038 = vmatpush.msra.mxu0 0.0
      %3039 = vmatpush.msra.mxu0 0.0
      %3040 = vmatpush.msra.mxu0 0.0
      %3041 = vmatpush.msra.mxu0 0.0
      %3042 = vmatpush.msra.mxu0 0.0
      %3043 = vmatpush.msra.mxu0 %v2935
      %3044 = vmatpush.msra.mxu0 %v2933
      %3045 = vmatpush.msra.mxu0 %v2931
      %3046 = vmatpush.msra.mxu0 %v2929
      %3047 = vmatpush.msra.mxu0 %v2927
      %3048 = vmatpush.msra.mxu0 %v2925
      %3049 = vmatpush.msra.mxu0 %v2923
      %3050 = vmatpush.msra.mxu0 %v2921
      %3051 = vmatpush.msra.mxu0 %v2919
      %3052 = vmatmul.f32.gmra.mxu0 %v2963
      %v3053 = vpop.f32.mrf.mxu0
      %v3054 = vadd.f32 %v3031, %v3053
      %3055 = vmatmul.f32.gmra.mxu0 %v2965
      %v3056 = vpop.f32.mrf.mxu0
      %v3057 = vadd.f32 %v3034, %v3056
      %3058 = vdwg.mxu0
      %3059 = vmatpush.msra.mxu0 %v2854
      %3060 = vmatpush.msra.mxu0 %v2852
      %3061 = vmatpush.msra.mxu0 %v2850
      %3062 = vmatpush.msra.mxu0 %v2848
      %3063 = vmatpush.msra.mxu0 %v2846
      %3064 = vmatpush.msra.mxu0 %v2844
      %3065 = vmatpush.msra.mxu0 %v2842
      %3066 = vmatpush.msra.mxu0 %v2840
      %3067 = vmatpush.msra.mxu0 %v2838
      %3068 = vmatpush.msra.mxu0 %v2836
      %3069 = vmatpush.msra.mxu0 %v2834
      %3070 = vmatpush.msra.mxu0 %v2832
      %3071 = vmatpush.msra.mxu0 %v2830
      %3072 = vmatpush.msra.mxu0 %v2828
      %3073 = vmatpush.msra.mxu0 %v2826
      %3074 = vmatpush.msra.mxu0 %v2824
      %3075 = vmatmul.f32.gmra.mxu0 %v2947
      %v3076 = vpop.f32.mrf.mxu0
      %v3077 = vadd.f32 0.0, %v3076
      %3078 = vmatmul.f32.gmra.mxu0 %v2946
      %v3079 = vpop.f32.mrf.mxu0
      %v3080 = vadd.f32 0.0, %v3079
      %3081 = vdwg.mxu0
      %3082 = vmatpush.msra.mxu0 %v2886
      %3083 = vmatpush.msra.mxu0 %v2884
      %3084 = vmatpush.msra.mxu0 %v2882
      %3085 = vmatpush.msra.mxu0 %v2880
      %3086 = vmatpush.msra.mxu0 %v2878
      %3087 = vmatpush.msra.mxu0 %v2876
      %3088 = vmatpush.msra.mxu0 %v2874
      %3089 = vmatpush.msra.mxu0 %v2872
      %3090 = vmatpush.msra.mxu0 %v2870
      %3091 = vmatpush.msra.mxu0 %v2868
      %3092 = vmatpush.msra.mxu0 %v2866
      %3093 = vmatpush.msra.mxu0 %v2864
      %3094 = vmatpush.msra.mxu0 %v2862
      %3095 = vmatpush.msra.mxu0 %v2860
      %3096 = vmatpush.msra.mxu0 %v2858
      %3097 = vmatpush.msra.mxu0 %v2856
      %3098 = vmatmul.f32.gmra.mxu0 %v2950
      %v3099 = vpop.f32.mrf.mxu0
      %v3100 = vadd.f32 %v3077, %v3099
      %3101 = vmatmul.f32.gmra.mxu0 %v2949
      %v3102 = vpop.f32.mrf.mxu0
      %v3103 = vadd.f32 %v3080, %v3102
      %3104 = vdwg.mxu0
      %3105 = vmatpush.msra.mxu0 %v2918
      %3106 = vmatpush.msra.mxu0 %v2916
      %3107 = vmatpush.msra.mxu0 %v2914
      %3108 = vmatpush.msra.mxu0 %v2912
      %3109 = vmatpush.msra.mxu0 %v2910
      %3110 = vmatpush.msra.mxu0 %v2908
      %3111 = vmatpush.msra.mxu0 %v2906
      %3112 = vmatpush.msra.mxu0 %v2904
      %3113 = vmatpush.msra.mxu0 %v2902
      %3114 = vmatpush.msra.mxu0 %v2900
      %3115 = vmatpush.msra.mxu0 %v2898
      %3116 = vmatpush.msra.mxu0 %v2896
      %3117 = vmatpush.msra.mxu0 %v2894
      %3118 = vmatpush.msra.mxu0 %v2892
      %3119 = vmatpush.msra.mxu0 %v2890
      %3120 = vmatpush.msra.mxu0 %v2888
      %3121 = vmatmul.f32.gmra.mxu0 %v2953
      %v3122 = vpop.f32.mrf.mxu0
      %v3123 = vadd.f32 %v3100, %v3122
      %3124 = vmatmul.f32.gmra.mxu0 %v2952
      %v3125 = vpop.f32.mrf.mxu0
      %v3126 = vadd.f32 %v3103, %v3125
      %3127 = vdwg.mxu0
      %3128 = vmatpush.msra.mxu0 0.0
      %3129 = vmatpush.msra.mxu0 0.0
      %3130 = vmatpush.msra.mxu0 0.0
      %3131 = vmatpush.msra.mxu0 0.0
      %3132 = vmatpush.msra.mxu0 0.0
      %3133 = vmatpush.msra.mxu0 0.0
      %3134 = vmatpush.msra.mxu0 0.0
      %3135 = vmatpush.msra.mxu0 %v2936
      %3136 = vmatpush.msra.mxu0 %v2934
      %3137 = vmatpush.msra.mxu0 %v2932
      %3138 = vmatpush.msra.mxu0 %v2930
      %3139 = vmatpush.msra.mxu0 %v2928
      %3140 = vmatpush.msra.mxu0 %v2926
      %3141 = vmatpush.msra.mxu0 %v2924
      %3142 = vmatpush.msra.mxu0 %v2922
      %3143 = vmatpush.msra.mxu0 %v2920
      %3144 = vmatmul.f32.gmra.mxu0 %v2963
      %v3145 = vpop.f32.mrf.mxu0
      %v3146 = vadd.f32 %v3123, %v3145
      %3147 = vmatmul.f32.gmra.mxu0 %v2965
      %v3148 = vpop.f32.mrf.mxu0
      %v3149 = vadd.f32 %v3126, %v3148
      %3150 = vdwg.mxu0
      %v3151 = vadd.f32 %v2811, %v3054
      %v3152 = vadd.f32 %v2812, %v3146
      %v3153 = vadd.f32 %v2813, %v3057
      %v3154 = vadd.f32 %v2814, %v3149
      %v3155 = vld [vmem:[%s6] ss:$4 sm:$0x3]
      %v3157 = vperm.slane %v3155, 0
      %v3158 = vperm.slane %v3155, 1
      %v3161 = vadd.f32 %v3151, %v3157
      %v3162 = vadd.f32 %v3152, %v3158
      %v3163 = vadd.f32 %v3153, %v3157
      %v3164 = vadd.f32 %v3154, %v3158
      %v3165 = vmax.f32 %v3161, 0.0
      %v3166 = vmax.f32 %v3162, 0.0
      %v3167 = vmax.f32 %v3163, 0.0
      %v3168 = vmax.f32 %v3164, 0.0
      %s3169 = scalar_lea.vmem %s6, 1
      %v3170 = vld [vmem:[%s3169] ss:$4 sm:$0x3]
      %v3172 = vperm.slane %v3170, 0
      %v3173 = vperm.slane %v3170, 1
      %v3176 = vmul.f32 %v3165, %v3172
      %v3177 = vmul.f32 %v3166, %v3173
      %v3178 = vmul.f32 %v3167, %v3172
      %v3179 = vmul.f32 %v3168, %v3173
      %s3180 = scalar_lea.vmem %s6, 2
      %v3181 = vld [vmem:[%s3180] ss:$4 sm:$0x3]
      %v3183 = vperm.slane %v3181, 0
      %v3184 = vperm.slane %v3181, 1
      %v3187 = vadd.f32 %v3176, %v3183
      %v3188 = vadd.f32 %v3177, %v3184
      %v3189 = vadd.f32 %v3178, %v3183
      %v3190 = vadd.f32 %v3179, %v3184
      %3191 = vst [vmem:[#allocation3] sm:$0xff] %v3187
      %vm3192 = vcmask 261120
      %3193 = vst.msk [vmem:[#allocation3 + $0x8] sm:$0xff] %vm3192, %v3188
      %3194 = vst [vmem:[#allocation3 + $0x10] sm:$0xf] %v3189
      %vm3195 = vcmask 257024
      %3196 = vst.msk [vmem:[#allocation3 + $0x18] sm:$0xf] %vm3195, %v3190
      %v3197 = vld [vmem:[%s543] sm:$0xff]
      %v3198 = vld [vmem:[%s543 + $0x8] sm:$0xff]
      %v3199 = vld [vmem:[%s543 + $0x10] sm:$0xff]
      %v3200 = vld [vmem:[%s543 + $0x18] sm:$0xff]
      %v3201 = vld [vmem:[%s543 + $0x20] sm:$0xf]
      %v3202 = vld [vmem:[%s543 + $0x28] sm:$0xf]
      %v3203 = vld [vmem:[%s543 + $0x30] sm:$0xf]
      %v3204 = vld [vmem:[%s543 + $0x38] sm:$0xf]
      %v3205 = vld [vmem:[%s9] sm:$0xff]
      %v3206 = vld [vmem:[%s9 + $0x8] sm:$0xff]
      %v3207 = vld [vmem:[%s9 + $0x10] sm:$0xff]
      %v3208 = vld [vmem:[%s9 + $0x18] sm:$0xff]
      %v3209 = vld [vmem:[%s9 + $0x20] sm:$0xff]
      %v3210 = vld [vmem:[%s9 + $0x28] sm:$0xff]
      %v3211 = vld [vmem:[%s9 + $0x30] sm:$0xff]
      %v3212 = vld [vmem:[%s9 + $0x38] sm:$0xff]
      %v3213 = vld [vmem:[%s9 + $0x40] sm:$0xff]
      %v3214 = vld [vmem:[%s9 + $0x48] sm:$0xff]
      %v3215 = vld [vmem:[%s9 + $0x50] sm:$0xff]
      %v3216 = vld [vmem:[%s9 + $0x58] sm:$0xff]
      %v3217 = vld [vmem:[%s9 + $0x60] sm:$0xff]
      %v3218 = vld [vmem:[%s9 + $0x68] sm:$0xff]
      %v3219 = vld [vmem:[%s9 + $0x70] sm:$0xff]
      %v3220 = vld [vmem:[%s9 + $0x78] sm:$0xff]
      %v3221 = vld [vmem:[%s9 + $0x80] sm:$0xff]
      %v3222 = vld [vmem:[%s9 + $0x88] sm:$0xff]
      %v3223 = vld [vmem:[%s9 + $0x90] sm:$0xff]
      %v3224 = vld [vmem:[%s9 + $0x98] sm:$0xff]
      %v3225 = vld [vmem:[%s9 + $0xa0] sm:$0xff]
      %v3226 = vld [vmem:[%s9 + $0xa8] sm:$0xff]
      %v3227 = vld [vmem:[%s9 + $0xb0] sm:$0xff]
      %v3228 = vld [vmem:[%s9 + $0xb8] sm:$0xff]
      %v3229 = vld [vmem:[%s9 + $0xc0] sm:$0xff]
      %v3230 = vld [vmem:[%s9 + $0xc8] sm:$0xff]
      %v3231 = vld [vmem:[%s9 + $0xd0] sm:$0xff]
      %v3232 = vld [vmem:[%s9 + $0xd8] sm:$0xff]
      %v3233 = vld [vmem:[%s9 + $0xe0] sm:$0xff]
      %v3234 = vld [vmem:[%s9 + $0xe8] sm:$0xff]
      %v3235 = vld [vmem:[%s9 + $0xf0] sm:$0xff]
      %v3236 = vld [vmem:[%s9 + $0xf8] sm:$0xff]
      %v3237 = vld [vmem:[%s9 + $0x100] sm:$0xff]
      %v3238 = vld [vmem:[%s9 + $0x108] sm:$0xff]
      %v3239 = vld [vmem:[%s9 + $0x110] sm:$0xff]
      %v3240 = vld [vmem:[%s9 + $0x118] sm:$0xff]
      %v3241 = vld [vmem:[%s9 + $0x120] sm:$0xff]
      %v3242 = vld [vmem:[%s9 + $0x128] sm:$0xff]
      %v3243 = vld [vmem:[%s9 + $0x130] sm:$0xff]
      %v3244 = vld [vmem:[%s9 + $0x138] sm:$0xff]
      %v3245 = vld [vmem:[%s9 + $0x140] sm:$0xff]
      %v3246 = vld [vmem:[%s9 + $0x148] sm:$0xff]
      %v3247 = vld [vmem:[%s9 + $0x150] sm:$0xff]
      %v3248 = vld [vmem:[%s9 + $0x158] sm:$0xff]
      %v3249 = vld [vmem:[%s9 + $0x160] sm:$0xff]
      %v3250 = vld [vmem:[%s9 + $0x168] sm:$0xff]
      %v3251 = vld [vmem:[%s9 + $0x170] sm:$0xff]
      %v3252 = vld [vmem:[%s9 + $0x178] sm:$0xff]
      %v3253 = vld [vmem:[%s9 + $0x180] sm:$0xff]
      %v3254 = vld [vmem:[%s9 + $0x188] sm:$0xff]
      %v3255 = vld [vmem:[%s9 + $0x190] sm:$0xff]
      %v3256 = vld [vmem:[%s9 + $0x198] sm:$0xff]
      %v3257 = vld [vmem:[%s9 + $0x1a0] sm:$0xff]
      %v3258 = vld [vmem:[%s9 + $0x1a8] sm:$0xff]
      %v3259 = vld [vmem:[%s9 + $0x1b0] sm:$0xff]
      %v3260 = vld [vmem:[%s9 + $0x1b8] sm:$0xff]
      %v3261 = vld [vmem:[%s9 + $0x1c0] sm:$0xff]
      %v3262 = vld [vmem:[%s9 + $0x1c8] sm:$0xff]
      %v3263 = vld [vmem:[%s9 + $0x1d0] sm:$0xff]
      %v3264 = vld [vmem:[%s9 + $0x1d8] sm:$0xff]
      %v3265 = vld [vmem:[%s9 + $0x1e0] sm:$0xff]
      %v3266 = vld [vmem:[%s9 + $0x1e8] sm:$0xff]
      %v3267 = vld [vmem:[%s9 + $0x1f0] sm:$0xff]
      %v3268 = vld [vmem:[%s9 + $0x1f8] sm:$0xff]
      %v3269 = vld [vmem:[%s9 + $0x200] sm:$0xff]
      %v3270 = vld [vmem:[%s9 + $0x208] sm:$0xff]
      %v3271 = vld [vmem:[%s9 + $0x210] sm:$0xff]
      %v3272 = vld [vmem:[%s9 + $0x218] sm:$0xff]
      %v3273 = vld [vmem:[%s9 + $0x220] sm:$0xff]
      %v3274 = vld [vmem:[%s9 + $0x228] sm:$0xff]
      %v3275 = vld [vmem:[%s9 + $0x230] sm:$0xff]
      %v3276 = vld [vmem:[%s9 + $0x238] sm:$0xff]
      %v3277 = vld [vmem:[%s9 + $0x240] sm:$0xff]
      %v3278 = vld [vmem:[%s9 + $0x248] sm:$0xff]
      %v3279 = vld [vmem:[%s9 + $0x250] sm:$0xff]
      %v3280 = vld [vmem:[%s9 + $0x258] sm:$0xff]
      %v3281 = vld [vmem:[%s9 + $0x260] sm:$0xff]
      %v3282 = vld [vmem:[%s9 + $0x268] sm:$0xff]
      %v3283 = vld [vmem:[%s9 + $0x270] sm:$0xff]
      %v3284 = vld [vmem:[%s9 + $0x278] sm:$0xff]
      %v3285 = vld [vmem:[%s9 + $0x280] sm:$0xff]
      %v3286 = vld [vmem:[%s9 + $0x288] sm:$0xff]
      %v3287 = vld [vmem:[%s9 + $0x290] sm:$0xff]
      %v3288 = vld [vmem:[%s9 + $0x298] sm:$0xff]
      %v3289 = vld [vmem:[%s9 + $0x2a0] sm:$0xff]
      %v3290 = vld [vmem:[%s9 + $0x2a8] sm:$0xff]
      %v3291 = vld [vmem:[%s9 + $0x2b0] sm:$0xff]
      %v3292 = vld [vmem:[%s9 + $0x2b8] sm:$0xff]
      %v3293 = vld [vmem:[%s9 + $0x2c0] sm:$0xff]
      %v3294 = vld [vmem:[%s9 + $0x2c8] sm:$0xff]
      %v3295 = vld [vmem:[%s9 + $0x2d0] sm:$0xff]
      %v3296 = vld [vmem:[%s9 + $0x2d8] sm:$0xff]
      %v3297 = vld [vmem:[%s9 + $0x2e0] sm:$0xff]
      %v3298 = vld [vmem:[%s9 + $0x2e8] sm:$0xff]
      %v3299 = vld [vmem:[%s9 + $0x2f0] sm:$0xff]
      %v3300 = vld [vmem:[%s9 + $0x2f8] sm:$0xff]
      %v3301 = vld [vmem:[%s9 + $0x300] sm:$0xff]
      %v3302 = vld [vmem:[%s9 + $0x308] sm:$0xff]
      %v3303 = vld [vmem:[%s9 + $0x310] sm:$0xff]
      %v3304 = vld [vmem:[%s9 + $0x318] sm:$0xff]
      %v3305 = vld [vmem:[%s9 + $0x320] sm:$0xff]
      %v3306 = vld [vmem:[%s9 + $0x328] sm:$0xff]
      %v3307 = vld [vmem:[%s9 + $0x330] sm:$0xff]
      %v3308 = vld [vmem:[%s9 + $0x338] sm:$0xff]
      %v3309 = vld [vmem:[%s9 + $0x340] sm:$0xff]
      %v3310 = vld [vmem:[%s9 + $0x348] sm:$0xff]
      %v3311 = vld [vmem:[%s9 + $0x350] sm:$0xff]
      %v3312 = vld [vmem:[%s9 + $0x358] sm:$0xff]
      %v3313 = vld [vmem:[%s9 + $0x360] sm:$0xff]
      %v3314 = vld [vmem:[%s9 + $0x368] sm:$0xff]
      %v3315 = vld [vmem:[%s9 + $0x370] sm:$0xff]
      %v3316 = vld [vmem:[%s9 + $0x378] sm:$0xff]
      %v3317 = vld [vmem:[%s9 + $0x380] sm:$0xff]
      %v3318 = vld [vmem:[%s9 + $0x388] sm:$0xff]
      %v3319 = vld [vmem:[%s543] sm:$0xfe]
      %v3320 = vld [vmem:[%s543 + $0x8] sm:$0xfe]
      %v3321 = vld [vmem:[%s543 + $0x10] sm:$0xfe]
      %v3322 = vld [vmem:[%s543 + $0x18] sm:$0xfe]
      %v3323 = vld [vmem:[%s543 + $0x20] sm:$0x1f]
      %v3324 = vld [vmem:[%s543 + $0x28] sm:$0x1f]
      %v3325 = vld [vmem:[%s543 + $0x30] sm:$0x1f]
      %v3326 = vld [vmem:[%s543 + $0x38] sm:$0x1f]
      %v3327 = vld [vmem:[%s9 + $0x390] sm:$0xff]
      %v3328 = vld [vmem:[%s9 + $0x398] sm:$0xff]
      %v3329 = vld [vmem:[%s9 + $0x3a0] sm:$0xff]
      %v3330 = vld [vmem:[%s9 + $0x3a8] sm:$0xff]
      %v3331 = vld [vmem:[%s9 + $0x3b0] sm:$0xff]
      %v3332 = vld [vmem:[%s9 + $0x3b8] sm:$0xff]
      %v3333 = vld [vmem:[%s9 + $0x3c0] sm:$0xff]
      %v3334 = vld [vmem:[%s9 + $0x3c8] sm:$0xff]
      %v3335 = vld [vmem:[%s9 + $0x3d0] sm:$0xff]
      %v3336 = vld [vmem:[%s9 + $0x3d8] sm:$0xff]
      %v3337 = vld [vmem:[%s9 + $0x3e0] sm:$0xff]
      %v3338 = vld [vmem:[%s9 + $0x3e8] sm:$0xff]
      %v3339 = vld [vmem:[%s9 + $0x3f0] sm:$0xff]
      %v3340 = vld [vmem:[%s9 + $0x3f8] sm:$0xff]
      %v3341 = vld [vmem:[%s9 + $0x400] sm:$0xff]
      %v3342 = vld [vmem:[%s9 + $0x408] sm:$0xff]
      %v3343 = vld [vmem:[%s9 + $0x410] sm:$0xff]
      %v3344 = vld [vmem:[%s9 + $0x418] sm:$0xff]
      %v3345 = vld [vmem:[%s9 + $0x420] sm:$0xff]
      %v3346 = vld [vmem:[%s9 + $0x428] sm:$0xff]
      %v3347 = vld [vmem:[%s9 + $0x430] sm:$0xff]
      %v3348 = vld [vmem:[%s9 + $0x438] sm:$0xff]
      %v3349 = vld [vmem:[%s9 + $0x440] sm:$0xff]
      %v3350 = vld [vmem:[%s9 + $0x448] sm:$0xff]
      %v3351 = vld [vmem:[%s9 + $0x450] sm:$0xff]
      %v3352 = vld [vmem:[%s9 + $0x458] sm:$0xff]
      %v3353 = vld [vmem:[%s9 + $0x460] sm:$0xff]
      %v3354 = vld [vmem:[%s9 + $0x468] sm:$0xff]
      %v3355 = vld [vmem:[%s9 + $0x470] sm:$0xff]
      %v3356 = vld [vmem:[%s9 + $0x478] sm:$0xff]
      %v3357 = vld [vmem:[%s9 + $0x480] sm:$0xff]
      %v3358 = vld [vmem:[%s9 + $0x488] sm:$0xff]
      %v3359 = vld [vmem:[%s9 + $0x490] sm:$0xff]
      %v3360 = vld [vmem:[%s9 + $0x498] sm:$0xff]
      %v3361 = vld [vmem:[%s9 + $0x4a0] sm:$0xff]
      %v3362 = vld [vmem:[%s9 + $0x4a8] sm:$0xff]
      %v3363 = vld [vmem:[%s9 + $0x4b0] sm:$0xff]
      %v3364 = vld [vmem:[%s9 + $0x4b8] sm:$0xff]
      %v3365 = vld [vmem:[%s9 + $0x4c0] sm:$0xff]
      %v3366 = vld [vmem:[%s9 + $0x4c8] sm:$0xff]
      %v3367 = vld [vmem:[%s9 + $0x4d0] sm:$0xff]
      %v3368 = vld [vmem:[%s9 + $0x4d8] sm:$0xff]
      %v3369 = vld [vmem:[%s9 + $0x4e0] sm:$0xff]
      %v3370 = vld [vmem:[%s9 + $0x4e8] sm:$0xff]
      %v3371 = vld [vmem:[%s9 + $0x4f0] sm:$0xff]
      %v3372 = vld [vmem:[%s9 + $0x4f8] sm:$0xff]
      %v3373 = vld [vmem:[%s9 + $0x500] sm:$0xff]
      %v3374 = vld [vmem:[%s9 + $0x508] sm:$0xff]
      %v3375 = vld [vmem:[%s9 + $0x510] sm:$0xff]
      %v3376 = vld [vmem:[%s9 + $0x518] sm:$0xff]
      %v3377 = vld [vmem:[%s9 + $0x520] sm:$0xff]
      %v3378 = vld [vmem:[%s9 + $0x528] sm:$0xff]
      %v3379 = vld [vmem:[%s9 + $0x530] sm:$0xff]
      %v3380 = vld [vmem:[%s9 + $0x538] sm:$0xff]
      %v3381 = vld [vmem:[%s9 + $0x540] sm:$0xff]
      %v3382 = vld [vmem:[%s9 + $0x548] sm:$0xff]
      %v3383 = vld [vmem:[%s9 + $0x550] sm:$0xff]
      %v3384 = vld [vmem:[%s9 + $0x558] sm:$0xff]
      %v3385 = vld [vmem:[%s9 + $0x560] sm:$0xff]
      %v3386 = vld [vmem:[%s9 + $0x568] sm:$0xff]
      %v3387 = vld [vmem:[%s9 + $0x570] sm:$0xff]
      %v3388 = vld [vmem:[%s9 + $0x578] sm:$0xff]
      %v3389 = vld [vmem:[%s9 + $0x580] sm:$0xff]
      %v3390 = vld [vmem:[%s9 + $0x588] sm:$0xff]
      %v3391 = vld [vmem:[%s9 + $0x590] sm:$0xff]
      %v3392 = vld [vmem:[%s9 + $0x598] sm:$0xff]
      %v3393 = vld [vmem:[%s9 + $0x5a0] sm:$0xff]
      %v3394 = vld [vmem:[%s9 + $0x5a8] sm:$0xff]
      %v3395 = vld [vmem:[%s9 + $0x5b0] sm:$0xff]
      %v3396 = vld [vmem:[%s9 + $0x5b8] sm:$0xff]
      %v3397 = vld [vmem:[%s9 + $0x5c0] sm:$0xff]
      %v3398 = vld [vmem:[%s9 + $0x5c8] sm:$0xff]
      %v3399 = vld [vmem:[%s9 + $0x5d0] sm:$0xff]
      %v3400 = vld [vmem:[%s9 + $0x5d8] sm:$0xff]
      %v3401 = vld [vmem:[%s9 + $0x5e0] sm:$0xff]
      %v3402 = vld [vmem:[%s9 + $0x5e8] sm:$0xff]
      %v3403 = vld [vmem:[%s9 + $0x5f0] sm:$0xff]
      %v3404 = vld [vmem:[%s9 + $0x5f8] sm:$0xff]
      %v3405 = vld [vmem:[%s9 + $0x600] sm:$0xff]
      %v3406 = vld [vmem:[%s9 + $0x608] sm:$0xff]
      %v3407 = vld [vmem:[%s9 + $0x610] sm:$0xff]
      %v3408 = vld [vmem:[%s9 + $0x618] sm:$0xff]
      %v3409 = vld [vmem:[%s9 + $0x620] sm:$0xff]
      %v3410 = vld [vmem:[%s9 + $0x628] sm:$0xff]
      %v3411 = vld [vmem:[%s9 + $0x630] sm:$0xff]
      %v3412 = vld [vmem:[%s9 + $0x638] sm:$0xff]
      %v3413 = vld [vmem:[%s9 + $0x640] sm:$0xff]
      %v3414 = vld [vmem:[%s9 + $0x648] sm:$0xff]
      %v3415 = vld [vmem:[%s9 + $0x650] sm:$0xff]
      %v3416 = vld [vmem:[%s9 + $0x658] sm:$0xff]
      %v3417 = vld [vmem:[%s9 + $0x660] sm:$0xff]
      %v3418 = vld [vmem:[%s9 + $0x668] sm:$0xff]
      %v3419 = vld [vmem:[%s9 + $0x670] sm:$0xff]
      %v3420 = vld [vmem:[%s9 + $0x678] sm:$0xff]
      %v3421 = vld [vmem:[%s9 + $0x680] sm:$0xff]
      %v3422 = vld [vmem:[%s9 + $0x688] sm:$0xff]
      %v3423 = vld [vmem:[%s9 + $0x690] sm:$0xff]
      %v3424 = vld [vmem:[%s9 + $0x698] sm:$0xff]
      %v3425 = vld [vmem:[%s9 + $0x6a0] sm:$0xff]
      %v3426 = vld [vmem:[%s9 + $0x6a8] sm:$0xff]
      %v3427 = vld [vmem:[%s9 + $0x6b0] sm:$0xff]
      %v3428 = vld [vmem:[%s9 + $0x6b8] sm:$0xff]
      %v3429 = vld [vmem:[%s9 + $0x6c0] sm:$0xff]
      %v3430 = vld [vmem:[%s9 + $0x6c8] sm:$0xff]
      %v3431 = vld [vmem:[%s9 + $0x6d0] sm:$0xff]
      %v3432 = vld [vmem:[%s9 + $0x6d8] sm:$0xff]
      %v3433 = vld [vmem:[%s9 + $0x6e0] sm:$0xff]
      %v3434 = vld [vmem:[%s9 + $0x6e8] sm:$0xff]
      %v3435 = vld [vmem:[%s9 + $0x6f0] sm:$0xff]
      %v3436 = vld [vmem:[%s9 + $0x6f8] sm:$0xff]
      %v3437 = vld [vmem:[%s9 + $0x700] sm:$0xff]
      %v3438 = vld [vmem:[%s9 + $0x708] sm:$0xff]
      %v3439 = vld [vmem:[%s9 + $0x710] sm:$0xff]
      %v3440 = vld [vmem:[%s9 + $0x718] sm:$0xff]
      %v3449 = vrot.slane %v3319, 1
      %v3450 = vrot.slane %v3323, 1
      %v3451 = vsel %vm685, %v3449, %v3450
      %v3452 = vrot.slane %v3320, 1
      %v3453 = vrot.slane %v3324, 1
      %v3454 = vsel %vm685, %v3452, %v3453
      %v3455 = vrot.slane %v3321, 1
      %v3456 = vrot.slane %v3325, 1
      %v3457 = vsel %vm685, %v3455, %v3456
      %v3458 = vrot.slane %v3322, 1
      %v3459 = vrot.slane %v3326, 1
      %v3460 = vsel %vm685, %v3458, %v3459
      %v3467 = vsel %vm704, %v3460, 0
      %v3469 = vsel %vm704, %v3459, 0
      %3471 = vmatpush.msra.mxu0 %v3357
      %3472 = vmatpush.msra.mxu0 %v3355
      %3473 = vmatpush.msra.mxu0 %v3353
      %3474 = vmatpush.msra.mxu0 %v3351
      %3475 = vmatpush.msra.mxu0 %v3349
      %3476 = vmatpush.msra.mxu0 %v3347
      %3477 = vmatpush.msra.mxu0 %v3345
      %3478 = vmatpush.msra.mxu0 %v3343
      %3479 = vmatpush.msra.mxu0 %v3341
      %3480 = vmatpush.msra.mxu0 %v3339
      %3481 = vmatpush.msra.mxu0 %v3337
      %3482 = vmatpush.msra.mxu0 %v3335
      %3483 = vmatpush.msra.mxu0 %v3333
      %3484 = vmatpush.msra.mxu0 %v3331
      %3485 = vmatpush.msra.mxu0 %v3329
      %3486 = vmatpush.msra.mxu0 %v3327
      %3487 = vmatmul.f32.gmra.mxu0 %v3451
      %v3488 = vpop.f32.mrf.mxu0
      %v3489 = vadd.f32 0.0, %v3488
      %3490 = vmatmul.f32.gmra.mxu0 %v3450
      %v3491 = vpop.f32.mrf.mxu0
      %v3492 = vadd.f32 0.0, %v3491
      %3493 = vdwg.mxu0
      %3494 = vmatpush.msra.mxu0 %v3389
      %3495 = vmatpush.msra.mxu0 %v3387
      %3496 = vmatpush.msra.mxu0 %v3385
      %3497 = vmatpush.msra.mxu0 %v3383
      %3498 = vmatpush.msra.mxu0 %v3381
      %3499 = vmatpush.msra.mxu0 %v3379
      %3500 = vmatpush.msra.mxu0 %v3377
      %3501 = vmatpush.msra.mxu0 %v3375
      %3502 = vmatpush.msra.mxu0 %v3373
      %3503 = vmatpush.msra.mxu0 %v3371
      %3504 = vmatpush.msra.mxu0 %v3369
      %3505 = vmatpush.msra.mxu0 %v3367
      %3506 = vmatpush.msra.mxu0 %v3365
      %3507 = vmatpush.msra.mxu0 %v3363
      %3508 = vmatpush.msra.mxu0 %v3361
      %3509 = vmatpush.msra.mxu0 %v3359
      %3510 = vmatmul.f32.gmra.mxu0 %v3454
      %v3511 = vpop.f32.mrf.mxu0
      %v3512 = vadd.f32 %v3489, %v3511
      %3513 = vmatmul.f32.gmra.mxu0 %v3453
      %v3514 = vpop.f32.mrf.mxu0
      %v3515 = vadd.f32 %v3492, %v3514
      %3516 = vdwg.mxu0
      %3517 = vmatpush.msra.mxu0 %v3421
      %3518 = vmatpush.msra.mxu0 %v3419
      %3519 = vmatpush.msra.mxu0 %v3417
      %3520 = vmatpush.msra.mxu0 %v3415
      %3521 = vmatpush.msra.mxu0 %v3413
      %3522 = vmatpush.msra.mxu0 %v3411
      %3523 = vmatpush.msra.mxu0 %v3409
      %3524 = vmatpush.msra.mxu0 %v3407
      %3525 = vmatpush.msra.mxu0 %v3405
      %3526 = vmatpush.msra.mxu0 %v3403
      %3527 = vmatpush.msra.mxu0 %v3401
      %3528 = vmatpush.msra.mxu0 %v3399
      %3529 = vmatpush.msra.mxu0 %v3397
      %3530 = vmatpush.msra.mxu0 %v3395
      %3531 = vmatpush.msra.mxu0 %v3393
      %3532 = vmatpush.msra.mxu0 %v3391
      %3533 = vmatmul.f32.gmra.mxu0 %v3457
      %v3534 = vpop.f32.mrf.mxu0
      %v3535 = vadd.f32 %v3512, %v3534
      %3536 = vmatmul.f32.gmra.mxu0 %v3456
      %v3537 = vpop.f32.mrf.mxu0
      %v3538 = vadd.f32 %v3515, %v3537
      %3539 = vdwg.mxu0
      %3540 = vmatpush.msra.mxu0 0.0
      %3541 = vmatpush.msra.mxu0 0.0
      %3542 = vmatpush.msra.mxu0 0.0
      %3543 = vmatpush.msra.mxu0 0.0
      %3544 = vmatpush.msra.mxu0 0.0
      %3545 = vmatpush.msra.mxu0 0.0
      %3546 = vmatpush.msra.mxu0 0.0
      %3547 = vmatpush.msra.mxu0 %v3439
      %3548 = vmatpush.msra.mxu0 %v3437
      %3549 = vmatpush.msra.mxu0 %v3435
      %3550 = vmatpush.msra.mxu0 %v3433
      %3551 = vmatpush.msra.mxu0 %v3431
      %3552 = vmatpush.msra.mxu0 %v3429
      %3553 = vmatpush.msra.mxu0 %v3427
      %3554 = vmatpush.msra.mxu0 %v3425
      %3555 = vmatpush.msra.mxu0 %v3423
      %3556 = vmatmul.f32.gmra.mxu0 %v3467
      %v3557 = vpop.f32.mrf.mxu0
      %v3558 = vadd.f32 %v3535, %v3557
      %3559 = vmatmul.f32.gmra.mxu0 %v3469
      %v3560 = vpop.f32.mrf.mxu0
      %v3561 = vadd.f32 %v3538, %v3560
      %3562 = vdwg.mxu0
      %3563 = vmatpush.msra.mxu0 %v3358
      %3564 = vmatpush.msra.mxu0 %v3356
      %3565 = vmatpush.msra.mxu0 %v3354
      %3566 = vmatpush.msra.mxu0 %v3352
      %3567 = vmatpush.msra.mxu0 %v3350
      %3568 = vmatpush.msra.mxu0 %v3348
      %3569 = vmatpush.msra.mxu0 %v3346
      %3570 = vmatpush.msra.mxu0 %v3344
      %3571 = vmatpush.msra.mxu0 %v3342
      %3572 = vmatpush.msra.mxu0 %v3340
      %3573 = vmatpush.msra.mxu0 %v3338
      %3574 = vmatpush.msra.mxu0 %v3336
      %3575 = vmatpush.msra.mxu0 %v3334
      %3576 = vmatpush.msra.mxu0 %v3332
      %3577 = vmatpush.msra.mxu0 %v3330
      %3578 = vmatpush.msra.mxu0 %v3328
      %3579 = vmatmul.f32.gmra.mxu0 %v3451
      %v3580 = vpop.f32.mrf.mxu0
      %v3581 = vadd.f32 0.0, %v3580
      %3582 = vmatmul.f32.gmra.mxu0 %v3450
      %v3583 = vpop.f32.mrf.mxu0
      %v3584 = vadd.f32 0.0, %v3583
      %3585 = vdwg.mxu0
      %3586 = vmatpush.msra.mxu0 %v3390
      %3587 = vmatpush.msra.mxu0 %v3388
      %3588 = vmatpush.msra.mxu0 %v3386
      %3589 = vmatpush.msra.mxu0 %v3384
      %3590 = vmatpush.msra.mxu0 %v3382
      %3591 = vmatpush.msra.mxu0 %v3380
      %3592 = vmatpush.msra.mxu0 %v3378
      %3593 = vmatpush.msra.mxu0 %v3376
      %3594 = vmatpush.msra.mxu0 %v3374
      %3595 = vmatpush.msra.mxu0 %v3372
      %3596 = vmatpush.msra.mxu0 %v3370
      %3597 = vmatpush.msra.mxu0 %v3368
      %3598 = vmatpush.msra.mxu0 %v3366
      %3599 = vmatpush.msra.mxu0 %v3364
      %3600 = vmatpush.msra.mxu0 %v3362
      %3601 = vmatpush.msra.mxu0 %v3360
      %3602 = vmatmul.f32.gmra.mxu0 %v3454
      %v3603 = vpop.f32.mrf.mxu0
      %v3604 = vadd.f32 %v3581, %v3603
      %3605 = vmatmul.f32.gmra.mxu0 %v3453
      %v3606 = vpop.f32.mrf.mxu0
      %v3607 = vadd.f32 %v3584, %v3606
      %3608 = vdwg.mxu0
      %3609 = vmatpush.msra.mxu0 %v3422
      %3610 = vmatpush.msra.mxu0 %v3420
      %3611 = vmatpush.msra.mxu0 %v3418
      %3612 = vmatpush.msra.mxu0 %v3416
      %3613 = vmatpush.msra.mxu0 %v3414
      %3614 = vmatpush.msra.mxu0 %v3412
      %3615 = vmatpush.msra.mxu0 %v3410
      %3616 = vmatpush.msra.mxu0 %v3408
      %3617 = vmatpush.msra.mxu0 %v3406
      %3618 = vmatpush.msra.mxu0 %v3404
      %3619 = vmatpush.msra.mxu0 %v3402
      %3620 = vmatpush.msra.mxu0 %v3400
      %3621 = vmatpush.msra.mxu0 %v3398
      %3622 = vmatpush.msra.mxu0 %v3396
      %3623 = vmatpush.msra.mxu0 %v3394
      %3624 = vmatpush.msra.mxu0 %v3392
      %3625 = vmatmul.f32.gmra.mxu0 %v3457
      %v3626 = vpop.f32.mrf.mxu0
      %v3627 = vadd.f32 %v3604, %v3626
      %3628 = vmatmul.f32.gmra.mxu0 %v3456
      %v3629 = vpop.f32.mrf.mxu0
      %v3630 = vadd.f32 %v3607, %v3629
      %3631 = vdwg.mxu0
      %3632 = vmatpush.msra.mxu0 0.0
      %3633 = vmatpush.msra.mxu0 0.0
      %3634 = vmatpush.msra.mxu0 0.0
      %3635 = vmatpush.msra.mxu0 0.0
      %3636 = vmatpush.msra.mxu0 0.0
      %3637 = vmatpush.msra.mxu0 0.0
      %3638 = vmatpush.msra.mxu0 0.0
      %3639 = vmatpush.msra.mxu0 %v3440
      %3640 = vmatpush.msra.mxu0 %v3438
      %3641 = vmatpush.msra.mxu0 %v3436
      %3642 = vmatpush.msra.mxu0 %v3434
      %3643 = vmatpush.msra.mxu0 %v3432
      %3644 = vmatpush.msra.mxu0 %v3430
      %3645 = vmatpush.msra.mxu0 %v3428
      %3646 = vmatpush.msra.mxu0 %v3426
      %3647 = vmatpush.msra.mxu0 %v3424
      %3648 = vmatmul.f32.gmra.mxu0 %v3467
      %v3649 = vpop.f32.mrf.mxu0
      %v3650 = vadd.f32 %v3627, %v3649
      %3651 = vmatmul.f32.gmra.mxu0 %v3469
      %v3652 = vpop.f32.mrf.mxu0
      %v3653 = vadd.f32 %v3630, %v3652
      %3654 = vdwg.mxu0
      %v3656 = vsel %vm704, %v3200, 0
      %v3659 = vsel %vm704, %v3204, 0
      %3661 = vmatpush.msra.mxu0 %v3235
      %3662 = vmatpush.msra.mxu0 %v3233
      %3663 = vmatpush.msra.mxu0 %v3231
      %3664 = vmatpush.msra.mxu0 %v3229
      %3665 = vmatpush.msra.mxu0 %v3227
      %3666 = vmatpush.msra.mxu0 %v3225
      %3667 = vmatpush.msra.mxu0 %v3223
      %3668 = vmatpush.msra.mxu0 %v3221
      %3669 = vmatpush.msra.mxu0 %v3219
      %3670 = vmatpush.msra.mxu0 %v3217
      %3671 = vmatpush.msra.mxu0 %v3215
      %3672 = vmatpush.msra.mxu0 %v3213
      %3673 = vmatpush.msra.mxu0 %v3211
      %3674 = vmatpush.msra.mxu0 %v3209
      %3675 = vmatpush.msra.mxu0 %v3207
      %3676 = vmatpush.msra.mxu0 %v3205
      %3677 = vmatmul.f32.gmra.mxu0 %v3197
      %v3678 = vpop.f32.mrf.mxu0
      %v3679 = vadd.f32 %v3558, %v3678
      %3680 = vmatmul.f32.gmra.mxu0 %v3201
      %v3681 = vpop.f32.mrf.mxu0
      %v3682 = vadd.f32 %v3561, %v3681
      %3683 = vdwg.mxu0
      %3684 = vmatpush.msra.mxu0 %v3267
      %3685 = vmatpush.msra.mxu0 %v3265
      %3686 = vmatpush.msra.mxu0 %v3263
      %3687 = vmatpush.msra.mxu0 %v3261
      %3688 = vmatpush.msra.mxu0 %v3259
      %3689 = vmatpush.msra.mxu0 %v3257
      %3690 = vmatpush.msra.mxu0 %v3255
      %3691 = vmatpush.msra.mxu0 %v3253
      %3692 = vmatpush.msra.mxu0 %v3251
      %3693 = vmatpush.msra.mxu0 %v3249
      %3694 = vmatpush.msra.mxu0 %v3247
      %3695 = vmatpush.msra.mxu0 %v3245
      %3696 = vmatpush.msra.mxu0 %v3243
      %3697 = vmatpush.msra.mxu0 %v3241
      %3698 = vmatpush.msra.mxu0 %v3239
      %3699 = vmatpush.msra.mxu0 %v3237
      %3700 = vmatmul.f32.gmra.mxu0 %v3198
      %v3701 = vpop.f32.mrf.mxu0
      %v3702 = vadd.f32 %v3679, %v3701
      %3703 = vmatmul.f32.gmra.mxu0 %v3202
      %v3704 = vpop.f32.mrf.mxu0
      %v3705 = vadd.f32 %v3682, %v3704
      %3706 = vdwg.mxu0
      %3707 = vmatpush.msra.mxu0 %v3299
      %3708 = vmatpush.msra.mxu0 %v3297
      %3709 = vmatpush.msra.mxu0 %v3295
      %3710 = vmatpush.msra.mxu0 %v3293
      %3711 = vmatpush.msra.mxu0 %v3291
      %3712 = vmatpush.msra.mxu0 %v3289
      %3713 = vmatpush.msra.mxu0 %v3287
      %3714 = vmatpush.msra.mxu0 %v3285
      %3715 = vmatpush.msra.mxu0 %v3283
      %3716 = vmatpush.msra.mxu0 %v3281
      %3717 = vmatpush.msra.mxu0 %v3279
      %3718 = vmatpush.msra.mxu0 %v3277
      %3719 = vmatpush.msra.mxu0 %v3275
      %3720 = vmatpush.msra.mxu0 %v3273
      %3721 = vmatpush.msra.mxu0 %v3271
      %3722 = vmatpush.msra.mxu0 %v3269
      %3723 = vmatmul.f32.gmra.mxu0 %v3199
      %v3724 = vpop.f32.mrf.mxu0
      %v3725 = vadd.f32 %v3702, %v3724
      %3726 = vmatmul.f32.gmra.mxu0 %v3203
      %v3727 = vpop.f32.mrf.mxu0
      %v3728 = vadd.f32 %v3705, %v3727
      %3729 = vdwg.mxu0
      %3730 = vmatpush.msra.mxu0 0.0
      %3731 = vmatpush.msra.mxu0 0.0
      %3732 = vmatpush.msra.mxu0 0.0
      %3733 = vmatpush.msra.mxu0 0.0
      %3734 = vmatpush.msra.mxu0 0.0
      %3735 = vmatpush.msra.mxu0 0.0
      %3736 = vmatpush.msra.mxu0 0.0
      %3737 = vmatpush.msra.mxu0 %v3317
      %3738 = vmatpush.msra.mxu0 %v3315
      %3739 = vmatpush.msra.mxu0 %v3313
      %3740 = vmatpush.msra.mxu0 %v3311
      %3741 = vmatpush.msra.mxu0 %v3309
      %3742 = vmatpush.msra.mxu0 %v3307
      %3743 = vmatpush.msra.mxu0 %v3305
      %3744 = vmatpush.msra.mxu0 %v3303
      %3745 = vmatpush.msra.mxu0 %v3301
      %3746 = vmatmul.f32.gmra.mxu0 %v3656
      %v3747 = vpop.f32.mrf.mxu0
      %v3748 = vadd.f32 %v3725, %v3747
      %3749 = vmatmul.f32.gmra.mxu0 %v3659
      %v3750 = vpop.f32.mrf.mxu0
      %v3751 = vadd.f32 %v3728, %v3750
      %3752 = vdwg.mxu0
      %3753 = vmatpush.msra.mxu0 %v3236
      %3754 = vmatpush.msra.mxu0 %v3234
      %3755 = vmatpush.msra.mxu0 %v3232
      %3756 = vmatpush.msra.mxu0 %v3230
      %3757 = vmatpush.msra.mxu0 %v3228
      %3758 = vmatpush.msra.mxu0 %v3226
      %3759 = vmatpush.msra.mxu0 %v3224
      %3760 = vmatpush.msra.mxu0 %v3222
      %3761 = vmatpush.msra.mxu0 %v3220
      %3762 = vmatpush.msra.mxu0 %v3218
      %3763 = vmatpush.msra.mxu0 %v3216
      %3764 = vmatpush.msra.mxu0 %v3214
      %3765 = vmatpush.msra.mxu0 %v3212
      %3766 = vmatpush.msra.mxu0 %v3210
      %3767 = vmatpush.msra.mxu0 %v3208
      %3768 = vmatpush.msra.mxu0 %v3206
      %3769 = vmatmul.f32.gmra.mxu0 %v3197
      %v3770 = vpop.f32.mrf.mxu0
      %v3771 = vadd.f32 %v3650, %v3770
      %3772 = vmatmul.f32.gmra.mxu0 %v3201
      %v3773 = vpop.f32.mrf.mxu0
      %v3774 = vadd.f32 %v3653, %v3773
      %3775 = vdwg.mxu0
      %3776 = vmatpush.msra.mxu0 %v3268
      %3777 = vmatpush.msra.mxu0 %v3266
      %3778 = vmatpush.msra.mxu0 %v3264
      %3779 = vmatpush.msra.mxu0 %v3262
      %3780 = vmatpush.msra.mxu0 %v3260
      %3781 = vmatpush.msra.mxu0 %v3258
      %3782 = vmatpush.msra.mxu0 %v3256
      %3783 = vmatpush.msra.mxu0 %v3254
      %3784 = vmatpush.msra.mxu0 %v3252
      %3785 = vmatpush.msra.mxu0 %v3250
      %3786 = vmatpush.msra.mxu0 %v3248
      %3787 = vmatpush.msra.mxu0 %v3246
      %3788 = vmatpush.msra.mxu0 %v3244
      %3789 = vmatpush.msra.mxu0 %v3242
      %3790 = vmatpush.msra.mxu0 %v3240
      %3791 = vmatpush.msra.mxu0 %v3238
      %3792 = vmatmul.f32.gmra.mxu0 %v3198
      %v3793 = vpop.f32.mrf.mxu0
      %v3794 = vadd.f32 %v3771, %v3793
      %3795 = vmatmul.f32.gmra.mxu0 %v3202
      %v3796 = vpop.f32.mrf.mxu0
      %v3797 = vadd.f32 %v3774, %v3796
      %3798 = vdwg.mxu0
      %3799 = vmatpush.msra.mxu0 %v3300
      %3800 = vmatpush.msra.mxu0 %v3298
      %3801 = vmatpush.msra.mxu0 %v3296
      %3802 = vmatpush.msra.mxu0 %v3294
      %3803 = vmatpush.msra.mxu0 %v3292
      %3804 = vmatpush.msra.mxu0 %v3290
      %3805 = vmatpush.msra.mxu0 %v3288
      %3806 = vmatpush.msra.mxu0 %v3286
      %3807 = vmatpush.msra.mxu0 %v3284
      %3808 = vmatpush.msra.mxu0 %v3282
      %3809 = vmatpush.msra.mxu0 %v3280
      %3810 = vmatpush.msra.mxu0 %v3278
      %3811 = vmatpush.msra.mxu0 %v3276
      %3812 = vmatpush.msra.mxu0 %v3274
      %3813 = vmatpush.msra.mxu0 %v3272
      %3814 = vmatpush.msra.mxu0 %v3270
      %3815 = vmatmul.f32.gmra.mxu0 %v3199
      %v3816 = vpop.f32.mrf.mxu0
      %v3817 = vadd.f32 %v3794, %v3816
      %3818 = vmatmul.f32.gmra.mxu0 %v3203
      %v3819 = vpop.f32.mrf.mxu0
      %v3820 = vadd.f32 %v3797, %v3819
      %3821 = vdwg.mxu0
      %3822 = vmatpush.msra.mxu0 0.0
      %3823 = vmatpush.msra.mxu0 0.0
      %3824 = vmatpush.msra.mxu0 0.0
      %3825 = vmatpush.msra.mxu0 0.0
      %3826 = vmatpush.msra.mxu0 0.0
      %3827 = vmatpush.msra.mxu0 0.0
      %3828 = vmatpush.msra.mxu0 0.0
      %3829 = vmatpush.msra.mxu0 %v3318
      %3830 = vmatpush.msra.mxu0 %v3316
      %3831 = vmatpush.msra.mxu0 %v3314
      %3832 = vmatpush.msra.mxu0 %v3312
      %3833 = vmatpush.msra.mxu0 %v3310
      %3834 = vmatpush.msra.mxu0 %v3308
      %3835 = vmatpush.msra.mxu0 %v3306
      %3836 = vmatpush.msra.mxu0 %v3304
      %3837 = vmatpush.msra.mxu0 %v3302
      %3838 = vmatmul.f32.gmra.mxu0 %v3656
      %v3839 = vpop.f32.mrf.mxu0
      %v3840 = vadd.f32 %v3817, %v3839
      %3841 = vmatmul.f32.gmra.mxu0 %v3659
      %v3842 = vpop.f32.mrf.mxu0
      %v3843 = vadd.f32 %v3820, %v3842
      %3844 = vdwg.mxu0
      %v3845 = vld [vmem:[%s543] sm:$0xfc]
      %v3846 = vld [vmem:[%s543 + $0x8] sm:$0xfc]
      %v3847 = vld [vmem:[%s543 + $0x10] sm:$0xfc]
      %v3848 = vld [vmem:[%s543 + $0x18] sm:$0xfc]
      %v3849 = vld [vmem:[%s543 + $0x20] sm:$0x3f]
      %v3850 = vld [vmem:[%s543 + $0x28] sm:$0x3f]
      %v3851 = vld [vmem:[%s543 + $0x30] sm:$0x3f]
      %v3852 = vld [vmem:[%s543 + $0x38] sm:$0x3f]
      %v3853 = vld [vmem:[%s9 + $0x720] sm:$0xff]
      %v3854 = vld [vmem:[%s9 + $0x728] sm:$0xff]
      %v3855 = vld [vmem:[%s9 + $0x730] sm:$0xff]
      %v3856 = vld [vmem:[%s9 + $0x738] sm:$0xff]
      %v3857 = vld [vmem:[%s9 + $0x740] sm:$0xff]
      %v3858 = vld [vmem:[%s9 + $0x748] sm:$0xff]
      %v3859 = vld [vmem:[%s9 + $0x750] sm:$0xff]
      %v3860 = vld [vmem:[%s9 + $0x758] sm:$0xff]
      %v3861 = vld [vmem:[%s9 + $0x760] sm:$0xff]
      %v3862 = vld [vmem:[%s9 + $0x768] sm:$0xff]
      %v3863 = vld [vmem:[%s9 + $0x770] sm:$0xff]
      %v3864 = vld [vmem:[%s9 + $0x778] sm:$0xff]
      %v3865 = vld [vmem:[%s9 + $0x780] sm:$0xff]
      %v3866 = vld [vmem:[%s9 + $0x788] sm:$0xff]
      %v3867 = vld [vmem:[%s9 + $0x790] sm:$0xff]
      %v3868 = vld [vmem:[%s9 + $0x798] sm:$0xff]
      %v3869 = vld [vmem:[%s9 + $0x7a0] sm:$0xff]
      %v3870 = vld [vmem:[%s9 + $0x7a8] sm:$0xff]
      %v3871 = vld [vmem:[%s9 + $0x7b0] sm:$0xff]
      %v3872 = vld [vmem:[%s9 + $0x7b8] sm:$0xff]
      %v3873 = vld [vmem:[%s9 + $0x7c0] sm:$0xff]
      %v3874 = vld [vmem:[%s9 + $0x7c8] sm:$0xff]
      %v3875 = vld [vmem:[%s9 + $0x7d0] sm:$0xff]
      %v3876 = vld [vmem:[%s9 + $0x7d8] sm:$0xff]
      %v3877 = vld [vmem:[%s9 + $0x7e0] sm:$0xff]
      %v3878 = vld [vmem:[%s9 + $0x7e8] sm:$0xff]
      %v3879 = vld [vmem:[%s9 + $0x7f0] sm:$0xff]
      %v3880 = vld [vmem:[%s9 + $0x7f8] sm:$0xff]
      %v3881 = vld [vmem:[%s9 + $0x800] sm:$0xff]
      %v3882 = vld [vmem:[%s9 + $0x808] sm:$0xff]
      %v3883 = vld [vmem:[%s9 + $0x810] sm:$0xff]
      %v3884 = vld [vmem:[%s9 + $0x818] sm:$0xff]
      %v3885 = vld [vmem:[%s9 + $0x820] sm:$0xff]
      %v3886 = vld [vmem:[%s9 + $0x828] sm:$0xff]
      %v3887 = vld [vmem:[%s9 + $0x830] sm:$0xff]
      %v3888 = vld [vmem:[%s9 + $0x838] sm:$0xff]
      %v3889 = vld [vmem:[%s9 + $0x840] sm:$0xff]
      %v3890 = vld [vmem:[%s9 + $0x848] sm:$0xff]
      %v3891 = vld [vmem:[%s9 + $0x850] sm:$0xff]
      %v3892 = vld [vmem:[%s9 + $0x858] sm:$0xff]
      %v3893 = vld [vmem:[%s9 + $0x860] sm:$0xff]
      %v3894 = vld [vmem:[%s9 + $0x868] sm:$0xff]
      %v3895 = vld [vmem:[%s9 + $0x870] sm:$0xff]
      %v3896 = vld [vmem:[%s9 + $0x878] sm:$0xff]
      %v3897 = vld [vmem:[%s9 + $0x880] sm:$0xff]
      %v3898 = vld [vmem:[%s9 + $0x888] sm:$0xff]
      %v3899 = vld [vmem:[%s9 + $0x890] sm:$0xff]
      %v3900 = vld [vmem:[%s9 + $0x898] sm:$0xff]
      %v3901 = vld [vmem:[%s9 + $0x8a0] sm:$0xff]
      %v3902 = vld [vmem:[%s9 + $0x8a8] sm:$0xff]
      %v3903 = vld [vmem:[%s9 + $0x8b0] sm:$0xff]
      %v3904 = vld [vmem:[%s9 + $0x8b8] sm:$0xff]
      %v3905 = vld [vmem:[%s9 + $0x8c0] sm:$0xff]
      %v3906 = vld [vmem:[%s9 + $0x8c8] sm:$0xff]
      %v3907 = vld [vmem:[%s9 + $0x8d0] sm:$0xff]
      %v3908 = vld [vmem:[%s9 + $0x8d8] sm:$0xff]
      %v3909 = vld [vmem:[%s9 + $0x8e0] sm:$0xff]
      %v3910 = vld [vmem:[%s9 + $0x8e8] sm:$0xff]
      %v3911 = vld [vmem:[%s9 + $0x8f0] sm:$0xff]
      %v3912 = vld [vmem:[%s9 + $0x8f8] sm:$0xff]
      %v3913 = vld [vmem:[%s9 + $0x900] sm:$0xff]
      %v3914 = vld [vmem:[%s9 + $0x908] sm:$0xff]
      %v3915 = vld [vmem:[%s9 + $0x910] sm:$0xff]
      %v3916 = vld [vmem:[%s9 + $0x918] sm:$0xff]
      %v3917 = vld [vmem:[%s9 + $0x920] sm:$0xff]
      %v3918 = vld [vmem:[%s9 + $0x928] sm:$0xff]
      %v3919 = vld [vmem:[%s9 + $0x930] sm:$0xff]
      %v3920 = vld [vmem:[%s9 + $0x938] sm:$0xff]
      %v3921 = vld [vmem:[%s9 + $0x940] sm:$0xff]
      %v3922 = vld [vmem:[%s9 + $0x948] sm:$0xff]
      %v3923 = vld [vmem:[%s9 + $0x950] sm:$0xff]
      %v3924 = vld [vmem:[%s9 + $0x958] sm:$0xff]
      %v3925 = vld [vmem:[%s9 + $0x960] sm:$0xff]
      %v3926 = vld [vmem:[%s9 + $0x968] sm:$0xff]
      %v3927 = vld [vmem:[%s9 + $0x970] sm:$0xff]
      %v3928 = vld [vmem:[%s9 + $0x978] sm:$0xff]
      %v3929 = vld [vmem:[%s9 + $0x980] sm:$0xff]
      %v3930 = vld [vmem:[%s9 + $0x988] sm:$0xff]
      %v3931 = vld [vmem:[%s9 + $0x990] sm:$0xff]
      %v3932 = vld [vmem:[%s9 + $0x998] sm:$0xff]
      %v3933 = vld [vmem:[%s9 + $0x9a0] sm:$0xff]
      %v3934 = vld [vmem:[%s9 + $0x9a8] sm:$0xff]
      %v3935 = vld [vmem:[%s9 + $0x9b0] sm:$0xff]
      %v3936 = vld [vmem:[%s9 + $0x9b8] sm:$0xff]
      %v3937 = vld [vmem:[%s9 + $0x9c0] sm:$0xff]
      %v3938 = vld [vmem:[%s9 + $0x9c8] sm:$0xff]
      %v3939 = vld [vmem:[%s9 + $0x9d0] sm:$0xff]
      %v3940 = vld [vmem:[%s9 + $0x9d8] sm:$0xff]
      %v3941 = vld [vmem:[%s9 + $0x9e0] sm:$0xff]
      %v3942 = vld [vmem:[%s9 + $0x9e8] sm:$0xff]
      %v3943 = vld [vmem:[%s9 + $0x9f0] sm:$0xff]
      %v3944 = vld [vmem:[%s9 + $0x9f8] sm:$0xff]
      %v3945 = vld [vmem:[%s9 + $0xa00] sm:$0xff]
      %v3946 = vld [vmem:[%s9 + $0xa08] sm:$0xff]
      %v3947 = vld [vmem:[%s9 + $0xa10] sm:$0xff]
      %v3948 = vld [vmem:[%s9 + $0xa18] sm:$0xff]
      %v3949 = vld [vmem:[%s9 + $0xa20] sm:$0xff]
      %v3950 = vld [vmem:[%s9 + $0xa28] sm:$0xff]
      %v3951 = vld [vmem:[%s9 + $0xa30] sm:$0xff]
      %v3952 = vld [vmem:[%s9 + $0xa38] sm:$0xff]
      %v3953 = vld [vmem:[%s9 + $0xa40] sm:$0xff]
      %v3954 = vld [vmem:[%s9 + $0xa48] sm:$0xff]
      %v3955 = vld [vmem:[%s9 + $0xa50] sm:$0xff]
      %v3956 = vld [vmem:[%s9 + $0xa58] sm:$0xff]
      %v3957 = vld [vmem:[%s9 + $0xa60] sm:$0xff]
      %v3958 = vld [vmem:[%s9 + $0xa68] sm:$0xff]
      %v3959 = vld [vmem:[%s9 + $0xa70] sm:$0xff]
      %v3960 = vld [vmem:[%s9 + $0xa78] sm:$0xff]
      %v3961 = vld [vmem:[%s9 + $0xa80] sm:$0xff]
      %v3962 = vld [vmem:[%s9 + $0xa88] sm:$0xff]
      %v3963 = vld [vmem:[%s9 + $0xa90] sm:$0xff]
      %v3964 = vld [vmem:[%s9 + $0xa98] sm:$0xff]
      %v3965 = vld [vmem:[%s9 + $0xaa0] sm:$0xff]
      %v3966 = vld [vmem:[%s9 + $0xaa8] sm:$0xff]
      %v3975 = vrot.slane %v3845, 2
      %v3976 = vrot.slane %v3849, 2
      %v3977 = vsel %vm972, %v3975, %v3976
      %v3978 = vrot.slane %v3846, 2
      %v3979 = vrot.slane %v3850, 2
      %v3980 = vsel %vm972, %v3978, %v3979
      %v3981 = vrot.slane %v3847, 2
      %v3982 = vrot.slane %v3851, 2
      %v3983 = vsel %vm972, %v3981, %v3982
      %v3984 = vrot.slane %v3848, 2
      %v3985 = vrot.slane %v3852, 2
      %v3986 = vsel %vm972, %v3984, %v3985
      %v3993 = vsel %vm704, %v3986, 0
      %v3995 = vsel %vm704, %v3985, 0
      %3997 = vmatpush.msra.mxu0 %v3883
      %3998 = vmatpush.msra.mxu0 %v3881
      %3999 = vmatpush.msra.mxu0 %v3879
      %4000 = vmatpush.msra.mxu0 %v3877
      %4001 = vmatpush.msra.mxu0 %v3875
      %4002 = vmatpush.msra.mxu0 %v3873
      %4003 = vmatpush.msra.mxu0 %v3871
      %4004 = vmatpush.msra.mxu0 %v3869
      %4005 = vmatpush.msra.mxu0 %v3867
      %4006 = vmatpush.msra.mxu0 %v3865
      %4007 = vmatpush.msra.mxu0 %v3863
      %4008 = vmatpush.msra.mxu0 %v3861
      %4009 = vmatpush.msra.mxu0 %v3859
      %4010 = vmatpush.msra.mxu0 %v3857
      %4011 = vmatpush.msra.mxu0 %v3855
      %4012 = vmatpush.msra.mxu0 %v3853
      %4013 = vmatmul.f32.gmra.mxu0 %v3977
      %v4014 = vpop.f32.mrf.mxu0
      %v4015 = vadd.f32 0.0, %v4014
      %4016 = vmatmul.f32.gmra.mxu0 %v3976
      %v4017 = vpop.f32.mrf.mxu0
      %v4018 = vadd.f32 0.0, %v4017
      %4019 = vdwg.mxu0
      %4020 = vmatpush.msra.mxu0 %v3915
      %4021 = vmatpush.msra.mxu0 %v3913
      %4022 = vmatpush.msra.mxu0 %v3911
      %4023 = vmatpush.msra.mxu0 %v3909
      %4024 = vmatpush.msra.mxu0 %v3907
      %4025 = vmatpush.msra.mxu0 %v3905
      %4026 = vmatpush.msra.mxu0 %v3903
      %4027 = vmatpush.msra.mxu0 %v3901
      %4028 = vmatpush.msra.mxu0 %v3899
      %4029 = vmatpush.msra.mxu0 %v3897
      %4030 = vmatpush.msra.mxu0 %v3895
      %4031 = vmatpush.msra.mxu0 %v3893
      %4032 = vmatpush.msra.mxu0 %v3891
      %4033 = vmatpush.msra.mxu0 %v3889
      %4034 = vmatpush.msra.mxu0 %v3887
      %4035 = vmatpush.msra.mxu0 %v3885
      %4036 = vmatmul.f32.gmra.mxu0 %v3980
      %v4037 = vpop.f32.mrf.mxu0
      %v4038 = vadd.f32 %v4015, %v4037
      %4039 = vmatmul.f32.gmra.mxu0 %v3979
      %v4040 = vpop.f32.mrf.mxu0
      %v4041 = vadd.f32 %v4018, %v4040
      %4042 = vdwg.mxu0
      %4043 = vmatpush.msra.mxu0 %v3947
      %4044 = vmatpush.msra.mxu0 %v3945
      %4045 = vmatpush.msra.mxu0 %v3943
      %4046 = vmatpush.msra.mxu0 %v3941
      %4047 = vmatpush.msra.mxu0 %v3939
      %4048 = vmatpush.msra.mxu0 %v3937
      %4049 = vmatpush.msra.mxu0 %v3935
      %4050 = vmatpush.msra.mxu0 %v3933
      %4051 = vmatpush.msra.mxu0 %v3931
      %4052 = vmatpush.msra.mxu0 %v3929
      %4053 = vmatpush.msra.mxu0 %v3927
      %4054 = vmatpush.msra.mxu0 %v3925
      %4055 = vmatpush.msra.mxu0 %v3923
      %4056 = vmatpush.msra.mxu0 %v3921
      %4057 = vmatpush.msra.mxu0 %v3919
      %4058 = vmatpush.msra.mxu0 %v3917
      %4059 = vmatmul.f32.gmra.mxu0 %v3983
      %v4060 = vpop.f32.mrf.mxu0
      %v4061 = vadd.f32 %v4038, %v4060
      %4062 = vmatmul.f32.gmra.mxu0 %v3982
      %v4063 = vpop.f32.mrf.mxu0
      %v4064 = vadd.f32 %v4041, %v4063
      %4065 = vdwg.mxu0
      %4066 = vmatpush.msra.mxu0 0.0
      %4067 = vmatpush.msra.mxu0 0.0
      %4068 = vmatpush.msra.mxu0 0.0
      %4069 = vmatpush.msra.mxu0 0.0
      %4070 = vmatpush.msra.mxu0 0.0
      %4071 = vmatpush.msra.mxu0 0.0
      %4072 = vmatpush.msra.mxu0 0.0
      %4073 = vmatpush.msra.mxu0 %v3965
      %4074 = vmatpush.msra.mxu0 %v3963
      %4075 = vmatpush.msra.mxu0 %v3961
      %4076 = vmatpush.msra.mxu0 %v3959
      %4077 = vmatpush.msra.mxu0 %v3957
      %4078 = vmatpush.msra.mxu0 %v3955
      %4079 = vmatpush.msra.mxu0 %v3953
      %4080 = vmatpush.msra.mxu0 %v3951
      %4081 = vmatpush.msra.mxu0 %v3949
      %4082 = vmatmul.f32.gmra.mxu0 %v3993
      %v4083 = vpop.f32.mrf.mxu0
      %v4084 = vadd.f32 %v4061, %v4083
      %4085 = vmatmul.f32.gmra.mxu0 %v3995
      %v4086 = vpop.f32.mrf.mxu0
      %v4087 = vadd.f32 %v4064, %v4086
      %4088 = vdwg.mxu0
      %4089 = vmatpush.msra.mxu0 %v3884
      %4090 = vmatpush.msra.mxu0 %v3882
      %4091 = vmatpush.msra.mxu0 %v3880
      %4092 = vmatpush.msra.mxu0 %v3878
      %4093 = vmatpush.msra.mxu0 %v3876
      %4094 = vmatpush.msra.mxu0 %v3874
      %4095 = vmatpush.msra.mxu0 %v3872
      %4096 = vmatpush.msra.mxu0 %v3870
      %4097 = vmatpush.msra.mxu0 %v3868
      %4098 = vmatpush.msra.mxu0 %v3866
      %4099 = vmatpush.msra.mxu0 %v3864
      %4100 = vmatpush.msra.mxu0 %v3862
      %4101 = vmatpush.msra.mxu0 %v3860
      %4102 = vmatpush.msra.mxu0 %v3858
      %4103 = vmatpush.msra.mxu0 %v3856
      %4104 = vmatpush.msra.mxu0 %v3854
      %4105 = vmatmul.f32.gmra.mxu0 %v3977
      %v4106 = vpop.f32.mrf.mxu0
      %v4107 = vadd.f32 0.0, %v4106
      %4108 = vmatmul.f32.gmra.mxu0 %v3976
      %v4109 = vpop.f32.mrf.mxu0
      %v4110 = vadd.f32 0.0, %v4109
      %4111 = vdwg.mxu0
      %4112 = vmatpush.msra.mxu0 %v3916
      %4113 = vmatpush.msra.mxu0 %v3914
      %4114 = vmatpush.msra.mxu0 %v3912
      %4115 = vmatpush.msra.mxu0 %v3910
      %4116 = vmatpush.msra.mxu0 %v3908
      %4117 = vmatpush.msra.mxu0 %v3906
      %4118 = vmatpush.msra.mxu0 %v3904
      %4119 = vmatpush.msra.mxu0 %v3902
      %4120 = vmatpush.msra.mxu0 %v3900
      %4121 = vmatpush.msra.mxu0 %v3898
      %4122 = vmatpush.msra.mxu0 %v3896
      %4123 = vmatpush.msra.mxu0 %v3894
      %4124 = vmatpush.msra.mxu0 %v3892
      %4125 = vmatpush.msra.mxu0 %v3890
      %4126 = vmatpush.msra.mxu0 %v3888
      %4127 = vmatpush.msra.mxu0 %v3886
      %4128 = vmatmul.f32.gmra.mxu0 %v3980
      %v4129 = vpop.f32.mrf.mxu0
      %v4130 = vadd.f32 %v4107, %v4129
      %4131 = vmatmul.f32.gmra.mxu0 %v3979
      %v4132 = vpop.f32.mrf.mxu0
      %v4133 = vadd.f32 %v4110, %v4132
      %4134 = vdwg.mxu0
      %4135 = vmatpush.msra.mxu0 %v3948
      %4136 = vmatpush.msra.mxu0 %v3946
      %4137 = vmatpush.msra.mxu0 %v3944
      %4138 = vmatpush.msra.mxu0 %v3942
      %4139 = vmatpush.msra.mxu0 %v3940
      %4140 = vmatpush.msra.mxu0 %v3938
      %4141 = vmatpush.msra.mxu0 %v3936
      %4142 = vmatpush.msra.mxu0 %v3934
      %4143 = vmatpush.msra.mxu0 %v3932
      %4144 = vmatpush.msra.mxu0 %v3930
      %4145 = vmatpush.msra.mxu0 %v3928
      %4146 = vmatpush.msra.mxu0 %v3926
      %4147 = vmatpush.msra.mxu0 %v3924
      %4148 = vmatpush.msra.mxu0 %v3922
      %4149 = vmatpush.msra.mxu0 %v3920
      %4150 = vmatpush.msra.mxu0 %v3918
      %4151 = vmatmul.f32.gmra.mxu0 %v3983
      %v4152 = vpop.f32.mrf.mxu0
      %v4153 = vadd.f32 %v4130, %v4152
      %4154 = vmatmul.f32.gmra.mxu0 %v3982
      %v4155 = vpop.f32.mrf.mxu0
      %v4156 = vadd.f32 %v4133, %v4155
      %4157 = vdwg.mxu0
      %4158 = vmatpush.msra.mxu0 0.0
      %4159 = vmatpush.msra.mxu0 0.0
      %4160 = vmatpush.msra.mxu0 0.0
      %4161 = vmatpush.msra.mxu0 0.0
      %4162 = vmatpush.msra.mxu0 0.0
      %4163 = vmatpush.msra.mxu0 0.0
      %4164 = vmatpush.msra.mxu0 0.0
      %4165 = vmatpush.msra.mxu0 %v3966
      %4166 = vmatpush.msra.mxu0 %v3964
      %4167 = vmatpush.msra.mxu0 %v3962
      %4168 = vmatpush.msra.mxu0 %v3960
      %4169 = vmatpush.msra.mxu0 %v3958
      %4170 = vmatpush.msra.mxu0 %v3956
      %4171 = vmatpush.msra.mxu0 %v3954
      %4172 = vmatpush.msra.mxu0 %v3952
      %4173 = vmatpush.msra.mxu0 %v3950
      %4174 = vmatmul.f32.gmra.mxu0 %v3993
      %v4175 = vpop.f32.mrf.mxu0
      %v4176 = vadd.f32 %v4153, %v4175
      %4177 = vmatmul.f32.gmra.mxu0 %v3995
      %v4178 = vpop.f32.mrf.mxu0
      %v4179 = vadd.f32 %v4156, %v4178
      %4180 = vdwg.mxu0
      %v4181 = vadd.f32 %v3748, %v4084
      %v4182 = vadd.f32 %v3840, %v4176
      %v4183 = vadd.f32 %v3751, %v4087
      %v4184 = vadd.f32 %v3843, %v4179
      %v4185 = vld [vmem:[%s543] sm:$0xf8]
      %v4186 = vld [vmem:[%s543 + $0x8] sm:$0xf8]
      %v4187 = vld [vmem:[%s543 + $0x10] sm:$0xf8]
      %v4188 = vld [vmem:[%s543 + $0x18] sm:$0xf8]
      %v4189 = vld [vmem:[%s543 + $0x20] sm:$0x7f]
      %v4190 = vld [vmem:[%s543 + $0x28] sm:$0x7f]
      %v4191 = vld [vmem:[%s543 + $0x30] sm:$0x7f]
      %v4192 = vld [vmem:[%s543 + $0x38] sm:$0x7f]
      %v4193 = vld [vmem:[%s9 + $0xab0] sm:$0xff]
      %v4194 = vld [vmem:[%s9 + $0xab8] sm:$0xff]
      %v4195 = vld [vmem:[%s9 + $0xac0] sm:$0xff]
      %v4196 = vld [vmem:[%s9 + $0xac8] sm:$0xff]
      %v4197 = vld [vmem:[%s9 + $0xad0] sm:$0xff]
      %v4198 = vld [vmem:[%s9 + $0xad8] sm:$0xff]
      %v4199 = vld [vmem:[%s9 + $0xae0] sm:$0xff]
      %v4200 = vld [vmem:[%s9 + $0xae8] sm:$0xff]
      %v4201 = vld [vmem:[%s9 + $0xaf0] sm:$0xff]
      %v4202 = vld [vmem:[%s9 + $0xaf8] sm:$0xff]
      %v4203 = vld [vmem:[%s9 + $0xb00] sm:$0xff]
      %v4204 = vld [vmem:[%s9 + $0xb08] sm:$0xff]
      %v4205 = vld [vmem:[%s9 + $0xb10] sm:$0xff]
      %v4206 = vld [vmem:[%s9 + $0xb18] sm:$0xff]
      %v4207 = vld [vmem:[%s9 + $0xb20] sm:$0xff]
      %v4208 = vld [vmem:[%s9 + $0xb28] sm:$0xff]
      %v4209 = vld [vmem:[%s9 + $0xb30] sm:$0xff]
      %v4210 = vld [vmem:[%s9 + $0xb38] sm:$0xff]
      %v4211 = vld [vmem:[%s9 + $0xb40] sm:$0xff]
      %v4212 = vld [vmem:[%s9 + $0xb48] sm:$0xff]
      %v4213 = vld [vmem:[%s9 + $0xb50] sm:$0xff]
      %v4214 = vld [vmem:[%s9 + $0xb58] sm:$0xff]
      %v4215 = vld [vmem:[%s9 + $0xb60] sm:$0xff]
      %v4216 = vld [vmem:[%s9 + $0xb68] sm:$0xff]
      %v4217 = vld [vmem:[%s9 + $0xb70] sm:$0xff]
      %v4218 = vld [vmem:[%s9 + $0xb78] sm:$0xff]
      %v4219 = vld [vmem:[%s9 + $0xb80] sm:$0xff]
      %v4220 = vld [vmem:[%s9 + $0xb88] sm:$0xff]
      %v4221 = vld [vmem:[%s9 + $0xb90] sm:$0xff]
      %v4222 = vld [vmem:[%s9 + $0xb98] sm:$0xff]
      %v4223 = vld [vmem:[%s9 + $0xba0] sm:$0xff]
      %v4224 = vld [vmem:[%s9 + $0xba8] sm:$0xff]
      %v4225 = vld [vmem:[%s9 + $0xbb0] sm:$0xff]
      %v4226 = vld [vmem:[%s9 + $0xbb8] sm:$0xff]
      %v4227 = vld [vmem:[%s9 + $0xbc0] sm:$0xff]
      %v4228 = vld [vmem:[%s9 + $0xbc8] sm:$0xff]
      %v4229 = vld [vmem:[%s9 + $0xbd0] sm:$0xff]
      %v4230 = vld [vmem:[%s9 + $0xbd8] sm:$0xff]
      %v4231 = vld [vmem:[%s9 + $0xbe0] sm:$0xff]
      %v4232 = vld [vmem:[%s9 + $0xbe8] sm:$0xff]
      %v4233 = vld [vmem:[%s9 + $0xbf0] sm:$0xff]
      %v4234 = vld [vmem:[%s9 + $0xbf8] sm:$0xff]
      %v4235 = vld [vmem:[%s9 + $0xc00] sm:$0xff]
      %v4236 = vld [vmem:[%s9 + $0xc08] sm:$0xff]
      %v4237 = vld [vmem:[%s9 + $0xc10] sm:$0xff]
      %v4238 = vld [vmem:[%s9 + $0xc18] sm:$0xff]
      %v4239 = vld [vmem:[%s9 + $0xc20] sm:$0xff]
      %v4240 = vld [vmem:[%s9 + $0xc28] sm:$0xff]
      %v4241 = vld [vmem:[%s9 + $0xc30] sm:$0xff]
      %v4242 = vld [vmem:[%s9 + $0xc38] sm:$0xff]
      %v4243 = vld [vmem:[%s9 + $0xc40] sm:$0xff]
      %v4244 = vld [vmem:[%s9 + $0xc48] sm:$0xff]
      %v4245 = vld [vmem:[%s9 + $0xc50] sm:$0xff]
      %v4246 = vld [vmem:[%s9 + $0xc58] sm:$0xff]
      %v4247 = vld [vmem:[%s9 + $0xc60] sm:$0xff]
      %v4248 = vld [vmem:[%s9 + $0xc68] sm:$0xff]
      %v4249 = vld [vmem:[%s9 + $0xc70] sm:$0xff]
      %v4250 = vld [vmem:[%s9 + $0xc78] sm:$0xff]
      %v4251 = vld [vmem:[%s9 + $0xc80] sm:$0xff]
      %v4252 = vld [vmem:[%s9 + $0xc88] sm:$0xff]
      %v4253 = vld [vmem:[%s9 + $0xc90] sm:$0xff]
      %v4254 = vld [vmem:[%s9 + $0xc98] sm:$0xff]
      %v4255 = vld [vmem:[%s9 + $0xca0] sm:$0xff]
      %v4256 = vld [vmem:[%s9 + $0xca8] sm:$0xff]
      %v4257 = vld [vmem:[%s9 + $0xcb0] sm:$0xff]
      %v4258 = vld [vmem:[%s9 + $0xcb8] sm:$0xff]
      %v4259 = vld [vmem:[%s9 + $0xcc0] sm:$0xff]
      %v4260 = vld [vmem:[%s9 + $0xcc8] sm:$0xff]
      %v4261 = vld [vmem:[%s9 + $0xcd0] sm:$0xff]
      %v4262 = vld [vmem:[%s9 + $0xcd8] sm:$0xff]
      %v4263 = vld [vmem:[%s9 + $0xce0] sm:$0xff]
      %v4264 = vld [vmem:[%s9 + $0xce8] sm:$0xff]
      %v4265 = vld [vmem:[%s9 + $0xcf0] sm:$0xff]
      %v4266 = vld [vmem:[%s9 + $0xcf8] sm:$0xff]
      %v4267 = vld [vmem:[%s9 + $0xd00] sm:$0xff]
      %v4268 = vld [vmem:[%s9 + $0xd08] sm:$0xff]
      %v4269 = vld [vmem:[%s9 + $0xd10] sm:$0xff]
      %v4270 = vld [vmem:[%s9 + $0xd18] sm:$0xff]
      %v4271 = vld [vmem:[%s9 + $0xd20] sm:$0xff]
      %v4272 = vld [vmem:[%s9 + $0xd28] sm:$0xff]
      %v4273 = vld [vmem:[%s9 + $0xd30] sm:$0xff]
      %v4274 = vld [vmem:[%s9 + $0xd38] sm:$0xff]
      %v4275 = vld [vmem:[%s9 + $0xd40] sm:$0xff]
      %v4276 = vld [vmem:[%s9 + $0xd48] sm:$0xff]
      %v4277 = vld [vmem:[%s9 + $0xd50] sm:$0xff]
      %v4278 = vld [vmem:[%s9 + $0xd58] sm:$0xff]
      %v4279 = vld [vmem:[%s9 + $0xd60] sm:$0xff]
      %v4280 = vld [vmem:[%s9 + $0xd68] sm:$0xff]
      %v4281 = vld [vmem:[%s9 + $0xd70] sm:$0xff]
      %v4282 = vld [vmem:[%s9 + $0xd78] sm:$0xff]
      %v4283 = vld [vmem:[%s9 + $0xd80] sm:$0xff]
      %v4284 = vld [vmem:[%s9 + $0xd88] sm:$0xff]
      %v4285 = vld [vmem:[%s9 + $0xd90] sm:$0xff]
      %v4286 = vld [vmem:[%s9 + $0xd98] sm:$0xff]
      %v4287 = vld [vmem:[%s9 + $0xda0] sm:$0xff]
      %v4288 = vld [vmem:[%s9 + $0xda8] sm:$0xff]
      %v4289 = vld [vmem:[%s9 + $0xdb0] sm:$0xff]
      %v4290 = vld [vmem:[%s9 + $0xdb8] sm:$0xff]
      %v4291 = vld [vmem:[%s9 + $0xdc0] sm:$0xff]
      %v4292 = vld [vmem:[%s9 + $0xdc8] sm:$0xff]
      %v4293 = vld [vmem:[%s9 + $0xdd0] sm:$0xff]
      %v4294 = vld [vmem:[%s9 + $0xdd8] sm:$0xff]
      %v4295 = vld [vmem:[%s9 + $0xde0] sm:$0xff]
      %v4296 = vld [vmem:[%s9 + $0xde8] sm:$0xff]
      %v4297 = vld [vmem:[%s9 + $0xdf0] sm:$0xff]
      %v4298 = vld [vmem:[%s9 + $0xdf8] sm:$0xff]
      %v4299 = vld [vmem:[%s9 + $0xe00] sm:$0xff]
      %v4300 = vld [vmem:[%s9 + $0xe08] sm:$0xff]
      %v4301 = vld [vmem:[%s9 + $0xe10] sm:$0xff]
      %v4302 = vld [vmem:[%s9 + $0xe18] sm:$0xff]
      %v4303 = vld [vmem:[%s9 + $0xe20] sm:$0xff]
      %v4304 = vld [vmem:[%s9 + $0xe28] sm:$0xff]
      %v4305 = vld [vmem:[%s9 + $0xe30] sm:$0xff]
      %v4306 = vld [vmem:[%s9 + $0xe38] sm:$0xff]
      %v4315 = vrot.slane %v4185, 3
      %v4316 = vrot.slane %v4189, 3
      %v4317 = vsel %vm1162, %v4315, %v4316
      %v4318 = vrot.slane %v4186, 3
      %v4319 = vrot.slane %v4190, 3
      %v4320 = vsel %vm1162, %v4318, %v4319
      %v4321 = vrot.slane %v4187, 3
      %v4322 = vrot.slane %v4191, 3
      %v4323 = vsel %vm1162, %v4321, %v4322
      %v4324 = vrot.slane %v4188, 3
      %v4325 = vrot.slane %v4192, 3
      %v4326 = vsel %vm1162, %v4324, %v4325
      %v4333 = vsel %vm704, %v4326, 0
      %v4335 = vsel %vm704, %v4325, 0
      %4337 = vmatpush.msra.mxu0 %v4223
      %4338 = vmatpush.msra.mxu0 %v4221
      %4339 = vmatpush.msra.mxu0 %v4219
      %4340 = vmatpush.msra.mxu0 %v4217
      %4341 = vmatpush.msra.mxu0 %v4215
      %4342 = vmatpush.msra.mxu0 %v4213
      %4343 = vmatpush.msra.mxu0 %v4211
      %4344 = vmatpush.msra.mxu0 %v4209
      %4345 = vmatpush.msra.mxu0 %v4207
      %4346 = vmatpush.msra.mxu0 %v4205
      %4347 = vmatpush.msra.mxu0 %v4203
      %4348 = vmatpush.msra.mxu0 %v4201
      %4349 = vmatpush.msra.mxu0 %v4199
      %4350 = vmatpush.msra.mxu0 %v4197
      %4351 = vmatpush.msra.mxu0 %v4195
      %4352 = vmatpush.msra.mxu0 %v4193
      %4353 = vmatmul.f32.gmra.mxu0 %v4317
      %v4354 = vpop.f32.mrf.mxu0
      %v4355 = vadd.f32 0.0, %v4354
      %4356 = vmatmul.f32.gmra.mxu0 %v4316
      %v4357 = vpop.f32.mrf.mxu0
      %v4358 = vadd.f32 0.0, %v4357
      %4359 = vdwg.mxu0
      %4360 = vmatpush.msra.mxu0 %v4255
      %4361 = vmatpush.msra.mxu0 %v4253
      %4362 = vmatpush.msra.mxu0 %v4251
      %4363 = vmatpush.msra.mxu0 %v4249
      %4364 = vmatpush.msra.mxu0 %v4247
      %4365 = vmatpush.msra.mxu0 %v4245
      %4366 = vmatpush.msra.mxu0 %v4243
      %4367 = vmatpush.msra.mxu0 %v4241
      %4368 = vmatpush.msra.mxu0 %v4239
      %4369 = vmatpush.msra.mxu0 %v4237
      %4370 = vmatpush.msra.mxu0 %v4235
      %4371 = vmatpush.msra.mxu0 %v4233
      %4372 = vmatpush.msra.mxu0 %v4231
      %4373 = vmatpush.msra.mxu0 %v4229
      %4374 = vmatpush.msra.mxu0 %v4227
      %4375 = vmatpush.msra.mxu0 %v4225
      %4376 = vmatmul.f32.gmra.mxu0 %v4320
      %v4377 = vpop.f32.mrf.mxu0
      %v4378 = vadd.f32 %v4355, %v4377
      %4379 = vmatmul.f32.gmra.mxu0 %v4319
      %v4380 = vpop.f32.mrf.mxu0
      %v4381 = vadd.f32 %v4358, %v4380
      %4382 = vdwg.mxu0
      %4383 = vmatpush.msra.mxu0 %v4287
      %4384 = vmatpush.msra.mxu0 %v4285
      %4385 = vmatpush.msra.mxu0 %v4283
      %4386 = vmatpush.msra.mxu0 %v4281
      %4387 = vmatpush.msra.mxu0 %v4279
      %4388 = vmatpush.msra.mxu0 %v4277
      %4389 = vmatpush.msra.mxu0 %v4275
      %4390 = vmatpush.msra.mxu0 %v4273
      %4391 = vmatpush.msra.mxu0 %v4271
      %4392 = vmatpush.msra.mxu0 %v4269
      %4393 = vmatpush.msra.mxu0 %v4267
      %4394 = vmatpush.msra.mxu0 %v4265
      %4395 = vmatpush.msra.mxu0 %v4263
      %4396 = vmatpush.msra.mxu0 %v4261
      %4397 = vmatpush.msra.mxu0 %v4259
      %4398 = vmatpush.msra.mxu0 %v4257
      %4399 = vmatmul.f32.gmra.mxu0 %v4323
      %v4400 = vpop.f32.mrf.mxu0
      %v4401 = vadd.f32 %v4378, %v4400
      %4402 = vmatmul.f32.gmra.mxu0 %v4322
      %v4403 = vpop.f32.mrf.mxu0
      %v4404 = vadd.f32 %v4381, %v4403
      %4405 = vdwg.mxu0
      %4406 = vmatpush.msra.mxu0 0.0
      %4407 = vmatpush.msra.mxu0 0.0
      %4408 = vmatpush.msra.mxu0 0.0
      %4409 = vmatpush.msra.mxu0 0.0
      %4410 = vmatpush.msra.mxu0 0.0
      %4411 = vmatpush.msra.mxu0 0.0
      %4412 = vmatpush.msra.mxu0 0.0
      %4413 = vmatpush.msra.mxu0 %v4305
      %4414 = vmatpush.msra.mxu0 %v4303
      %4415 = vmatpush.msra.mxu0 %v4301
      %4416 = vmatpush.msra.mxu0 %v4299
      %4417 = vmatpush.msra.mxu0 %v4297
      %4418 = vmatpush.msra.mxu0 %v4295
      %4419 = vmatpush.msra.mxu0 %v4293
      %4420 = vmatpush.msra.mxu0 %v4291
      %4421 = vmatpush.msra.mxu0 %v4289
      %4422 = vmatmul.f32.gmra.mxu0 %v4333
      %v4423 = vpop.f32.mrf.mxu0
      %v4424 = vadd.f32 %v4401, %v4423
      %4425 = vmatmul.f32.gmra.mxu0 %v4335
      %v4426 = vpop.f32.mrf.mxu0
      %v4427 = vadd.f32 %v4404, %v4426
      %4428 = vdwg.mxu0
      %4429 = vmatpush.msra.mxu0 %v4224
      %4430 = vmatpush.msra.mxu0 %v4222
      %4431 = vmatpush.msra.mxu0 %v4220
      %4432 = vmatpush.msra.mxu0 %v4218
      %4433 = vmatpush.msra.mxu0 %v4216
      %4434 = vmatpush.msra.mxu0 %v4214
      %4435 = vmatpush.msra.mxu0 %v4212
      %4436 = vmatpush.msra.mxu0 %v4210
      %4437 = vmatpush.msra.mxu0 %v4208
      %4438 = vmatpush.msra.mxu0 %v4206
      %4439 = vmatpush.msra.mxu0 %v4204
      %4440 = vmatpush.msra.mxu0 %v4202
      %4441 = vmatpush.msra.mxu0 %v4200
      %4442 = vmatpush.msra.mxu0 %v4198
      %4443 = vmatpush.msra.mxu0 %v4196
      %4444 = vmatpush.msra.mxu0 %v4194
      %4445 = vmatmul.f32.gmra.mxu0 %v4317
      %v4446 = vpop.f32.mrf.mxu0
      %v4447 = vadd.f32 0.0, %v4446
      %4448 = vmatmul.f32.gmra.mxu0 %v4316
      %v4449 = vpop.f32.mrf.mxu0
      %v4450 = vadd.f32 0.0, %v4449
      %4451 = vdwg.mxu0
      %4452 = vmatpush.msra.mxu0 %v4256
      %4453 = vmatpush.msra.mxu0 %v4254
      %4454 = vmatpush.msra.mxu0 %v4252
      %4455 = vmatpush.msra.mxu0 %v4250
      %4456 = vmatpush.msra.mxu0 %v4248
      %4457 = vmatpush.msra.mxu0 %v4246
      %4458 = vmatpush.msra.mxu0 %v4244
      %4459 = vmatpush.msra.mxu0 %v4242
      %4460 = vmatpush.msra.mxu0 %v4240
      %4461 = vmatpush.msra.mxu0 %v4238
      %4462 = vmatpush.msra.mxu0 %v4236
      %4463 = vmatpush.msra.mxu0 %v4234
      %4464 = vmatpush.msra.mxu0 %v4232
      %4465 = vmatpush.msra.mxu0 %v4230
      %4466 = vmatpush.msra.mxu0 %v4228
      %4467 = vmatpush.msra.mxu0 %v4226
      %4468 = vmatmul.f32.gmra.mxu0 %v4320
      %v4469 = vpop.f32.mrf.mxu0
      %v4470 = vadd.f32 %v4447, %v4469
      %4471 = vmatmul.f32.gmra.mxu0 %v4319
      %v4472 = vpop.f32.mrf.mxu0
      %v4473 = vadd.f32 %v4450, %v4472
      %4474 = vdwg.mxu0
      %4475 = vmatpush.msra.mxu0 %v4288
      %4476 = vmatpush.msra.mxu0 %v4286
      %4477 = vmatpush.msra.mxu0 %v4284
      %4478 = vmatpush.msra.mxu0 %v4282
      %4479 = vmatpush.msra.mxu0 %v4280
      %4480 = vmatpush.msra.mxu0 %v4278
      %4481 = vmatpush.msra.mxu0 %v4276
      %4482 = vmatpush.msra.mxu0 %v4274
      %4483 = vmatpush.msra.mxu0 %v4272
      %4484 = vmatpush.msra.mxu0 %v4270
      %4485 = vmatpush.msra.mxu0 %v4268
      %4486 = vmatpush.msra.mxu0 %v4266
      %4487 = vmatpush.msra.mxu0 %v4264
      %4488 = vmatpush.msra.mxu0 %v4262
      %4489 = vmatpush.msra.mxu0 %v4260
      %4490 = vmatpush.msra.mxu0 %v4258
      %4491 = vmatmul.f32.gmra.mxu0 %v4323
      %v4492 = vpop.f32.mrf.mxu0
      %v4493 = vadd.f32 %v4470, %v4492
      %4494 = vmatmul.f32.gmra.mxu0 %v4322
      %v4495 = vpop.f32.mrf.mxu0
      %v4496 = vadd.f32 %v4473, %v4495
      %4497 = vdwg.mxu0
      %4498 = vmatpush.msra.mxu0 0.0
      %4499 = vmatpush.msra.mxu0 0.0
      %4500 = vmatpush.msra.mxu0 0.0
      %4501 = vmatpush.msra.mxu0 0.0
      %4502 = vmatpush.msra.mxu0 0.0
      %4503 = vmatpush.msra.mxu0 0.0
      %4504 = vmatpush.msra.mxu0 0.0
      %4505 = vmatpush.msra.mxu0 %v4306
      %4506 = vmatpush.msra.mxu0 %v4304
      %4507 = vmatpush.msra.mxu0 %v4302
      %4508 = vmatpush.msra.mxu0 %v4300
      %4509 = vmatpush.msra.mxu0 %v4298
      %4510 = vmatpush.msra.mxu0 %v4296
      %4511 = vmatpush.msra.mxu0 %v4294
      %4512 = vmatpush.msra.mxu0 %v4292
      %4513 = vmatpush.msra.mxu0 %v4290
      %4514 = vmatmul.f32.gmra.mxu0 %v4333
      %v4515 = vpop.f32.mrf.mxu0
      %v4516 = vadd.f32 %v4493, %v4515
      %4517 = vmatmul.f32.gmra.mxu0 %v4335
      %v4518 = vpop.f32.mrf.mxu0
      %v4519 = vadd.f32 %v4496, %v4518
      %4520 = vdwg.mxu0
      %v4521 = vadd.f32 %v4181, %v4424
      %v4522 = vadd.f32 %v4182, %v4516
      %v4523 = vadd.f32 %v4183, %v4427
      %v4524 = vadd.f32 %v4184, %v4519
      %v4525 = vld [vmem:[%s543] sm:$0xf0]
      %v4526 = vld [vmem:[%s543 + $0x8] sm:$0xf0]
      %v4527 = vld [vmem:[%s543 + $0x10] sm:$0xf0]
      %v4528 = vld [vmem:[%s543 + $0x18] sm:$0xf0]
      %v4529 = vld [vmem:[%s543 + $0x20] sm:$0xff]
      %v4530 = vld [vmem:[%s543 + $0x28] sm:$0xff]
      %v4531 = vld [vmem:[%s543 + $0x30] sm:$0xff]
      %v4532 = vld [vmem:[%s543 + $0x38] sm:$0xff]
      %v4533 = vld [vmem:[%s9 + $0xe40] sm:$0xff]
      %v4534 = vld [vmem:[%s9 + $0xe48] sm:$0xff]
      %v4535 = vld [vmem:[%s9 + $0xe50] sm:$0xff]
      %v4536 = vld [vmem:[%s9 + $0xe58] sm:$0xff]
      %v4537 = vld [vmem:[%s9 + $0xe60] sm:$0xff]
      %v4538 = vld [vmem:[%s9 + $0xe68] sm:$0xff]
      %v4539 = vld [vmem:[%s9 + $0xe70] sm:$0xff]
      %v4540 = vld [vmem:[%s9 + $0xe78] sm:$0xff]
      %v4541 = vld [vmem:[%s9 + $0xe80] sm:$0xff]
      %v4542 = vld [vmem:[%s9 + $0xe88] sm:$0xff]
      %v4543 = vld [vmem:[%s9 + $0xe90] sm:$0xff]
      %v4544 = vld [vmem:[%s9 + $0xe98] sm:$0xff]
      %v4545 = vld [vmem:[%s9 + $0xea0] sm:$0xff]
      %v4546 = vld [vmem:[%s9 + $0xea8] sm:$0xff]
      %v4547 = vld [vmem:[%s9 + $0xeb0] sm:$0xff]
      %v4548 = vld [vmem:[%s9 + $0xeb8] sm:$0xff]
      %v4549 = vld [vmem:[%s9 + $0xec0] sm:$0xff]
      %v4550 = vld [vmem:[%s9 + $0xec8] sm:$0xff]
      %v4551 = vld [vmem:[%s9 + $0xed0] sm:$0xff]
      %v4552 = vld [vmem:[%s9 + $0xed8] sm:$0xff]
      %v4553 = vld [vmem:[%s9 + $0xee0] sm:$0xff]
      %v4554 = vld [vmem:[%s9 + $0xee8] sm:$0xff]
      %v4555 = vld [vmem:[%s9 + $0xef0] sm:$0xff]
      %v4556 = vld [vmem:[%s9 + $0xef8] sm:$0xff]
      %v4557 = vld [vmem:[%s9 + $0xf00] sm:$0xff]
      %v4558 = vld [vmem:[%s9 + $0xf08] sm:$0xff]
      %v4559 = vld [vmem:[%s9 + $0xf10] sm:$0xff]
      %v4560 = vld [vmem:[%s9 + $0xf18] sm:$0xff]
      %v4561 = vld [vmem:[%s9 + $0xf20] sm:$0xff]
      %v4562 = vld [vmem:[%s9 + $0xf28] sm:$0xff]
      %v4563 = vld [vmem:[%s9 + $0xf30] sm:$0xff]
      %v4564 = vld [vmem:[%s9 + $0xf38] sm:$0xff]
      %v4565 = vld [vmem:[%s9 + $0xf40] sm:$0xff]
      %v4566 = vld [vmem:[%s9 + $0xf48] sm:$0xff]
      %v4567 = vld [vmem:[%s9 + $0xf50] sm:$0xff]
      %v4568 = vld [vmem:[%s9 + $0xf58] sm:$0xff]
      %v4569 = vld [vmem:[%s9 + $0xf60] sm:$0xff]
      %v4570 = vld [vmem:[%s9 + $0xf68] sm:$0xff]
      %v4571 = vld [vmem:[%s9 + $0xf70] sm:$0xff]
      %v4572 = vld [vmem:[%s9 + $0xf78] sm:$0xff]
      %v4573 = vld [vmem:[%s9 + $0xf80] sm:$0xff]
      %v4574 = vld [vmem:[%s9 + $0xf88] sm:$0xff]
      %v4575 = vld [vmem:[%s9 + $0xf90] sm:$0xff]
      %v4576 = vld [vmem:[%s9 + $0xf98] sm:$0xff]
      %v4577 = vld [vmem:[%s9 + $0xfa0] sm:$0xff]
      %v4578 = vld [vmem:[%s9 + $0xfa8] sm:$0xff]
      %v4579 = vld [vmem:[%s9 + $0xfb0] sm:$0xff]
      %v4580 = vld [vmem:[%s9 + $0xfb8] sm:$0xff]
      %v4581 = vld [vmem:[%s9 + $0xfc0] sm:$0xff]
      %v4582 = vld [vmem:[%s9 + $0xfc8] sm:$0xff]
      %v4583 = vld [vmem:[%s9 + $0xfd0] sm:$0xff]
      %v4584 = vld [vmem:[%s9 + $0xfd8] sm:$0xff]
      %v4585 = vld [vmem:[%s9 + $0xfe0] sm:$0xff]
      %v4586 = vld [vmem:[%s9 + $0xfe8] sm:$0xff]
      %v4587 = vld [vmem:[%s9 + $0xff0] sm:$0xff]
      %v4588 = vld [vmem:[%s9 + $0xff8] sm:$0xff]
      %v4589 = vld [vmem:[%s9 + $0x1000] sm:$0xff]
      %v4590 = vld [vmem:[%s9 + $0x1008] sm:$0xff]
      %v4591 = vld [vmem:[%s9 + $0x1010] sm:$0xff]
      %v4592 = vld [vmem:[%s9 + $0x1018] sm:$0xff]
      %v4593 = vld [vmem:[%s9 + $0x1020] sm:$0xff]
      %v4594 = vld [vmem:[%s9 + $0x1028] sm:$0xff]
      %v4595 = vld [vmem:[%s9 + $0x1030] sm:$0xff]
      %v4596 = vld [vmem:[%s9 + $0x1038] sm:$0xff]
      %v4597 = vld [vmem:[%s9 + $0x1040] sm:$0xff]
      %v4598 = vld [vmem:[%s9 + $0x1048] sm:$0xff]
      %v4599 = vld [vmem:[%s9 + $0x1050] sm:$0xff]
      %v4600 = vld [vmem:[%s9 + $0x1058] sm:$0xff]
      %v4601 = vld [vmem:[%s9 + $0x1060] sm:$0xff]
      %v4602 = vld [vmem:[%s9 + $0x1068] sm:$0xff]
      %v4603 = vld [vmem:[%s9 + $0x1070] sm:$0xff]
      %v4604 = vld [vmem:[%s9 + $0x1078] sm:$0xff]
      %v4605 = vld [vmem:[%s9 + $0x1080] sm:$0xff]
      %v4606 = vld [vmem:[%s9 + $0x1088] sm:$0xff]
      %v4607 = vld [vmem:[%s9 + $0x1090] sm:$0xff]
      %v4608 = vld [vmem:[%s9 + $0x1098] sm:$0xff]
      %v4609 = vld [vmem:[%s9 + $0x10a0] sm:$0xff]
      %v4610 = vld [vmem:[%s9 + $0x10a8] sm:$0xff]
      %v4611 = vld [vmem:[%s9 + $0x10b0] sm:$0xff]
      %v4612 = vld [vmem:[%s9 + $0x10b8] sm:$0xff]
      %v4613 = vld [vmem:[%s9 + $0x10c0] sm:$0xff]
      %v4614 = vld [vmem:[%s9 + $0x10c8] sm:$0xff]
      %v4615 = vld [vmem:[%s9 + $0x10d0] sm:$0xff]
      %v4616 = vld [vmem:[%s9 + $0x10d8] sm:$0xff]
      %v4617 = vld [vmem:[%s9 + $0x10e0] sm:$0xff]
      %v4618 = vld [vmem:[%s9 + $0x10e8] sm:$0xff]
      %v4619 = vld [vmem:[%s9 + $0x10f0] sm:$0xff]
      %v4620 = vld [vmem:[%s9 + $0x10f8] sm:$0xff]
      %v4621 = vld [vmem:[%s9 + $0x1100] sm:$0xff]
      %v4622 = vld [vmem:[%s9 + $0x1108] sm:$0xff]
      %v4623 = vld [vmem:[%s9 + $0x1110] sm:$0xff]
      %v4624 = vld [vmem:[%s9 + $0x1118] sm:$0xff]
      %v4625 = vld [vmem:[%s9 + $0x1120] sm:$0xff]
      %v4626 = vld [vmem:[%s9 + $0x1128] sm:$0xff]
      %v4627 = vld [vmem:[%s9 + $0x1130] sm:$0xff]
      %v4628 = vld [vmem:[%s9 + $0x1138] sm:$0xff]
      %v4629 = vld [vmem:[%s9 + $0x1140] sm:$0xff]
      %v4630 = vld [vmem:[%s9 + $0x1148] sm:$0xff]
      %v4631 = vld [vmem:[%s9 + $0x1150] sm:$0xff]
      %v4632 = vld [vmem:[%s9 + $0x1158] sm:$0xff]
      %v4633 = vld [vmem:[%s9 + $0x1160] sm:$0xff]
      %v4634 = vld [vmem:[%s9 + $0x1168] sm:$0xff]
      %v4635 = vld [vmem:[%s9 + $0x1170] sm:$0xff]
      %v4636 = vld [vmem:[%s9 + $0x1178] sm:$0xff]
      %v4637 = vld [vmem:[%s9 + $0x1180] sm:$0xff]
      %v4638 = vld [vmem:[%s9 + $0x1188] sm:$0xff]
      %v4639 = vld [vmem:[%s9 + $0x1190] sm:$0xff]
      %v4640 = vld [vmem:[%s9 + $0x1198] sm:$0xff]
      %v4641 = vld [vmem:[%s9 + $0x11a0] sm:$0xff]
      %v4642 = vld [vmem:[%s9 + $0x11a8] sm:$0xff]
      %v4643 = vld [vmem:[%s9 + $0x11b0] sm:$0xff]
      %v4644 = vld [vmem:[%s9 + $0x11b8] sm:$0xff]
      %v4645 = vld [vmem:[%s9 + $0x11c0] sm:$0xff]
      %v4646 = vld [vmem:[%s9 + $0x11c8] sm:$0xff]
      %v4655 = vrot.slane %v4525, 4
      %v4656 = vrot.slane %v4529, 4
      %v4657 = vsel %vm1352, %v4655, %v4656
      %v4658 = vrot.slane %v4526, 4
      %v4659 = vrot.slane %v4530, 4
      %v4660 = vsel %vm1352, %v4658, %v4659
      %v4661 = vrot.slane %v4527, 4
      %v4662 = vrot.slane %v4531, 4
      %v4663 = vsel %vm1352, %v4661, %v4662
      %v4664 = vrot.slane %v4528, 4
      %v4665 = vrot.slane %v4532, 4
      %v4666 = vsel %vm1352, %v4664, %v4665
      %v4673 = vsel %vm704, %v4666, 0
      %v4675 = vsel %vm704, %v4665, 0
      %4677 = vmatpush.msra.mxu0 %v4563
      %4678 = vmatpush.msra.mxu0 %v4561
      %4679 = vmatpush.msra.mxu0 %v4559
      %4680 = vmatpush.msra.mxu0 %v4557
      %4681 = vmatpush.msra.mxu0 %v4555
      %4682 = vmatpush.msra.mxu0 %v4553
      %4683 = vmatpush.msra.mxu0 %v4551
      %4684 = vmatpush.msra.mxu0 %v4549
      %4685 = vmatpush.msra.mxu0 %v4547
      %4686 = vmatpush.msra.mxu0 %v4545
      %4687 = vmatpush.msra.mxu0 %v4543
      %4688 = vmatpush.msra.mxu0 %v4541
      %4689 = vmatpush.msra.mxu0 %v4539
      %4690 = vmatpush.msra.mxu0 %v4537
      %4691 = vmatpush.msra.mxu0 %v4535
      %4692 = vmatpush.msra.mxu0 %v4533
      %4693 = vmatmul.f32.gmra.mxu0 %v4657
      %v4694 = vpop.f32.mrf.mxu0
      %v4695 = vadd.f32 0.0, %v4694
      %4696 = vmatmul.f32.gmra.mxu0 %v4656
      %v4697 = vpop.f32.mrf.mxu0
      %v4698 = vadd.f32 0.0, %v4697
      %4699 = vdwg.mxu0
      %4700 = vmatpush.msra.mxu0 %v4595
      %4701 = vmatpush.msra.mxu0 %v4593
      %4702 = vmatpush.msra.mxu0 %v4591
      %4703 = vmatpush.msra.mxu0 %v4589
      %4704 = vmatpush.msra.mxu0 %v4587
      %4705 = vmatpush.msra.mxu0 %v4585
      %4706 = vmatpush.msra.mxu0 %v4583
      %4707 = vmatpush.msra.mxu0 %v4581
      %4708 = vmatpush.msra.mxu0 %v4579
      %4709 = vmatpush.msra.mxu0 %v4577
      %4710 = vmatpush.msra.mxu0 %v4575
      %4711 = vmatpush.msra.mxu0 %v4573
      %4712 = vmatpush.msra.mxu0 %v4571
      %4713 = vmatpush.msra.mxu0 %v4569
      %4714 = vmatpush.msra.mxu0 %v4567
      %4715 = vmatpush.msra.mxu0 %v4565
      %4716 = vmatmul.f32.gmra.mxu0 %v4660
      %v4717 = vpop.f32.mrf.mxu0
      %v4718 = vadd.f32 %v4695, %v4717
      %4719 = vmatmul.f32.gmra.mxu0 %v4659
      %v4720 = vpop.f32.mrf.mxu0
      %v4721 = vadd.f32 %v4698, %v4720
      %4722 = vdwg.mxu0
      %4723 = vmatpush.msra.mxu0 %v4627
      %4724 = vmatpush.msra.mxu0 %v4625
      %4725 = vmatpush.msra.mxu0 %v4623
      %4726 = vmatpush.msra.mxu0 %v4621
      %4727 = vmatpush.msra.mxu0 %v4619
      %4728 = vmatpush.msra.mxu0 %v4617
      %4729 = vmatpush.msra.mxu0 %v4615
      %4730 = vmatpush.msra.mxu0 %v4613
      %4731 = vmatpush.msra.mxu0 %v4611
      %4732 = vmatpush.msra.mxu0 %v4609
      %4733 = vmatpush.msra.mxu0 %v4607
      %4734 = vmatpush.msra.mxu0 %v4605
      %4735 = vmatpush.msra.mxu0 %v4603
      %4736 = vmatpush.msra.mxu0 %v4601
      %4737 = vmatpush.msra.mxu0 %v4599
      %4738 = vmatpush.msra.mxu0 %v4597
      %4739 = vmatmul.f32.gmra.mxu0 %v4663
      %v4740 = vpop.f32.mrf.mxu0
      %v4741 = vadd.f32 %v4718, %v4740
      %4742 = vmatmul.f32.gmra.mxu0 %v4662
      %v4743 = vpop.f32.mrf.mxu0
      %v4744 = vadd.f32 %v4721, %v4743
      %4745 = vdwg.mxu0
      %4746 = vmatpush.msra.mxu0 0.0
      %4747 = vmatpush.msra.mxu0 0.0
      %4748 = vmatpush.msra.mxu0 0.0
      %4749 = vmatpush.msra.mxu0 0.0
      %4750 = vmatpush.msra.mxu0 0.0
      %4751 = vmatpush.msra.mxu0 0.0
      %4752 = vmatpush.msra.mxu0 0.0
      %4753 = vmatpush.msra.mxu0 %v4645
      %4754 = vmatpush.msra.mxu0 %v4643
      %4755 = vmatpush.msra.mxu0 %v4641
      %4756 = vmatpush.msra.mxu0 %v4639
      %4757 = vmatpush.msra.mxu0 %v4637
      %4758 = vmatpush.msra.mxu0 %v4635
      %4759 = vmatpush.msra.mxu0 %v4633
      %4760 = vmatpush.msra.mxu0 %v4631
      %4761 = vmatpush.msra.mxu0 %v4629
      %4762 = vmatmul.f32.gmra.mxu0 %v4673
      %v4763 = vpop.f32.mrf.mxu0
      %v4764 = vadd.f32 %v4741, %v4763
      %4765 = vmatmul.f32.gmra.mxu0 %v4675
      %v4766 = vpop.f32.mrf.mxu0
      %v4767 = vadd.f32 %v4744, %v4766
      %4768 = vdwg.mxu0
      %4769 = vmatpush.msra.mxu0 %v4564
      %4770 = vmatpush.msra.mxu0 %v4562
      %4771 = vmatpush.msra.mxu0 %v4560
      %4772 = vmatpush.msra.mxu0 %v4558
      %4773 = vmatpush.msra.mxu0 %v4556
      %4774 = vmatpush.msra.mxu0 %v4554
      %4775 = vmatpush.msra.mxu0 %v4552
      %4776 = vmatpush.msra.mxu0 %v4550
      %4777 = vmatpush.msra.mxu0 %v4548
      %4778 = vmatpush.msra.mxu0 %v4546
      %4779 = vmatpush.msra.mxu0 %v4544
      %4780 = vmatpush.msra.mxu0 %v4542
      %4781 = vmatpush.msra.mxu0 %v4540
      %4782 = vmatpush.msra.mxu0 %v4538
      %4783 = vmatpush.msra.mxu0 %v4536
      %4784 = vmatpush.msra.mxu0 %v4534
      %4785 = vmatmul.f32.gmra.mxu0 %v4657
      %v4786 = vpop.f32.mrf.mxu0
      %v4787 = vadd.f32 0.0, %v4786
      %4788 = vmatmul.f32.gmra.mxu0 %v4656
      %v4789 = vpop.f32.mrf.mxu0
      %v4790 = vadd.f32 0.0, %v4789
      %4791 = vdwg.mxu0
      %4792 = vmatpush.msra.mxu0 %v4596
      %4793 = vmatpush.msra.mxu0 %v4594
      %4794 = vmatpush.msra.mxu0 %v4592
      %4795 = vmatpush.msra.mxu0 %v4590
      %4796 = vmatpush.msra.mxu0 %v4588
      %4797 = vmatpush.msra.mxu0 %v4586
      %4798 = vmatpush.msra.mxu0 %v4584
      %4799 = vmatpush.msra.mxu0 %v4582
      %4800 = vmatpush.msra.mxu0 %v4580
      %4801 = vmatpush.msra.mxu0 %v4578
      %4802 = vmatpush.msra.mxu0 %v4576
      %4803 = vmatpush.msra.mxu0 %v4574
      %4804 = vmatpush.msra.mxu0 %v4572
      %4805 = vmatpush.msra.mxu0 %v4570
      %4806 = vmatpush.msra.mxu0 %v4568
      %4807 = vmatpush.msra.mxu0 %v4566
      %4808 = vmatmul.f32.gmra.mxu0 %v4660
      %v4809 = vpop.f32.mrf.mxu0
      %v4810 = vadd.f32 %v4787, %v4809
      %4811 = vmatmul.f32.gmra.mxu0 %v4659
      %v4812 = vpop.f32.mrf.mxu0
      %v4813 = vadd.f32 %v4790, %v4812
      %4814 = vdwg.mxu0
      %4815 = vmatpush.msra.mxu0 %v4628
      %4816 = vmatpush.msra.mxu0 %v4626
      %4817 = vmatpush.msra.mxu0 %v4624
      %4818 = vmatpush.msra.mxu0 %v4622
      %4819 = vmatpush.msra.mxu0 %v4620
      %4820 = vmatpush.msra.mxu0 %v4618
      %4821 = vmatpush.msra.mxu0 %v4616
      %4822 = vmatpush.msra.mxu0 %v4614
      %4823 = vmatpush.msra.mxu0 %v4612
      %4824 = vmatpush.msra.mxu0 %v4610
      %4825 = vmatpush.msra.mxu0 %v4608
      %4826 = vmatpush.msra.mxu0 %v4606
      %4827 = vmatpush.msra.mxu0 %v4604
      %4828 = vmatpush.msra.mxu0 %v4602
      %4829 = vmatpush.msra.mxu0 %v4600
      %4830 = vmatpush.msra.mxu0 %v4598
      %4831 = vmatmul.f32.gmra.mxu0 %v4663
      %v4832 = vpop.f32.mrf.mxu0
      %v4833 = vadd.f32 %v4810, %v4832
      %4834 = vmatmul.f32.gmra.mxu0 %v4662
      %v4835 = vpop.f32.mrf.mxu0
      %v4836 = vadd.f32 %v4813, %v4835
      %4837 = vdwg.mxu0
      %4838 = vmatpush.msra.mxu0 0.0
      %4839 = vmatpush.msra.mxu0 0.0
      %4840 = vmatpush.msra.mxu0 0.0
      %4841 = vmatpush.msra.mxu0 0.0
      %4842 = vmatpush.msra.mxu0 0.0
      %4843 = vmatpush.msra.mxu0 0.0
      %4844 = vmatpush.msra.mxu0 0.0
      %4845 = vmatpush.msra.mxu0 %v4646
      %4846 = vmatpush.msra.mxu0 %v4644
      %4847 = vmatpush.msra.mxu0 %v4642
      %4848 = vmatpush.msra.mxu0 %v4640
      %4849 = vmatpush.msra.mxu0 %v4638
      %4850 = vmatpush.msra.mxu0 %v4636
      %4851 = vmatpush.msra.mxu0 %v4634
      %4852 = vmatpush.msra.mxu0 %v4632
      %4853 = vmatpush.msra.mxu0 %v4630
      %4854 = vmatmul.f32.gmra.mxu0 %v4673
      %v4855 = vpop.f32.mrf.mxu0
      %v4856 = vadd.f32 %v4833, %v4855
      %4857 = vmatmul.f32.gmra.mxu0 %v4675
      %v4858 = vpop.f32.mrf.mxu0
      %v4859 = vadd.f32 %v4836, %v4858
      %4860 = vdwg.mxu0
      %v4861 = vadd.f32 %v4521, %v4764
      %v4862 = vadd.f32 %v4522, %v4856
      %v4863 = vadd.f32 %v4523, %v4767
      %v4864 = vadd.f32 %v4524, %v4859
      %v4865 = vld [vmem:[%s10] ss:$4 sm:$0x3]
      %v4867 = vperm.slane %v4865, 0
      %v4868 = vperm.slane %v4865, 1
      %v4871 = vadd.f32 %v4861, %v4867
      %v4872 = vadd.f32 %v4862, %v4868
      %v4873 = vadd.f32 %v4863, %v4867
      %v4874 = vadd.f32 %v4864, %v4868
      %v4875 = vmax.f32 %v4871, 0.0
      %v4876 = vmax.f32 %v4872, 0.0
      %v4877 = vmax.f32 %v4873, 0.0
      %v4878 = vmax.f32 %v4874, 0.0
      %s4879 = scalar_lea.vmem %s10, 1
      %v4880 = vld [vmem:[%s4879] ss:$4 sm:$0x3]
      %v4882 = vperm.slane %v4880, 0
      %v4883 = vperm.slane %v4880, 1
      %v4886 = vmul.f32 %v4875, %v4882
      %v4887 = vmul.f32 %v4876, %v4883
      %v4888 = vmul.f32 %v4877, %v4882
      %v4889 = vmul.f32 %v4878, %v4883
      %s4890 = scalar_lea.vmem %s10, 2
      %v4891 = vld [vmem:[%s4890] ss:$4 sm:$0x3]
      %v4893 = vperm.slane %v4891, 0
      %v4894 = vperm.slane %v4891, 1
      %v4897 = vadd.f32 %v4886, %v4893
      %v4898 = vadd.f32 %v4887, %v4894
      %v4899 = vadd.f32 %v4888, %v4893
      %v4900 = vadd.f32 %v4889, %v4894
      %4901 = vst [vmem:[#allocation4] sm:$0xff] %v4897
      %vm4902 = vcmask 523264
      %4903 = vst.msk [vmem:[#allocation4 + $0x8] sm:$0xff] %vm4902, %v4898
      %4904 = vst [vmem:[#allocation4 + $0x10] sm:$0xf] %v4899
      %vm4905 = vcmask 519168
      %4906 = vst.msk [vmem:[#allocation4 + $0x18] sm:$0xf] %vm4905, %v4900
      %v4907 = vld [vmem:[#allocation2] sm:$0xff]
      %v4908 = vld [vmem:[%s3] sm:$0xff]
      %v4909 = vld [vmem:[%s3 + $0x8] sm:$0xff]
      %v4910 = vld [vmem:[%s3 + $0x10] sm:$0xff]
      %v4911 = vld [vmem:[%s3 + $0x18] sm:$0xff]
      %v4912 = vld [vmem:[%s3 + $0x20] sm:$0xff]
      %v4913 = vld [vmem:[%s3 + $0x28] sm:$0xff]
      %v4914 = vld [vmem:[%s3 + $0x30] sm:$0xff]
      %v4915 = vld [vmem:[%s3 + $0x38] sm:$0xff]
      %v4916 = vld [vmem:[%s3 + $0x40] sm:$0xff]
      %v4917 = vld [vmem:[%s3 + $0x48] sm:$0xff]
      %v4918 = vld [vmem:[%s3 + $0x50] sm:$0xff]
      %v4919 = vld [vmem:[%s3 + $0x58] sm:$0xff]
      %v4920 = vld [vmem:[%s3 + $0x60] sm:$0xff]
      %v4921 = vld [vmem:[%s3 + $0x68] sm:$0xff]
      %v4922 = vld [vmem:[%s3 + $0x70] sm:$0xff]
      %v4923 = vld [vmem:[#allocation2 + $0x1] sm:$0xff]
      %v4924 = vld [vmem:[%s3 + $0x78] sm:$0xff]
      %v4925 = vld [vmem:[%s3 + $0x80] sm:$0xff]
      %v4926 = vld [vmem:[%s3 + $0x88] sm:$0xff]
      %v4927 = vld [vmem:[%s3 + $0x90] sm:$0xff]
      %v4928 = vld [vmem:[%s3 + $0x98] sm:$0xff]
      %v4929 = vld [vmem:[%s3 + $0xa0] sm:$0xff]
      %v4930 = vld [vmem:[%s3 + $0xa8] sm:$0xff]
      %v4931 = vld [vmem:[%s3 + $0xb0] sm:$0xff]
      %v4932 = vld [vmem:[%s3 + $0xb8] sm:$0xff]
      %v4933 = vld [vmem:[%s3 + $0xc0] sm:$0xff]
      %v4934 = vld [vmem:[%s3 + $0xc8] sm:$0xff]
      %v4935 = vld [vmem:[%s3 + $0xd0] sm:$0xff]
      %v4936 = vld [vmem:[%s3 + $0xd8] sm:$0xff]
      %v4937 = vld [vmem:[%s3 + $0xe0] sm:$0xff]
      %v4938 = vld [vmem:[%s3 + $0xe8] sm:$0xff]
      %v4940 = vsel %vm1483, %v4923, 0
      %4942 = vmatpush.msra.mxu0 0.0
      %4943 = vmatpush.msra.mxu0 %v4938
      %4944 = vmatpush.msra.mxu0 %v4937
      %4945 = vmatpush.msra.mxu0 %v4936
      %4946 = vmatpush.msra.mxu0 %v4935
      %4947 = vmatpush.msra.mxu0 %v4934
      %4948 = vmatpush.msra.mxu0 %v4933
      %4949 = vmatpush.msra.mxu0 %v4932
      %4950 = vmatpush.msra.mxu0 %v4931
      %4951 = vmatpush.msra.mxu0 %v4930
      %4952 = vmatpush.msra.mxu0 %v4929
      %4953 = vmatpush.msra.mxu0 %v4928
      %4954 = vmatpush.msra.mxu0 %v4927
      %4955 = vmatpush.msra.mxu0 %v4926
      %4956 = vmatpush.msra.mxu0 %v4925
      %4957 = vmatpush.msra.mxu0 %v4924
      %4958 = vmatmul.f32.gmra.mxu0 %v4940
      %v4959 = vpop.f32.mrf.mxu0
      %v4960 = vadd.f32 0.0, %v4959
      %4961 = vdwg.mxu0
      %v4963 = vsel %vm1483, %v4907, 0
      %4965 = vmatpush.msra.mxu0 0.0
      %4966 = vmatpush.msra.mxu0 %v4922
      %4967 = vmatpush.msra.mxu0 %v4921
      %4968 = vmatpush.msra.mxu0 %v4920
      %4969 = vmatpush.msra.mxu0 %v4919
      %4970 = vmatpush.msra.mxu0 %v4918
      %4971 = vmatpush.msra.mxu0 %v4917
      %4972 = vmatpush.msra.mxu0 %v4916
      %4973 = vmatpush.msra.mxu0 %v4915
      %4974 = vmatpush.msra.mxu0 %v4914
      %4975 = vmatpush.msra.mxu0 %v4913
      %4976 = vmatpush.msra.mxu0 %v4912
      %4977 = vmatpush.msra.mxu0 %v4911
      %4978 = vmatpush.msra.mxu0 %v4910
      %4979 = vmatpush.msra.mxu0 %v4909
      %4980 = vmatpush.msra.mxu0 %v4908
      %4981 = vmatmul.f32.gmra.mxu0 %v4963
      %v4982 = vpop.f32.mrf.mxu0
      %v4983 = vadd.f32 %v4960, %v4982
      %4984 = vdwg.mxu0
      %v4985 = vld [vmem:[#allocation2 + $0x2] sm:$0xff]
      %v4986 = vld [vmem:[%s3 + $0xf0] sm:$0xff]
      %v4987 = vld [vmem:[%s3 + $0xf8] sm:$0xff]
      %v4988 = vld [vmem:[%s3 + $0x100] sm:$0xff]
      %v4989 = vld [vmem:[%s3 + $0x108] sm:$0xff]
      %v4990 = vld [vmem:[%s3 + $0x110] sm:$0xff]
      %v4991 = vld [vmem:[%s3 + $0x118] sm:$0xff]
      %v4992 = vld [vmem:[%s3 + $0x120] sm:$0xff]
      %v4993 = vld [vmem:[%s3 + $0x128] sm:$0xff]
      %v4994 = vld [vmem:[%s3 + $0x130] sm:$0xff]
      %v4995 = vld [vmem:[%s3 + $0x138] sm:$0xff]
      %v4996 = vld [vmem:[%s3 + $0x140] sm:$0xff]
      %v4997 = vld [vmem:[%s3 + $0x148] sm:$0xff]
      %v4998 = vld [vmem:[%s3 + $0x150] sm:$0xff]
      %v4999 = vld [vmem:[%s3 + $0x158] sm:$0xff]
      %v5000 = vld [vmem:[%s3 + $0x160] sm:$0xff]
      %v5002 = vsel %vm1483, %v4985, 0
      %5004 = vmatpush.msra.mxu0 0.0
      %5005 = vmatpush.msra.mxu0 %v5000
      %5006 = vmatpush.msra.mxu0 %v4999
      %5007 = vmatpush.msra.mxu0 %v4998
      %5008 = vmatpush.msra.mxu0 %v4997
      %5009 = vmatpush.msra.mxu0 %v4996
      %5010 = vmatpush.msra.mxu0 %v4995
      %5011 = vmatpush.msra.mxu0 %v4994
      %5012 = vmatpush.msra.mxu0 %v4993
      %5013 = vmatpush.msra.mxu0 %v4992
      %5014 = vmatpush.msra.mxu0 %v4991
      %5015 = vmatpush.msra.mxu0 %v4990
      %5016 = vmatpush.msra.mxu0 %v4989
      %5017 = vmatpush.msra.mxu0 %v4988
      %5018 = vmatpush.msra.mxu0 %v4987
      %5019 = vmatpush.msra.mxu0 %v4986
      %5020 = vmatmul.f32.gmra.mxu0 %v5002
      %v5021 = vpop.f32.mrf.mxu0
      %v5022 = vadd.f32 0.0, %v5021
      %5023 = vdwg.mxu0
      %v5024 = vadd.f32 %v4983, %v5022
      %v5025 = vld [vmem:[#allocation2 + $0x3] sm:$0xff]
      %v5026 = vld [vmem:[%s3 + $0x168] sm:$0xff]
      %v5027 = vld [vmem:[%s3 + $0x170] sm:$0xff]
      %v5028 = vld [vmem:[%s3 + $0x178] sm:$0xff]
      %v5029 = vld [vmem:[%s3 + $0x180] sm:$0xff]
      %v5030 = vld [vmem:[%s3 + $0x188] sm:$0xff]
      %v5031 = vld [vmem:[%s3 + $0x190] sm:$0xff]
      %v5032 = vld [vmem:[%s3 + $0x198] sm:$0xff]
      %v5033 = vld [vmem:[%s3 + $0x1a0] sm:$0xff]
      %v5034 = vld [vmem:[%s3 + $0x1a8] sm:$0xff]
      %v5035 = vld [vmem:[%s3 + $0x1b0] sm:$0xff]
      %v5036 = vld [vmem:[%s3 + $0x1b8] sm:$0xff]
      %v5037 = vld [vmem:[%s3 + $0x1c0] sm:$0xff]
      %v5038 = vld [vmem:[%s3 + $0x1c8] sm:$0xff]
      %v5039 = vld [vmem:[%s3 + $0x1d0] sm:$0xff]
      %v5040 = vld [vmem:[%s3 + $0x1d8] sm:$0xff]
      %v5042 = vsel %vm1483, %v5025, 0
      %5044 = vmatpush.msra.mxu0 0.0
      %5045 = vmatpush.msra.mxu0 %v5040
      %5046 = vmatpush.msra.mxu0 %v5039
      %5047 = vmatpush.msra.mxu0 %v5038
      %5048 = vmatpush.msra.mxu0 %v5037
      %5049 = vmatpush.msra.mxu0 %v5036
      %5050 = vmatpush.msra.mxu0 %v5035
      %5051 = vmatpush.msra.mxu0 %v5034
      %5052 = vmatpush.msra.mxu0 %v5033
      %5053 = vmatpush.msra.mxu0 %v5032
      %5054 = vmatpush.msra.mxu0 %v5031
      %5055 = vmatpush.msra.mxu0 %v5030
      %5056 = vmatpush.msra.mxu0 %v5029
      %5057 = vmatpush.msra.mxu0 %v5028
      %5058 = vmatpush.msra.mxu0 %v5027
      %5059 = vmatpush.msra.mxu0 %v5026
      %5060 = vmatmul.f32.gmra.mxu0 %v5042
      %v5061 = vpop.f32.mrf.mxu0
      %v5062 = vadd.f32 0.0, %v5061
      %5063 = vdwg.mxu0
      %v5064 = vadd.f32 %v5024, %v5062
      %v5065 = vld [vmem:[#allocation2 + $0x4] sm:$0xff]
      %v5066 = vld [vmem:[%s3 + $0x1e0] sm:$0xff]
      %v5067 = vld [vmem:[%s3 + $0x1e8] sm:$0xff]
      %v5068 = vld [vmem:[%s3 + $0x1f0] sm:$0xff]
      %v5069 = vld [vmem:[%s3 + $0x1f8] sm:$0xff]
      %v5070 = vld [vmem:[%s3 + $0x200] sm:$0xff]
      %v5071 = vld [vmem:[%s3 + $0x208] sm:$0xff]
      %v5072 = vld [vmem:[%s3 + $0x210] sm:$0xff]
      %v5073 = vld [vmem:[%s3 + $0x218] sm:$0xff]
      %v5074 = vld [vmem:[%s3 + $0x220] sm:$0xff]
      %v5075 = vld [vmem:[%s3 + $0x228] sm:$0xff]
      %v5076 = vld [vmem:[%s3 + $0x230] sm:$0xff]
      %v5077 = vld [vmem:[%s3 + $0x238] sm:$0xff]
      %v5078 = vld [vmem:[%s3 + $0x240] sm:$0xff]
      %v5079 = vld [vmem:[%s3 + $0x248] sm:$0xff]
      %v5080 = vld [vmem:[%s3 + $0x250] sm:$0xff]
      %v5082 = vsel %vm1483, %v5065, 0
      %5084 = vmatpush.msra.mxu0 0.0
      %5085 = vmatpush.msra.mxu0 %v5080
      %5086 = vmatpush.msra.mxu0 %v5079
      %5087 = vmatpush.msra.mxu0 %v5078
      %5088 = vmatpush.msra.mxu0 %v5077
      %5089 = vmatpush.msra.mxu0 %v5076
      %5090 = vmatpush.msra.mxu0 %v5075
      %5091 = vmatpush.msra.mxu0 %v5074
      %5092 = vmatpush.msra.mxu0 %v5073
      %5093 = vmatpush.msra.mxu0 %v5072
      %5094 = vmatpush.msra.mxu0 %v5071
      %5095 = vmatpush.msra.mxu0 %v5070
      %5096 = vmatpush.msra.mxu0 %v5069
      %5097 = vmatpush.msra.mxu0 %v5068
      %5098 = vmatpush.msra.mxu0 %v5067
      %5099 = vmatpush.msra.mxu0 %v5066
      %5100 = vmatmul.f32.gmra.mxu0 %v5082
      %v5101 = vpop.f32.mrf.mxu0
      %v5102 = vadd.f32 0.0, %v5101
      %5103 = vdwg.mxu0
      %v5104 = vadd.f32 %v5064, %v5102
      %v5105 = vld [vmem:[%s4] sm:$0x1]
      %v5106 = vperm.slane %v5105, 0
      %v5107 = vadd.f32 %v5104, %v5106
      %v5108 = vmax.f32 %v5107, 0.0
      %v5109 = vld [vmem:[%s4 + $0x1] sm:$0x1]
      %v5110 = vperm.slane %v5109, 0
      %v5111 = vmul.f32 %v5108, %v5110
      %v5112 = vld [vmem:[%s4 + $0x2] sm:$0x1]
      %v5113 = vperm.slane %v5112, 0
      %v5114 = vadd.f32 %v5111, %v5113
      %v5115 = vld [vmem:[#allocation3] sm:$0xff]
      %v5116 = vld [vmem:[#allocation3 + $0x8] sm:$0xff]
      %v5117 = vld [vmem:[%s7] sm:$0xff]
      %v5118 = vld [vmem:[%s7 + $0x8] sm:$0xff]
      %v5119 = vld [vmem:[%s7 + $0x10] sm:$0xff]
      %v5120 = vld [vmem:[%s7 + $0x18] sm:$0xff]
      %v5121 = vld [vmem:[%s7 + $0x20] sm:$0xff]
      %v5122 = vld [vmem:[%s7 + $0x28] sm:$0xff]
      %v5123 = vld [vmem:[%s7 + $0x30] sm:$0xff]
      %v5124 = vld [vmem:[%s7 + $0x38] sm:$0xff]
      %v5125 = vld [vmem:[%s7 + $0x40] sm:$0xff]
      %v5126 = vld [vmem:[%s7 + $0x48] sm:$0xff]
      %v5127 = vld [vmem:[%s7 + $0x50] sm:$0xff]
      %v5128 = vld [vmem:[%s7 + $0x58] sm:$0xff]
      %v5129 = vld [vmem:[%s7 + $0x60] sm:$0xff]
      %v5130 = vld [vmem:[%s7 + $0x68] sm:$0xff]
      %v5131 = vld [vmem:[%s7 + $0x70] sm:$0xff]
      %v5132 = vld [vmem:[%s7 + $0x78] sm:$0xff]
      %v5133 = vld [vmem:[%s7 + $0x80] sm:$0xff]
      %v5134 = vld [vmem:[%s7 + $0x88] sm:$0xff]
      %v5135 = vld [vmem:[%s7 + $0x90] sm:$0xff]
      %v5136 = vld [vmem:[%s7 + $0x98] sm:$0xff]
      %v5137 = vld [vmem:[#allocation3] sm:$0xfe]
      %v5138 = vld [vmem:[#allocation3 + $0x8] sm:$0xfe]
      %v5139 = vld [vmem:[#allocation3 + $0x10] sm:$0x1]
      %v5140 = vld [vmem:[#allocation3 + $0x18] sm:$0x1]
      %v5141 = vld [vmem:[%s7 + $0xa0] sm:$0xff]
      %v5142 = vld [vmem:[%s7 + $0xa8] sm:$0xff]
      %v5143 = vld [vmem:[%s7 + $0xb0] sm:$0xff]
      %v5144 = vld [vmem:[%s7 + $0xb8] sm:$0xff]
      %v5145 = vld [vmem:[%s7 + $0xc0] sm:$0xff]
      %v5146 = vld [vmem:[%s7 + $0xc8] sm:$0xff]
      %v5147 = vld [vmem:[%s7 + $0xd0] sm:$0xff]
      %v5148 = vld [vmem:[%s7 + $0xd8] sm:$0xff]
      %v5149 = vld [vmem:[%s7 + $0xe0] sm:$0xff]
      %v5150 = vld [vmem:[%s7 + $0xe8] sm:$0xff]
      %v5151 = vld [vmem:[%s7 + $0xf0] sm:$0xff]
      %v5152 = vld [vmem:[%s7 + $0xf8] sm:$0xff]
      %v5153 = vld [vmem:[%s7 + $0x100] sm:$0xff]
      %v5154 = vld [vmem:[%s7 + $0x108] sm:$0xff]
      %v5155 = vld [vmem:[%s7 + $0x110] sm:$0xff]
      %v5156 = vld [vmem:[%s7 + $0x118] sm:$0xff]
      %v5157 = vld [vmem:[%s7 + $0x120] sm:$0xff]
      %v5158 = vld [vmem:[%s7 + $0x128] sm:$0xff]
      %v5159 = vld [vmem:[%s7 + $0x130] sm:$0xff]
      %v5160 = vld [vmem:[%s7 + $0x138] sm:$0xff]
      %v5165 = vrot.slane %v5137, 1
      %v5166 = vrot.slane %v5139, 1
      %v5167 = vsel %vm685, %v5165, %v5166
      %v5168 = vrot.slane %v5138, 1
      %v5169 = vrot.slane %v5140, 1
      %v5170 = vsel %vm685, %v5168, %v5169
      %v5172 = vsel %vm3192, %v5170, 0
      %5174 = vmatpush.msra.mxu0 %v5156
      %5175 = vmatpush.msra.mxu0 %v5155
      %5176 = vmatpush.msra.mxu0 %v5154
      %5177 = vmatpush.msra.mxu0 %v5153
      %5178 = vmatpush.msra.mxu0 %v5152
      %5179 = vmatpush.msra.mxu0 %v5151
      %5180 = vmatpush.msra.mxu0 %v5150
      %5181 = vmatpush.msra.mxu0 %v5149
      %5182 = vmatpush.msra.mxu0 %v5148
      %5183 = vmatpush.msra.mxu0 %v5147
      %5184 = vmatpush.msra.mxu0 %v5146
      %5185 = vmatpush.msra.mxu0 %v5145
      %5186 = vmatpush.msra.mxu0 %v5144
      %5187 = vmatpush.msra.mxu0 %v5143
      %5188 = vmatpush.msra.mxu0 %v5142
      %5189 = vmatpush.msra.mxu0 %v5141
      %5190 = vmatmul.f32.gmra.mxu0 %v5167
      %v5191 = vpop.f32.mrf.mxu0
      %v5192 = vadd.f32 0.0, %v5191
      %5193 = vdwg.mxu0
      %5194 = vmatpush.msra.mxu0 0.0
      %5195 = vmatpush.msra.mxu0 0.0
      %5196 = vmatpush.msra.mxu0 0.0
      %5197 = vmatpush.msra.mxu0 0.0
      %5198 = vmatpush.msra.mxu0 0.0
      %5199 = vmatpush.msra.mxu0 0.0
      %5200 = vmatpush.msra.mxu0 0.0
      %5201 = vmatpush.msra.mxu0 0.0
      %5202 = vmatpush.msra.mxu0 0.0
      %5203 = vmatpush.msra.mxu0 0.0
      %5204 = vmatpush.msra.mxu0 0.0
      %5205 = vmatpush.msra.mxu0 0.0
      %5206 = vmatpush.msra.mxu0 %v5160
      %5207 = vmatpush.msra.mxu0 %v5159
      %5208 = vmatpush.msra.mxu0 %v5158
      %5209 = vmatpush.msra.mxu0 %v5157
      %5210 = vmatmul.f32.gmra.mxu0 %v5172
      %v5211 = vpop.f32.mrf.mxu0
      %v5212 = vadd.f32 %v5192, %v5211
      %5213 = vdwg.mxu0
      %v5215 = vsel %vm3192, %v5116, 0
      %5217 = vmatpush.msra.mxu0 %v5132
      %5218 = vmatpush.msra.mxu0 %v5131
      %5219 = vmatpush.msra.mxu0 %v5130
      %5220 = vmatpush.msra.mxu0 %v5129
      %5221 = vmatpush.msra.mxu0 %v5128
      %5222 = vmatpush.msra.mxu0 %v5127
      %5223 = vmatpush.msra.mxu0 %v5126
      %5224 = vmatpush.msra.mxu0 %v5125
      %5225 = vmatpush.msra.mxu0 %v5124
      %5226 = vmatpush.msra.mxu0 %v5123
      %5227 = vmatpush.msra.mxu0 %v5122
      %5228 = vmatpush.msra.mxu0 %v5121
      %5229 = vmatpush.msra.mxu0 %v5120
      %5230 = vmatpush.msra.mxu0 %v5119
      %5231 = vmatpush.msra.mxu0 %v5118
      %5232 = vmatpush.msra.mxu0 %v5117
      %5233 = vmatmul.f32.gmra.mxu0 %v5115
      %v5234 = vpop.f32.mrf.mxu0
      %v5235 = vadd.f32 %v5212, %v5234
      %5236 = vdwg.mxu0
      %5237 = vmatpush.msra.mxu0 0.0
      %5238 = vmatpush.msra.mxu0 0.0
      %5239 = vmatpush.msra.mxu0 0.0
      %5240 = vmatpush.msra.mxu0 0.0
      %5241 = vmatpush.msra.mxu0 0.0
      %5242 = vmatpush.msra.mxu0 0.0
      %5243 = vmatpush.msra.mxu0 0.0
      %5244 = vmatpush.msra.mxu0 0.0
      %5245 = vmatpush.msra.mxu0 0.0
      %5246 = vmatpush.msra.mxu0 0.0
      %5247 = vmatpush.msra.mxu0 0.0
      %5248 = vmatpush.msra.mxu0 0.0
      %5249 = vmatpush.msra.mxu0 %v5136
      %5250 = vmatpush.msra.mxu0 %v5135
      %5251 = vmatpush.msra.mxu0 %v5134
      %5252 = vmatpush.msra.mxu0 %v5133
      %5253 = vmatmul.f32.gmra.mxu0 %v5215
      %v5254 = vpop.f32.mrf.mxu0
      %v5255 = vadd.f32 %v5235, %v5254
      %5256 = vdwg.mxu0
      %v5257 = vld [vmem:[#allocation3] sm:$0xfc]
      %v5258 = vld [vmem:[#allocation3 + $0x8] sm:$0xfc]
      %v5259 = vld [vmem:[#allocation3 + $0x10] sm:$0x3]
      %v5260 = vld [vmem:[#allocation3 + $0x18] sm:$0x3]
      %v5261 = vld [vmem:[%s7 + $0x140] sm:$0xff]
      %v5262 = vld [vmem:[%s7 + $0x148] sm:$0xff]
      %v5263 = vld [vmem:[%s7 + $0x150] sm:$0xff]
      %v5264 = vld [vmem:[%s7 + $0x158] sm:$0xff]
      %v5265 = vld [vmem:[%s7 + $0x160] sm:$0xff]
      %v5266 = vld [vmem:[%s7 + $0x168] sm:$0xff]
      %v5267 = vld [vmem:[%s7 + $0x170] sm:$0xff]
      %v5268 = vld [vmem:[%s7 + $0x178] sm:$0xff]
      %v5269 = vld [vmem:[%s7 + $0x180] sm:$0xff]
      %v5270 = vld [vmem:[%s7 + $0x188] sm:$0xff]
      %v5271 = vld [vmem:[%s7 + $0x190] sm:$0xff]
      %v5272 = vld [vmem:[%s7 + $0x198] sm:$0xff]
      %v5273 = vld [vmem:[%s7 + $0x1a0] sm:$0xff]
      %v5274 = vld [vmem:[%s7 + $0x1a8] sm:$0xff]
      %v5275 = vld [vmem:[%s7 + $0x1b0] sm:$0xff]
      %v5276 = vld [vmem:[%s7 + $0x1b8] sm:$0xff]
      %v5277 = vld [vmem:[%s7 + $0x1c0] sm:$0xff]
      %v5278 = vld [vmem:[%s7 + $0x1c8] sm:$0xff]
      %v5279 = vld [vmem:[%s7 + $0x1d0] sm:$0xff]
      %v5280 = vld [vmem:[%s7 + $0x1d8] sm:$0xff]
      %v5285 = vrot.slane %v5257, 2
      %v5286 = vrot.slane %v5259, 2
      %v5287 = vsel %vm972, %v5285, %v5286
      %v5288 = vrot.slane %v5258, 2
      %v5289 = vrot.slane %v5260, 2
      %v5290 = vsel %vm972, %v5288, %v5289
      %v5292 = vsel %vm3192, %v5290, 0
      %5294 = vmatpush.msra.mxu0 %v5276
      %5295 = vmatpush.msra.mxu0 %v5275
      %5296 = vmatpush.msra.mxu0 %v5274
      %5297 = vmatpush.msra.mxu0 %v5273
      %5298 = vmatpush.msra.mxu0 %v5272
      %5299 = vmatpush.msra.mxu0 %v5271
      %5300 = vmatpush.msra.mxu0 %v5270
      %5301 = vmatpush.msra.mxu0 %v5269
      %5302 = vmatpush.msra.mxu0 %v5268
      %5303 = vmatpush.msra.mxu0 %v5267
      %5304 = vmatpush.msra.mxu0 %v5266
      %5305 = vmatpush.msra.mxu0 %v5265
      %5306 = vmatpush.msra.mxu0 %v5264
      %5307 = vmatpush.msra.mxu0 %v5263
      %5308 = vmatpush.msra.mxu0 %v5262
      %5309 = vmatpush.msra.mxu0 %v5261
      %5310 = vmatmul.f32.gmra.mxu0 %v5287
      %v5311 = vpop.f32.mrf.mxu0
      %v5312 = vadd.f32 0.0, %v5311
      %5313 = vdwg.mxu0
      %5314 = vmatpush.msra.mxu0 0.0
      %5315 = vmatpush.msra.mxu0 0.0
      %5316 = vmatpush.msra.mxu0 0.0
      %5317 = vmatpush.msra.mxu0 0.0
      %5318 = vmatpush.msra.mxu0 0.0
      %5319 = vmatpush.msra.mxu0 0.0
      %5320 = vmatpush.msra.mxu0 0.0
      %5321 = vmatpush.msra.mxu0 0.0
      %5322 = vmatpush.msra.mxu0 0.0
      %5323 = vmatpush.msra.mxu0 0.0
      %5324 = vmatpush.msra.mxu0 0.0
      %5325 = vmatpush.msra.mxu0 0.0
      %5326 = vmatpush.msra.mxu0 %v5280
      %5327 = vmatpush.msra.mxu0 %v5279
      %5328 = vmatpush.msra.mxu0 %v5278
      %5329 = vmatpush.msra.mxu0 %v5277
      %5330 = vmatmul.f32.gmra.mxu0 %v5292
      %v5331 = vpop.f32.mrf.mxu0
      %v5332 = vadd.f32 %v5312, %v5331
      %5333 = vdwg.mxu0
      %v5334 = vadd.f32 %v5255, %v5332
      %v5335 = vld [vmem:[#allocation3] sm:$0xf8]
      %v5336 = vld [vmem:[#allocation3 + $0x8] sm:$0xf8]
      %v5337 = vld [vmem:[#allocation3 + $0x10] sm:$0x7]
      %v5338 = vld [vmem:[#allocation3 + $0x18] sm:$0x7]
      %v5339 = vld [vmem:[%s7 + $0x1e0] sm:$0xff]
      %v5340 = vld [vmem:[%s7 + $0x1e8] sm:$0xff]
      %v5341 = vld [vmem:[%s7 + $0x1f0] sm:$0xff]
      %v5342 = vld [vmem:[%s7 + $0x1f8] sm:$0xff]
      %v5343 = vld [vmem:[%s7 + $0x200] sm:$0xff]
      %v5344 = vld [vmem:[%s7 + $0x208] sm:$0xff]
      %v5345 = vld [vmem:[%s7 + $0x210] sm:$0xff]
      %v5346 = vld [vmem:[%s7 + $0x218] sm:$0xff]
      %v5347 = vld [vmem:[%s7 + $0x220] sm:$0xff]
      %v5348 = vld [vmem:[%s7 + $0x228] sm:$0xff]
      %v5349 = vld [vmem:[%s7 + $0x230] sm:$0xff]
      %v5350 = vld [vmem:[%s7 + $0x238] sm:$0xff]
      %v5351 = vld [vmem:[%s7 + $0x240] sm:$0xff]
      %v5352 = vld [vmem:[%s7 + $0x248] sm:$0xff]
      %v5353 = vld [vmem:[%s7 + $0x250] sm:$0xff]
      %v5354 = vld [vmem:[%s7 + $0x258] sm:$0xff]
      %v5355 = vld [vmem:[%s7 + $0x260] sm:$0xff]
      %v5356 = vld [vmem:[%s7 + $0x268] sm:$0xff]
      %v5357 = vld [vmem:[%s7 + $0x270] sm:$0xff]
      %v5358 = vld [vmem:[%s7 + $0x278] sm:$0xff]
      %v5363 = vrot.slane %v5335, 3
      %v5364 = vrot.slane %v5337, 3
      %v5365 = vsel %vm1162, %v5363, %v5364
      %v5366 = vrot.slane %v5336, 3
      %v5367 = vrot.slane %v5338, 3
      %v5368 = vsel %vm1162, %v5366, %v5367
      %v5370 = vsel %vm3192, %v5368, 0
      %5372 = vmatpush.msra.mxu0 %v5354
      %5373 = vmatpush.msra.mxu0 %v5353
      %5374 = vmatpush.msra.mxu0 %v5352
      %5375 = vmatpush.msra.mxu0 %v5351
      %5376 = vmatpush.msra.mxu0 %v5350
      %5377 = vmatpush.msra.mxu0 %v5349
      %5378 = vmatpush.msra.mxu0 %v5348
      %5379 = vmatpush.msra.mxu0 %v5347
      %5380 = vmatpush.msra.mxu0 %v5346
      %5381 = vmatpush.msra.mxu0 %v5345
      %5382 = vmatpush.msra.mxu0 %v5344
      %5383 = vmatpush.msra.mxu0 %v5343
      %5384 = vmatpush.msra.mxu0 %v5342
      %5385 = vmatpush.msra.mxu0 %v5341
      %5386 = vmatpush.msra.mxu0 %v5340
      %5387 = vmatpush.msra.mxu0 %v5339
      %5388 = vmatmul.f32.gmra.mxu0 %v5365
      %v5389 = vpop.f32.mrf.mxu0
      %v5390 = vadd.f32 0.0, %v5389
      %5391 = vdwg.mxu0
      %5392 = vmatpush.msra.mxu0 0.0
      %5393 = vmatpush.msra.mxu0 0.0
      %5394 = vmatpush.msra.mxu0 0.0
      %5395 = vmatpush.msra.mxu0 0.0
      %5396 = vmatpush.msra.mxu0 0.0
      %5397 = vmatpush.msra.mxu0 0.0
      %5398 = vmatpush.msra.mxu0 0.0
      %5399 = vmatpush.msra.mxu0 0.0
      %5400 = vmatpush.msra.mxu0 0.0
      %5401 = vmatpush.msra.mxu0 0.0
      %5402 = vmatpush.msra.mxu0 0.0
      %5403 = vmatpush.msra.mxu0 0.0
      %5404 = vmatpush.msra.mxu0 %v5358
      %5405 = vmatpush.msra.mxu0 %v5357
      %5406 = vmatpush.msra.mxu0 %v5356
      %5407 = vmatpush.msra.mxu0 %v5355
      %5408 = vmatmul.f32.gmra.mxu0 %v5370
      %v5409 = vpop.f32.mrf.mxu0
      %v5410 = vadd.f32 %v5390, %v5409
      %5411 = vdwg.mxu0
      %v5412 = vadd.f32 %v5334, %v5410
      %v5413 = vld [vmem:[#allocation3] sm:$0xf0]
      %v5414 = vld [vmem:[#allocation3 + $0x8] sm:$0xf0]
      %v5415 = vld [vmem:[#allocation3 + $0x10] sm:$0xf]
      %v5416 = vld [vmem:[#allocation3 + $0x18] sm:$0xf]
      %v5417 = vld [vmem:[%s7 + $0x280] sm:$0xff]
      %v5418 = vld [vmem:[%s7 + $0x288] sm:$0xff]
      %v5419 = vld [vmem:[%s7 + $0x290] sm:$0xff]
      %v5420 = vld [vmem:[%s7 + $0x298] sm:$0xff]
      %v5421 = vld [vmem:[%s7 + $0x2a0] sm:$0xff]
      %v5422 = vld [vmem:[%s7 + $0x2a8] sm:$0xff]
      %v5423 = vld [vmem:[%s7 + $0x2b0] sm:$0xff]
      %v5424 = vld [vmem:[%s7 + $0x2b8] sm:$0xff]
      %v5425 = vld [vmem:[%s7 + $0x2c0] sm:$0xff]
      %v5426 = vld [vmem:[%s7 + $0x2c8] sm:$0xff]
      %v5427 = vld [vmem:[%s7 + $0x2d0] sm:$0xff]
      %v5428 = vld [vmem:[%s7 + $0x2d8] sm:$0xff]
      %v5429 = vld [vmem:[%s7 + $0x2e0] sm:$0xff]
      %v5430 = vld [vmem:[%s7 + $0x2e8] sm:$0xff]
      %v5431 = vld [vmem:[%s7 + $0x2f0] sm:$0xff]
      %v5432 = vld [vmem:[%s7 + $0x2f8] sm:$0xff]
      %v5433 = vld [vmem:[%s7 + $0x300] sm:$0xff]
      %v5434 = vld [vmem:[%s7 + $0x308] sm:$0xff]
      %v5435 = vld [vmem:[%s7 + $0x310] sm:$0xff]
      %v5436 = vld [vmem:[%s7 + $0x318] sm:$0xff]
      %v5441 = vrot.slane %v5413, 4
      %v5442 = vrot.slane %v5415, 4
      %v5443 = vsel %vm1352, %v5441, %v5442
      %v5444 = vrot.slane %v5414, 4
      %v5445 = vrot.slane %v5416, 4
      %v5446 = vsel %vm1352, %v5444, %v5445
      %v5448 = vsel %vm3192, %v5446, 0
      %5450 = vmatpush.msra.mxu0 %v5432
      %5451 = vmatpush.msra.mxu0 %v5431
      %5452 = vmatpush.msra.mxu0 %v5430
      %5453 = vmatpush.msra.mxu0 %v5429
      %5454 = vmatpush.msra.mxu0 %v5428
      %5455 = vmatpush.msra.mxu0 %v5427
      %5456 = vmatpush.msra.mxu0 %v5426
      %5457 = vmatpush.msra.mxu0 %v5425
      %5458 = vmatpush.msra.mxu0 %v5424
      %5459 = vmatpush.msra.mxu0 %v5423
      %5460 = vmatpush.msra.mxu0 %v5422
      %5461 = vmatpush.msra.mxu0 %v5421
      %5462 = vmatpush.msra.mxu0 %v5420
      %5463 = vmatpush.msra.mxu0 %v5419
      %5464 = vmatpush.msra.mxu0 %v5418
      %5465 = vmatpush.msra.mxu0 %v5417
      %5466 = vmatmul.f32.gmra.mxu0 %v5443
      %v5467 = vpop.f32.mrf.mxu0
      %v5468 = vadd.f32 0.0, %v5467
      %5469 = vdwg.mxu0
      %5470 = vmatpush.msra.mxu0 0.0
      %5471 = vmatpush.msra.mxu0 0.0
      %5472 = vmatpush.msra.mxu0 0.0
      %5473 = vmatpush.msra.mxu0 0.0
      %5474 = vmatpush.msra.mxu0 0.0
      %5475 = vmatpush.msra.mxu0 0.0
      %5476 = vmatpush.msra.mxu0 0.0
      %5477 = vmatpush.msra.mxu0 0.0
      %5478 = vmatpush.msra.mxu0 0.0
      %5479 = vmatpush.msra.mxu0 0.0
      %5480 = vmatpush.msra.mxu0 0.0
      %5481 = vmatpush.msra.mxu0 0.0
      %5482 = vmatpush.msra.mxu0 %v5436
      %5483 = vmatpush.msra.mxu0 %v5435
      %5484 = vmatpush.msra.mxu0 %v5434
      %5485 = vmatpush.msra.mxu0 %v5433
      %5486 = vmatmul.f32.gmra.mxu0 %v5448
      %v5487 = vpop.f32.mrf.mxu0
      %v5488 = vadd.f32 %v5468, %v5487
      %5489 = vdwg.mxu0
      %v5490 = vadd.f32 %v5412, %v5488
      %v5491 = vld [vmem:[%s8] sm:$0x1]
      %v5492 = vperm.slane %v5491, 0
      %v5493 = vadd.f32 %v5490, %v5492
      %v5494 = vmax.f32 %v5493, 0.0
      %v5495 = vld [vmem:[%s8 + $0x1] sm:$0x1]
      %v5496 = vperm.slane %v5495, 0
      %v5497 = vmul.f32 %v5494, %v5496
      %v5498 = vld [vmem:[%s8 + $0x2] sm:$0x1]
      %v5499 = vperm.slane %v5498, 0
      %v5500 = vadd.f32 %v5497, %v5499
      %v5501 = vld [vmem:[#allocation4] sm:$0xff]
      %v5502 = vld [vmem:[#allocation4 + $0x8] sm:$0xff]
      %v5503 = vld [vmem:[%s11] sm:$0xff]
      %v5504 = vld [vmem:[%s11 + $0x8] sm:$0xff]
      %v5505 = vld [vmem:[%s11 + $0x10] sm:$0xff]
      %v5506 = vld [vmem:[%s11 + $0x18] sm:$0xff]
      %v5507 = vld [vmem:[%s11 + $0x20] sm:$0xff]
      %v5508 = vld [vmem:[%s11 + $0x28] sm:$0xff]
      %v5509 = vld [vmem:[%s11 + $0x30] sm:$0xff]
      %v5510 = vld [vmem:[%s11 + $0x38] sm:$0xff]
      %v5511 = vld [vmem:[%s11 + $0x40] sm:$0xff]
      %v5512 = vld [vmem:[%s11 + $0x48] sm:$0xff]
      %v5513 = vld [vmem:[%s11 + $0x50] sm:$0xff]
      %v5514 = vld [vmem:[%s11 + $0x58] sm:$0xff]
      %v5515 = vld [vmem:[%s11 + $0x60] sm:$0xff]
      %v5516 = vld [vmem:[%s11 + $0x68] sm:$0xff]
      %v5517 = vld [vmem:[%s11 + $0x70] sm:$0xff]
      %v5518 = vld [vmem:[%s11 + $0x78] sm:$0xff]
      %v5519 = vld [vmem:[%s11 + $0x80] sm:$0xff]
      %v5520 = vld [vmem:[%s11 + $0x88] sm:$0xff]
      %v5521 = vld [vmem:[%s11 + $0x90] sm:$0xff]
      %v5522 = vld [vmem:[%s11 + $0x98] sm:$0xff]
      %v5523 = vld [vmem:[%s11 + $0xa0] sm:$0xff]
      %v5524 = vld [vmem:[%s11 + $0xa8] sm:$0xff]
      %v5525 = vld [vmem:[%s11 + $0xb0] sm:$0xff]
      %v5526 = vld [vmem:[%s11 + $0xb8] sm:$0xff]
      %v5527 = vld [vmem:[#allocation4] sm:$0xfe]
      %v5528 = vld [vmem:[#allocation4 + $0x8] sm:$0xfe]
      %v5529 = vld [vmem:[#allocation4 + $0x10] sm:$0x1]
      %v5530 = vld [vmem:[#allocation4 + $0x18] sm:$0x1]
      %v5531 = vld [vmem:[%s11 + $0xc0] sm:$0xff]
      %v5532 = vld [vmem:[%s11 + $0xc8] sm:$0xff]
      %v5533 = vld [vmem:[%s11 + $0xd0] sm:$0xff]
      %v5534 = vld [vmem:[%s11 + $0xd8] sm:$0xff]
      %v5535 = vld [vmem:[%s11 + $0xe0] sm:$0xff]
      %v5536 = vld [vmem:[%s11 + $0xe8] sm:$0xff]
      %v5537 = vld [vmem:[%s11 + $0xf0] sm:$0xff]
      %v5538 = vld [vmem:[%s11 + $0xf8] sm:$0xff]
      %v5539 = vld [vmem:[%s11 + $0x100] sm:$0xff]
      %v5540 = vld [vmem:[%s11 + $0x108] sm:$0xff]
      %v5541 = vld [vmem:[%s11 + $0x110] sm:$0xff]
      %v5542 = vld [vmem:[%s11 + $0x118] sm:$0xff]
      %v5543 = vld [vmem:[%s11 + $0x120] sm:$0xff]
      %v5544 = vld [vmem:[%s11 + $0x128] sm:$0xff]
      %v5545 = vld [vmem:[%s11 + $0x130] sm:$0xff]
      %v5546 = vld [vmem:[%s11 + $0x138] sm:$0xff]
      %v5547 = vld [vmem:[%s11 + $0x140] sm:$0xff]
      %v5548 = vld [vmem:[%s11 + $0x148] sm:$0xff]
      %v5549 = vld [vmem:[%s11 + $0x150] sm:$0xff]
      %v5550 = vld [vmem:[%s11 + $0x158] sm:$0xff]
      %v5551 = vld [vmem:[%s11 + $0x160] sm:$0xff]
      %v5552 = vld [vmem:[%s11 + $0x168] sm:$0xff]
      %v5553 = vld [vmem:[%s11 + $0x170] sm:$0xff]
      %v5554 = vld [vmem:[%s11 + $0x178] sm:$0xff]
      %v5559 = vrot.slane %v5527, 1
      %v5560 = vrot.slane %v5529, 1
      %v5561 = vsel %vm685, %v5559, %v5560
      %v5562 = vrot.slane %v5528, 1
      %v5563 = vrot.slane %v5530, 1
      %v5564 = vsel %vm685, %v5562, %v5563
      %v5566 = vsel %vm4902, %v5564, 0
      %5568 = vmatpush.msra.mxu0 %v5546
      %5569 = vmatpush.msra.mxu0 %v5545
      %5570 = vmatpush.msra.mxu0 %v5544
      %5571 = vmatpush.msra.mxu0 %v5543
      %5572 = vmatpush.msra.mxu0 %v5542
      %5573 = vmatpush.msra.mxu0 %v5541
      %5574 = vmatpush.msra.mxu0 %v5540
      %5575 = vmatpush.msra.mxu0 %v5539
      %5576 = vmatpush.msra.mxu0 %v5538
      %5577 = vmatpush.msra.mxu0 %v5537
      %5578 = vmatpush.msra.mxu0 %v5536
      %5579 = vmatpush.msra.mxu0 %v5535
      %5580 = vmatpush.msra.mxu0 %v5534
      %5581 = vmatpush.msra.mxu0 %v5533
      %5582 = vmatpush.msra.mxu0 %v5532
      %5583 = vmatpush.msra.mxu0 %v5531
      %5584 = vmatmul.f32.gmra.mxu0 %v5561
      %v5585 = vpop.f32.mrf.mxu0
      %v5586 = vadd.f32 0.0, %v5585
      %5587 = vdwg.mxu0
      %5588 = vmatpush.msra.mxu0 0.0
      %5589 = vmatpush.msra.mxu0 0.0
      %5590 = vmatpush.msra.mxu0 0.0
      %5591 = vmatpush.msra.mxu0 0.0
      %5592 = vmatpush.msra.mxu0 0.0
      %5593 = vmatpush.msra.mxu0 0.0
      %5594 = vmatpush.msra.mxu0 0.0
      %5595 = vmatpush.msra.mxu0 0.0
      %5596 = vmatpush.msra.mxu0 %v5554
      %5597 = vmatpush.msra.mxu0 %v5553
      %5598 = vmatpush.msra.mxu0 %v5552
      %5599 = vmatpush.msra.mxu0 %v5551
      %5600 = vmatpush.msra.mxu0 %v5550
      %5601 = vmatpush.msra.mxu0 %v5549
      %5602 = vmatpush.msra.mxu0 %v5548
      %5603 = vmatpush.msra.mxu0 %v5547
      %5604 = vmatmul.f32.gmra.mxu0 %v5566
      %v5605 = vpop.f32.mrf.mxu0
      %v5606 = vadd.f32 %v5586, %v5605
      %5607 = vdwg.mxu0
      %v5609 = vsel %vm4902, %v5502, 0
      %5611 = vmatpush.msra.mxu0 %v5518
      %5612 = vmatpush.msra.mxu0 %v5517
      %5613 = vmatpush.msra.mxu0 %v5516
      %5614 = vmatpush.msra.mxu0 %v5515
      %5615 = vmatpush.msra.mxu0 %v5514
      %5616 = vmatpush.msra.mxu0 %v5513
      %5617 = vmatpush.msra.mxu0 %v5512
      %5618 = vmatpush.msra.mxu0 %v5511
      %5619 = vmatpush.msra.mxu0 %v5510
      %5620 = vmatpush.msra.mxu0 %v5509
      %5621 = vmatpush.msra.mxu0 %v5508
      %5622 = vmatpush.msra.mxu0 %v5507
      %5623 = vmatpush.msra.mxu0 %v5506
      %5624 = vmatpush.msra.mxu0 %v5505
      %5625 = vmatpush.msra.mxu0 %v5504
      %5626 = vmatpush.msra.mxu0 %v5503
      %5627 = vmatmul.f32.gmra.mxu0 %v5501
      %v5628 = vpop.f32.mrf.mxu0
      %v5629 = vadd.f32 %v5606, %v5628
      %5630 = vdwg.mxu0
      %5631 = vmatpush.msra.mxu0 0.0
      %5632 = vmatpush.msra.mxu0 0.0
      %5633 = vmatpush.msra.mxu0 0.0
      %5634 = vmatpush.msra.mxu0 0.0
      %5635 = vmatpush.msra.mxu0 0.0
      %5636 = vmatpush.msra.mxu0 0.0
      %5637 = vmatpush.msra.mxu0 0.0
      %5638 = vmatpush.msra.mxu0 0.0
      %5639 = vmatpush.msra.mxu0 %v5526
      %5640 = vmatpush.msra.mxu0 %v5525
      %5641 = vmatpush.msra.mxu0 %v5524
      %5642 = vmatpush.msra.mxu0 %v5523
      %5643 = vmatpush.msra.mxu0 %v5522
      %5644 = vmatpush.msra.mxu0 %v5521
      %5645 = vmatpush.msra.mxu0 %v5520
      %5646 = vmatpush.msra.mxu0 %v5519
      %5647 = vmatmul.f32.gmra.mxu0 %v5609
      %v5648 = vpop.f32.mrf.mxu0
      %v5649 = vadd.f32 %v5629, %v5648
      %5650 = vdwg.mxu0
      %v5651 = vld [vmem:[#allocation4] sm:$0xfc]
      %v5652 = vld [vmem:[#allocation4 + $0x8] sm:$0xfc]
      %v5653 = vld [vmem:[#allocation4 + $0x10] sm:$0x3]
      %v5654 = vld [vmem:[#allocation4 + $0x18] sm:$0x3]
      %v5655 = vld [vmem:[%s11 + $0x180] sm:$0xff]
      %v5656 = vld [vmem:[%s11 + $0x188] sm:$0xff]
      %v5657 = vld [vmem:[%s11 + $0x190] sm:$0xff]
      %v5658 = vld [vmem:[%s11 + $0x198] sm:$0xff]
      %v5659 = vld [vmem:[%s11 + $0x1a0] sm:$0xff]
      %v5660 = vld [vmem:[%s11 + $0x1a8] sm:$0xff]
      %v5661 = vld [vmem:[%s11 + $0x1b0] sm:$0xff]
      %v5662 = vld [vmem:[%s11 + $0x1b8] sm:$0xff]
      %v5663 = vld [vmem:[%s11 + $0x1c0] sm:$0xff]
      %v5664 = vld [vmem:[%s11 + $0x1c8] sm:$0xff]
      %v5665 = vld [vmem:[%s11 + $0x1d0] sm:$0xff]
      %v5666 = vld [vmem:[%s11 + $0x1d8] sm:$0xff]
      %v5667 = vld [vmem:[%s11 + $0x1e0] sm:$0xff]
      %v5668 = vld [vmem:[%s11 + $0x1e8] sm:$0xff]
      %v5669 = vld [vmem:[%s11 + $0x1f0] sm:$0xff]
      %v5670 = vld [vmem:[%s11 + $0x1f8] sm:$0xff]
      %v5671 = vld [vmem:[%s11 + $0x200] sm:$0xff]
      %v5672 = vld [vmem:[%s11 + $0x208] sm:$0xff]
      %v5673 = vld [vmem:[%s11 + $0x210] sm:$0xff]
      %v5674 = vld [vmem:[%s11 + $0x218] sm:$0xff]
      %v5675 = vld [vmem:[%s11 + $0x220] sm:$0xff]
      %v5676 = vld [vmem:[%s11 + $0x228] sm:$0xff]
      %v5677 = vld [vmem:[%s11 + $0x230] sm:$0xff]
      %v5678 = vld [vmem:[%s11 + $0x238] sm:$0xff]
      %v5683 = vrot.slane %v5651, 2
      %v5684 = vrot.slane %v5653, 2
      %v5685 = vsel %vm972, %v5683, %v5684
      %v5686 = vrot.slane %v5652, 2
      %v5687 = vrot.slane %v5654, 2
      %v5688 = vsel %vm972, %v5686, %v5687
      %v5690 = vsel %vm4902, %v5688, 0
      %5692 = vmatpush.msra.mxu0 %v5670
      %5693 = vmatpush.msra.mxu0 %v5669
      %5694 = vmatpush.msra.mxu0 %v5668
      %5695 = vmatpush.msra.mxu0 %v5667
      %5696 = vmatpush.msra.mxu0 %v5666
      %5697 = vmatpush.msra.mxu0 %v5665
      %5698 = vmatpush.msra.mxu0 %v5664
      %5699 = vmatpush.msra.mxu0 %v5663
      %5700 = vmatpush.msra.mxu0 %v5662
      %5701 = vmatpush.msra.mxu0 %v5661
      %5702 = vmatpush.msra.mxu0 %v5660
      %5703 = vmatpush.msra.mxu0 %v5659
      %5704 = vmatpush.msra.mxu0 %v5658
      %5705 = vmatpush.msra.mxu0 %v5657
      %5706 = vmatpush.msra.mxu0 %v5656
      %5707 = vmatpush.msra.mxu0 %v5655
      %5708 = vmatmul.f32.gmra.mxu0 %v5685
      %v5709 = vpop.f32.mrf.mxu0
      %v5710 = vadd.f32 0.0, %v5709
      %5711 = vdwg.mxu0
      %5712 = vmatpush.msra.mxu0 0.0
      %5713 = vmatpush.msra.mxu0 0.0
      %5714 = vmatpush.msra.mxu0 0.0
      %5715 = vmatpush.msra.mxu0 0.0
      %5716 = vmatpush.msra.mxu0 0.0
      %5717 = vmatpush.msra.mxu0 0.0
      %5718 = vmatpush.msra.mxu0 0.0
      %5719 = vmatpush.msra.mxu0 0.0
      %5720 = vmatpush.msra.mxu0 %v5678
      %5721 = vmatpush.msra.mxu0 %v5677
      %5722 = vmatpush.msra.mxu0 %v5676
      %5723 = vmatpush.msra.mxu0 %v5675
      %5724 = vmatpush.msra.mxu0 %v5674
      %5725 = vmatpush.msra.mxu0 %v5673
      %5726 = vmatpush.msra.mxu0 %v5672
      %5727 = vmatpush.msra.mxu0 %v5671
      %5728 = vmatmul.f32.gmra.mxu0 %v5690
      %v5729 = vpop.f32.mrf.mxu0
      %v5730 = vadd.f32 %v5710, %v5729
      %5731 = vdwg.mxu0
      %v5732 = vadd.f32 %v5649, %v5730
      %v5733 = vld [vmem:[#allocation4] sm:$0xf8]
      %v5734 = vld [vmem:[#allocation4 + $0x8] sm:$0xf8]
      %v5735 = vld [vmem:[#allocation4 + $0x10] sm:$0x7]
      %v5736 = vld [vmem:[#allocation4 + $0x18] sm:$0x7]
      %v5737 = vld [vmem:[%s11 + $0x240] sm:$0xff]
      %v5738 = vld [vmem:[%s11 + $0x248] sm:$0xff]
      %v5739 = vld [vmem:[%s11 + $0x250] sm:$0xff]
      %v5740 = vld [vmem:[%s11 + $0x258] sm:$0xff]
      %v5741 = vld [vmem:[%s11 + $0x260] sm:$0xff]
      %v5742 = vld [vmem:[%s11 + $0x268] sm:$0xff]
      %v5743 = vld [vmem:[%s11 + $0x270] sm:$0xff]
      %v5744 = vld [vmem:[%s11 + $0x278] sm:$0xff]
      %v5745 = vld [vmem:[%s11 + $0x280] sm:$0xff]
      %v5746 = vld [vmem:[%s11 + $0x288] sm:$0xff]
      %v5747 = vld [vmem:[%s11 + $0x290] sm:$0xff]
      %v5748 = vld [vmem:[%s11 + $0x298] sm:$0xff]
      %v5749 = vld [vmem:[%s11 + $0x2a0] sm:$0xff]
      %v5750 = vld [vmem:[%s11 + $0x2a8] sm:$0xff]
      %v5751 = vld [vmem:[%s11 + $0x2b0] sm:$0xff]
      %v5752 = vld [vmem:[%s11 + $0x2b8] sm:$0xff]
      %v5753 = vld [vmem:[%s11 + $0x2c0] sm:$0xff]
      %v5754 = vld [vmem:[%s11 + $0x2c8] sm:$0xff]
      %v5755 = vld [vmem:[%s11 + $0x2d0] sm:$0xff]
      %v5756 = vld [vmem:[%s11 + $0x2d8] sm:$0xff]
      %v5757 = vld [vmem:[%s11 + $0x2e0] sm:$0xff]
      %v5758 = vld [vmem:[%s11 + $0x2e8] sm:$0xff]
      %v5759 = vld [vmem:[%s11 + $0x2f0] sm:$0xff]
      %v5760 = vld [vmem:[%s11 + $0x2f8] sm:$0xff]
      %v5765 = vrot.slane %v5733, 3
      %v5766 = vrot.slane %v5735, 3
      %v5767 = vsel %vm1162, %v5765, %v5766
      %v5768 = vrot.slane %v5734, 3
      %v5769 = vrot.slane %v5736, 3
      %v5770 = vsel %vm1162, %v5768, %v5769
      %v5772 = vsel %vm4902, %v5770, 0
      %5774 = vmatpush.msra.mxu0 %v5752
      %5775 = vmatpush.msra.mxu0 %v5751
      %5776 = vmatpush.msra.mxu0 %v5750
      %5777 = vmatpush.msra.mxu0 %v5749
      %5778 = vmatpush.msra.mxu0 %v5748
      %5779 = vmatpush.msra.mxu0 %v5747
      %5780 = vmatpush.msra.mxu0 %v5746
      %5781 = vmatpush.msra.mxu0 %v5745
      %5782 = vmatpush.msra.mxu0 %v5744
      %5783 = vmatpush.msra.mxu0 %v5743
      %5784 = vmatpush.msra.mxu0 %v5742
      %5785 = vmatpush.msra.mxu0 %v5741
      %5786 = vmatpush.msra.mxu0 %v5740
      %5787 = vmatpush.msra.mxu0 %v5739
      %5788 = vmatpush.msra.mxu0 %v5738
      %5789 = vmatpush.msra.mxu0 %v5737
      %5790 = vmatmul.f32.gmra.mxu0 %v5767
      %v5791 = vpop.f32.mrf.mxu0
      %v5792 = vadd.f32 0.0, %v5791
      %5793 = vdwg.mxu0
      %5794 = vmatpush.msra.mxu0 0.0
      %5795 = vmatpush.msra.mxu0 0.0
      %5796 = vmatpush.msra.mxu0 0.0
      %5797 = vmatpush.msra.mxu0 0.0
      %5798 = vmatpush.msra.mxu0 0.0
      %5799 = vmatpush.msra.mxu0 0.0
      %5800 = vmatpush.msra.mxu0 0.0
      %5801 = vmatpush.msra.mxu0 0.0
      %5802 = vmatpush.msra.mxu0 %v5760
      %5803 = vmatpush.msra.mxu0 %v5759
      %5804 = vmatpush.msra.mxu0 %v5758
      %5805 = vmatpush.msra.mxu0 %v5757
      %5806 = vmatpush.msra.mxu0 %v5756
      %5807 = vmatpush.msra.mxu0 %v5755
      %5808 = vmatpush.msra.mxu0 %v5754
      %5809 = vmatpush.msra.mxu0 %v5753
      %5810 = vmatmul.f32.gmra.mxu0 %v5772
      %v5811 = vpop.f32.mrf.mxu0
      %v5812 = vadd.f32 %v5792, %v5811
      %5813 = vdwg.mxu0
      %v5814 = vadd.f32 %v5732, %v5812
      %v5815 = vld [vmem:[#allocation4] sm:$0xf0]
      %v5816 = vld [vmem:[#allocation4 + $0x8] sm:$0xf0]
      %v5817 = vld [vmem:[#allocation4 + $0x10] sm:$0xf]
      %v5818 = vld [vmem:[#allocation4 + $0x18] sm:$0xf]
      %v5819 = vld [vmem:[%s11 + $0x300] sm:$0xff]
      %v5820 = vld [vmem:[%s11 + $0x308] sm:$0xff]
      %v5821 = vld [vmem:[%s11 + $0x310] sm:$0xff]
      %v5822 = vld [vmem:[%s11 + $0x318] sm:$0xff]
      %v5823 = vld [vmem:[%s11 + $0x320] sm:$0xff]
      %v5824 = vld [vmem:[%s11 + $0x328] sm:$0xff]
      %v5825 = vld [vmem:[%s11 + $0x330] sm:$0xff]
      %v5826 = vld [vmem:[%s11 + $0x338] sm:$0xff]
      %v5827 = vld [vmem:[%s11 + $0x340] sm:$0xff]
      %v5828 = vld [vmem:[%s11 + $0x348] sm:$0xff]
      %v5829 = vld [vmem:[%s11 + $0x350] sm:$0xff]
      %v5830 = vld [vmem:[%s11 + $0x358] sm:$0xff]
      %v5831 = vld [vmem:[%s11 + $0x360] sm:$0xff]
      %v5832 = vld [vmem:[%s11 + $0x368] sm:$0xff]
      %v5833 = vld [vmem:[%s11 + $0x370] sm:$0xff]
      %v5834 = vld [vmem:[%s11 + $0x378] sm:$0xff]
      %v5835 = vld [vmem:[%s11 + $0x380] sm:$0xff]
      %v5836 = vld [vmem:[%s11 + $0x388] sm:$0xff]
      %v5837 = vld [vmem:[%s11 + $0x390] sm:$0xff]
      %v5838 = vld [vmem:[%s11 + $0x398] sm:$0xff]
      %v5839 = vld [vmem:[%s11 + $0x3a0] sm:$0xff]
      %v5840 = vld [vmem:[%s11 + $0x3a8] sm:$0xff]
      %v5841 = vld [vmem:[%s11 + $0x3b0] sm:$0xff]
      %v5842 = vld [vmem:[%s11 + $0x3b8] sm:$0xff]
      %v5847 = vrot.slane %v5815, 4
      %v5848 = vrot.slane %v5817, 4
      %v5849 = vsel %vm1352, %v5847, %v5848
      %v5850 = vrot.slane %v5816, 4
      %v5851 = vrot.slane %v5818, 4
      %v5852 = vsel %vm1352, %v5850, %v5851
      %v5854 = vsel %vm4902, %v5852, 0
      %5856 = vmatpush.msra.mxu0 %v5834
      %5857 = vmatpush.msra.mxu0 %v5833
      %5858 = vmatpush.msra.mxu0 %v5832
      %5859 = vmatpush.msra.mxu0 %v5831
      %5860 = vmatpush.msra.mxu0 %v5830
      %5861 = vmatpush.msra.mxu0 %v5829
      %5862 = vmatpush.msra.mxu0 %v5828
      %5863 = vmatpush.msra.mxu0 %v5827
      %5864 = vmatpush.msra.mxu0 %v5826
      %5865 = vmatpush.msra.mxu0 %v5825
      %5866 = vmatpush.msra.mxu0 %v5824
      %5867 = vmatpush.msra.mxu0 %v5823
      %5868 = vmatpush.msra.mxu0 %v5822
      %5869 = vmatpush.msra.mxu0 %v5821
      %5870 = vmatpush.msra.mxu0 %v5820
      %5871 = vmatpush.msra.mxu0 %v5819
      %5872 = vmatmul.f32.gmra.mxu0 %v5849
      %v5873 = vpop.f32.mrf.mxu0
      %v5874 = vadd.f32 0.0, %v5873
      %5875 = vdwg.mxu0
      %5876 = vmatpush.msra.mxu0 0.0
      %5877 = vmatpush.msra.mxu0 0.0
      %5878 = vmatpush.msra.mxu0 0.0
      %5879 = vmatpush.msra.mxu0 0.0
      %5880 = vmatpush.msra.mxu0 0.0
      %5881 = vmatpush.msra.mxu0 0.0
      %5882 = vmatpush.msra.mxu0 0.0
      %5883 = vmatpush.msra.mxu0 0.0
      %5884 = vmatpush.msra.mxu0 %v5842
      %5885 = vmatpush.msra.mxu0 %v5841
      %5886 = vmatpush.msra.mxu0 %v5840
      %5887 = vmatpush.msra.mxu0 %v5839
      %5888 = vmatpush.msra.mxu0 %v5838
      %5889 = vmatpush.msra.mxu0 %v5837
      %5890 = vmatpush.msra.mxu0 %v5836
      %5891 = vmatpush.msra.mxu0 %v5835
      %5892 = vmatmul.f32.gmra.mxu0 %v5854
      %v5893 = vpop.f32.mrf.mxu0
      %v5894 = vadd.f32 %v5874, %v5893
      %5895 = vdwg.mxu0
      %v5896 = vadd.f32 %v5814, %v5894
      %v5897 = vld [vmem:[%s12] sm:$0x1]
      %v5898 = vperm.slane %v5897, 0
      %v5899 = vadd.f32 %v5896, %v5898
      %v5900 = vmax.f32 %v5899, 0.0
      %v5901 = vld [vmem:[%s12 + $0x1] sm:$0x1]
      %v5902 = vperm.slane %v5901, 0
      %v5903 = vmul.f32 %v5900, %v5902
      %v5904 = vld [vmem:[%s12 + $0x2] sm:$0x1]
      %v5905 = vperm.slane %v5904, 0
      %v5906 = vadd.f32 %v5903, %v5905
      %v5907 = vld [vmem:[%s13] sm:$0x1]
      %v5909 = vperm.slane %v5907, 0
      %v5911 = vmul.f32 %v5114, %v5909
      %vm5912 = vcmask 719872
      %v5913 = vsel %vm5912, %v5911, 0.0
      %5914 = vadd.xlane.f32.xlu0 %v5913
      %v5915 = vpop.xlane.xlu0 %5914
      %v5916 = vrot.slane %v5915, 4
      %v5917 = vadd.f32 %v5915, %v5916
      %v5918 = vrot.slane %v5917, 2
      %v5919 = vadd.f32 %v5917, %v5918
      %v5920 = vrot.slane %v5919, 1
      %v5921 = vadd.f32 %v5919, %v5920
      %v5922 = vld [vmem:[%s14] sm:$0x1]
      %v5924 = vperm.slane %v5922, 0
      %v5926 = vmul.f32 %v5500, %v5924
      %v5927 = vsel %vm5912, %v5926, 0.0
      %5928 = vadd.xlane.f32.xlu0 %v5927
      %v5929 = vpop.xlane.xlu0 %5928
      %v5930 = vrot.slane %v5929, 4
      %v5931 = vadd.f32 %v5929, %v5930
      %v5932 = vrot.slane %v5931, 2
      %v5933 = vadd.f32 %v5931, %v5932
      %v5934 = vrot.slane %v5933, 1
      %v5935 = vadd.f32 %v5933, %v5934
      %v5936 = vadd.f32 %v5921, %v5935
      %v5937 = vld [vmem:[%s15] sm:$0x1]
      %v5939 = vperm.slane %v5937, 0
      %v5941 = vmul.f32 %v5906, %v5939
      %vm5942 = vcmask 392192
      %v5943 = vsel %vm5942, %v5941, 0.0
      %5944 = vadd.xlane.f32.xlu0 %v5943
      %v5945 = vpop.xlane.xlu0 %5944
      %v5946 = vrot.slane %v5945, 4
      %v5947 = vadd.f32 %v5945, %v5946
      %v5948 = vrot.slane %v5947, 2
      %v5949 = vadd.f32 %v5947, %v5948
      %v5950 = vrot.slane %v5949, 1
      %v5951 = vadd.f32 %v5949, %v5950
      %v5952 = vadd.f32 %v5936, %v5951
      %v5953 = vld [vmem:[#allocation5] sm:$0x1]
      %v5954 = vadd.f32 %v5952, %v5953
      %v5955 = vsub.f32 0.0, %v5954
      %v5956 = vmul.f32 %v5955, 1.442695
      %v5957 = vpow.pop %v5956
      %v5958 = vadd.f32 %v5957, 1.0
      %v5959 = vrcp.pop %v5958
      %v5960 = vmul.f32 %v5958, %v5959
      %v5961 = vsub.f32 1.0, %v5960
      %v5962 = vmul.f32 %v5959, %v5961
      %v5963 = vadd.f32 %v5959, %v5962
      %vm5964 = vweird.f32 %v5958
      %vm5965 = vweird.f32 %v5959
      %vm5966 = vmor %vm5964, %vm5965
      %v5967 = vsel %vm5966, %v5959, %v5963
      %v5968 = vand.u32 2147483647, %v5958
      %vm5969 = vcmp.eq.f32.partialorder %v5968, 8.507059e+37
      %v5970 = vand.u32 %v5958, 2147483648
      %v5971 = vor.u32 1.1754944e-38, %v5970
      %v5972 = vsel %vm5969, %v5971, %v5967
      %v5973 = vmul.f32 1.0, %v5972
      %vm5974 = vcmask 0
      %5975 = vst.msk [vmem:[%s546] sm:$0x1] %vm5974, %v5973
      %p5976 = scmp.lt.s32.totalorder %s30, 1
      %s5977 = scalar_select %p5976, %s30, 1
      %s5978 = scalar_lea.vmem %s17, %s5977
      // Predicated region
      $region89: #{net_individual_forward.1} parent=87 // pred_check
        %p5979 = pneg %p410
      $region90: #{net_individual_forward.1} parent=87 // pred_check_branch
        %5981 = sbr.rel (%p5979) target = $region92
      $region91: #{net_individual_forward.1} parent=87 // pred_region
        _
      $region92: #{net_individual_forward.1} parent=87 // pred_fallthru
        _
    $region88: #{net_individual_forward.1} parent=5 // pred_fallthru
      _
    %p5982 = scmp.le.s32.totalorder 2, %s25
    // Predicated region
    $region93: #{net_individual_forward.1} parent=5 // pred_check
      %p5983 = pneg %p5982
    $region94: #{net_individual_forward.1} parent=5 // pred_check_branch
      %5985 = sbr.rel (%p5983) target = $region96
    $region95: #{net_individual_forward.1} parent=5 // pred_region
      %s5986 = ssub.s32 %s25, 2
      // Predicated region
      $region97: #{net_individual_forward.1} parent=95 // pred_check
        %p5987 = pneg %p416
      $region98: #{net_individual_forward.1} parent=95 // pred_check_branch
        %5989 = sbr.rel (%p5987) target = $region100
      $region99: #{net_individual_forward.1} parent=95 // pred_region
        %p5990 = scmp.lt.s32.totalorder %s31, 1
        %s5991 = scalar_select %p5990, %s31, 1
        %s5992 = scalar_lea.vmem %s17, %s5991
      $region100: #{net_individual_forward.1} parent=95 // pred_fallthru
        _
    $region96: #{net_individual_forward.1} parent=5 // pred_fallthru
      _
  $region6: #{net_individual_forward.1} parent=0 // loop_footer
    %s29 = sadd.s32 1, %s25
  $region7: #{net_individual_forward.1} parent=0 // loop_footer_branch
    %24 = sbr.rel target = $region3
  $region8: #{net_individual_forward.1} parent=0 // loop_exit
    _

</llo_original>
